<compile_context>
chip_gen: v7x
topology: tpu7x:2x2x1
jax: 0.10.0
libtpu: 0.0.40
codegen_flags: <defaults>
</compile_context>

<pallas_src>
import functools

import numpy as np
import jax
import jax.numpy as jnp
from jax import lax
from jax.experimental import pallas as pl
from jax.experimental.pallas import tpu as pltpu

BN_EPS = 1e-5


# ------------------------------ tile choosers ------------------------------ #

def _pick_block_do(Do, HoWo, N):
    """Largest D-tile whose lane width (bd*Ho*Wo) is a 128 multiple while still giving
    >= 4 parallel grid steps; falls back to the full spatial block (always legal)."""
    cands = [bd for bd in range(1, Do + 1) if Do % bd == 0 and (bd * HoWo) % 128 == 0]
    if not cands:
        return Do
    for bd in sorted(cands, reverse=True):
        if N * (Do // bd) >= 4:
            return bd
    return cands[0]


def _pick_block_m(M, N):
    cands = [c for c in (8192, 4096, 2048, 1024, 512, 256, 128) if M % c == 0]
    if not cands:
        return M
    for c in cands:
        if N * (M // c) >= 4:
            return c
    return cands[-1]


# ----------------------------- Pallas kernels ------------------------------ #

def _conv_tap_kernel(x_ref, w_ref, b_ref, out_ref, stat_ref, *,
                     taps, block_do, Ho, Wo, Cin, Cout):
    # x_ref   : (1, s^3, Dq, Hq, Wq, Cin) bf16  -- one batch's phase tensor (resident across m)
    # w_ref   : (K^3, Cout, Cin)          bf16
    # b_ref   : (Cout, 1)                 f32
    # out_ref : (1, Cout, block_do*Ho*Wo) f32   -- lane-dense output tile
    # stat_ref: (1, 1, Cout, 2)           f32   -- per-tile (sum, sumsq) for BN stats
    m = pl.program_id(1)
    mt = block_do * Ho * Wo
    acc = jnp.zeros((Cout, mt), jnp.float32)
    for t, (ph, qd, qh, qw) in enumerate(taps):
        a = x_ref[0, ph, pl.ds(m * block_do + qd, block_do),
                  qh:qh + Ho, qw:qw + Wo, :]            # (block_do, Ho, Wo, Cin) bf16
        a = a.reshape(mt, Cin)                          # lane dim (Cin) unchanged
        w_t = w_ref[t]                                  # (Cout, Cin) bf16
        # NT matmul: (Cout, Cin) x (mt, Cin)^T -> (Cout, mt), f32 accumulation on the MXU.
        acc = acc + lax.dot_general(
            w_t, a, (((1,), (1,)), ((), ())),
            preferred_element_type=jnp.float32)
    acc = acc + b_ref[...]                              # bias, broadcast over lanes
    out_ref[0] = acc
    stat_ref[0, 0] = jnp.concatenate(
        [jnp.sum(acc, axis=1, keepdims=True),
         jnp.sum(acc * acc, axis=1, keepdims=True)], axis=1)


def _bn_relu_kernel(x_ref, scale_ref, shift_ref, o_ref):
    # x_ref: (1, C, mt) f32   scale/shift: (C, 1) f32
    y = x_ref[0] * scale_ref[...] + shift_ref[...]
    o_ref[0] = jnp.maximum(y, 0.0)


# ------------------------------ conv wrapper ------------------------------- #

def conv3d_pallas(x, weight, bias, *, stride, padding, dilation=1):
    """Forward Conv3d. x: (N, Cin, D, H, W) f32, weight: (Cout, Cin, K, K, K), bias: (Cout,).
    Returns conv_out (N, Cout, Do*Ho*Wo) f32, per-tile stats (N, n_m, Cout, 2), (Do, Ho, Wo)."""
    N, Cin, D, H, W = x.shape
    Cout, Cin2, K, K2, K3 = weight.shape
    assert Cin == Cin2 and K == K2 == K3
    s, p, dl = int(stride), int(padding), int(dilation)

    def odim(L):
        return (L + 2 * p - dl * (K - 1) - 1) // s + 1

    Do, Ho, Wo = odim(D), odim(H), odim(W)
    qmax = (dl * (K - 1)) // s
    Dq, Hq, Wq = Do + qmax, Ho + qmax, Wo + qmax
    tgtD, tgtH, tgtW = s * Dq, s * Hq, s * Wq

    # NDHWC + zero padding, trimmed/extended so each stride-phase has uniform length.
    x_ndhwc = jnp.transpose(x, (0, 2, 3, 4, 1))
    x_pad = jnp.pad(x_ndhwc, ((0, 0),
                              (p, max(0, tgtD - D - p)),
                              (p, max(0, tgtH - H - p)),
                              (p, max(0, tgtW - W - p)),
                              (0, 0)))
    x_pad = x_pad[:, :tgtD, :tgtH, :tgtW, :]

    # Stride-phase (space-to-depth) rearrangement: no duplication, single layout pass.
    # x_ph[n, (rd*s+rh)*s+rw, j, k, l, c] == x_pad[n, j*s+rd, k*s+rh, l*s+rw, c]
    x_ph = x_pad.reshape(N, Dq, s, Hq, s, Wq, s, Cin)
    x_ph = jnp.transpose(x_ph, (0, 2, 4, 6, 1, 3, 5, 7)).reshape(N, s ** 3, Dq, Hq, Wq, Cin)
    x_ph = x_ph.astype(jnp.bfloat16)

    # Tap table: tap (kd,kh,kw) reads phase (rd,rh,rw) at window offset (qd,qh,qw).
    taps = []
    for kd in range(K):
        rd, qd = (kd * dl) % s, (kd * dl) // s
        for kh in range(K):
            rh, qh = (kh * dl) % s, (kh * dl) // s
            for kw in range(K):
                rw, qw = (kw * dl) % s, (kw * dl) // s
                taps.append(((rd * s + rh) * s + rw, qd, qh, qw))
    taps = tuple(taps)

    w_taps = jnp.transpose(weight, (2, 3, 4, 0, 1)).reshape(K ** 3, Cout, Cin)
    w_taps = w_taps.astype(jnp.bfloat16)
    bias2 = bias.reshape(Cout, 1).astype(jnp.float32)

    M = Do * Ho * Wo
    bd = _pick_block_do(Do, Ho * Wo, N)
    n_m = Do // bd
    mt = bd * Ho * Wo

    kernel = functools.partial(_conv_tap_kernel, taps=taps, block_do=bd,
                               Ho=Ho, Wo=Wo, Cin=Cin, Cout=Cout)

    conv_out, stats = pl.pallas_call(
        kernel,
        out_shape=(jax.ShapeDtypeStruct((N, Cout, M), jnp.float32),
                   jax.ShapeDtypeStruct((N, n_m, Cout, 2), jnp.float32)),
        grid_spec=pl.GridSpec(
            grid=(N, n_m),
            in_specs=[
                pl.BlockSpec((1, s ** 3, Dq, Hq, Wq, Cin),
                             lambda n, m: (n, 0, 0, 0, 0, 0)),
                pl.BlockSpec((K ** 3, Cout, Cin), lambda n, m: (0, 0, 0)),
                pl.BlockSpec((Cout, 1), lambda n, m: (0, 0)),
            ],
            out_specs=(
                pl.BlockSpec((1, Cout, mt), lambda n, m: (n, 0, m)),
                pl.BlockSpec((1, 1, Cout, 2), lambda n, m: (n, m, 0, 0)),
            ),
        ),
        compiler_params=pltpu.CompilerParams(
            dimension_semantics=("parallel", "parallel")),
    )(x_ph, w_taps, bias2)
    return conv_out, stats, (Do, Ho, Wo)


# -------------------------- BN (batch stats) + ReLU ------------------------ #

def batchnorm_relu_pallas(conv_out, stats, gamma, beta, eps=BN_EPS):
    N, C, M = conv_out.shape
    cnt = float(N * M)
    sums = jnp.sum(stats[..., 0], axis=(0, 1))                 # (C,)
    sqs = jnp.sum(stats[..., 1], axis=(0, 1))                  # (C,)
    mean = sums / cnt
    var = jnp.maximum(sqs / cnt - mean * mean, 0.0)            # biased var (training BN)
    scale = gamma * lax.rsqrt(var + eps)
    shift = beta - mean * scale
    scale2 = scale.reshape(C, 1).astype(jnp.float32)
    shift2 = shift.reshape(C, 1).astype(jnp.float32)

    mt = _pick_block_m(M, N)
    n_m = M // mt
    return pl.pallas_call(
        _bn_relu_kernel,
        out_shape=jax.ShapeDtypeStruct((N, C, M), jnp.float32),
        grid_spec=pl.GridSpec(
            grid=(N, n_m),
            in_specs=[pl.BlockSpec((1, C, mt), lambda n, m: (n, 0, m)),
                      pl.BlockSpec((C, 1), lambda n, m: (0, 0)),
                      pl.BlockSpec((C, 1), lambda n, m: (0, 0))],
            out_specs=pl.BlockSpec((1, C, mt), lambda n, m: (n, 0, m)),
        ),
        compiler_params=pltpu.CompilerParams(
            dimension_semantics=("parallel", "parallel")),
    )(conv_out, scale2, shift2)


# ------------------------------ forward pass ------------------------------- #

def down_block(x, params, *, stride, padding=0):
    conv_out, stats, (Do, Ho, Wo) = conv3d_pallas(
        x, params["weight"], params["bias"], stride=stride, padding=padding)
    y = batchnorm_relu_pallas(conv_out, stats, params["gamma"], params["beta"])
    N = x.shape[0]
    Cout = params["weight"].shape[0]
    return y.reshape(N, Cout, Do, Ho, Wo)                      # NCDHW via pure reshape


# ---------------------------------- main ----------------------------------- #

if __name__ == "__main__":
    key = jax.random.PRNGKey(0)
    k1, k2, k3, k4, k5 = jax.random.split(key, 5)

    N, Cin, Cout = 2, 4, 8
    D = H = W = 16
    K, stride, padding = 3, 2, 1          # classic DownBlock config: 16^3 -> 8^3

    x = jax.random.normal(k1, (N, Cin, D, H, W), jnp.float32)
    params = dict(
        weight=0.1 * jax.random.normal(k2, (Cout, Cin, K, K, K), jnp.float32),
        bias=0.1 * jax.random.normal(k3, (Cout,), jnp.float32),
        gamma=1.0 + 0.1 * jax.random.normal(k4, (Cout,), jnp.float32),
        beta=0.1 * jax.random.normal(k5, (Cout,), jnp.float32),
    )

    out = down_block(x, params, stride=stride, padding=padding)
    out = jax.block_until_ready(out)

    # Pure-JAX reference. Operands are rounded to bf16 exactly like the kernel's MXU
    # inputs, so the comparison isolates kernel correctness (f32 accumulation both sides).
    xb = x.astype(jnp.bfloat16).astype(jnp.float32)
    wb = params["weight"].astype(jnp.bfloat16).astype(jnp.float32)
    conv_ref = lax.conv_general_dilated(
        xb, wb, window_strides=(stride,) * 3, padding=[(padding, padding)] * 3,
        dimension_numbers=("NCDHW", "OIDHW", "NCDHW"),
    ) + params["bias"].reshape(1, Cout, 1, 1, 1)
    mean = jnp.mean(conv_ref, axis=(0, 2, 3, 4), keepdims=True)
    var = jnp.mean((conv_ref - mean) ** 2, axis=(0, 2, 3, 4), keepdims=True)
    y_ref = (conv_ref - mean) * lax.rsqrt(var + BN_EPS)
    y_ref = (y_ref * params["gamma"].reshape(1, Cout, 1, 1, 1)
             + params["beta"].reshape(1, Cout, 1, 1, 1))
    ref = jnp.maximum(y_ref, 0.0)

    assert out.shape == ref.shape, (out.shape, ref.shape)
    np.testing.assert_allclose(np.asarray(out), np.asarray(ref), rtol=5e-4, atol=5e-4)
    print("KERNEL_OK")
</pallas_src>

<mosaic_0001>
module attributes {stable_mosaic.version = 11 : i64} {
  func.func @_conv_tap_kernel(%arg0: i32, %arg1: i32, %arg2: memref<1x8x9x9x9x4xbf16, #tpu.memory_space<vmem>>, %arg3: memref<27x8x4xbf16, #tpu.memory_space<vmem>>, %arg4: memref<8x1xf32, #tpu.memory_space<vmem>>, %arg5: memref<1x8x256xf32, #tpu.memory_space<vmem>>, %arg6: memref<1x1x8x2xf32, #tpu.memory_space<vmem>>) attributes {dimension_semantics = [#tpu.dimension_semantics<parallel>, #tpu.dimension_semantics<parallel>], iteration_bounds = array<i64: 2, 2>, scalar_prefetch = 0 : i64, scratch_operands = 0 : i64, tpu.core_type = #tpu.core_type<tc>, window_params = [{transform_indices = @transform_0, window_bounds = array<i64: 1, 8, 9, 9, 9, 4>}, {pipeline_mode = #tpu.pipeline_mode<synchronous>, transform_indices = @transform_1, window_bounds = array<i64: 27, 8, 4>}, {pipeline_mode = #tpu.pipeline_mode<synchronous>, transform_indices = @transform_2, window_bounds = array<i64: 8, 1>}, {transform_indices = @transform_3, window_bounds = array<i64: 1, 8, 256>}, {transform_indices = @transform_4, window_bounds = array<i64: 1, 1, 8, 2>}]} {
    %cst = arith.constant 0.000000e+00 : f32
    %0 = vector.broadcast %cst : f32 to vector<8x256xf32>
    %c4_i32 = arith.constant 4 : i32
    %1 = arith.muli %arg1, %c4_i32 : i32
    %c0_i32 = arith.constant 0 : i32
    %2 = arith.addi %1, %c0_i32 : i32
    %c0 = arith.constant 0 : index
    %c0_0 = arith.constant 0 : index
    %3 = arith.index_cast %2 : i32 to index
    %c0_1 = arith.constant 0 : index
    %c0_2 = arith.constant 0 : index
    %c0_3 = arith.constant 0 : index
    %4 = vector.load %arg2[%c0, %c0_0, %3, %c0_1, %c0_2, %c0_3] : memref<1x8x9x9x9x4xbf16, #tpu.memory_space<vmem>>, vector<1x1x4x8x8x4xbf16>
    %5 = vector.shape_cast %4 : vector<1x1x4x8x8x4xbf16> to vector<4x8x8x4xbf16>
    %6 = vector.shape_cast %5 : vector<4x8x8x4xbf16> to vector<256x4xbf16>
    %c0_4 = arith.constant 0 : index
    %c0_5 = arith.constant 0 : index
    %c0_6 = arith.constant 0 : index
    %7 = vector.load %arg3[%c0_4, %c0_5, %c0_6] : memref<27x8x4xbf16, #tpu.memory_space<vmem>>, vector<1x8x4xbf16>
    %8 = vector.shape_cast %7 : vector<1x8x4xbf16> to vector<8x4xbf16>
    %cst_7 = arith.constant dense<0.000000e+00> : vector<8x256xf32>
    %9 = tpu.matmul %8, %6, %cst_7 {dimension_numbers = #tpu.dot_dimension_numbers<[1], [1], [0], [0], [0, 0, 1, 0], [], []>} : vector<8x4xbf16>, vector<256x4xbf16>, vector<8x256xf32> -> vector<8x256xf32>
    %10 = arith.addf %0, %9 : vector<8x256xf32>
    %c4_i32_8 = arith.constant 4 : i32
    %11 = arith.muli %arg1, %c4_i32_8 : i32
    %c0_i32_9 = arith.constant 0 : i32
    %12 = arith.addi %11, %c0_i32_9 : i32
    %c0_10 = arith.constant 0 : index
    %c1 = arith.constant 1 : index
    %13 = arith.index_cast %12 : i32 to index
    %c0_11 = arith.constant 0 : index
    %c0_12 = arith.constant 0 : index
    %c0_13 = arith.constant 0 : index
    %14 = vector.load %arg2[%c0_10, %c1, %13, %c0_11, %c0_12, %c0_13] : memref<1x8x9x9x9x4xbf16, #tpu.memory_space<vmem>>, vector<1x1x4x8x8x4xbf16>
    %15 = vector.shape_cast %14 : vector<1x1x4x8x8x4xbf16> to vector<4x8x8x4xbf16>
    %16 = vector.shape_cast %15 : vector<4x8x8x4xbf16> to vector<256x4xbf16>
    %c1_14 = arith.constant 1 : index
    %c0_15 = arith.constant 0 : index
    %c0_16 = arith.constant 0 : index
    %17 = vector.load %arg3[%c1_14, %c0_15, %c0_16] : memref<27x8x4xbf16, #tpu.memory_space<vmem>>, vector<1x8x4xbf16>
    %18 = vector.shape_cast %17 : vector<1x8x4xbf16> to vector<8x4xbf16>
    %cst_17 = arith.constant dense<0.000000e+00> : vector<8x256xf32>
    %19 = tpu.matmul %18, %16, %cst_17 {dimension_numbers = #tpu.dot_dimension_numbers<[1], [1], [0], [0], [0, 0, 1, 0], [], []>} : vector<8x4xbf16>, vector<256x4xbf16>, vector<8x256xf32> -> vector<8x256xf32>
    %20 = arith.addf %10, %19 : vector<8x256xf32>
    %c4_i32_18 = arith.constant 4 : i32
    %21 = arith.muli %arg1, %c4_i32_18 : i32
    %c0_i32_19 = arith.constant 0 : i32
    %22 = arith.addi %21, %c0_i32_19 : i32
    %c0_20 = arith.constant 0 : index
    %c0_21 = arith.constant 0 : index
    %23 = arith.index_cast %22 : i32 to index
    %c0_22 = arith.constant 0 : index
    %c1_23 = arith.constant 1 : index
    %c0_24 = arith.constant 0 : index
    %24 = vector.load %arg2[%c0_20, %c0_21, %23, %c0_22, %c1_23, %c0_24] : memref<1x8x9x9x9x4xbf16, #tpu.memory_space<vmem>>, vector<1x1x4x8x8x4xbf16>
    %25 = vector.shape_cast %24 : vector<1x1x4x8x8x4xbf16> to vector<4x8x8x4xbf16>
    %26 = vector.shape_cast %25 : vector<4x8x8x4xbf16> to vector<256x4xbf16>
    %c2 = arith.constant 2 : index
    %c0_25 = arith.constant 0 : index
    %c0_26 = arith.constant 0 : index
    %27 = vector.load %arg3[%c2, %c0_25, %c0_26] : memref<27x8x4xbf16, #tpu.memory_space<vmem>>, vector<1x8x4xbf16>
    %28 = vector.shape_cast %27 : vector<1x8x4xbf16> to vector<8x4xbf16>
    %cst_27 = arith.constant dense<0.000000e+00> : vector<8x256xf32>
    %29 = tpu.matmul %28, %26, %cst_27 {dimension_numbers = #tpu.dot_dimension_numbers<[1], [1], [0], [0], [0, 0, 1, 0], [], []>} : vector<8x4xbf16>, vector<256x4xbf16>, vector<8x256xf32> -> vector<8x256xf32>
    %30 = arith.addf %20, %29 : vector<8x256xf32>
    %c4_i32_28 = arith.constant 4 : i32
    %31 = arith.muli %arg1, %c4_i32_28 : i32
    %c0_i32_29 = arith.constant 0 : i32
    %32 = arith.addi %31, %c0_i32_29 : i32
    %c0_30 = arith.constant 0 : index
    %c2_31 = arith.constant 2 : index
    %33 = arith.index_cast %32 : i32 to index
    %c0_32 = arith.constant 0 : index
    %c0_33 = arith.constant 0 : index
    %c0_34 = arith.constant 0 : index
    %34 = vector.load %arg2[%c0_30, %c2_31, %33, %c0_32, %c0_33, %c0_34] : memref<1x8x9x9x9x4xbf16, #tpu.memory_space<vmem>>, vector<1x1x4x8x8x4xbf16>
    %35 = vector.shape_cast %34 : vector<1x1x4x8x8x4xbf16> to vector<4x8x8x4xbf16>
    %36 = vector.shape_cast %35 : vector<4x8x8x4xbf16> to vector<256x4xbf16>
    %c3 = arith.constant 3 : index
    %c0_35 = arith.constant 0 : index
    %c0_36 = arith.constant 0 : index
    %37 = vector.load %arg3[%c3, %c0_35, %c0_36] : memref<27x8x4xbf16, #tpu.memory_space<vmem>>, vector<1x8x4xbf16>
    %38 = vector.shape_cast %37 : vector<1x8x4xbf16> to vector<8x4xbf16>
    %cst_37 = arith.constant dense<0.000000e+00> : vector<8x256xf32>
    %39 = tpu.matmul %38, %36, %cst_37 {dimension_numbers = #tpu.dot_dimension_numbers<[1], [1], [0], [0], [0, 0, 1, 0], [], []>} : vector<8x4xbf16>, vector<256x4xbf16>, vector<8x256xf32> -> vector<8x256xf32>
    %40 = arith.addf %30, %39 : vector<8x256xf32>
    %c4_i32_38 = arith.constant 4 : i32
    %41 = arith.muli %arg1, %c4_i32_38 : i32
    %c0_i32_39 = arith.constant 0 : i32
    %42 = arith.addi %41, %c0_i32_39 : i32
    %c0_40 = arith.constant 0 : index
    %c3_41 = arith.constant 3 : index
    %43 = arith.index_cast %42 : i32 to index
    %c0_42 = arith.constant 0 : index
    %c0_43 = arith.constant 0 : index
    %c0_44 = arith.constant 0 : index
    %44 = vector.load %arg2[%c0_40, %c3_41, %43, %c0_42, %c0_43, %c0_44] : memref<1x8x9x9x9x4xbf16, #tpu.memory_space<vmem>>, vector<1x1x4x8x8x4xbf16>
    %45 = vector.shape_cast %44 : vector<1x1x4x8x8x4xbf16> to vector<4x8x8x4xbf16>
    %46 = vector.shape_cast %45 : vector<4x8x8x4xbf16> to vector<256x4xbf16>
    %c4 = arith.constant 4 : index
    %c0_45 = arith.constant 0 : index
    %c0_46 = arith.constant 0 : index
    %47 = vector.load %arg3[%c4, %c0_45, %c0_46] : memref<27x8x4xbf16, #tpu.memory_space<vmem>>, vector<1x8x4xbf16>
    %48 = vector.shape_cast %47 : vector<1x8x4xbf16> to vector<8x4xbf16>
    %cst_47 = arith.constant dense<0.000000e+00> : vector<8x256xf32>
    %49 = tpu.matmul %48, %46, %cst_47 {dimension_numbers = #tpu.dot_dimension_numbers<[1], [1], [0], [0], [0, 0, 1, 0], [], []>} : vector<8x4xbf16>, vector<256x4xbf16>, vector<8x256xf32> -> vector<8x256xf32>
    %50 = arith.addf %40, %49 : vector<8x256xf32>
    %c4_i32_48 = arith.constant 4 : i32
    %51 = arith.muli %arg1, %c4_i32_48 : i32
    %c0_i32_49 = arith.constant 0 : i32
    %52 = arith.addi %51, %c0_i32_49 : i32
    %c0_50 = arith.constant 0 : index
    %c2_51 = arith.constant 2 : index
    %53 = arith.index_cast %52 : i32 to index
    %c0_52 = arith.constant 0 : index
    %c1_53 = arith.constant 1 : index
    %c0_54 = arith.constant 0 : index
    %54 = vector.load %arg2[%c0_50, %c2_51, %53, %c0_52, %c1_53, %c0_54] : memref<1x8x9x9x9x4xbf16, #tpu.memory_space<vmem>>, vector<1x1x4x8x8x4xbf16>
    %55 = vector.shape_cast %54 : vector<1x1x4x8x8x4xbf16> to vector<4x8x8x4xbf16>
    %56 = vector.shape_cast %55 : vector<4x8x8x4xbf16> to vector<256x4xbf16>
    %c5 = arith.constant 5 : index
    %c0_55 = arith.constant 0 : index
    %c0_56 = arith.constant 0 : index
    %57 = vector.load %arg3[%c5, %c0_55, %c0_56] : memref<27x8x4xbf16, #tpu.memory_space<vmem>>, vector<1x8x4xbf16>
    %58 = vector.shape_cast %57 : vector<1x8x4xbf16> to vector<8x4xbf16>
    %cst_57 = arith.constant dense<0.000000e+00> : vector<8x256xf32>
    %59 = tpu.matmul %58, %56, %cst_57 {dimension_numbers = #tpu.dot_dimension_numbers<[1], [1], [0], [0], [0, 0, 1, 0], [], []>} : vector<8x4xbf16>, vector<256x4xbf16>, vector<8x256xf32> -> vector<8x256xf32>
    %60 = arith.addf %50, %59 : vector<8x256xf32>
    %c4_i32_58 = arith.constant 4 : i32
    %61 = arith.muli %arg1, %c4_i32_58 : i32
    %c0_i32_59 = arith.constant 0 : i32
    %62 = arith.addi %61, %c0_i32_59 : i32
    %c0_60 = arith.constant 0 : index
    %c0_61 = arith.constant 0 : index
    %63 = arith.index_cast %62 : i32 to index
    %c1_62 = arith.constant 1 : index
    %c0_63 = arith.constant 0 : index
    %c0_64 = arith.constant 0 : index
    %64 = vector.load %arg2[%c0_60, %c0_61, %63, %c1_62, %c0_63, %c0_64] : memref<1x8x9x9x9x4xbf16, #tpu.memory_space<vmem>>, vector<1x1x4x8x8x4xbf16>
    %65 = vector.shape_cast %64 : vector<1x1x4x8x8x4xbf16> to vector<4x8x8x4xbf16>
    %66 = vector.shape_cast %65 : vector<4x8x8x4xbf16> to vector<256x4xbf16>
    %c6 = arith.constant 6 : index
    %c0_65 = arith.constant 0 : index
    %c0_66 = arith.constant 0 : index
    %67 = vector.load %arg3[%c6, %c0_65, %c0_66] : memref<27x8x4xbf16, #tpu.memory_space<vmem>>, vector<1x8x4xbf16>
    %68 = vector.shape_cast %67 : vector<1x8x4xbf16> to vector<8x4xbf16>
    %cst_67 = arith.constant dense<0.000000e+00> : vector<8x256xf32>
    %69 = tpu.matmul %68, %66, %cst_67 {dimension_numbers = #tpu.dot_dimension_numbers<[1], [1], [0], [0], [0, 0, 1, 0], [], []>} : vector<8x4xbf16>, vector<256x4xbf16>, vector<8x256xf32> -> vector<8x256xf32>
    %70 = arith.addf %60, %69 : vector<8x256xf32>
    %c4_i32_68 = arith.constant 4 : i32
    %71 = arith.muli %arg1, %c4_i32_68 : i32
    %c0_i32_69 = arith.constant 0 : i32
    %72 = arith.addi %71, %c0_i32_69 : i32
    %c0_70 = arith.constant 0 : index
    %c1_71 = arith.constant 1 : index
    %73 = arith.index_cast %72 : i32 to index
    %c1_72 = arith.constant 1 : index
    %c0_73 = arith.constant 0 : index
    %c0_74 = arith.constant 0 : index
    %74 = vector.load %arg2[%c0_70, %c1_71, %73, %c1_72, %c0_73, %c0_74] : memref<1x8x9x9x9x4xbf16, #tpu.memory_space<vmem>>, vector<1x1x4x8x8x4xbf16>
    %75 = vector.shape_cast %74 : vector<1x1x4x8x8x4xbf16> to vector<4x8x8x4xbf16>
    %76 = vector.shape_cast %75 : vector<4x8x8x4xbf16> to vector<256x4xbf16>
    %c7 = arith.constant 7 : index
    %c0_75 = arith.constant 0 : index
    %c0_76 = arith.constant 0 : index
    %77 = vector.load %arg3[%c7, %c0_75, %c0_76] : memref<27x8x4xbf16, #tpu.memory_space<vmem>>, vector<1x8x4xbf16>
    %78 = vector.shape_cast %77 : vector<1x8x4xbf16> to vector<8x4xbf16>
    %cst_77 = arith.constant dense<0.000000e+00> : vector<8x256xf32>
    %79 = tpu.matmul %78, %76, %cst_77 {dimension_numbers = #tpu.dot_dimension_numbers<[1], [1], [0], [0], [0, 0, 1, 0], [], []>} : vector<8x4xbf16>, vector<256x4xbf16>, vector<8x256xf32> -> vector<8x256xf32>
    %80 = arith.addf %70, %79 : vector<8x256xf32>
    %c4_i32_78 = arith.constant 4 : i32
    %81 = arith.muli %arg1, %c4_i32_78 : i32
    %c0_i32_79 = arith.constant 0 : i32
    %82 = arith.addi %81, %c0_i32_79 : i32
    %c0_80 = arith.constant 0 : index
    %c0_81 = arith.constant 0 : index
    %83 = arith.index_cast %82 : i32 to index
    %c1_82 = arith.constant 1 : index
    %c1_83 = arith.constant 1 : index
    %c0_84 = arith.constant 0 : index
    %84 = vector.load %arg2[%c0_80, %c0_81, %83, %c1_82, %c1_83, %c0_84] : memref<1x8x9x9x9x4xbf16, #tpu.memory_space<vmem>>, vector<1x1x4x8x8x4xbf16>
    %85 = vector.shape_cast %84 : vector<1x1x4x8x8x4xbf16> to vector<4x8x8x4xbf16>
    %86 = vector.shape_cast %85 : vector<4x8x8x4xbf16> to vector<256x4xbf16>
    %c8 = arith.constant 8 : index
    %c0_85 = arith.constant 0 : index
    %c0_86 = arith.constant 0 : index
    %87 = vector.load %arg3[%c8, %c0_85, %c0_86] : memref<27x8x4xbf16, #tpu.memory_space<vmem>>, vector<1x8x4xbf16>
    %88 = vector.shape_cast %87 : vector<1x8x4xbf16> to vector<8x4xbf16>
    %cst_87 = arith.constant dense<0.000000e+00> : vector<8x256xf32>
    %89 = tpu.matmul %88, %86, %cst_87 {dimension_numbers = #tpu.dot_dimension_numbers<[1], [1], [0], [0], [0, 0, 1, 0], [], []>} : vector<8x4xbf16>, vector<256x4xbf16>, vector<8x256xf32> -> vector<8x256xf32>
    %90 = arith.addf %80, %89 : vector<8x256xf32>
    %c4_i32_88 = arith.constant 4 : i32
    %91 = arith.muli %arg1, %c4_i32_88 : i32
    %c0_i32_89 = arith.constant 0 : i32
    %92 = arith.addi %91, %c0_i32_89 : i32
    %c0_90 = arith.constant 0 : index
    %c4_91 = arith.constant 4 : index
    %93 = arith.index_cast %92 : i32 to index
    %c0_92 = arith.constant 0 : index
    %c0_93 = arith.constant 0 : index
    %c0_94 = arith.constant 0 : index
    %94 = vector.load %arg2[%c0_90, %c4_91, %93, %c0_92, %c0_93, %c0_94] : memref<1x8x9x9x9x4xbf16, #tpu.memory_space<vmem>>, vector<1x1x4x8x8x4xbf16>
    %95 = vector.shape_cast %94 : vector<1x1x4x8x8x4xbf16> to vector<4x8x8x4xbf16>
    %96 = vector.shape_cast %95 : vector<4x8x8x4xbf16> to vector<256x4xbf16>
    %c9 = arith.constant 9 : index
    %c0_95 = arith.constant 0 : index
    %c0_96 = arith.constant 0 : index
    %97 = vector.load %arg3[%c9, %c0_95, %c0_96] : memref<27x8x4xbf16, #tpu.memory_space<vmem>>, vector<1x8x4xbf16>
    %98 = vector.shape_cast %97 : vector<1x8x4xbf16> to vector<8x4xbf16>
    %cst_97 = arith.constant dense<0.000000e+00> : vector<8x256xf32>
    %99 = tpu.matmul %98, %96, %cst_97 {dimension_numbers = #tpu.dot_dimension_numbers<[1], [1], [0], [0], [0, 0, 1, 0], [], []>} : vector<8x4xbf16>, vector<256x4xbf16>, vector<8x256xf32> -> vector<8x256xf32>
    %100 = arith.addf %90, %99 : vector<8x256xf32>
    %c4_i32_98 = arith.constant 4 : i32
    %101 = arith.muli %arg1, %c4_i32_98 : i32
    %c0_i32_99 = arith.constant 0 : i32
    %102 = arith.addi %101, %c0_i32_99 : i32
    %c0_100 = arith.constant 0 : index
    %c5_101 = arith.constant 5 : index
    %103 = arith.index_cast %102 : i32 to index
    %c0_102 = arith.constant 0 : index
    %c0_103 = arith.constant 0 : index
    %c0_104 = arith.constant 0 : index
    %104 = vector.load %arg2[%c0_100, %c5_101, %103, %c0_102, %c0_103, %c0_104] : memref<1x8x9x9x9x4xbf16, #tpu.memory_space<vmem>>, vector<1x1x4x8x8x4xbf16>
    %105 = vector.shape_cast %104 : vector<1x1x4x8x8x4xbf16> to vector<4x8x8x4xbf16>
    %106 = vector.shape_cast %105 : vector<4x8x8x4xbf16> to vector<256x4xbf16>
    %c10 = arith.constant 10 : index
    %c0_105 = arith.constant 0 : index
    %c0_106 = arith.constant 0 : index
    %107 = vector.load %arg3[%c10, %c0_105, %c0_106] : memref<27x8x4xbf16, #tpu.memory_space<vmem>>, vector<1x8x4xbf16>
    %108 = vector.shape_cast %107 : vector<1x8x4xbf16> to vector<8x4xbf16>
    %cst_107 = arith.constant dense<0.000000e+00> : vector<8x256xf32>
    %109 = tpu.matmul %108, %106, %cst_107 {dimension_numbers = #tpu.dot_dimension_numbers<[1], [1], [0], [0], [0, 0, 1, 0], [], []>} : vector<8x4xbf16>, vector<256x4xbf16>, vector<8x256xf32> -> vector<8x256xf32>
    %110 = arith.addf %100, %109 : vector<8x256xf32>
    %c4_i32_108 = arith.constant 4 : i32
    %111 = arith.muli %arg1, %c4_i32_108 : i32
    %c0_i32_109 = arith.constant 0 : i32
    %112 = arith.addi %111, %c0_i32_109 : i32
    %c0_110 = arith.constant 0 : index
    %c4_111 = arith.constant 4 : index
    %113 = arith.index_cast %112 : i32 to index
    %c0_112 = arith.constant 0 : index
    %c1_113 = arith.constant 1 : index
    %c0_114 = arith.constant 0 : index
    %114 = vector.load %arg2[%c0_110, %c4_111, %113, %c0_112, %c1_113, %c0_114] : memref<1x8x9x9x9x4xbf16, #tpu.memory_space<vmem>>, vector<1x1x4x8x8x4xbf16>
    %115 = vector.shape_cast %114 : vector<1x1x4x8x8x4xbf16> to vector<4x8x8x4xbf16>
    %116 = vector.shape_cast %115 : vector<4x8x8x4xbf16> to vector<256x4xbf16>
    %c11 = arith.constant 11 : index
    %c0_115 = arith.constant 0 : index
    %c0_116 = arith.constant 0 : index
    %117 = vector.load %arg3[%c11, %c0_115, %c0_116] : memref<27x8x4xbf16, #tpu.memory_space<vmem>>, vector<1x8x4xbf16>
    %118 = vector.shape_cast %117 : vector<1x8x4xbf16> to vector<8x4xbf16>
    %cst_117 = arith.constant dense<0.000000e+00> : vector<8x256xf32>
    %119 = tpu.matmul %118, %116, %cst_117 {dimension_numbers = #tpu.dot_dimension_numbers<[1], [1], [0], [0], [0, 0, 1, 0], [], []>} : vector<8x4xbf16>, vector<256x4xbf16>, vector<8x256xf32> -> vector<8x256xf32>
    %120 = arith.addf %110, %119 : vector<8x256xf32>
    %c4_i32_118 = arith.constant 4 : i32
    %121 = arith.muli %arg1, %c4_i32_118 : i32
    %c0_i32_119 = arith.constant 0 : i32
    %122 = arith.addi %121, %c0_i32_119 : i32
    %c0_120 = arith.constant 0 : index
    %c6_121 = arith.constant 6 : index
    %123 = arith.index_cast %122 : i32 to index
    %c0_122 = arith.constant 0 : index
    %c0_123 = arith.constant 0 : index
    %c0_124 = arith.constant 0 : index
    %124 = vector.load %arg2[%c0_120, %c6_121, %123, %c0_122, %c0_123, %c0_124] : memref<1x8x9x9x9x4xbf16, #tpu.memory_space<vmem>>, vector<1x1x4x8x8x4xbf16>
    %125 = vector.shape_cast %124 : vector<1x1x4x8x8x4xbf16> to vector<4x8x8x4xbf16>
    %126 = vector.shape_cast %125 : vector<4x8x8x4xbf16> to vector<256x4xbf16>
    %c12 = arith.constant 12 : index
    %c0_125 = arith.constant 0 : index
    %c0_126 = arith.constant 0 : index
    %127 = vector.load %arg3[%c12, %c0_125, %c0_126] : memref<27x8x4xbf16, #tpu.memory_space<vmem>>, vector<1x8x4xbf16>
    %128 = vector.shape_cast %127 : vector<1x8x4xbf16> to vector<8x4xbf16>
    %cst_127 = arith.constant dense<0.000000e+00> : vector<8x256xf32>
    %129 = tpu.matmul %128, %126, %cst_127 {dimension_numbers = #tpu.dot_dimension_numbers<[1], [1], [0], [0], [0, 0, 1, 0], [], []>} : vector<8x4xbf16>, vector<256x4xbf16>, vector<8x256xf32> -> vector<8x256xf32>
    %130 = arith.addf %120, %129 : vector<8x256xf32>
    %c4_i32_128 = arith.constant 4 : i32
    %131 = arith.muli %arg1, %c4_i32_128 : i32
    %c0_i32_129 = arith.constant 0 : i32
    %132 = arith.addi %131, %c0_i32_129 : i32
    %c0_130 = arith.constant 0 : index
    %c7_131 = arith.constant 7 : index
    %133 = arith.index_cast %132 : i32 to index
    %c0_132 = arith.constant 0 : index
    %c0_133 = arith.constant 0 : index
    %c0_134 = arith.constant 0 : index
    %134 = vector.load %arg2[%c0_130, %c7_131, %133, %c0_132, %c0_133, %c0_134] : memref<1x8x9x9x9x4xbf16, #tpu.memory_space<vmem>>, vector<1x1x4x8x8x4xbf16>
    %135 = vector.shape_cast %134 : vector<1x1x4x8x8x4xbf16> to vector<4x8x8x4xbf16>
    %136 = vector.shape_cast %135 : vector<4x8x8x4xbf16> to vector<256x4xbf16>
    %c13 = arith.constant 13 : index
    %c0_135 = arith.constant 0 : index
    %c0_136 = arith.constant 0 : index
    %137 = vector.load %arg3[%c13, %c0_135, %c0_136] : memref<27x8x4xbf16, #tpu.memory_space<vmem>>, vector<1x8x4xbf16>
    %138 = vector.shape_cast %137 : vector<1x8x4xbf16> to vector<8x4xbf16>
    %cst_137 = arith.constant dense<0.000000e+00> : vector<8x256xf32>
    %139 = tpu.matmul %138, %136, %cst_137 {dimension_numbers = #tpu.dot_dimension_numbers<[1], [1], [0], [0], [0, 0, 1, 0], [], []>} : vector<8x4xbf16>, vector<256x4xbf16>, vector<8x256xf32> -> vector<8x256xf32>
    %140 = arith.addf %130, %139 : vector<8x256xf32>
    %c4_i32_138 = arith.constant 4 : i32
    %141 = arith.muli %arg1, %c4_i32_138 : i32
    %c0_i32_139 = arith.constant 0 : i32
    %142 = arith.addi %141, %c0_i32_139 : i32
    %c0_140 = arith.constant 0 : index
    %c6_141 = arith.constant 6 : index
    %143 = arith.index_cast %142 : i32 to index
    %c0_142 = arith.constant 0 : index
    %c1_143 = arith.constant 1 : index
    %c0_144 = arith.constant 0 : index
    %144 = vector.load %arg2[%c0_140, %c6_141, %143, %c0_142, %c1_143, %c0_144] : memref<1x8x9x9x9x4xbf16, #tpu.memory_space<vmem>>, vector<1x1x4x8x8x4xbf16>
    %145 = vector.shape_cast %144 : vector<1x1x4x8x8x4xbf16> to vector<4x8x8x4xbf16>
    %146 = vector.shape_cast %145 : vector<4x8x8x4xbf16> to vector<256x4xbf16>
    %c14 = arith.constant 14 : index
    %c0_145 = arith.constant 0 : index
    %c0_146 = arith.constant 0 : index
    %147 = vector.load %arg3[%c14, %c0_145, %c0_146] : memref<27x8x4xbf16, #tpu.memory_space<vmem>>, vector<1x8x4xbf16>
    %148 = vector.shape_cast %147 : vector<1x8x4xbf16> to vector<8x4xbf16>
    %cst_147 = arith.constant dense<0.000000e+00> : vector<8x256xf32>
    %149 = tpu.matmul %148, %146, %cst_147 {dimension_numbers = #tpu.dot_dimension_numbers<[1], [1], [0], [0], [0, 0, 1, 0], [], []>} : vector<8x4xbf16>, vector<256x4xbf16>, vector<8x256xf32> -> vector<8x256xf32>
    %150 = arith.addf %140, %149 : vector<8x256xf32>
    %c4_i32_148 = arith.constant 4 : i32
    %151 = arith.muli %arg1, %c4_i32_148 : i32
    %c0_i32_149 = arith.constant 0 : i32
    %152 = arith.addi %151, %c0_i32_149 : i32
    %c0_150 = arith.constant 0 : index
    %c4_151 = arith.constant 4 : index
    %153 = arith.index_cast %152 : i32 to index
    %c1_152 = arith.constant 1 : index
    %c0_153 = arith.constant 0 : index
    %c0_154 = arith.constant 0 : index
    %154 = vector.load %arg2[%c0_150, %c4_151, %153, %c1_152, %c0_153, %c0_154] : memref<1x8x9x9x9x4xbf16, #tpu.memory_space<vmem>>, vector<1x1x4x8x8x4xbf16>
    %155 = vector.shape_cast %154 : vector<1x1x4x8x8x4xbf16> to vector<4x8x8x4xbf16>
    %156 = vector.shape_cast %155 : vector<4x8x8x4xbf16> to vector<256x4xbf16>
    %c15 = arith.constant 15 : index
    %c0_155 = arith.constant 0 : index
    %c0_156 = arith.constant 0 : index
    %157 = vector.load %arg3[%c15, %c0_155, %c0_156] : memref<27x8x4xbf16, #tpu.memory_space<vmem>>, vector<1x8x4xbf16>
    %158 = vector.shape_cast %157 : vector<1x8x4xbf16> to vector<8x4xbf16>
    %cst_157 = arith.constant dense<0.000000e+00> : vector<8x256xf32>
    %159 = tpu.matmul %158, %156, %cst_157 {dimension_numbers = #tpu.dot_dimension_numbers<[1], [1], [0], [0], [0, 0, 1, 0], [], []>} : vector<8x4xbf16>, vector<256x4xbf16>, vector<8x256xf32> -> vector<8x256xf32>
    %160 = arith.addf %150, %159 : vector<8x256xf32>
    %c4_i32_158 = arith.constant 4 : i32
    %161 = arith.muli %arg1, %c4_i32_158 : i32
    %c0_i32_159 = arith.constant 0 : i32
    %162 = arith.addi %161, %c0_i32_159 : i32
    %c0_160 = arith.constant 0 : index
    %c5_161 = arith.constant 5 : index
    %163 = arith.index_cast %162 : i32 to index
    %c1_162 = arith.constant 1 : index
    %c0_163 = arith.constant 0 : index
    %c0_164 = arith.constant 0 : index
    %164 = vector.load %arg2[%c0_160, %c5_161, %163, %c1_162, %c0_163, %c0_164] : memref<1x8x9x9x9x4xbf16, #tpu.memory_space<vmem>>, vector<1x1x4x8x8x4xbf16>
    %165 = vector.shape_cast %164 : vector<1x1x4x8x8x4xbf16> to vector<4x8x8x4xbf16>
    %166 = vector.shape_cast %165 : vector<4x8x8x4xbf16> to vector<256x4xbf16>
    %c16 = arith.constant 16 : index
    %c0_165 = arith.constant 0 : index
    %c0_166 = arith.constant 0 : index
    %167 = vector.load %arg3[%c16, %c0_165, %c0_166] : memref<27x8x4xbf16, #tpu.memory_space<vmem>>, vector<1x8x4xbf16>
    %168 = vector.shape_cast %167 : vector<1x8x4xbf16> to vector<8x4xbf16>
    %cst_167 = arith.constant dense<0.000000e+00> : vector<8x256xf32>
    %169 = tpu.matmul %168, %166, %cst_167 {dimension_numbers = #tpu.dot_dimension_numbers<[1], [1], [0], [0], [0, 0, 1, 0], [], []>} : vector<8x4xbf16>, vector<256x4xbf16>, vector<8x256xf32> -> vector<8x256xf32>
    %170 = arith.addf %160, %169 : vector<8x256xf32>
    %c4_i32_168 = arith.constant 4 : i32
    %171 = arith.muli %arg1, %c4_i32_168 : i32
    %c0_i32_169 = arith.constant 0 : i32
    %172 = arith.addi %171, %c0_i32_169 : i32
    %c0_170 = arith.constant 0 : index
    %c4_171 = arith.constant 4 : index
    %173 = arith.index_cast %172 : i32 to index
    %c1_172 = arith.constant 1 : index
    %c1_173 = arith.constant 1 : index
    %c0_174 = arith.constant 0 : index
    %174 = vector.load %arg2[%c0_170, %c4_171, %173, %c1_172, %c1_173, %c0_174] : memref<1x8x9x9x9x4xbf16, #tpu.memory_space<vmem>>, vector<1x1x4x8x8x4xbf16>
    %175 = vector.shape_cast %174 : vector<1x1x4x8x8x4xbf16> to vector<4x8x8x4xbf16>
    %176 = vector.shape_cast %175 : vector<4x8x8x4xbf16> to vector<256x4xbf16>
    %c17 = arith.constant 17 : index
    %c0_175 = arith.constant 0 : index
    %c0_176 = arith.constant 0 : index
    %177 = vector.load %arg3[%c17, %c0_175, %c0_176] : memref<27x8x4xbf16, #tpu.memory_space<vmem>>, vector<1x8x4xbf16>
    %178 = vector.shape_cast %177 : vector<1x8x4xbf16> to vector<8x4xbf16>
    %cst_177 = arith.constant dense<0.000000e+00> : vector<8x256xf32>
    %179 = tpu.matmul %178, %176, %cst_177 {dimension_numbers = #tpu.dot_dimension_numbers<[1], [1], [0], [0], [0, 0, 1, 0], [], []>} : vector<8x4xbf16>, vector<256x4xbf16>, vector<8x256xf32> -> vector<8x256xf32>
    %180 = arith.addf %170, %179 : vector<8x256xf32>
    %c4_i32_178 = arith.constant 4 : i32
    %181 = arith.muli %arg1, %c4_i32_178 : i32
    %c1_i32 = arith.constant 1 : i32
    %182 = arith.addi %181, %c1_i32 : i32
    %c0_179 = arith.constant 0 : index
    %c0_180 = arith.constant 0 : index
    %183 = arith.index_cast %182 : i32 to index
    %c0_181 = arith.constant 0 : index
    %c0_182 = arith.constant 0 : index
    %c0_183 = arith.constant 0 : index
    %184 = vector.load %arg2[%c0_179, %c0_180, %183, %c0_181, %c0_182, %c0_183] : memref<1x8x9x9x9x4xbf16, #tpu.memory_space<vmem>>, vector<1x1x4x8x8x4xbf16>
    %185 = vector.shape_cast %184 : vector<1x1x4x8x8x4xbf16> to vector<4x8x8x4xbf16>
    %186 = vector.shape_cast %185 : vector<4x8x8x4xbf16> to vector<256x4xbf16>
    %c18 = arith.constant 18 : index
    %c0_184 = arith.constant 0 : index
    %c0_185 = arith.constant 0 : index
    %187 = vector.load %arg3[%c18, %c0_184, %c0_185] : memref<27x8x4xbf16, #tpu.memory_space<vmem>>, vector<1x8x4xbf16>
    %188 = vector.shape_cast %187 : vector<1x8x4xbf16> to vector<8x4xbf16>
    %cst_186 = arith.constant dense<0.000000e+00> : vector<8x256xf32>
    %189 = tpu.matmul %188, %186, %cst_186 {dimension_numbers = #tpu.dot_dimension_numbers<[1], [1], [0], [0], [0, 0, 1, 0], [], []>} : vector<8x4xbf16>, vector<256x4xbf16>, vector<8x256xf32> -> vector<8x256xf32>
    %190 = arith.addf %180, %189 : vector<8x256xf32>
    %c4_i32_187 = arith.constant 4 : i32
    %191 = arith.muli %arg1, %c4_i32_187 : i32
    %c1_i32_188 = arith.constant 1 : i32
    %192 = arith.addi %191, %c1_i32_188 : i32
    %c0_189 = arith.constant 0 : index
    %c1_190 = arith.constant 1 : index
    %193 = arith.index_cast %192 : i32 to index
    %c0_191 = arith.constant 0 : index
    %c0_192 = arith.constant 0 : index
    %c0_193 = arith.constant 0 : index
    %194 = vector.load %arg2[%c0_189, %c1_190, %193, %c0_191, %c0_192, %c0_193] : memref<1x8x9x9x9x4xbf16, #tpu.memory_space<vmem>>, vector<1x1x4x8x8x4xbf16>
    %195 = vector.shape_cast %194 : vector<1x1x4x8x8x4xbf16> to vector<4x8x8x4xbf16>
    %196 = vector.shape_cast %195 : vector<4x8x8x4xbf16> to vector<256x4xbf16>
    %c19 = arith.constant 19 : index
    %c0_194 = arith.constant 0 : index
    %c0_195 = arith.constant 0 : index
    %197 = vector.load %arg3[%c19, %c0_194, %c0_195] : memref<27x8x4xbf16, #tpu.memory_space<vmem>>, vector<1x8x4xbf16>
    %198 = vector.shape_cast %197 : vector<1x8x4xbf16> to vector<8x4xbf16>
    %cst_196 = arith.constant dense<0.000000e+00> : vector<8x256xf32>
    %199 = tpu.matmul %198, %196, %cst_196 {dimension_numbers = #tpu.dot_dimension_numbers<[1], [1], [0], [0], [0, 0, 1, 0], [], []>} : vector<8x4xbf16>, vector<256x4xbf16>, vector<8x256xf32> -> vector<8x256xf32>
    %200 = arith.addf %190, %199 : vector<8x256xf32>
    %c4_i32_197 = arith.constant 4 : i32
    %201 = arith.muli %arg1, %c4_i32_197 : i32
    %c1_i32_198 = arith.constant 1 : i32
    %202 = arith.addi %201, %c1_i32_198 : i32
    %c0_199 = arith.constant 0 : index
    %c0_200 = arith.constant 0 : index
    %203 = arith.index_cast %202 : i32 to index
    %c0_201 = arith.constant 0 : index
    %c1_202 = arith.constant 1 : index
    %c0_203 = arith.constant 0 : index
    %204 = vector.load %arg2[%c0_199, %c0_200, %203, %c0_201, %c1_202, %c0_203] : memref<1x8x9x9x9x4xbf16, #tpu.memory_space<vmem>>, vector<1x1x4x8x8x4xbf16>
    %205 = vector.shape_cast %204 : vector<1x1x4x8x8x4xbf16> to vector<4x8x8x4xbf16>
    %206 = vector.shape_cast %205 : vector<4x8x8x4xbf16> to vector<256x4xbf16>
    %c20 = arith.constant 20 : index
    %c0_204 = arith.constant 0 : index
    %c0_205 = arith.constant 0 : index
    %207 = vector.load %arg3[%c20, %c0_204, %c0_205] : memref<27x8x4xbf16, #tpu.memory_space<vmem>>, vector<1x8x4xbf16>
    %208 = vector.shape_cast %207 : vector<1x8x4xbf16> to vector<8x4xbf16>
    %cst_206 = arith.constant dense<0.000000e+00> : vector<8x256xf32>
    %209 = tpu.matmul %208, %206, %cst_206 {dimension_numbers = #tpu.dot_dimension_numbers<[1], [1], [0], [0], [0, 0, 1, 0], [], []>} : vector<8x4xbf16>, vector<256x4xbf16>, vector<8x256xf32> -> vector<8x256xf32>
    %210 = arith.addf %200, %209 : vector<8x256xf32>
    %c4_i32_207 = arith.constant 4 : i32
    %211 = arith.muli %arg1, %c4_i32_207 : i32
    %c1_i32_208 = arith.constant 1 : i32
    %212 = arith.addi %211, %c1_i32_208 : i32
    %c0_209 = arith.constant 0 : index
    %c2_210 = arith.constant 2 : index
    %213 = arith.index_cast %212 : i32 to index
    %c0_211 = arith.constant 0 : index
    %c0_212 = arith.constant 0 : index
    %c0_213 = arith.constant 0 : index
    %214 = vector.load %arg2[%c0_209, %c2_210, %213, %c0_211, %c0_212, %c0_213] : memref<1x8x9x9x9x4xbf16, #tpu.memory_space<vmem>>, vector<1x1x4x8x8x4xbf16>
    %215 = vector.shape_cast %214 : vector<1x1x4x8x8x4xbf16> to vector<4x8x8x4xbf16>
    %216 = vector.shape_cast %215 : vector<4x8x8x4xbf16> to vector<256x4xbf16>
    %c21 = arith.constant 21 : index
    %c0_214 = arith.constant 0 : index
    %c0_215 = arith.constant 0 : index
    %217 = vector.load %arg3[%c21, %c0_214, %c0_215] : memref<27x8x4xbf16, #tpu.memory_space<vmem>>, vector<1x8x4xbf16>
    %218 = vector.shape_cast %217 : vector<1x8x4xbf16> to vector<8x4xbf16>
    %cst_216 = arith.constant dense<0.000000e+00> : vector<8x256xf32>
    %219 = tpu.matmul %218, %216, %cst_216 {dimension_numbers = #tpu.dot_dimension_numbers<[1], [1], [0], [0], [0, 0, 1, 0], [], []>} : vector<8x4xbf16>, vector<256x4xbf16>, vector<8x256xf32> -> vector<8x256xf32>
    %220 = arith.addf %210, %219 : vector<8x256xf32>
    %c4_i32_217 = arith.constant 4 : i32
    %221 = arith.muli %arg1, %c4_i32_217 : i32
    %c1_i32_218 = arith.constant 1 : i32
    %222 = arith.addi %221, %c1_i32_218 : i32
    %c0_219 = arith.constant 0 : index
    %c3_220 = arith.constant 3 : index
    %223 = arith.index_cast %222 : i32 to index
    %c0_221 = arith.constant 0 : index
    %c0_222 = arith.constant 0 : index
    %c0_223 = arith.constant 0 : index
    %224 = vector.load %arg2[%c0_219, %c3_220, %223, %c0_221, %c0_222, %c0_223] : memref<1x8x9x9x9x4xbf16, #tpu.memory_space<vmem>>, vector<1x1x4x8x8x4xbf16>
    %225 = vector.shape_cast %224 : vector<1x1x4x8x8x4xbf16> to vector<4x8x8x4xbf16>
    %226 = vector.shape_cast %225 : vector<4x8x8x4xbf16> to vector<256x4xbf16>
    %c22 = arith.constant 22 : index
    %c0_224 = arith.constant 0 : index
    %c0_225 = arith.constant 0 : index
    %227 = vector.load %arg3[%c22, %c0_224, %c0_225] : memref<27x8x4xbf16, #tpu.memory_space<vmem>>, vector<1x8x4xbf16>
    %228 = vector.shape_cast %227 : vector<1x8x4xbf16> to vector<8x4xbf16>
    %cst_226 = arith.constant dense<0.000000e+00> : vector<8x256xf32>
    %229 = tpu.matmul %228, %226, %cst_226 {dimension_numbers = #tpu.dot_dimension_numbers<[1], [1], [0], [0], [0, 0, 1, 0], [], []>} : vector<8x4xbf16>, vector<256x4xbf16>, vector<8x256xf32> -> vector<8x256xf32>
    %230 = arith.addf %220, %229 : vector<8x256xf32>
    %c4_i32_227 = arith.constant 4 : i32
    %231 = arith.muli %arg1, %c4_i32_227 : i32
    %c1_i32_228 = arith.constant 1 : i32
    %232 = arith.addi %231, %c1_i32_228 : i32
    %c0_229 = arith.constant 0 : index
    %c2_230 = arith.constant 2 : index
    %233 = arith.index_cast %232 : i32 to index
    %c0_231 = arith.constant 0 : index
    %c1_232 = arith.constant 1 : index
    %c0_233 = arith.constant 0 : index
    %234 = vector.load %arg2[%c0_229, %c2_230, %233, %c0_231, %c1_232, %c0_233] : memref<1x8x9x9x9x4xbf16, #tpu.memory_space<vmem>>, vector<1x1x4x8x8x4xbf16>
    %235 = vector.shape_cast %234 : vector<1x1x4x8x8x4xbf16> to vector<4x8x8x4xbf16>
    %236 = vector.shape_cast %235 : vector<4x8x8x4xbf16> to vector<256x4xbf16>
    %c23 = arith.constant 23 : index
    %c0_234 = arith.constant 0 : index
    %c0_235 = arith.constant 0 : index
    %237 = vector.load %arg3[%c23, %c0_234, %c0_235] : memref<27x8x4xbf16, #tpu.memory_space<vmem>>, vector<1x8x4xbf16>
    %238 = vector.shape_cast %237 : vector<1x8x4xbf16> to vector<8x4xbf16>
    %cst_236 = arith.constant dense<0.000000e+00> : vector<8x256xf32>
    %239 = tpu.matmul %238, %236, %cst_236 {dimension_numbers = #tpu.dot_dimension_numbers<[1], [1], [0], [0], [0, 0, 1, 0], [], []>} : vector<8x4xbf16>, vector<256x4xbf16>, vector<8x256xf32> -> vector<8x256xf32>
    %240 = arith.addf %230, %239 : vector<8x256xf32>
    %c4_i32_237 = arith.constant 4 : i32
    %241 = arith.muli %arg1, %c4_i32_237 : i32
    %c1_i32_238 = arith.constant 1 : i32
    %242 = arith.addi %241, %c1_i32_238 : i32
    %c0_239 = arith.constant 0 : index
    %c0_240 = arith.constant 0 : index
    %243 = arith.index_cast %242 : i32 to index
    %c1_241 = arith.constant 1 : index
    %c0_242 = arith.constant 0 : index
    %c0_243 = arith.constant 0 : index
    %244 = vector.load %arg2[%c0_239, %c0_240, %243, %c1_241, %c0_242, %c0_243] : memref<1x8x9x9x9x4xbf16, #tpu.memory_space<vmem>>, vector<1x1x4x8x8x4xbf16>
    %245 = vector.shape_cast %244 : vector<1x1x4x8x8x4xbf16> to vector<4x8x8x4xbf16>
    %246 = vector.shape_cast %245 : vector<4x8x8x4xbf16> to vector<256x4xbf16>
    %c24 = arith.constant 24 : index
    %c0_244 = arith.constant 0 : index
    %c0_245 = arith.constant 0 : index
    %247 = vector.load %arg3[%c24, %c0_244, %c0_245] : memref<27x8x4xbf16, #tpu.memory_space<vmem>>, vector<1x8x4xbf16>
    %248 = vector.shape_cast %247 : vector<1x8x4xbf16> to vector<8x4xbf16>
    %cst_246 = arith.constant dense<0.000000e+00> : vector<8x256xf32>
    %249 = tpu.matmul %248, %246, %cst_246 {dimension_numbers = #tpu.dot_dimension_numbers<[1], [1], [0], [0], [0, 0, 1, 0], [], []>} : vector<8x4xbf16>, vector<256x4xbf16>, vector<8x256xf32> -> vector<8x256xf32>
    %250 = arith.addf %240, %249 : vector<8x256xf32>
    %c4_i32_247 = arith.constant 4 : i32
    %251 = arith.muli %arg1, %c4_i32_247 : i32
    %c1_i32_248 = arith.constant 1 : i32
    %252 = arith.addi %251, %c1_i32_248 : i32
    %c0_249 = arith.constant 0 : index
    %c1_250 = arith.constant 1 : index
    %253 = arith.index_cast %252 : i32 to index
    %c1_251 = arith.constant 1 : index
    %c0_252 = arith.constant 0 : index
    %c0_253 = arith.constant 0 : index
    %254 = vector.load %arg2[%c0_249, %c1_250, %253, %c1_251, %c0_252, %c0_253] : memref<1x8x9x9x9x4xbf16, #tpu.memory_space<vmem>>, vector<1x1x4x8x8x4xbf16>
    %255 = vector.shape_cast %254 : vector<1x1x4x8x8x4xbf16> to vector<4x8x8x4xbf16>
    %256 = vector.shape_cast %255 : vector<4x8x8x4xbf16> to vector<256x4xbf16>
    %c25 = arith.constant 25 : index
    %c0_254 = arith.constant 0 : index
    %c0_255 = arith.constant 0 : index
    %257 = vector.load %arg3[%c25, %c0_254, %c0_255] : memref<27x8x4xbf16, #tpu.memory_space<vmem>>, vector<1x8x4xbf16>
    %258 = vector.shape_cast %257 : vector<1x8x4xbf16> to vector<8x4xbf16>
    %cst_256 = arith.constant dense<0.000000e+00> : vector<8x256xf32>
    %259 = tpu.matmul %258, %256, %cst_256 {dimension_numbers = #tpu.dot_dimension_numbers<[1], [1], [0], [0], [0, 0, 1, 0], [], []>} : vector<8x4xbf16>, vector<256x4xbf16>, vector<8x256xf32> -> vector<8x256xf32>
    %260 = arith.addf %250, %259 : vector<8x256xf32>
    %c4_i32_257 = arith.constant 4 : i32
    %261 = arith.muli %arg1, %c4_i32_257 : i32
    %c1_i32_258 = arith.constant 1 : i32
    %262 = arith.addi %261, %c1_i32_258 : i32
    %c0_259 = arith.constant 0 : index
    %c0_260 = arith.constant 0 : index
    %263 = arith.index_cast %262 : i32 to index
    %c1_261 = arith.constant 1 : index
    %c1_262 = arith.constant 1 : index
    %c0_263 = arith.constant 0 : index
    %264 = vector.load %arg2[%c0_259, %c0_260, %263, %c1_261, %c1_262, %c0_263] : memref<1x8x9x9x9x4xbf16, #tpu.memory_space<vmem>>, vector<1x1x4x8x8x4xbf16>
    %265 = vector.shape_cast %264 : vector<1x1x4x8x8x4xbf16> to vector<4x8x8x4xbf16>
    %266 = vector.shape_cast %265 : vector<4x8x8x4xbf16> to vector<256x4xbf16>
    %c26 = arith.constant 26 : index
    %c0_264 = arith.constant 0 : index
    %c0_265 = arith.constant 0 : index
    %267 = vector.load %arg3[%c26, %c0_264, %c0_265] : memref<27x8x4xbf16, #tpu.memory_space<vmem>>, vector<1x8x4xbf16>
    %268 = vector.shape_cast %267 : vector<1x8x4xbf16> to vector<8x4xbf16>
    %cst_266 = arith.constant dense<0.000000e+00> : vector<8x256xf32>
    %269 = tpu.matmul %268, %266, %cst_266 {dimension_numbers = #tpu.dot_dimension_numbers<[1], [1], [0], [0], [0, 0, 1, 0], [], []>} : vector<8x4xbf16>, vector<256x4xbf16>, vector<8x256xf32> -> vector<8x256xf32>
    %270 = arith.addf %260, %269 : vector<8x256xf32>
    %c0_267 = arith.constant 0 : index
    %c0_268 = arith.constant 0 : index
    %271 = vector.load %arg4[%c0_267, %c0_268] : memref<8x1xf32, #tpu.memory_space<vmem>>, vector<8x1xf32>
    %272 = vector.broadcast %271 : vector<8x1xf32> to vector<8x256xf32>
    %273 = arith.addf %270, %272 : vector<8x256xf32>
    %c0_269 = arith.constant 0 : index
    %c0_270 = arith.constant 0 : index
    %c0_271 = arith.constant 0 : index
    %274 = vector.load %arg5[%c0_269, %c0_270, %c0_271] : memref<1x8x256xf32, #tpu.memory_space<vmem>>, vector<1x8x256xf32>
    %275 = vector.shape_cast %274 : vector<1x8x256xf32> to vector<8x256xf32>
    %276 = vector.shape_cast %273 : vector<8x256xf32> to vector<1x8x256xf32>
    tpu.vector_store %arg5[%c0_269, %c0_270, %c0_271], %276 {strides = array<i32>} : memref<1x8x256xf32, #tpu.memory_space<vmem>>, vector<1x8x256xf32>,
    %cst_272 = arith.constant dense<0.000000e+00> : vector<8xf32>
    %277 = vector.multi_reduction <add>, %273, %cst_272 [1] : vector<8x256xf32> to vector<8xf32>
    %278 = vector.shape_cast %277 : vector<8xf32> to vector<8x1xf32>
    %279 = arith.mulf %273, %273 : vector<8x256xf32>
    %cst_273 = arith.constant dense<0.000000e+00> : vector<8xf32>
    %280 = vector.multi_reduction <add>, %279, %cst_273 [1] : vector<8x256xf32> to vector<8xf32>
    %281 = vector.shape_cast %280 : vector<8xf32> to vector<8x1xf32>
    %282 = tpu.concatenate %278, %281 in 1 : vector<8x1xf32>, vector<8x1xf32> -> vector<8x2xf32>
    %c0_274 = arith.constant 0 : index
    %c0_275 = arith.constant 0 : index
    %c0_276 = arith.constant 0 : index
    %c0_277 = arith.constant 0 : index
    %283 = vector.load %arg6[%c0_274, %c0_275, %c0_276, %c0_277] : memref<1x1x8x2xf32, #tpu.memory_space<vmem>>, vector<1x1x8x2xf32>
    %284 = vector.shape_cast %283 : vector<1x1x8x2xf32> to vector<8x2xf32>
    %285 = vector.shape_cast %282 : vector<8x2xf32> to vector<1x1x8x2xf32>
    tpu.vector_store %arg6[%c0_274, %c0_275, %c0_276, %c0_277], %285 {strides = array<i32>} : memref<1x1x8x2xf32, #tpu.memory_space<vmem>>, vector<1x1x8x2xf32>,
    return
  }
  func.func @transform_0(%arg0: i32, %arg1: i32) -> (i32, i32, i32, i32, i32, i32) {
    %c0_i32 = arith.constant 0 : i32
    %c0_i32_0 = arith.constant 0 : i32
    %c0_i32_1 = arith.constant 0 : i32
    %c0_i32_2 = arith.constant 0 : i32
    %c0_i32_3 = arith.constant 0 : i32
    %c0_i32_4 = arith.constant 0 : i32
    return %arg0, %c0_i32, %c0_i32_0, %c0_i32_1, %c0_i32_2, %c0_i32_3 : i32, i32, i32, i32, i32, i32
  }
  func.func @transform_1(%arg0: i32, %arg1: i32) -> (i32, i32, i32) {
    %c0_i32 = arith.constant 0 : i32
    %c0_i32_0 = arith.constant 0 : i32
    %c0_i32_1 = arith.constant 0 : i32
    %c0_i32_2 = arith.constant 0 : i32
    return %c0_i32, %c0_i32_0, %c0_i32_1 : i32, i32, i32
  }
  func.func @transform_2(%arg0: i32, %arg1: i32) -> (i32, i32) {
    %c0_i32 = arith.constant 0 : i32
    %c0_i32_0 = arith.constant 0 : i32
    %c0_i32_1 = arith.constant 0 : i32
    return %c0_i32, %c0_i32_0 : i32, i32
  }
  func.func @transform_3(%arg0: i32, %arg1: i32) -> (i32, i32, i32) {
    %c0_i32 = arith.constant 0 : i32
    %c0_i32_0 = arith.constant 0 : i32
    return %arg0, %c0_i32, %arg1 : i32, i32, i32
  }
  func.func @transform_4(%arg0: i32, %arg1: i32) -> (i32, i32, i32, i32) {
    %c0_i32 = arith.constant 0 : i32
    %c0_i32_0 = arith.constant 0 : i32
    %c0_i32_1 = arith.constant 0 : i32
    return %arg0, %arg1, %c0_i32, %c0_i32_0 : i32, i32, i32, i32
  }
}

</mosaic_0001>

<llo_original>
// kernel: tpu_custom_call.1
$region0: #{tpu_custom_call.1}
  #allocation0 [shape = 'u32[]', space=smem, size = 0x4, offset = 0x4, fixed_abs, tag = 'smem constant byte address 0x4 - core index']
  #allocation1 [shape = 'u32[144,128]{1,0:T(1,128)}', space=vmem, size = 0x12000, scoped, tag = 'internal scratch']
  %s0 = inlined_call_operand.vmem [shape: bf16[2,8,9,9,9,4], index: 0, kind: input, shape index: {}]
  %s1 = inlined_call_operand.vmem [shape: bf16[27,8,4], index: 1, kind: input, shape index: {}]
  %s2 = inlined_call_operand.vmem [shape: f32[8,1], index: 2, kind: input, shape index: {}]
  %s3 = inlined_call_operand.hbm [shape: f32[2,8,512], index: 3, kind: output, shape index: {0}]
  %s4 = inlined_call_operand.vmem [shape: f32[2,2,8,2], index: 4, kind: output, shape index: {1}]
  %5 = xla_tuple %s3, %s4
  %s6 = sld [smem:[#allocation0]]
  $region53: #{tpu_custom_call.1} parent=0
    _
  %s8 = ssub.s32 1, %s6
  %s9 = scalar_select 0, %s8, %s6
  $region1: #{tpu_custom_call.1} parent=0
    #allocation2 [shape = 'u8[16384]{0}', space=vmem, size = 0x4000, scoped, tag = 'output window, operand 0']
    #allocation3 [shape = 's32[2]{0}', space=sflag, size = 0x8, scoped, tag = 'scoped memory for tpu_custom_call.1']
    %10 = vsyncpa [#allocation3], 0
    %s11 = scalar_lea.sflag [#allocation3], 1
    %12 = vsyncpa %s11, 0
    loop: start=0, step=1, limit=6
    $region2: #{tpu_custom_call.1} parent=1 // loop_pre_header
      _
    $region3: #{tpu_custom_call.1} parent=1 // loop_header
      %s14 = sphi 0, %s18
      %p15 = scmp.ge.s32.totalorder %s14, 6
      %s21 = sphi 0, %s33
      %s22 = sphi 0, %s29
      %s23 = sphi 0, %s21
      %s24 = sphi 0, %s22
      %s25 = sphi 0, %s23
      %s26 = sphi 0, %s24
      %s36 = sphi 0, %s38
      %s39 = sphi 0, %s36
      %s40 = sphi 0, %s39
      %s56 = sphi 0, %s40
      %s60 = sphi 0, %s60
      %s62 = sphi 0, %s60
      %s63 = sphi 0, %s62
      %s77 = sphi 0, %s63
      %s81 = sphi 0, %s81
      %s83 = sphi 0, %s81
      %s84 = sphi 0, %s83
      %s98 = sphi 0, %s84
      %s106 = sphi 0, %s108
      %s109 = sphi 0, %s106
      %s110 = sphi 0, %s109
      %s126 = sphi 0, %s110
      %s134 = sphi 0, %s136
      %s137 = sphi 0, %s134
      %s138 = sphi 0, %s137
      %s154 = sphi 0, %s138
    $region4: #{tpu_custom_call.1} parent=1 // loop_header_branch
      %17 = sbr.rel (%p15) target = $region8
    $region5: #{tpu_custom_call.1} parent=1 // loop_body
      %s19 = ssub.s32 %s14, 1
      %s20 = ssub.s32 %s14, 2
      %s27 = sadd.s32 1, %s22
      %p28 = scmp.ge.s32.totalorder %s27, 2
      %s29 = scalar_select %p28, 0, %s27
      %s30 = sadd.s32 1, %s21
      %s31 = scalar_select %p28, %s30, %s21
      %p32 = scmp.ge.s32.totalorder %s31, 2
      %s33 = scalar_select %p32, 0, %s31
      %s34 = ssub.s32 %s21, %s33
      %p35 = scmp.eq.s32.totalorder %s34, 0
      %s37 = sadd.s32 %s36, 1
      %s38 = scalar_select %p35, %s36, %s37
      %p41 = pneg %p35
      %p42 = scmp.eq.s32.totalorder %s14, 3
      %p43 = por %p41, %p42
      %p44 = scmp.ne.s32.totalorder %s36, %s39
      %p45 = scmp.eq.s32.totalorder %s14, 0
      %p46 = por %p44, %p45
      %p47 = scmp.ne.s32.totalorder %s36, %s39
      %p48 = scmp.eq.s32.totalorder %s19, 3
      %p49 = por %p47, %p48
      %p50 = scmp.ne.s32.totalorder %s39, %s40
      %p51 = scmp.eq.s32.totalorder %s19, 0
      %p52 = por %p50, %p51
      %p53 = scmp.ne.s32.totalorder %s39, %s40
      %p54 = scmp.eq.s32.totalorder %s20, 3
      %p55 = por %p53, %p54
      %p57 = scmp.ne.s32.totalorder %s40, %s56
      %p58 = scmp.eq.s32.totalorder %s20, 0
      %p59 = por %p57, %p58
      %s61 = sadd.s32 %s60, 1
      %p64 = scmp.eq.s32.totalorder %s14, 3
      %p65 = scmp.ne.s32.totalorder %s60, %s62
      %p66 = scmp.eq.s32.totalorder %s14, 0
      %p67 = por %p65, %p66
      %p68 = scmp.ne.s32.totalorder %s60, %s62
      %p69 = scmp.eq.s32.totalorder %s19, 3
      %p70 = por %p68, %p69
      %p71 = scmp.ne.s32.totalorder %s62, %s63
      %p72 = scmp.eq.s32.totalorder %s19, 0
      %p73 = por %p71, %p72
      %p74 = scmp.ne.s32.totalorder %s62, %s63
      %p75 = scmp.eq.s32.totalorder %s20, 3
      %p76 = por %p74, %p75
      %p78 = scmp.ne.s32.totalorder %s63, %s77
      %p79 = scmp.eq.s32.totalorder %s20, 0
      %p80 = por %p78, %p79
      %s82 = sadd.s32 %s81, 1
      %p85 = scmp.eq.s32.totalorder %s14, 3
      %p86 = scmp.ne.s32.totalorder %s81, %s83
      %p87 = scmp.eq.s32.totalorder %s14, 0
      %p88 = por %p86, %p87
      %p89 = scmp.ne.s32.totalorder %s81, %s83
      %p90 = scmp.eq.s32.totalorder %s19, 3
      %p91 = por %p89, %p90
      %p92 = scmp.ne.s32.totalorder %s83, %s84
      %p93 = scmp.eq.s32.totalorder %s19, 0
      %p94 = por %p92, %p93
      %p95 = scmp.ne.s32.totalorder %s83, %s84
      %p96 = scmp.eq.s32.totalorder %s20, 3
      %p97 = por %p95, %p96
      %p99 = scmp.ne.s32.totalorder %s84, %s98
      %p100 = scmp.eq.s32.totalorder %s20, 0
      %p101 = por %p99, %p100
      %s102 = ssub.s32 %s21, %s33
      %s103 = ssub.s32 %s22, %s29
      %s104 = sor.u32 %s102, %s103
      %p105 = scmp.eq.s32.totalorder %s104, 0
      %s107 = sadd.s32 %s106, 1
      %s108 = scalar_select %p105, %s106, %s107
      %p111 = pneg %p105
      %p112 = scmp.eq.s32.totalorder %s14, 3
      %p113 = por %p111, %p112
      %p114 = scmp.ne.s32.totalorder %s106, %s109
      %p115 = scmp.eq.s32.totalorder %s14, 0
      %p116 = por %p114, %p115
      %p117 = scmp.ne.s32.totalorder %s106, %s109
      %p118 = scmp.eq.s32.totalorder %s19, 3
      %p119 = por %p117, %p118
      %p120 = scmp.ne.s32.totalorder %s109, %s110
      %p121 = scmp.eq.s32.totalorder %s19, 0
      %p122 = por %p120, %p121
      %p123 = scmp.ne.s32.totalorder %s109, %s110
      %p124 = scmp.eq.s32.totalorder %s20, 3
      %p125 = por %p123, %p124
      %p127 = scmp.ne.s32.totalorder %s110, %s126
      %p128 = scmp.eq.s32.totalorder %s20, 0
      %p129 = por %p127, %p128
      %s130 = ssub.s32 %s21, %s33
      %s131 = ssub.s32 %s22, %s29
      %s132 = sor.u32 %s130, %s131
      %p133 = scmp.eq.s32.totalorder %s132, 0
      %s135 = sadd.s32 %s134, 1
      %s136 = scalar_select %p133, %s134, %s135
      %p139 = pneg %p133
      %p140 = scmp.eq.s32.totalorder %s14, 3
      %p141 = por %p139, %p140
      %p142 = scmp.ne.s32.totalorder %s134, %s137
      %p143 = scmp.eq.s32.totalorder %s14, 0
      %p144 = por %p142, %p143
      %p145 = scmp.ne.s32.totalorder %s134, %s137
      %p146 = scmp.eq.s32.totalorder %s19, 3
      %p147 = por %p145, %p146
      %p148 = scmp.ne.s32.totalorder %s137, %s138
      %p149 = scmp.eq.s32.totalorder %s19, 0
      %p150 = por %p148, %p149
      %p151 = scmp.ne.s32.totalorder %s137, %s138
      %p152 = scmp.eq.s32.totalorder %s20, 3
      %p153 = por %p151, %p152
      %p155 = scmp.ne.s32.totalorder %s138, %s154
      %p156 = scmp.eq.s32.totalorder %s20, 0
      %p157 = por %p155, %p156
      %p158 = scmp.le.s32.totalorder 1, %s14
      %p159 = scmp.lt.s32.totalorder %s14, 5
      %p160 = pnand %p158, %p159
      %p161 = pneg %p160
      // Predicated region
      $region9: #{tpu_custom_call.1} parent=5 // pred_check
        _
      $region10: #{tpu_custom_call.1} parent=5 // pred_check_branch
        %163 = sbr.rel (%p160) target = $region12
      $region11: #{tpu_custom_call.1} parent=5 // pred_region
        %s164 = ssub.s32 %s14, 1
        // Predicated region
        $region13: #{tpu_custom_call.1} parent=11 // pred_check
          %p165 = pneg %p73
        $region14: #{tpu_custom_call.1} parent=11 // pred_check_branch
          %167 = sbr.rel (%p165) target = $region16
        $region15: #{tpu_custom_call.1} parent=11 // pred_region
          _
        $region16: #{tpu_custom_call.1} parent=11 // pred_fallthru
          _
        // Predicated region
        $region17: #{tpu_custom_call.1} parent=11 // pred_check
          %p168 = pneg %p94
        $region18: #{tpu_custom_call.1} parent=11 // pred_check_branch
          %170 = sbr.rel (%p168) target = $region20
        $region19: #{tpu_custom_call.1} parent=11 // pred_region
          _
        $region20: #{tpu_custom_call.1} parent=11 // pred_fallthru
          _
      $region12: #{tpu_custom_call.1} parent=5 // pred_fallthru
        _
      %p171 = scmp.lt.s32.totalorder %s14, 4
      // Predicated region
      $region21: #{tpu_custom_call.1} parent=5 // pred_check
        %p172 = pneg %p171
      $region22: #{tpu_custom_call.1} parent=5 // pred_check_branch
        %174 = sbr.rel (%p172) target = $region24
      $region23: #{tpu_custom_call.1} parent=5 // pred_region
        // Predicated region
        $region25: #{tpu_custom_call.1} parent=23 // pred_check
          %p175 = pneg %p46
        $region26: #{tpu_custom_call.1} parent=23 // pred_check_branch
          %177 = sbr.rel (%p175) target = $region28
        $region27: #{tpu_custom_call.1} parent=23 // pred_region
          %p178 = scmp.lt.s32.totalorder %s21, 1
          %s179 = scalar_select %p178, %s21, 1
          %s180 = smul.addr %s179, 1296
          %s181 = smul.addr %s180, 4
          %s182 = scalar_lea.vmem %s0, %s181
        $region28: #{tpu_custom_call.1} parent=23 // pred_fallthru
          _
      $region24: #{tpu_custom_call.1} parent=5 // pred_fallthru
        _
      %p183 = scmp.le.s32.totalorder 1, %s14
      %p184 = scmp.lt.s32.totalorder %s14, 5
      %p185 = pnand %p183, %p184
      %p186 = pneg %p185
      // Predicated region
      $region29: #{tpu_custom_call.1} parent=5 // pred_check
        _
      $region30: #{tpu_custom_call.1} parent=5 // pred_check_branch
        %188 = sbr.rel (%p185) target = $region32
      $region31: #{tpu_custom_call.1} parent=5 // pred_region
        %s189 = ssub.s32 %s14, 1
        %p190 = scmp.lt.s32.totalorder %s23, 1
        %s191 = scalar_select %p190, %s23, 1
        %s192 = smul.addr %s191, 1296
        %s193 = smul.addr %s192, 4
        %s194 = scalar_lea.vmem %s0, %s193
        %p195 = pneg %p52
        %p196 = pneg %p49
        %p197 = pneg %p73
        %p198 = pneg %p70
        %p199 = pneg %p94
        %p200 = pneg %p91
        %p201 = pneg %p122
        %p202 = pneg %p119
        %s203 = sand.u32 %s109, 1
        %s204 = scalar_lea.sflag [#allocation3], %s203
        %s205 = sand.u32 %s109, 1
        %s206 = smul.addr %s205, 16
        %s207 = scalar_lea.vmem [#allocation2], %s206
        %p208 = pneg %p150
        %p209 = pneg %p147
        %p210 = scmp.lt.s32.totalorder %s23, 1
        %s211 = scalar_select %p210, %s23, 1
        %p212 = scmp.lt.s32.totalorder %s24, 1
        %s213 = scalar_select %p212, %s24, 1
        %s214 = smul.addr %s211, 2
        %s215 = sadd.s32 %s213, %s214
        %s216 = smul.addr %s215, 8
        %s217 = scalar_lea.vmem %s4, %s216
        %p218 = scmp.lt.s32.totalorder %s23, 1
        %s219 = scalar_select %p218, %s23, 1
        %s220 = smul.addr %s219, 1296
        %s221 = smul.addr %s220, 4
        %s222 = scalar_lea.vmem %s0, %s221
        %s223 = smul.u32 2, %s24
        %p224 = scmp.lt.s32.totalorder %s23, 1
        %s225 = scalar_select %p224, %s23, 1
        %p226 = scmp.lt.s32.totalorder %s24, 1
        %s227 = scalar_select %p226, %s24, 1
        %s228 = smul.addr %s225, 2
        %s229 = sadd.s32 %s227, %s228
        %s230 = smul.addr %s229, 8
        %s231 = scalar_lea.vmem %s4, %s230
        %s233 = smul.u32 %s24, 4
        %s234 = smul.u32 %s233, 18
        %s235 = smul.addr %s234, 4
        %s236 = scalar_lea.vmem %s222, %s235
        %v237 = vld [vmem:[%s236] sm:$0xf]
        %v238 = vld [vmem:[%s236 + $0x8] sm:$0xf]
        %v239 = vld [vmem:[%s236 + $0x10] sm:$0xf]
        %v240 = vld [vmem:[%s236 + $0x18] sm:$0xf]
        %v241 = vld [vmem:[%s236 + $0x20] sm:$0xf]
        %v242 = vld [vmem:[%s236 + $0x28] sm:$0xf]
        %v243 = vld [vmem:[%s236 + $0x30] sm:$0xf]
        %v244 = vld [vmem:[%s236 + $0x38] sm:$0xf]
        %v245 = vld [vmem:[%s236 + $0x48] sm:$0xf]
        %v246 = vld [vmem:[%s236 + $0x50] sm:$0xf]
        %v247 = vld [vmem:[%s236 + $0x58] sm:$0xf]
        %v248 = vld [vmem:[%s236 + $0x60] sm:$0xf]
        %v249 = vld [vmem:[%s236 + $0x68] sm:$0xf]
        %v250 = vld [vmem:[%s236 + $0x70] sm:$0xf]
        %v251 = vld [vmem:[%s236 + $0x78] sm:$0xf]
        %v252 = vld [vmem:[%s236 + $0x80] sm:$0xf]
        %v253 = vld [vmem:[%s236 + $0x90] sm:$0xf]
        %v254 = vld [vmem:[%s236 + $0x98] sm:$0xf]
        %v255 = vld [vmem:[%s236 + $0xa0] sm:$0xf]
        %v256 = vld [vmem:[%s236 + $0xa8] sm:$0xf]
        %v257 = vld [vmem:[%s236 + $0xb0] sm:$0xf]
        %v258 = vld [vmem:[%s236 + $0xb8] sm:$0xf]
        %v259 = vld [vmem:[%s236 + $0xc0] sm:$0xf]
        %v260 = vld [vmem:[%s236 + $0xc8] sm:$0xf]
        %v261 = vld [vmem:[%s236 + $0xd8] sm:$0xf]
        %v262 = vld [vmem:[%s236 + $0xe0] sm:$0xf]
        %v263 = vld [vmem:[%s236 + $0xe8] sm:$0xf]
        %v264 = vld [vmem:[%s236 + $0xf0] sm:$0xf]
        %v265 = vld [vmem:[%s236 + $0xf8] sm:$0xf]
        %v266 = vld [vmem:[%s236 + $0x100] sm:$0xf]
        %v267 = vld [vmem:[%s236 + $0x108] sm:$0xf]
        %v268 = vld [vmem:[%s236 + $0x110] sm:$0xf]
        %v269 = vld [vmem:[%s1] sm:$0xf]
        %s270 = sadd.s32 %s234, 162
        %s271 = smul.addr %s270, 4
        %s272 = scalar_lea.vmem %s222, %s271
        %v273 = vld [vmem:[%s272] sm:$0xf]
        %v274 = vld [vmem:[%s272 + $0x8] sm:$0xf]
        %v275 = vld [vmem:[%s272 + $0x10] sm:$0xf]
        %v276 = vld [vmem:[%s272 + $0x18] sm:$0xf]
        %v277 = vld [vmem:[%s272 + $0x20] sm:$0xf]
        %v278 = vld [vmem:[%s272 + $0x28] sm:$0xf]
        %v279 = vld [vmem:[%s272 + $0x30] sm:$0xf]
        %v280 = vld [vmem:[%s272 + $0x38] sm:$0xf]
        %v281 = vld [vmem:[%s272 + $0x48] sm:$0xf]
        %v282 = vld [vmem:[%s272 + $0x50] sm:$0xf]
        %v283 = vld [vmem:[%s272 + $0x58] sm:$0xf]
        %v284 = vld [vmem:[%s272 + $0x60] sm:$0xf]
        %v285 = vld [vmem:[%s272 + $0x68] sm:$0xf]
        %v286 = vld [vmem:[%s272 + $0x70] sm:$0xf]
        %v287 = vld [vmem:[%s272 + $0x78] sm:$0xf]
        %v288 = vld [vmem:[%s272 + $0x80] sm:$0xf]
        %v289 = vld [vmem:[%s272 + $0x90] sm:$0xf]
        %v290 = vld [vmem:[%s272 + $0x98] sm:$0xf]
        %v291 = vld [vmem:[%s272 + $0xa0] sm:$0xf]
        %v292 = vld [vmem:[%s272 + $0xa8] sm:$0xf]
        %v293 = vld [vmem:[%s272 + $0xb0] sm:$0xf]
        %v294 = vld [vmem:[%s272 + $0xb8] sm:$0xf]
        %v295 = vld [vmem:[%s272 + $0xc0] sm:$0xf]
        %v296 = vld [vmem:[%s272 + $0xc8] sm:$0xf]
        %v297 = vld [vmem:[%s272 + $0xd8] sm:$0xf]
        %v298 = vld [vmem:[%s272 + $0xe0] sm:$0xf]
        %v299 = vld [vmem:[%s272 + $0xe8] sm:$0xf]
        %v300 = vld [vmem:[%s272 + $0xf0] sm:$0xf]
        %v301 = vld [vmem:[%s272 + $0xf8] sm:$0xf]
        %v302 = vld [vmem:[%s272 + $0x100] sm:$0xf]
        %v303 = vld [vmem:[%s272 + $0x108] sm:$0xf]
        %v304 = vld [vmem:[%s272 + $0x110] sm:$0xf]
        %s305 = scalar_lea.vmem %s1, 4
        %v306 = vld [vmem:[%s305] sm:$0xf]
        %v339 = vunpack.c.l.b16 %v273
        %v340 = vunpack.c.l.b16 %v274
        %v341 = vunpack.c.l.b16 %v275
        %v342 = vunpack.c.l.b16 %v276
        %v343 = vunpack.c.l.b16 %v277
        %v344 = vunpack.c.l.b16 %v278
        %v345 = vunpack.c.l.b16 %v279
        %v346 = vunpack.c.l.b16 %v280
        %v347 = vunpack.c.l.b16 %v281
        %v348 = vunpack.c.l.b16 %v282
        %v349 = vunpack.c.l.b16 %v283
        %v350 = vunpack.c.l.b16 %v284
        %v351 = vunpack.c.l.b16 %v285
        %v352 = vunpack.c.l.b16 %v286
        %v353 = vunpack.c.l.b16 %v287
        %v354 = vunpack.c.l.b16 %v288
        %v355 = vunpack.c.l.b16 %v289
        %v356 = vunpack.c.l.b16 %v290
        %v357 = vunpack.c.l.b16 %v291
        %v358 = vunpack.c.l.b16 %v292
        %v359 = vunpack.c.l.b16 %v293
        %v360 = vunpack.c.l.b16 %v294
        %v361 = vunpack.c.l.b16 %v295
        %v362 = vunpack.c.l.b16 %v296
        %v363 = vunpack.c.l.b16 %v297
        %v364 = vunpack.c.l.b16 %v298
        %v365 = vunpack.c.l.b16 %v299
        %v366 = vunpack.c.l.b16 %v300
        %v367 = vunpack.c.l.b16 %v301
        %v368 = vunpack.c.l.b16 %v302
        %v369 = vunpack.c.l.b16 %v303
        %v370 = vunpack.c.l.b16 %v304
        %v371 = vpack.c.b16 %v340, %v339
        %v372 = vpack.c.b16 %v342, %v341
        %v373 = vpack.c.b16 %v344, %v343
        %v374 = vpack.c.b16 %v346, %v345
        %v375 = vpack.c.b16 %v348, %v347
        %v376 = vpack.c.b16 %v350, %v349
        %v377 = vpack.c.b16 %v352, %v351
        %v378 = vpack.c.b16 %v354, %v353
        %v379 = vpack.c.b16 %v356, %v355
        %v380 = vpack.c.b16 %v358, %v357
        %v381 = vpack.c.b16 %v360, %v359
        %v382 = vpack.c.b16 %v362, %v361
        %v383 = vpack.c.b16 %v364, %v363
        %v384 = vpack.c.b16 %v366, %v365
        %v385 = vpack.c.b16 %v368, %v367
        %v386 = vpack.c.b16 %v370, %v369
        %vm387 = vcmask 31744
        %v389 = vsel %vm387, %v306, 0
        %v392 = vsel %vm387, %v371, 0
        %v395 = vsel %vm387, %v372, 0
        %v398 = vsel %vm387, %v373, 0
        %v401 = vsel %vm387, %v374, 0
        %v404 = vsel %vm387, %v375, 0
        %v407 = vsel %vm387, %v376, 0
        %v410 = vsel %vm387, %v377, 0
        %v413 = vsel %vm387, %v378, 0
        %v416 = vsel %vm387, %v379, 0
        %v419 = vsel %vm387, %v380, 0
        %v422 = vsel %vm387, %v381, 0
        %v425 = vsel %vm387, %v382, 0
        %v428 = vsel %vm387, %v383, 0
        %v431 = vsel %vm387, %v384, 0
        %v434 = vsel %vm387, %v385, 0
        %v437 = vsel %vm387, %v386, 0
        %439 = vmatprep.subr.bf16.mxu0 0
        %440 = vmatpush1.bf16.xpose.msra.mxu0 %v392
        %441 = vmatprep.subr.bf16.mxu0 0
        %442 = vmatpush1.bf16.xpose.msra.mxu0 %v395
        %443 = vmatprep.subr.bf16.mxu0 0
        %444 = vmatpush1.bf16.xpose.msra.mxu0 %v398
        %445 = vmatprep.subr.bf16.mxu0 0
        %446 = vmatpush1.bf16.xpose.msra.mxu0 %v401
        %447 = vmatprep.subr.bf16.mxu0 0
        %448 = vmatpush1.bf16.xpose.msra.mxu0 %v404
        %449 = vmatprep.subr.bf16.mxu0 0
        %450 = vmatpush1.bf16.xpose.msra.mxu0 %v407
        %451 = vmatprep.subr.bf16.mxu0 0
        %452 = vmatpush1.bf16.xpose.msra.mxu0 %v410
        %453 = vmatprep.subr.bf16.mxu0 0
        %454 = vmatpush1.bf16.xpose.msra.mxu0 %v413
        %455 = vmatprep.subr.bf16.mxu0 0
        %456 = vmatpush1.bf16.xpose.msra.mxu0 %v416
        %457 = vmatprep.subr.bf16.mxu0 0
        %458 = vmatpush1.bf16.xpose.msra.mxu0 %v419
        %459 = vmatprep.subr.bf16.mxu0 0
        %460 = vmatpush1.bf16.xpose.msra.mxu0 %v422
        %461 = vmatprep.subr.bf16.mxu0 0
        %462 = vmatpush1.bf16.xpose.msra.mxu0 %v425
        %463 = vmatprep.subr.bf16.mxu0 0
        %464 = vmatpush1.bf16.xpose.msra.mxu0 %v428
        %465 = vmatprep.subr.bf16.mxu0 0
        %466 = vmatpush1.bf16.xpose.msra.mxu0 %v431
        %467 = vmatprep.subr.bf16.mxu0 0
        %468 = vmatpush1.bf16.xpose.msra.mxu0 %v434
        %469 = vmatprep.subr.bf16.mxu0 0
        %470 = vmatpush1.bf16.xpose.msra.mxu0 %v437
        %471 = vmatprep.mubr.bf16.mxu0 0
        %472 = vmatmul.mubr.bf16.gmra.mrb[0].mxu0 %v389
        %v473 = vpop.f32.mrb[0].mxu0
        %v474 = vadd.f32 0.0, %v473
        %v475 = vpop.f32.mrb[0].mxu0
        %v476 = vadd.f32 0.0, %v475
        %v477 = vpop.f32.mrb[0].mxu0
        %v478 = vpop.f32.mrb[0].mxu0
        %479 = vdwg.mxu0
        %v512 = vunpack.c.l.b16 %v237
        %v513 = vunpack.c.l.b16 %v238
        %v514 = vunpack.c.l.b16 %v239
        %v515 = vunpack.c.l.b16 %v240
        %v516 = vunpack.c.l.b16 %v241
        %v517 = vunpack.c.l.b16 %v242
        %v518 = vunpack.c.l.b16 %v243
        %v519 = vunpack.c.l.b16 %v244
        %v520 = vunpack.c.l.b16 %v245
        %v521 = vunpack.c.l.b16 %v246
        %v522 = vunpack.c.l.b16 %v247
        %v523 = vunpack.c.l.b16 %v248
        %v524 = vunpack.c.l.b16 %v249
        %v525 = vunpack.c.l.b16 %v250
        %v526 = vunpack.c.l.b16 %v251
        %v527 = vunpack.c.l.b16 %v252
        %v528 = vunpack.c.l.b16 %v253
        %v529 = vunpack.c.l.b16 %v254
        %v530 = vunpack.c.l.b16 %v255
        %v531 = vunpack.c.l.b16 %v256
        %v532 = vunpack.c.l.b16 %v257
        %v533 = vunpack.c.l.b16 %v258
        %v534 = vunpack.c.l.b16 %v259
        %v535 = vunpack.c.l.b16 %v260
        %v536 = vunpack.c.l.b16 %v261
        %v537 = vunpack.c.l.b16 %v262
        %v538 = vunpack.c.l.b16 %v263
        %v539 = vunpack.c.l.b16 %v264
        %v540 = vunpack.c.l.b16 %v265
        %v541 = vunpack.c.l.b16 %v266
        %v542 = vunpack.c.l.b16 %v267
        %v543 = vunpack.c.l.b16 %v268
        %v544 = vpack.c.b16 %v513, %v512
        %v545 = vpack.c.b16 %v515, %v514
        %v546 = vpack.c.b16 %v517, %v516
        %v547 = vpack.c.b16 %v519, %v518
        %v548 = vpack.c.b16 %v521, %v520
        %v549 = vpack.c.b16 %v523, %v522
        %v550 = vpack.c.b16 %v525, %v524
        %v551 = vpack.c.b16 %v527, %v526
        %v552 = vpack.c.b16 %v529, %v528
        %v553 = vpack.c.b16 %v531, %v530
        %v554 = vpack.c.b16 %v533, %v532
        %v555 = vpack.c.b16 %v535, %v534
        %v556 = vpack.c.b16 %v537, %v536
        %v557 = vpack.c.b16 %v539, %v538
        %v558 = vpack.c.b16 %v541, %v540
        %v559 = vpack.c.b16 %v543, %v542
        %v561 = vsel %vm387, %v269, 0
        %v564 = vsel %vm387, %v544, 0
        %v567 = vsel %vm387, %v545, 0
        %v570 = vsel %vm387, %v546, 0
        %v573 = vsel %vm387, %v547, 0
        %v576 = vsel %vm387, %v548, 0
        %v579 = vsel %vm387, %v549, 0
        %v582 = vsel %vm387, %v550, 0
        %v585 = vsel %vm387, %v551, 0
        %v588 = vsel %vm387, %v552, 0
        %v591 = vsel %vm387, %v553, 0
        %v594 = vsel %vm387, %v554, 0
        %v597 = vsel %vm387, %v555, 0
        %v600 = vsel %vm387, %v556, 0
        %v603 = vsel %vm387, %v557, 0
        %v606 = vsel %vm387, %v558, 0
        %v609 = vsel %vm387, %v559, 0
        %611 = vmatprep.subr.bf16.mxu0 0
        %612 = vmatpush1.bf16.xpose.msra.mxu0 %v564
        %613 = vmatprep.subr.bf16.mxu0 0
        %614 = vmatpush1.bf16.xpose.msra.mxu0 %v567
        %615 = vmatprep.subr.bf16.mxu0 0
        %616 = vmatpush1.bf16.xpose.msra.mxu0 %v570
        %617 = vmatprep.subr.bf16.mxu0 0
        %618 = vmatpush1.bf16.xpose.msra.mxu0 %v573
        %619 = vmatprep.subr.bf16.mxu0 0
        %620 = vmatpush1.bf16.xpose.msra.mxu0 %v576
        %621 = vmatprep.subr.bf16.mxu0 0
        %622 = vmatpush1.bf16.xpose.msra.mxu0 %v579
        %623 = vmatprep.subr.bf16.mxu0 0
        %624 = vmatpush1.bf16.xpose.msra.mxu0 %v582
        %625 = vmatprep.subr.bf16.mxu0 0
        %626 = vmatpush1.bf16.xpose.msra.mxu0 %v585
        %627 = vmatprep.subr.bf16.mxu0 0
        %628 = vmatpush1.bf16.xpose.msra.mxu0 %v588
        %629 = vmatprep.subr.bf16.mxu0 0
        %630 = vmatpush1.bf16.xpose.msra.mxu0 %v591
        %631 = vmatprep.subr.bf16.mxu0 0
        %632 = vmatpush1.bf16.xpose.msra.mxu0 %v594
        %633 = vmatprep.subr.bf16.mxu0 0
        %634 = vmatpush1.bf16.xpose.msra.mxu0 %v597
        %635 = vmatprep.subr.bf16.mxu0 0
        %636 = vmatpush1.bf16.xpose.msra.mxu0 %v600
        %637 = vmatprep.subr.bf16.mxu0 0
        %638 = vmatpush1.bf16.xpose.msra.mxu0 %v603
        %639 = vmatprep.subr.bf16.mxu0 0
        %640 = vmatpush1.bf16.xpose.msra.mxu0 %v606
        %641 = vmatprep.subr.bf16.mxu0 0
        %642 = vmatpush1.bf16.xpose.msra.mxu0 %v609
        %643 = vmatprep.mubr.bf16.mxu0 0
        %644 = vmatmul.mubr.bf16.gmra.mrb[0].mxu0 %v561
        %v645 = vpop.f32.mrb[0].mxu0
        %v646 = vadd.f32 %v474, %v645
        %v647 = vpop.f32.mrb[0].mxu0
        %v648 = vadd.f32 %v476, %v647
        %v649 = vpop.f32.mrb[0].mxu0
        %v650 = vpop.f32.mrb[0].mxu0
        %651 = vdwg.mxu0
        %v652 = vld [vmem:[%s236] sm:$0xf]
        %v653 = vld [vmem:[%s236 + $0x4] sm:$0x1]
        %v654 = vld [vmem:[%s236 + $0x8] sm:$0xf]
        %v655 = vld [vmem:[%s236 + $0xc] sm:$0x1]
        %v656 = vld [vmem:[%s236 + $0x10] sm:$0xf]
        %v657 = vld [vmem:[%s236 + $0x14] sm:$0x1]
        %v658 = vld [vmem:[%s236 + $0x18] sm:$0xf]
        %v659 = vld [vmem:[%s236 + $0x1c] sm:$0x1]
        %v660 = vld [vmem:[%s236 + $0x20] sm:$0xf]
        %v661 = vld [vmem:[%s236 + $0x24] sm:$0x1]
        %v662 = vld [vmem:[%s236 + $0x28] sm:$0xf]
        %v663 = vld [vmem:[%s236 + $0x2c] sm:$0x1]
        %v664 = vld [vmem:[%s236 + $0x30] sm:$0xf]
        %v665 = vld [vmem:[%s236 + $0x34] sm:$0x1]
        %v666 = vld [vmem:[%s236 + $0x38] sm:$0xf]
        %v667 = vld [vmem:[%s236 + $0x3c] sm:$0x1]
        %v668 = vld [vmem:[%s236 + $0x48] sm:$0xf]
        %v669 = vld [vmem:[%s236 + $0x4c] sm:$0x1]
        %v670 = vld [vmem:[%s236 + $0x50] sm:$0xf]
        %v671 = vld [vmem:[%s236 + $0x54] sm:$0x1]
        %v672 = vld [vmem:[%s236 + $0x58] sm:$0xf]
        %v673 = vld [vmem:[%s236 + $0x5c] sm:$0x1]
        %v674 = vld [vmem:[%s236 + $0x60] sm:$0xf]
        %v675 = vld [vmem:[%s236 + $0x64] sm:$0x1]
        %v676 = vld [vmem:[%s236 + $0x68] sm:$0xf]
        %v677 = vld [vmem:[%s236 + $0x6c] sm:$0x1]
        %v678 = vld [vmem:[%s236 + $0x70] sm:$0xf]
        %v679 = vld [vmem:[%s236 + $0x74] sm:$0x1]
        %v680 = vld [vmem:[%s236 + $0x78] sm:$0xf]
        %v681 = vld [vmem:[%s236 + $0x7c] sm:$0x1]
        %v682 = vld [vmem:[%s236 + $0x80] sm:$0xf]
        %v683 = vld [vmem:[%s236 + $0x84] sm:$0x1]
        %v684 = vld [vmem:[%s236 + $0x90] sm:$0xf]
        %v685 = vld [vmem:[%s236 + $0x94] sm:$0x1]
        %v686 = vld [vmem:[%s236 + $0x98] sm:$0xf]
        %v687 = vld [vmem:[%s236 + $0x9c] sm:$0x1]
        %v688 = vld [vmem:[%s236 + $0xa0] sm:$0xf]
        %v689 = vld [vmem:[%s236 + $0xa4] sm:$0x1]
        %v690 = vld [vmem:[%s236 + $0xa8] sm:$0xf]
        %v691 = vld [vmem:[%s236 + $0xac] sm:$0x1]
        %v692 = vld [vmem:[%s236 + $0xb0] sm:$0xf]
        %v693 = vld [vmem:[%s236 + $0xb4] sm:$0x1]
        %v694 = vld [vmem:[%s236 + $0xb8] sm:$0xf]
        %v695 = vld [vmem:[%s236 + $0xbc] sm:$0x1]
        %v696 = vld [vmem:[%s236 + $0xc0] sm:$0xf]
        %v697 = vld [vmem:[%s236 + $0xc4] sm:$0x1]
        %v698 = vld [vmem:[%s236 + $0xc8] sm:$0xf]
        %v699 = vld [vmem:[%s236 + $0xcc] sm:$0x1]
        %v700 = vld [vmem:[%s236 + $0xd8] sm:$0xf]
        %v701 = vld [vmem:[%s236 + $0xdc] sm:$0x1]
        %v702 = vld [vmem:[%s236 + $0xe0] sm:$0xf]
        %v703 = vld [vmem:[%s236 + $0xe4] sm:$0x1]
        %v704 = vld [vmem:[%s236 + $0xe8] sm:$0xf]
        %v705 = vld [vmem:[%s236 + $0xec] sm:$0x1]
        %v706 = vld [vmem:[%s236 + $0xf0] sm:$0xf]
        %v707 = vld [vmem:[%s236 + $0xf4] sm:$0x1]
        %v708 = vld [vmem:[%s236 + $0xf8] sm:$0xf]
        %v709 = vld [vmem:[%s236 + $0xfc] sm:$0x1]
        %v710 = vld [vmem:[%s236 + $0x100] sm:$0xf]
        %v711 = vld [vmem:[%s236 + $0x104] sm:$0x1]
        %v712 = vld [vmem:[%s236 + $0x108] sm:$0xf]
        %v713 = vld [vmem:[%s236 + $0x10c] sm:$0x1]
        %v714 = vld [vmem:[%s236 + $0x110] sm:$0xf]
        %v715 = vld [vmem:[%s236 + $0x114] sm:$0x1]
        %vm716 = vsmask.f32 3328
        %vm717 = vsmask.f32 7440
        %vm718 = vmor %vm716, %vm717
        %v720 = vshrl.u32 %v652, 16
        %v722 = vrot.slane %v720, 4
        %v723 = vshll.u32 %v652, 16
        %v725 = vrot.slane %v723, 5
        %v726 = vor.u32 %v722, %v725
        %v727 = vrot.slane %v726, 4
        %v729 = vshll.u32 %v653, 16
        %v731 = vrot.slane %v729, 5
        %v732 = vsel %vm718, %v727, %v731
        %v734 = vshrl.u32 %v654, 16
        %v736 = vrot.slane %v734, 4
        %v737 = vshll.u32 %v654, 16
        %v739 = vrot.slane %v737, 5
        %v740 = vor.u32 %v736, %v739
        %v741 = vrot.slane %v740, 4
        %v743 = vshll.u32 %v655, 16
        %v745 = vrot.slane %v743, 5
        %v746 = vsel %vm718, %v741, %v745
        %v748 = vshrl.u32 %v656, 16
        %v750 = vrot.slane %v748, 4
        %v751 = vshll.u32 %v656, 16
        %v753 = vrot.slane %v751, 5
        %v754 = vor.u32 %v750, %v753
        %v755 = vrot.slane %v754, 4
        %v757 = vshll.u32 %v657, 16
        %v759 = vrot.slane %v757, 5
        %v760 = vsel %vm718, %v755, %v759
        %v762 = vshrl.u32 %v658, 16
        %v764 = vrot.slane %v762, 4
        %v765 = vshll.u32 %v658, 16
        %v767 = vrot.slane %v765, 5
        %v768 = vor.u32 %v764, %v767
        %v769 = vrot.slane %v768, 4
        %v771 = vshll.u32 %v659, 16
        %v773 = vrot.slane %v771, 5
        %v774 = vsel %vm718, %v769, %v773
        %v776 = vshrl.u32 %v660, 16
        %v778 = vrot.slane %v776, 4
        %v779 = vshll.u32 %v660, 16
        %v781 = vrot.slane %v779, 5
        %v782 = vor.u32 %v778, %v781
        %v783 = vrot.slane %v782, 4
        %v785 = vshll.u32 %v661, 16
        %v787 = vrot.slane %v785, 5
        %v788 = vsel %vm718, %v783, %v787
        %v790 = vshrl.u32 %v662, 16
        %v792 = vrot.slane %v790, 4
        %v793 = vshll.u32 %v662, 16
        %v795 = vrot.slane %v793, 5
        %v796 = vor.u32 %v792, %v795
        %v797 = vrot.slane %v796, 4
        %v799 = vshll.u32 %v663, 16
        %v801 = vrot.slane %v799, 5
        %v802 = vsel %vm718, %v797, %v801
        %v804 = vshrl.u32 %v664, 16
        %v806 = vrot.slane %v804, 4
        %v807 = vshll.u32 %v664, 16
        %v809 = vrot.slane %v807, 5
        %v810 = vor.u32 %v806, %v809
        %v811 = vrot.slane %v810, 4
        %v813 = vshll.u32 %v665, 16
        %v815 = vrot.slane %v813, 5
        %v816 = vsel %vm718, %v811, %v815
        %v818 = vshrl.u32 %v666, 16
        %v820 = vrot.slane %v818, 4
        %v821 = vshll.u32 %v666, 16
        %v823 = vrot.slane %v821, 5
        %v824 = vor.u32 %v820, %v823
        %v825 = vrot.slane %v824, 4
        %v827 = vshll.u32 %v667, 16
        %v829 = vrot.slane %v827, 5
        %v830 = vsel %vm718, %v825, %v829
        %v832 = vshrl.u32 %v668, 16
        %v834 = vrot.slane %v832, 4
        %v835 = vshll.u32 %v668, 16
        %v837 = vrot.slane %v835, 5
        %v838 = vor.u32 %v834, %v837
        %v839 = vrot.slane %v838, 4
        %v841 = vshll.u32 %v669, 16
        %v843 = vrot.slane %v841, 5
        %v844 = vsel %vm718, %v839, %v843
        %v846 = vshrl.u32 %v670, 16
        %v848 = vrot.slane %v846, 4
        %v849 = vshll.u32 %v670, 16
        %v851 = vrot.slane %v849, 5
        %v852 = vor.u32 %v848, %v851
        %v853 = vrot.slane %v852, 4
        %v855 = vshll.u32 %v671, 16
        %v857 = vrot.slane %v855, 5
        %v858 = vsel %vm718, %v853, %v857
        %v860 = vshrl.u32 %v672, 16
        %v862 = vrot.slane %v860, 4
        %v863 = vshll.u32 %v672, 16
        %v865 = vrot.slane %v863, 5
        %v866 = vor.u32 %v862, %v865
        %v867 = vrot.slane %v866, 4
        %v869 = vshll.u32 %v673, 16
        %v871 = vrot.slane %v869, 5
        %v872 = vsel %vm718, %v867, %v871
        %v874 = vshrl.u32 %v674, 16
        %v876 = vrot.slane %v874, 4
        %v877 = vshll.u32 %v674, 16
        %v879 = vrot.slane %v877, 5
        %v880 = vor.u32 %v876, %v879
        %v881 = vrot.slane %v880, 4
        %v883 = vshll.u32 %v675, 16
        %v885 = vrot.slane %v883, 5
        %v886 = vsel %vm718, %v881, %v885
        %v888 = vshrl.u32 %v676, 16
        %v890 = vrot.slane %v888, 4
        %v891 = vshll.u32 %v676, 16
        %v893 = vrot.slane %v891, 5
        %v894 = vor.u32 %v890, %v893
        %v895 = vrot.slane %v894, 4
        %v897 = vshll.u32 %v677, 16
        %v899 = vrot.slane %v897, 5
        %v900 = vsel %vm718, %v895, %v899
        %v902 = vshrl.u32 %v678, 16
        %v904 = vrot.slane %v902, 4
        %v905 = vshll.u32 %v678, 16
        %v907 = vrot.slane %v905, 5
        %v908 = vor.u32 %v904, %v907
        %v909 = vrot.slane %v908, 4
        %v911 = vshll.u32 %v679, 16
        %v913 = vrot.slane %v911, 5
        %v914 = vsel %vm718, %v909, %v913
        %v916 = vshrl.u32 %v680, 16
        %v918 = vrot.slane %v916, 4
        %v919 = vshll.u32 %v680, 16
        %v921 = vrot.slane %v919, 5
        %v922 = vor.u32 %v918, %v921
        %v923 = vrot.slane %v922, 4
        %v925 = vshll.u32 %v681, 16
        %v927 = vrot.slane %v925, 5
        %v928 = vsel %vm718, %v923, %v927
        %v930 = vshrl.u32 %v682, 16
        %v932 = vrot.slane %v930, 4
        %v933 = vshll.u32 %v682, 16
        %v935 = vrot.slane %v933, 5
        %v936 = vor.u32 %v932, %v935
        %v937 = vrot.slane %v936, 4
        %v939 = vshll.u32 %v683, 16
        %v941 = vrot.slane %v939, 5
        %v942 = vsel %vm718, %v937, %v941
        %v944 = vshrl.u32 %v684, 16
        %v946 = vrot.slane %v944, 4
        %v947 = vshll.u32 %v684, 16
        %v949 = vrot.slane %v947, 5
        %v950 = vor.u32 %v946, %v949
        %v951 = vrot.slane %v950, 4
        %v953 = vshll.u32 %v685, 16
        %v955 = vrot.slane %v953, 5
        %v956 = vsel %vm718, %v951, %v955
        %v958 = vshrl.u32 %v686, 16
        %v960 = vrot.slane %v958, 4
        %v961 = vshll.u32 %v686, 16
        %v963 = vrot.slane %v961, 5
        %v964 = vor.u32 %v960, %v963
        %v965 = vrot.slane %v964, 4
        %v967 = vshll.u32 %v687, 16
        %v969 = vrot.slane %v967, 5
        %v970 = vsel %vm718, %v965, %v969
        %v972 = vshrl.u32 %v688, 16
        %v974 = vrot.slane %v972, 4
        %v975 = vshll.u32 %v688, 16
        %v977 = vrot.slane %v975, 5
        %v978 = vor.u32 %v974, %v977
        %v979 = vrot.slane %v978, 4
        %v981 = vshll.u32 %v689, 16
        %v983 = vrot.slane %v981, 5
        %v984 = vsel %vm718, %v979, %v983
        %v986 = vshrl.u32 %v690, 16
        %v988 = vrot.slane %v986, 4
        %v989 = vshll.u32 %v690, 16
        %v991 = vrot.slane %v989, 5
        %v992 = vor.u32 %v988, %v991
        %v993 = vrot.slane %v992, 4
        %v995 = vshll.u32 %v691, 16
        %v997 = vrot.slane %v995, 5
        %v998 = vsel %vm718, %v993, %v997
        %v1000 = vshrl.u32 %v692, 16
        %v1002 = vrot.slane %v1000, 4
        %v1003 = vshll.u32 %v692, 16
        %v1005 = vrot.slane %v1003, 5
        %v1006 = vor.u32 %v1002, %v1005
        %v1007 = vrot.slane %v1006, 4
        %v1009 = vshll.u32 %v693, 16
        %v1011 = vrot.slane %v1009, 5
        %v1012 = vsel %vm718, %v1007, %v1011
        %v1014 = vshrl.u32 %v694, 16
        %v1016 = vrot.slane %v1014, 4
        %v1017 = vshll.u32 %v694, 16
        %v1019 = vrot.slane %v1017, 5
        %v1020 = vor.u32 %v1016, %v1019
        %v1021 = vrot.slane %v1020, 4
        %v1023 = vshll.u32 %v695, 16
        %v1025 = vrot.slane %v1023, 5
        %v1026 = vsel %vm718, %v1021, %v1025
        %v1028 = vshrl.u32 %v696, 16
        %v1030 = vrot.slane %v1028, 4
        %v1031 = vshll.u32 %v696, 16
        %v1033 = vrot.slane %v1031, 5
        %v1034 = vor.u32 %v1030, %v1033
        %v1035 = vrot.slane %v1034, 4
        %v1037 = vshll.u32 %v697, 16
        %v1039 = vrot.slane %v1037, 5
        %v1040 = vsel %vm718, %v1035, %v1039
        %v1042 = vshrl.u32 %v698, 16
        %v1044 = vrot.slane %v1042, 4
        %v1045 = vshll.u32 %v698, 16
        %v1047 = vrot.slane %v1045, 5
        %v1048 = vor.u32 %v1044, %v1047
        %v1049 = vrot.slane %v1048, 4
        %v1051 = vshll.u32 %v699, 16
        %v1053 = vrot.slane %v1051, 5
        %v1054 = vsel %vm718, %v1049, %v1053
        %v1056 = vshrl.u32 %v700, 16
        %v1058 = vrot.slane %v1056, 4
        %v1059 = vshll.u32 %v700, 16
        %v1061 = vrot.slane %v1059, 5
        %v1062 = vor.u32 %v1058, %v1061
        %v1063 = vrot.slane %v1062, 4
        %v1065 = vshll.u32 %v701, 16
        %v1067 = vrot.slane %v1065, 5
        %v1068 = vsel %vm718, %v1063, %v1067
        %v1070 = vshrl.u32 %v702, 16
        %v1072 = vrot.slane %v1070, 4
        %v1073 = vshll.u32 %v702, 16
        %v1075 = vrot.slane %v1073, 5
        %v1076 = vor.u32 %v1072, %v1075
        %v1077 = vrot.slane %v1076, 4
        %v1079 = vshll.u32 %v703, 16
        %v1081 = vrot.slane %v1079, 5
        %v1082 = vsel %vm718, %v1077, %v1081
        %v1084 = vshrl.u32 %v704, 16
        %v1086 = vrot.slane %v1084, 4
        %v1087 = vshll.u32 %v704, 16
        %v1089 = vrot.slane %v1087, 5
        %v1090 = vor.u32 %v1086, %v1089
        %v1091 = vrot.slane %v1090, 4
        %v1093 = vshll.u32 %v705, 16
        %v1095 = vrot.slane %v1093, 5
        %v1096 = vsel %vm718, %v1091, %v1095
        %v1098 = vshrl.u32 %v706, 16
        %v1100 = vrot.slane %v1098, 4
        %v1101 = vshll.u32 %v706, 16
        %v1103 = vrot.slane %v1101, 5
        %v1104 = vor.u32 %v1100, %v1103
        %v1105 = vrot.slane %v1104, 4
        %v1107 = vshll.u32 %v707, 16
        %v1109 = vrot.slane %v1107, 5
        %v1110 = vsel %vm718, %v1105, %v1109
        %v1112 = vshrl.u32 %v708, 16
        %v1114 = vrot.slane %v1112, 4
        %v1115 = vshll.u32 %v708, 16
        %v1117 = vrot.slane %v1115, 5
        %v1118 = vor.u32 %v1114, %v1117
        %v1119 = vrot.slane %v1118, 4
        %v1121 = vshll.u32 %v709, 16
        %v1123 = vrot.slane %v1121, 5
        %v1124 = vsel %vm718, %v1119, %v1123
        %v1126 = vshrl.u32 %v710, 16
        %v1128 = vrot.slane %v1126, 4
        %v1129 = vshll.u32 %v710, 16
        %v1131 = vrot.slane %v1129, 5
        %v1132 = vor.u32 %v1128, %v1131
        %v1133 = vrot.slane %v1132, 4
        %v1135 = vshll.u32 %v711, 16
        %v1137 = vrot.slane %v1135, 5
        %v1138 = vsel %vm718, %v1133, %v1137
        %v1140 = vshrl.u32 %v712, 16
        %v1142 = vrot.slane %v1140, 4
        %v1143 = vshll.u32 %v712, 16
        %v1145 = vrot.slane %v1143, 5
        %v1146 = vor.u32 %v1142, %v1145
        %v1147 = vrot.slane %v1146, 4
        %v1149 = vshll.u32 %v713, 16
        %v1151 = vrot.slane %v1149, 5
        %v1152 = vsel %vm718, %v1147, %v1151
        %v1154 = vshrl.u32 %v714, 16
        %v1156 = vrot.slane %v1154, 4
        %v1157 = vshll.u32 %v714, 16
        %v1159 = vrot.slane %v1157, 5
        %v1160 = vor.u32 %v1156, %v1159
        %v1161 = vrot.slane %v1160, 4
        %v1163 = vshll.u32 %v715, 16
        %v1165 = vrot.slane %v1163, 5
        %v1166 = vsel %vm718, %v1161, %v1165
        %s1167 = scalar_lea.vmem %s1, 8
        %v1168 = vld [vmem:[%s1167] sm:$0xf]
        %v1169 = vunpack.c.l.b16 %v732
        %v1170 = vunpack.c.l.b16 %v746
        %v1171 = vunpack.c.l.b16 %v760
        %v1172 = vunpack.c.l.b16 %v774
        %v1173 = vunpack.c.l.b16 %v788
        %v1174 = vunpack.c.l.b16 %v802
        %v1175 = vunpack.c.l.b16 %v816
        %v1176 = vunpack.c.l.b16 %v830
        %v1177 = vunpack.c.l.b16 %v844
        %v1178 = vunpack.c.l.b16 %v858
        %v1179 = vunpack.c.l.b16 %v872
        %v1180 = vunpack.c.l.b16 %v886
        %v1181 = vunpack.c.l.b16 %v900
        %v1182 = vunpack.c.l.b16 %v914
        %v1183 = vunpack.c.l.b16 %v928
        %v1184 = vunpack.c.l.b16 %v942
        %v1185 = vunpack.c.l.b16 %v956
        %v1186 = vunpack.c.l.b16 %v970
        %v1187 = vunpack.c.l.b16 %v984
        %v1188 = vunpack.c.l.b16 %v998
        %v1189 = vunpack.c.l.b16 %v1012
        %v1190 = vunpack.c.l.b16 %v1026
        %v1191 = vunpack.c.l.b16 %v1040
        %v1192 = vunpack.c.l.b16 %v1054
        %v1193 = vunpack.c.l.b16 %v1068
        %v1194 = vunpack.c.l.b16 %v1082
        %v1195 = vunpack.c.l.b16 %v1096
        %v1196 = vunpack.c.l.b16 %v1110
        %v1197 = vunpack.c.l.b16 %v1124
        %v1198 = vunpack.c.l.b16 %v1138
        %v1199 = vunpack.c.l.b16 %v1152
        %v1200 = vunpack.c.l.b16 %v1166
        %v1201 = vpack.c.b16 %v1170, %v1169
        %v1202 = vpack.c.b16 %v1172, %v1171
        %v1203 = vpack.c.b16 %v1174, %v1173
        %v1204 = vpack.c.b16 %v1176, %v1175
        %v1205 = vpack.c.b16 %v1178, %v1177
        %v1206 = vpack.c.b16 %v1180, %v1179
        %v1207 = vpack.c.b16 %v1182, %v1181
        %v1208 = vpack.c.b16 %v1184, %v1183
        %v1209 = vpack.c.b16 %v1186, %v1185
        %v1210 = vpack.c.b16 %v1188, %v1187
        %v1211 = vpack.c.b16 %v1190, %v1189
        %v1212 = vpack.c.b16 %v1192, %v1191
        %v1213 = vpack.c.b16 %v1194, %v1193
        %v1214 = vpack.c.b16 %v1196, %v1195
        %v1215 = vpack.c.b16 %v1198, %v1197
        %v1216 = vpack.c.b16 %v1200, %v1199
        %v1218 = vsel %vm387, %v1168, 0
        %v1221 = vsel %vm387, %v1201, 0
        %v1224 = vsel %vm387, %v1202, 0
        %v1227 = vsel %vm387, %v1203, 0
        %v1230 = vsel %vm387, %v1204, 0
        %v1233 = vsel %vm387, %v1205, 0
        %v1236 = vsel %vm387, %v1206, 0
        %v1239 = vsel %vm387, %v1207, 0
        %v1242 = vsel %vm387, %v1208, 0
        %v1245 = vsel %vm387, %v1209, 0
        %v1248 = vsel %vm387, %v1210, 0
        %v1251 = vsel %vm387, %v1211, 0
        %v1254 = vsel %vm387, %v1212, 0
        %v1257 = vsel %vm387, %v1213, 0
        %v1260 = vsel %vm387, %v1214, 0
        %v1263 = vsel %vm387, %v1215, 0
        %v1266 = vsel %vm387, %v1216, 0
        %1268 = vmatprep.subr.bf16.mxu0 0
        %1269 = vmatpush1.bf16.xpose.msra.mxu0 %v1221
        %1270 = vmatprep.subr.bf16.mxu0 0
        %1271 = vmatpush1.bf16.xpose.msra.mxu0 %v1224
        %1272 = vmatprep.subr.bf16.mxu0 0
        %1273 = vmatpush1.bf16.xpose.msra.mxu0 %v1227
        %1274 = vmatprep.subr.bf16.mxu0 0
        %1275 = vmatpush1.bf16.xpose.msra.mxu0 %v1230
        %1276 = vmatprep.subr.bf16.mxu0 0
        %1277 = vmatpush1.bf16.xpose.msra.mxu0 %v1233
        %1278 = vmatprep.subr.bf16.mxu0 0
        %1279 = vmatpush1.bf16.xpose.msra.mxu0 %v1236
        %1280 = vmatprep.subr.bf16.mxu0 0
        %1281 = vmatpush1.bf16.xpose.msra.mxu0 %v1239
        %1282 = vmatprep.subr.bf16.mxu0 0
        %1283 = vmatpush1.bf16.xpose.msra.mxu0 %v1242
        %1284 = vmatprep.subr.bf16.mxu0 0
        %1285 = vmatpush1.bf16.xpose.msra.mxu0 %v1245
        %1286 = vmatprep.subr.bf16.mxu0 0
        %1287 = vmatpush1.bf16.xpose.msra.mxu0 %v1248
        %1288 = vmatprep.subr.bf16.mxu0 0
        %1289 = vmatpush1.bf16.xpose.msra.mxu0 %v1251
        %1290 = vmatprep.subr.bf16.mxu0 0
        %1291 = vmatpush1.bf16.xpose.msra.mxu0 %v1254
        %1292 = vmatprep.subr.bf16.mxu0 0
        %1293 = vmatpush1.bf16.xpose.msra.mxu0 %v1257
        %1294 = vmatprep.subr.bf16.mxu0 0
        %1295 = vmatpush1.bf16.xpose.msra.mxu0 %v1260
        %1296 = vmatprep.subr.bf16.mxu0 0
        %1297 = vmatpush1.bf16.xpose.msra.mxu0 %v1263
        %1298 = vmatprep.subr.bf16.mxu0 0
        %1299 = vmatpush1.bf16.xpose.msra.mxu0 %v1266
        %1300 = vmatprep.mubr.bf16.mxu0 0
        %1301 = vmatmul.mubr.bf16.gmra.mrb[0].mxu0 %v1218
        %v1302 = vpop.f32.mrb[0].mxu0
        %v1303 = vadd.f32 0.0, %v1302
        %v1304 = vpop.f32.mrb[0].mxu0
        %v1305 = vadd.f32 0.0, %v1304
        %v1306 = vpop.f32.mrb[0].mxu0
        %v1307 = vpop.f32.mrb[0].mxu0
        %1308 = vdwg.mxu0
        %v1309 = vadd.f32 %v646, %v1303
        %v1310 = vadd.f32 %v648, %v1305
        %s1311 = sadd.s32 %s234, 324
        %s1312 = smul.addr %s1311, 4
        %s1313 = scalar_lea.vmem %s222, %s1312
        %v1314 = vld [vmem:[%s1313] sm:$0xf]
        %v1315 = vld [vmem:[%s1313 + $0x8] sm:$0xf]
        %v1316 = vld [vmem:[%s1313 + $0x10] sm:$0xf]
        %v1317 = vld [vmem:[%s1313 + $0x18] sm:$0xf]
        %v1318 = vld [vmem:[%s1313 + $0x20] sm:$0xf]
        %v1319 = vld [vmem:[%s1313 + $0x28] sm:$0xf]
        %v1320 = vld [vmem:[%s1313 + $0x30] sm:$0xf]
        %v1321 = vld [vmem:[%s1313 + $0x38] sm:$0xf]
        %v1322 = vld [vmem:[%s1313 + $0x48] sm:$0xf]
        %v1323 = vld [vmem:[%s1313 + $0x50] sm:$0xf]
        %v1324 = vld [vmem:[%s1313 + $0x58] sm:$0xf]
        %v1325 = vld [vmem:[%s1313 + $0x60] sm:$0xf]
        %v1326 = vld [vmem:[%s1313 + $0x68] sm:$0xf]
        %v1327 = vld [vmem:[%s1313 + $0x70] sm:$0xf]
        %v1328 = vld [vmem:[%s1313 + $0x78] sm:$0xf]
        %v1329 = vld [vmem:[%s1313 + $0x80] sm:$0xf]
        %v1330 = vld [vmem:[%s1313 + $0x90] sm:$0xf]
        %v1331 = vld [vmem:[%s1313 + $0x98] sm:$0xf]
        %v1332 = vld [vmem:[%s1313 + $0xa0] sm:$0xf]
        %v1333 = vld [vmem:[%s1313 + $0xa8] sm:$0xf]
        %v1334 = vld [vmem:[%s1313 + $0xb0] sm:$0xf]
        %v1335 = vld [vmem:[%s1313 + $0xb8] sm:$0xf]
        %v1336 = vld [vmem:[%s1313 + $0xc0] sm:$0xf]
        %v1337 = vld [vmem:[%s1313 + $0xc8] sm:$0xf]
        %v1338 = vld [vmem:[%s1313 + $0xd8] sm:$0xf]
        %v1339 = vld [vmem:[%s1313 + $0xe0] sm:$0xf]
        %v1340 = vld [vmem:[%s1313 + $0xe8] sm:$0xf]
        %v1341 = vld [vmem:[%s1313 + $0xf0] sm:$0xf]
        %v1342 = vld [vmem:[%s1313 + $0xf8] sm:$0xf]
        %v1343 = vld [vmem:[%s1313 + $0x100] sm:$0xf]
        %v1344 = vld [vmem:[%s1313 + $0x108] sm:$0xf]
        %v1345 = vld [vmem:[%s1313 + $0x110] sm:$0xf]
        %s1346 = scalar_lea.vmem %s1, 12
        %v1347 = vld [vmem:[%s1346] sm:$0xf]
        %v1380 = vunpack.c.l.b16 %v1314
        %v1381 = vunpack.c.l.b16 %v1315
        %v1382 = vunpack.c.l.b16 %v1316
        %v1383 = vunpack.c.l.b16 %v1317
        %v1384 = vunpack.c.l.b16 %v1318
        %v1385 = vunpack.c.l.b16 %v1319
        %v1386 = vunpack.c.l.b16 %v1320
        %v1387 = vunpack.c.l.b16 %v1321
        %v1388 = vunpack.c.l.b16 %v1322
        %v1389 = vunpack.c.l.b16 %v1323
        %v1390 = vunpack.c.l.b16 %v1324
        %v1391 = vunpack.c.l.b16 %v1325
        %v1392 = vunpack.c.l.b16 %v1326
        %v1393 = vunpack.c.l.b16 %v1327
        %v1394 = vunpack.c.l.b16 %v1328
        %v1395 = vunpack.c.l.b16 %v1329
        %v1396 = vunpack.c.l.b16 %v1330
        %v1397 = vunpack.c.l.b16 %v1331
        %v1398 = vunpack.c.l.b16 %v1332
        %v1399 = vunpack.c.l.b16 %v1333
        %v1400 = vunpack.c.l.b16 %v1334
        %v1401 = vunpack.c.l.b16 %v1335
        %v1402 = vunpack.c.l.b16 %v1336
        %v1403 = vunpack.c.l.b16 %v1337
        %v1404 = vunpack.c.l.b16 %v1338
        %v1405 = vunpack.c.l.b16 %v1339
        %v1406 = vunpack.c.l.b16 %v1340
        %v1407 = vunpack.c.l.b16 %v1341
        %v1408 = vunpack.c.l.b16 %v1342
        %v1409 = vunpack.c.l.b16 %v1343
        %v1410 = vunpack.c.l.b16 %v1344
        %v1411 = vunpack.c.l.b16 %v1345
        %v1412 = vpack.c.b16 %v1381, %v1380
        %v1413 = vpack.c.b16 %v1383, %v1382
        %v1414 = vpack.c.b16 %v1385, %v1384
        %v1415 = vpack.c.b16 %v1387, %v1386
        %v1416 = vpack.c.b16 %v1389, %v1388
        %v1417 = vpack.c.b16 %v1391, %v1390
        %v1418 = vpack.c.b16 %v1393, %v1392
        %v1419 = vpack.c.b16 %v1395, %v1394
        %v1420 = vpack.c.b16 %v1397, %v1396
        %v1421 = vpack.c.b16 %v1399, %v1398
        %v1422 = vpack.c.b16 %v1401, %v1400
        %v1423 = vpack.c.b16 %v1403, %v1402
        %v1424 = vpack.c.b16 %v1405, %v1404
        %v1425 = vpack.c.b16 %v1407, %v1406
        %v1426 = vpack.c.b16 %v1409, %v1408
        %v1427 = vpack.c.b16 %v1411, %v1410
        %v1429 = vsel %vm387, %v1347, 0
        %v1432 = vsel %vm387, %v1412, 0
        %v1435 = vsel %vm387, %v1413, 0
        %v1438 = vsel %vm387, %v1414, 0
        %v1441 = vsel %vm387, %v1415, 0
        %v1444 = vsel %vm387, %v1416, 0
        %v1447 = vsel %vm387, %v1417, 0
        %v1450 = vsel %vm387, %v1418, 0
        %v1453 = vsel %vm387, %v1419, 0
        %v1456 = vsel %vm387, %v1420, 0
        %v1459 = vsel %vm387, %v1421, 0
        %v1462 = vsel %vm387, %v1422, 0
        %v1465 = vsel %vm387, %v1423, 0
        %v1468 = vsel %vm387, %v1424, 0
        %v1471 = vsel %vm387, %v1425, 0
        %v1474 = vsel %vm387, %v1426, 0
        %v1477 = vsel %vm387, %v1427, 0
        %1479 = vmatprep.subr.bf16.mxu0 0
        %1480 = vmatpush1.bf16.xpose.msra.mxu0 %v1432
        %1481 = vmatprep.subr.bf16.mxu0 0
        %1482 = vmatpush1.bf16.xpose.msra.mxu0 %v1435
        %1483 = vmatprep.subr.bf16.mxu0 0
        %1484 = vmatpush1.bf16.xpose.msra.mxu0 %v1438
        %1485 = vmatprep.subr.bf16.mxu0 0
        %1486 = vmatpush1.bf16.xpose.msra.mxu0 %v1441
        %1487 = vmatprep.subr.bf16.mxu0 0
        %1488 = vmatpush1.bf16.xpose.msra.mxu0 %v1444
        %1489 = vmatprep.subr.bf16.mxu0 0
        %1490 = vmatpush1.bf16.xpose.msra.mxu0 %v1447
        %1491 = vmatprep.subr.bf16.mxu0 0
        %1492 = vmatpush1.bf16.xpose.msra.mxu0 %v1450
        %1493 = vmatprep.subr.bf16.mxu0 0
        %1494 = vmatpush1.bf16.xpose.msra.mxu0 %v1453
        %1495 = vmatprep.subr.bf16.mxu0 0
        %1496 = vmatpush1.bf16.xpose.msra.mxu0 %v1456
        %1497 = vmatprep.subr.bf16.mxu0 0
        %1498 = vmatpush1.bf16.xpose.msra.mxu0 %v1459
        %1499 = vmatprep.subr.bf16.mxu0 0
        %1500 = vmatpush1.bf16.xpose.msra.mxu0 %v1462
        %1501 = vmatprep.subr.bf16.mxu0 0
        %1502 = vmatpush1.bf16.xpose.msra.mxu0 %v1465
        %1503 = vmatprep.subr.bf16.mxu0 0
        %1504 = vmatpush1.bf16.xpose.msra.mxu0 %v1468
        %1505 = vmatprep.subr.bf16.mxu0 0
        %1506 = vmatpush1.bf16.xpose.msra.mxu0 %v1471
        %1507 = vmatprep.subr.bf16.mxu0 0
        %1508 = vmatpush1.bf16.xpose.msra.mxu0 %v1474
        %1509 = vmatprep.subr.bf16.mxu0 0
        %1510 = vmatpush1.bf16.xpose.msra.mxu0 %v1477
        %1511 = vmatprep.mubr.bf16.mxu0 0
        %1512 = vmatmul.mubr.bf16.gmra.mrb[0].mxu0 %v1429
        %v1513 = vpop.f32.mrb[0].mxu0
        %v1514 = vadd.f32 0.0, %v1513
        %v1515 = vpop.f32.mrb[0].mxu0
        %v1516 = vadd.f32 0.0, %v1515
        %v1517 = vpop.f32.mrb[0].mxu0
        %v1518 = vpop.f32.mrb[0].mxu0
        %1519 = vdwg.mxu0
        %v1520 = vadd.f32 %v1309, %v1514
        %v1521 = vadd.f32 %v1310, %v1516
        %s1522 = sadd.s32 %s234, 486
        %s1523 = smul.addr %s1522, 4
        %s1524 = scalar_lea.vmem %s222, %s1523
        %v1525 = vld [vmem:[%s1524] sm:$0xf]
        %v1526 = vld [vmem:[%s1524 + $0x8] sm:$0xf]
        %v1527 = vld [vmem:[%s1524 + $0x10] sm:$0xf]
        %v1528 = vld [vmem:[%s1524 + $0x18] sm:$0xf]
        %v1529 = vld [vmem:[%s1524 + $0x20] sm:$0xf]
        %v1530 = vld [vmem:[%s1524 + $0x28] sm:$0xf]
        %v1531 = vld [vmem:[%s1524 + $0x30] sm:$0xf]
        %v1532 = vld [vmem:[%s1524 + $0x38] sm:$0xf]
        %v1533 = vld [vmem:[%s1524 + $0x48] sm:$0xf]
        %v1534 = vld [vmem:[%s1524 + $0x50] sm:$0xf]
        %v1535 = vld [vmem:[%s1524 + $0x58] sm:$0xf]
        %v1536 = vld [vmem:[%s1524 + $0x60] sm:$0xf]
        %v1537 = vld [vmem:[%s1524 + $0x68] sm:$0xf]
        %v1538 = vld [vmem:[%s1524 + $0x70] sm:$0xf]
        %v1539 = vld [vmem:[%s1524 + $0x78] sm:$0xf]
        %v1540 = vld [vmem:[%s1524 + $0x80] sm:$0xf]
        %v1541 = vld [vmem:[%s1524 + $0x90] sm:$0xf]
        %v1542 = vld [vmem:[%s1524 + $0x98] sm:$0xf]
        %v1543 = vld [vmem:[%s1524 + $0xa0] sm:$0xf]
        %v1544 = vld [vmem:[%s1524 + $0xa8] sm:$0xf]
        %v1545 = vld [vmem:[%s1524 + $0xb0] sm:$0xf]
        %v1546 = vld [vmem:[%s1524 + $0xb8] sm:$0xf]
        %v1547 = vld [vmem:[%s1524 + $0xc0] sm:$0xf]
        %v1548 = vld [vmem:[%s1524 + $0xc8] sm:$0xf]
        %v1549 = vld [vmem:[%s1524 + $0xd8] sm:$0xf]
        %v1550 = vld [vmem:[%s1524 + $0xe0] sm:$0xf]
        %v1551 = vld [vmem:[%s1524 + $0xe8] sm:$0xf]
        %v1552 = vld [vmem:[%s1524 + $0xf0] sm:$0xf]
        %v1553 = vld [vmem:[%s1524 + $0xf8] sm:$0xf]
        %v1554 = vld [vmem:[%s1524 + $0x100] sm:$0xf]
        %v1555 = vld [vmem:[%s1524 + $0x108] sm:$0xf]
        %v1556 = vld [vmem:[%s1524 + $0x110] sm:$0xf]
        %s1557 = scalar_lea.vmem %s1, 16
        %v1558 = vld [vmem:[%s1557] sm:$0xf]
        %v1591 = vunpack.c.l.b16 %v1525
        %v1592 = vunpack.c.l.b16 %v1526
        %v1593 = vunpack.c.l.b16 %v1527
        %v1594 = vunpack.c.l.b16 %v1528
        %v1595 = vunpack.c.l.b16 %v1529
        %v1596 = vunpack.c.l.b16 %v1530
        %v1597 = vunpack.c.l.b16 %v1531
        %v1598 = vunpack.c.l.b16 %v1532
        %v1599 = vunpack.c.l.b16 %v1533
        %v1600 = vunpack.c.l.b16 %v1534
        %v1601 = vunpack.c.l.b16 %v1535
        %v1602 = vunpack.c.l.b16 %v1536
        %v1603 = vunpack.c.l.b16 %v1537
        %v1604 = vunpack.c.l.b16 %v1538
        %v1605 = vunpack.c.l.b16 %v1539
        %v1606 = vunpack.c.l.b16 %v1540
        %v1607 = vunpack.c.l.b16 %v1541
        %v1608 = vunpack.c.l.b16 %v1542
        %v1609 = vunpack.c.l.b16 %v1543
        %v1610 = vunpack.c.l.b16 %v1544
        %v1611 = vunpack.c.l.b16 %v1545
        %v1612 = vunpack.c.l.b16 %v1546
        %v1613 = vunpack.c.l.b16 %v1547
        %v1614 = vunpack.c.l.b16 %v1548
        %v1615 = vunpack.c.l.b16 %v1549
        %v1616 = vunpack.c.l.b16 %v1550
        %v1617 = vunpack.c.l.b16 %v1551
        %v1618 = vunpack.c.l.b16 %v1552
        %v1619 = vunpack.c.l.b16 %v1553
        %v1620 = vunpack.c.l.b16 %v1554
        %v1621 = vunpack.c.l.b16 %v1555
        %v1622 = vunpack.c.l.b16 %v1556
        %v1623 = vpack.c.b16 %v1592, %v1591
        %v1624 = vpack.c.b16 %v1594, %v1593
        %v1625 = vpack.c.b16 %v1596, %v1595
        %v1626 = vpack.c.b16 %v1598, %v1597
        %v1627 = vpack.c.b16 %v1600, %v1599
        %v1628 = vpack.c.b16 %v1602, %v1601
        %v1629 = vpack.c.b16 %v1604, %v1603
        %v1630 = vpack.c.b16 %v1606, %v1605
        %v1631 = vpack.c.b16 %v1608, %v1607
        %v1632 = vpack.c.b16 %v1610, %v1609
        %v1633 = vpack.c.b16 %v1612, %v1611
        %v1634 = vpack.c.b16 %v1614, %v1613
        %v1635 = vpack.c.b16 %v1616, %v1615
        %v1636 = vpack.c.b16 %v1618, %v1617
        %v1637 = vpack.c.b16 %v1620, %v1619
        %v1638 = vpack.c.b16 %v1622, %v1621
        %v1640 = vsel %vm387, %v1558, 0
        %v1643 = vsel %vm387, %v1623, 0
        %v1646 = vsel %vm387, %v1624, 0
        %v1649 = vsel %vm387, %v1625, 0
        %v1652 = vsel %vm387, %v1626, 0
        %v1655 = vsel %vm387, %v1627, 0
        %v1658 = vsel %vm387, %v1628, 0
        %v1661 = vsel %vm387, %v1629, 0
        %v1664 = vsel %vm387, %v1630, 0
        %v1667 = vsel %vm387, %v1631, 0
        %v1670 = vsel %vm387, %v1632, 0
        %v1673 = vsel %vm387, %v1633, 0
        %v1676 = vsel %vm387, %v1634, 0
        %v1679 = vsel %vm387, %v1635, 0
        %v1682 = vsel %vm387, %v1636, 0
        %v1685 = vsel %vm387, %v1637, 0
        %v1688 = vsel %vm387, %v1638, 0
        %1690 = vmatprep.subr.bf16.mxu0 0
        %1691 = vmatpush1.bf16.xpose.msra.mxu0 %v1643
        %1692 = vmatprep.subr.bf16.mxu0 0
        %1693 = vmatpush1.bf16.xpose.msra.mxu0 %v1646
        %1694 = vmatprep.subr.bf16.mxu0 0
        %1695 = vmatpush1.bf16.xpose.msra.mxu0 %v1649
        %1696 = vmatprep.subr.bf16.mxu0 0
        %1697 = vmatpush1.bf16.xpose.msra.mxu0 %v1652
        %1698 = vmatprep.subr.bf16.mxu0 0
        %1699 = vmatpush1.bf16.xpose.msra.mxu0 %v1655
        %1700 = vmatprep.subr.bf16.mxu0 0
        %1701 = vmatpush1.bf16.xpose.msra.mxu0 %v1658
        %1702 = vmatprep.subr.bf16.mxu0 0
        %1703 = vmatpush1.bf16.xpose.msra.mxu0 %v1661
        %1704 = vmatprep.subr.bf16.mxu0 0
        %1705 = vmatpush1.bf16.xpose.msra.mxu0 %v1664
        %1706 = vmatprep.subr.bf16.mxu0 0
        %1707 = vmatpush1.bf16.xpose.msra.mxu0 %v1667
        %1708 = vmatprep.subr.bf16.mxu0 0
        %1709 = vmatpush1.bf16.xpose.msra.mxu0 %v1670
        %1710 = vmatprep.subr.bf16.mxu0 0
        %1711 = vmatpush1.bf16.xpose.msra.mxu0 %v1673
        %1712 = vmatprep.subr.bf16.mxu0 0
        %1713 = vmatpush1.bf16.xpose.msra.mxu0 %v1676
        %1714 = vmatprep.subr.bf16.mxu0 0
        %1715 = vmatpush1.bf16.xpose.msra.mxu0 %v1679
        %1716 = vmatprep.subr.bf16.mxu0 0
        %1717 = vmatpush1.bf16.xpose.msra.mxu0 %v1682
        %1718 = vmatprep.subr.bf16.mxu0 0
        %1719 = vmatpush1.bf16.xpose.msra.mxu0 %v1685
        %1720 = vmatprep.subr.bf16.mxu0 0
        %1721 = vmatpush1.bf16.xpose.msra.mxu0 %v1688
        %1722 = vmatprep.mubr.bf16.mxu0 0
        %1723 = vmatmul.mubr.bf16.gmra.mrb[0].mxu0 %v1640
        %v1724 = vpop.f32.mrb[0].mxu0
        %v1725 = vadd.f32 0.0, %v1724
        %v1726 = vpop.f32.mrb[0].mxu0
        %v1727 = vadd.f32 0.0, %v1726
        %v1728 = vpop.f32.mrb[0].mxu0
        %v1729 = vpop.f32.mrb[0].mxu0
        %1730 = vdwg.mxu0
        %v1731 = vadd.f32 %v1520, %v1725
        %v1732 = vadd.f32 %v1521, %v1727
        %v1733 = vld [vmem:[%s1313] sm:$0xf]
        %v1734 = vld [vmem:[%s1313 + $0x4] sm:$0x1]
        %v1735 = vld [vmem:[%s1313 + $0x8] sm:$0xf]
        %v1736 = vld [vmem:[%s1313 + $0xc] sm:$0x1]
        %v1737 = vld [vmem:[%s1313 + $0x10] sm:$0xf]
        %v1738 = vld [vmem:[%s1313 + $0x14] sm:$0x1]
        %v1739 = vld [vmem:[%s1313 + $0x18] sm:$0xf]
        %v1740 = vld [vmem:[%s1313 + $0x1c] sm:$0x1]
        %v1741 = vld [vmem:[%s1313 + $0x20] sm:$0xf]
        %v1742 = vld [vmem:[%s1313 + $0x24] sm:$0x1]
        %v1743 = vld [vmem:[%s1313 + $0x28] sm:$0xf]
        %v1744 = vld [vmem:[%s1313 + $0x2c] sm:$0x1]
        %v1745 = vld [vmem:[%s1313 + $0x30] sm:$0xf]
        %v1746 = vld [vmem:[%s1313 + $0x34] sm:$0x1]
        %v1747 = vld [vmem:[%s1313 + $0x38] sm:$0xf]
        %v1748 = vld [vmem:[%s1313 + $0x3c] sm:$0x1]
        %v1749 = vld [vmem:[%s1313 + $0x48] sm:$0xf]
        %v1750 = vld [vmem:[%s1313 + $0x4c] sm:$0x1]
        %v1751 = vld [vmem:[%s1313 + $0x50] sm:$0xf]
        %v1752 = vld [vmem:[%s1313 + $0x54] sm:$0x1]
        %v1753 = vld [vmem:[%s1313 + $0x58] sm:$0xf]
        %v1754 = vld [vmem:[%s1313 + $0x5c] sm:$0x1]
        %v1755 = vld [vmem:[%s1313 + $0x60] sm:$0xf]
        %v1756 = vld [vmem:[%s1313 + $0x64] sm:$0x1]
        %v1757 = vld [vmem:[%s1313 + $0x68] sm:$0xf]
        %v1758 = vld [vmem:[%s1313 + $0x6c] sm:$0x1]
        %v1759 = vld [vmem:[%s1313 + $0x70] sm:$0xf]
        %v1760 = vld [vmem:[%s1313 + $0x74] sm:$0x1]
        %v1761 = vld [vmem:[%s1313 + $0x78] sm:$0xf]
        %v1762 = vld [vmem:[%s1313 + $0x7c] sm:$0x1]
        %v1763 = vld [vmem:[%s1313 + $0x80] sm:$0xf]
        %v1764 = vld [vmem:[%s1313 + $0x84] sm:$0x1]
        %v1765 = vld [vmem:[%s1313 + $0x90] sm:$0xf]
        %v1766 = vld [vmem:[%s1313 + $0x94] sm:$0x1]
        %v1767 = vld [vmem:[%s1313 + $0x98] sm:$0xf]
        %v1768 = vld [vmem:[%s1313 + $0x9c] sm:$0x1]
        %v1769 = vld [vmem:[%s1313 + $0xa0] sm:$0xf]
        %v1770 = vld [vmem:[%s1313 + $0xa4] sm:$0x1]
        %v1771 = vld [vmem:[%s1313 + $0xa8] sm:$0xf]
        %v1772 = vld [vmem:[%s1313 + $0xac] sm:$0x1]
        %v1773 = vld [vmem:[%s1313 + $0xb0] sm:$0xf]
        %v1774 = vld [vmem:[%s1313 + $0xb4] sm:$0x1]
        %v1775 = vld [vmem:[%s1313 + $0xb8] sm:$0xf]
        %v1776 = vld [vmem:[%s1313 + $0xbc] sm:$0x1]
        %v1777 = vld [vmem:[%s1313 + $0xc0] sm:$0xf]
        %v1778 = vld [vmem:[%s1313 + $0xc4] sm:$0x1]
        %v1779 = vld [vmem:[%s1313 + $0xc8] sm:$0xf]
        %v1780 = vld [vmem:[%s1313 + $0xcc] sm:$0x1]
        %v1781 = vld [vmem:[%s1313 + $0xd8] sm:$0xf]
        %v1782 = vld [vmem:[%s1313 + $0xdc] sm:$0x1]
        %v1783 = vld [vmem:[%s1313 + $0xe0] sm:$0xf]
        %v1784 = vld [vmem:[%s1313 + $0xe4] sm:$0x1]
        %v1785 = vld [vmem:[%s1313 + $0xe8] sm:$0xf]
        %v1786 = vld [vmem:[%s1313 + $0xec] sm:$0x1]
        %v1787 = vld [vmem:[%s1313 + $0xf0] sm:$0xf]
        %v1788 = vld [vmem:[%s1313 + $0xf4] sm:$0x1]
        %v1789 = vld [vmem:[%s1313 + $0xf8] sm:$0xf]
        %v1790 = vld [vmem:[%s1313 + $0xfc] sm:$0x1]
        %v1791 = vld [vmem:[%s1313 + $0x100] sm:$0xf]
        %v1792 = vld [vmem:[%s1313 + $0x104] sm:$0x1]
        %v1793 = vld [vmem:[%s1313 + $0x108] sm:$0xf]
        %v1794 = vld [vmem:[%s1313 + $0x10c] sm:$0x1]
        %v1795 = vld [vmem:[%s1313 + $0x110] sm:$0xf]
        %v1796 = vld [vmem:[%s1313 + $0x114] sm:$0x1]
        %v1798 = vshrl.u32 %v1733, 16
        %v1800 = vrot.slane %v1798, 4
        %v1801 = vshll.u32 %v1733, 16
        %v1803 = vrot.slane %v1801, 5
        %v1804 = vor.u32 %v1800, %v1803
        %v1805 = vrot.slane %v1804, 4
        %v1807 = vshll.u32 %v1734, 16
        %v1809 = vrot.slane %v1807, 5
        %v1810 = vsel %vm718, %v1805, %v1809
        %v1812 = vshrl.u32 %v1735, 16
        %v1814 = vrot.slane %v1812, 4
        %v1815 = vshll.u32 %v1735, 16
        %v1817 = vrot.slane %v1815, 5
        %v1818 = vor.u32 %v1814, %v1817
        %v1819 = vrot.slane %v1818, 4
        %v1821 = vshll.u32 %v1736, 16
        %v1823 = vrot.slane %v1821, 5
        %v1824 = vsel %vm718, %v1819, %v1823
        %v1826 = vshrl.u32 %v1737, 16
        %v1828 = vrot.slane %v1826, 4
        %v1829 = vshll.u32 %v1737, 16
        %v1831 = vrot.slane %v1829, 5
        %v1832 = vor.u32 %v1828, %v1831
        %v1833 = vrot.slane %v1832, 4
        %v1835 = vshll.u32 %v1738, 16
        %v1837 = vrot.slane %v1835, 5
        %v1838 = vsel %vm718, %v1833, %v1837
        %v1840 = vshrl.u32 %v1739, 16
        %v1842 = vrot.slane %v1840, 4
        %v1843 = vshll.u32 %v1739, 16
        %v1845 = vrot.slane %v1843, 5
        %v1846 = vor.u32 %v1842, %v1845
        %v1847 = vrot.slane %v1846, 4
        %v1849 = vshll.u32 %v1740, 16
        %v1851 = vrot.slane %v1849, 5
        %v1852 = vsel %vm718, %v1847, %v1851
        %v1854 = vshrl.u32 %v1741, 16
        %v1856 = vrot.slane %v1854, 4
        %v1857 = vshll.u32 %v1741, 16
        %v1859 = vrot.slane %v1857, 5
        %v1860 = vor.u32 %v1856, %v1859
        %v1861 = vrot.slane %v1860, 4
        %v1863 = vshll.u32 %v1742, 16
        %v1865 = vrot.slane %v1863, 5
        %v1866 = vsel %vm718, %v1861, %v1865
        %v1868 = vshrl.u32 %v1743, 16
        %v1870 = vrot.slane %v1868, 4
        %v1871 = vshll.u32 %v1743, 16
        %v1873 = vrot.slane %v1871, 5
        %v1874 = vor.u32 %v1870, %v1873
        %v1875 = vrot.slane %v1874, 4
        %v1877 = vshll.u32 %v1744, 16
        %v1879 = vrot.slane %v1877, 5
        %v1880 = vsel %vm718, %v1875, %v1879
        %v1882 = vshrl.u32 %v1745, 16
        %v1884 = vrot.slane %v1882, 4
        %v1885 = vshll.u32 %v1745, 16
        %v1887 = vrot.slane %v1885, 5
        %v1888 = vor.u32 %v1884, %v1887
        %v1889 = vrot.slane %v1888, 4
        %v1891 = vshll.u32 %v1746, 16
        %v1893 = vrot.slane %v1891, 5
        %v1894 = vsel %vm718, %v1889, %v1893
        %v1896 = vshrl.u32 %v1747, 16
        %v1898 = vrot.slane %v1896, 4
        %v1899 = vshll.u32 %v1747, 16
        %v1901 = vrot.slane %v1899, 5
        %v1902 = vor.u32 %v1898, %v1901
        %v1903 = vrot.slane %v1902, 4
        %v1905 = vshll.u32 %v1748, 16
        %v1907 = vrot.slane %v1905, 5
        %v1908 = vsel %vm718, %v1903, %v1907
        %v1910 = vshrl.u32 %v1749, 16
        %v1912 = vrot.slane %v1910, 4
        %v1913 = vshll.u32 %v1749, 16
        %v1915 = vrot.slane %v1913, 5
        %v1916 = vor.u32 %v1912, %v1915
        %v1917 = vrot.slane %v1916, 4
        %v1919 = vshll.u32 %v1750, 16
        %v1921 = vrot.slane %v1919, 5
        %v1922 = vsel %vm718, %v1917, %v1921
        %v1924 = vshrl.u32 %v1751, 16
        %v1926 = vrot.slane %v1924, 4
        %v1927 = vshll.u32 %v1751, 16
        %v1929 = vrot.slane %v1927, 5
        %v1930 = vor.u32 %v1926, %v1929
        %v1931 = vrot.slane %v1930, 4
        %v1933 = vshll.u32 %v1752, 16
        %v1935 = vrot.slane %v1933, 5
        %v1936 = vsel %vm718, %v1931, %v1935
        %v1938 = vshrl.u32 %v1753, 16
        %v1940 = vrot.slane %v1938, 4
        %v1941 = vshll.u32 %v1753, 16
        %v1943 = vrot.slane %v1941, 5
        %v1944 = vor.u32 %v1940, %v1943
        %v1945 = vrot.slane %v1944, 4
        %v1947 = vshll.u32 %v1754, 16
        %v1949 = vrot.slane %v1947, 5
        %v1950 = vsel %vm718, %v1945, %v1949
        %v1952 = vshrl.u32 %v1755, 16
        %v1954 = vrot.slane %v1952, 4
        %v1955 = vshll.u32 %v1755, 16
        %v1957 = vrot.slane %v1955, 5
        %v1958 = vor.u32 %v1954, %v1957
        %v1959 = vrot.slane %v1958, 4
        %v1961 = vshll.u32 %v1756, 16
        %v1963 = vrot.slane %v1961, 5
        %v1964 = vsel %vm718, %v1959, %v1963
        %v1966 = vshrl.u32 %v1757, 16
        %v1968 = vrot.slane %v1966, 4
        %v1969 = vshll.u32 %v1757, 16
        %v1971 = vrot.slane %v1969, 5
        %v1972 = vor.u32 %v1968, %v1971
        %v1973 = vrot.slane %v1972, 4
        %v1975 = vshll.u32 %v1758, 16
        %v1977 = vrot.slane %v1975, 5
        %v1978 = vsel %vm718, %v1973, %v1977
        %v1980 = vshrl.u32 %v1759, 16
        %v1982 = vrot.slane %v1980, 4
        %v1983 = vshll.u32 %v1759, 16
        %v1985 = vrot.slane %v1983, 5
        %v1986 = vor.u32 %v1982, %v1985
        %v1987 = vrot.slane %v1986, 4
        %v1989 = vshll.u32 %v1760, 16
        %v1991 = vrot.slane %v1989, 5
        %v1992 = vsel %vm718, %v1987, %v1991
        %v1994 = vshrl.u32 %v1761, 16
        %v1996 = vrot.slane %v1994, 4
        %v1997 = vshll.u32 %v1761, 16
        %v1999 = vrot.slane %v1997, 5
        %v2000 = vor.u32 %v1996, %v1999
        %v2001 = vrot.slane %v2000, 4
        %v2003 = vshll.u32 %v1762, 16
        %v2005 = vrot.slane %v2003, 5
        %v2006 = vsel %vm718, %v2001, %v2005
        %v2008 = vshrl.u32 %v1763, 16
        %v2010 = vrot.slane %v2008, 4
        %v2011 = vshll.u32 %v1763, 16
        %v2013 = vrot.slane %v2011, 5
        %v2014 = vor.u32 %v2010, %v2013
        %v2015 = vrot.slane %v2014, 4
        %v2017 = vshll.u32 %v1764, 16
        %v2019 = vrot.slane %v2017, 5
        %v2020 = vsel %vm718, %v2015, %v2019
        %v2022 = vshrl.u32 %v1765, 16
        %v2024 = vrot.slane %v2022, 4
        %v2025 = vshll.u32 %v1765, 16
        %v2027 = vrot.slane %v2025, 5
        %v2028 = vor.u32 %v2024, %v2027
        %v2029 = vrot.slane %v2028, 4
        %v2031 = vshll.u32 %v1766, 16
        %v2033 = vrot.slane %v2031, 5
        %v2034 = vsel %vm718, %v2029, %v2033
        %v2036 = vshrl.u32 %v1767, 16
        %v2038 = vrot.slane %v2036, 4
        %v2039 = vshll.u32 %v1767, 16
        %v2041 = vrot.slane %v2039, 5
        %v2042 = vor.u32 %v2038, %v2041
        %v2043 = vrot.slane %v2042, 4
        %v2045 = vshll.u32 %v1768, 16
        %v2047 = vrot.slane %v2045, 5
        %v2048 = vsel %vm718, %v2043, %v2047
        %v2050 = vshrl.u32 %v1769, 16
        %v2052 = vrot.slane %v2050, 4
        %v2053 = vshll.u32 %v1769, 16
        %v2055 = vrot.slane %v2053, 5
        %v2056 = vor.u32 %v2052, %v2055
        %v2057 = vrot.slane %v2056, 4
        %v2059 = vshll.u32 %v1770, 16
        %v2061 = vrot.slane %v2059, 5
        %v2062 = vsel %vm718, %v2057, %v2061
        %v2064 = vshrl.u32 %v1771, 16
        %v2066 = vrot.slane %v2064, 4
        %v2067 = vshll.u32 %v1771, 16
        %v2069 = vrot.slane %v2067, 5
        %v2070 = vor.u32 %v2066, %v2069
        %v2071 = vrot.slane %v2070, 4
        %v2073 = vshll.u32 %v1772, 16
        %v2075 = vrot.slane %v2073, 5
        %v2076 = vsel %vm718, %v2071, %v2075
        %v2078 = vshrl.u32 %v1773, 16
        %v2080 = vrot.slane %v2078, 4
        %v2081 = vshll.u32 %v1773, 16
        %v2083 = vrot.slane %v2081, 5
        %v2084 = vor.u32 %v2080, %v2083
        %v2085 = vrot.slane %v2084, 4
        %v2087 = vshll.u32 %v1774, 16
        %v2089 = vrot.slane %v2087, 5
        %v2090 = vsel %vm718, %v2085, %v2089
        %v2092 = vshrl.u32 %v1775, 16
        %v2094 = vrot.slane %v2092, 4
        %v2095 = vshll.u32 %v1775, 16
        %v2097 = vrot.slane %v2095, 5
        %v2098 = vor.u32 %v2094, %v2097
        %v2099 = vrot.slane %v2098, 4
        %v2101 = vshll.u32 %v1776, 16
        %v2103 = vrot.slane %v2101, 5
        %v2104 = vsel %vm718, %v2099, %v2103
        %v2106 = vshrl.u32 %v1777, 16
        %v2108 = vrot.slane %v2106, 4
        %v2109 = vshll.u32 %v1777, 16
        %v2111 = vrot.slane %v2109, 5
        %v2112 = vor.u32 %v2108, %v2111
        %v2113 = vrot.slane %v2112, 4
        %v2115 = vshll.u32 %v1778, 16
        %v2117 = vrot.slane %v2115, 5
        %v2118 = vsel %vm718, %v2113, %v2117
        %v2120 = vshrl.u32 %v1779, 16
        %v2122 = vrot.slane %v2120, 4
        %v2123 = vshll.u32 %v1779, 16
        %v2125 = vrot.slane %v2123, 5
        %v2126 = vor.u32 %v2122, %v2125
        %v2127 = vrot.slane %v2126, 4
        %v2129 = vshll.u32 %v1780, 16
        %v2131 = vrot.slane %v2129, 5
        %v2132 = vsel %vm718, %v2127, %v2131
        %v2134 = vshrl.u32 %v1781, 16
        %v2136 = vrot.slane %v2134, 4
        %v2137 = vshll.u32 %v1781, 16
        %v2139 = vrot.slane %v2137, 5
        %v2140 = vor.u32 %v2136, %v2139
        %v2141 = vrot.slane %v2140, 4
        %v2143 = vshll.u32 %v1782, 16
        %v2145 = vrot.slane %v2143, 5
        %v2146 = vsel %vm718, %v2141, %v2145
        %v2148 = vshrl.u32 %v1783, 16
        %v2150 = vrot.slane %v2148, 4
        %v2151 = vshll.u32 %v1783, 16
        %v2153 = vrot.slane %v2151, 5
        %v2154 = vor.u32 %v2150, %v2153
        %v2155 = vrot.slane %v2154, 4
        %v2157 = vshll.u32 %v1784, 16
        %v2159 = vrot.slane %v2157, 5
        %v2160 = vsel %vm718, %v2155, %v2159
        %v2162 = vshrl.u32 %v1785, 16
        %v2164 = vrot.slane %v2162, 4
        %v2165 = vshll.u32 %v1785, 16
        %v2167 = vrot.slane %v2165, 5
        %v2168 = vor.u32 %v2164, %v2167
        %v2169 = vrot.slane %v2168, 4
        %v2171 = vshll.u32 %v1786, 16
        %v2173 = vrot.slane %v2171, 5
        %v2174 = vsel %vm718, %v2169, %v2173
        %v2176 = vshrl.u32 %v1787, 16
        %v2178 = vrot.slane %v2176, 4
        %v2179 = vshll.u32 %v1787, 16
        %v2181 = vrot.slane %v2179, 5
        %v2182 = vor.u32 %v2178, %v2181
        %v2183 = vrot.slane %v2182, 4
        %v2185 = vshll.u32 %v1788, 16
        %v2187 = vrot.slane %v2185, 5
        %v2188 = vsel %vm718, %v2183, %v2187
        %v2190 = vshrl.u32 %v1789, 16
        %v2192 = vrot.slane %v2190, 4
        %v2193 = vshll.u32 %v1789, 16
        %v2195 = vrot.slane %v2193, 5
        %v2196 = vor.u32 %v2192, %v2195
        %v2197 = vrot.slane %v2196, 4
        %v2199 = vshll.u32 %v1790, 16
        %v2201 = vrot.slane %v2199, 5
        %v2202 = vsel %vm718, %v2197, %v2201
        %v2204 = vshrl.u32 %v1791, 16
        %v2206 = vrot.slane %v2204, 4
        %v2207 = vshll.u32 %v1791, 16
        %v2209 = vrot.slane %v2207, 5
        %v2210 = vor.u32 %v2206, %v2209
        %v2211 = vrot.slane %v2210, 4
        %v2213 = vshll.u32 %v1792, 16
        %v2215 = vrot.slane %v2213, 5
        %v2216 = vsel %vm718, %v2211, %v2215
        %v2218 = vshrl.u32 %v1793, 16
        %v2220 = vrot.slane %v2218, 4
        %v2221 = vshll.u32 %v1793, 16
        %v2223 = vrot.slane %v2221, 5
        %v2224 = vor.u32 %v2220, %v2223
        %v2225 = vrot.slane %v2224, 4
        %v2227 = vshll.u32 %v1794, 16
        %v2229 = vrot.slane %v2227, 5
        %v2230 = vsel %vm718, %v2225, %v2229
        %v2232 = vshrl.u32 %v1795, 16
        %v2234 = vrot.slane %v2232, 4
        %v2235 = vshll.u32 %v1795, 16
        %v2237 = vrot.slane %v2235, 5
        %v2238 = vor.u32 %v2234, %v2237
        %v2239 = vrot.slane %v2238, 4
        %v2241 = vshll.u32 %v1796, 16
        %v2243 = vrot.slane %v2241, 5
        %v2244 = vsel %vm718, %v2239, %v2243
        %s2245 = scalar_lea.vmem %s1, 20
        %v2246 = vld [vmem:[%s2245] sm:$0xf]
        %v2247 = vunpack.c.l.b16 %v1810
        %v2248 = vunpack.c.l.b16 %v1824
        %v2249 = vunpack.c.l.b16 %v1838
        %v2250 = vunpack.c.l.b16 %v1852
        %v2251 = vunpack.c.l.b16 %v1866
        %v2252 = vunpack.c.l.b16 %v1880
        %v2253 = vunpack.c.l.b16 %v1894
        %v2254 = vunpack.c.l.b16 %v1908
        %v2255 = vunpack.c.l.b16 %v1922
        %v2256 = vunpack.c.l.b16 %v1936
        %v2257 = vunpack.c.l.b16 %v1950
        %v2258 = vunpack.c.l.b16 %v1964
        %v2259 = vunpack.c.l.b16 %v1978
        %v2260 = vunpack.c.l.b16 %v1992
        %v2261 = vunpack.c.l.b16 %v2006
        %v2262 = vunpack.c.l.b16 %v2020
        %v2263 = vunpack.c.l.b16 %v2034
        %v2264 = vunpack.c.l.b16 %v2048
        %v2265 = vunpack.c.l.b16 %v2062
        %v2266 = vunpack.c.l.b16 %v2076
        %v2267 = vunpack.c.l.b16 %v2090
        %v2268 = vunpack.c.l.b16 %v2104
        %v2269 = vunpack.c.l.b16 %v2118
        %v2270 = vunpack.c.l.b16 %v2132
        %v2271 = vunpack.c.l.b16 %v2146
        %v2272 = vunpack.c.l.b16 %v2160
        %v2273 = vunpack.c.l.b16 %v2174
        %v2274 = vunpack.c.l.b16 %v2188
        %v2275 = vunpack.c.l.b16 %v2202
        %v2276 = vunpack.c.l.b16 %v2216
        %v2277 = vunpack.c.l.b16 %v2230
        %v2278 = vunpack.c.l.b16 %v2244
        %v2279 = vpack.c.b16 %v2248, %v2247
        %v2280 = vpack.c.b16 %v2250, %v2249
        %v2281 = vpack.c.b16 %v2252, %v2251
        %v2282 = vpack.c.b16 %v2254, %v2253
        %v2283 = vpack.c.b16 %v2256, %v2255
        %v2284 = vpack.c.b16 %v2258, %v2257
        %v2285 = vpack.c.b16 %v2260, %v2259
        %v2286 = vpack.c.b16 %v2262, %v2261
        %v2287 = vpack.c.b16 %v2264, %v2263
        %v2288 = vpack.c.b16 %v2266, %v2265
        %v2289 = vpack.c.b16 %v2268, %v2267
        %v2290 = vpack.c.b16 %v2270, %v2269
        %v2291 = vpack.c.b16 %v2272, %v2271
        %v2292 = vpack.c.b16 %v2274, %v2273
        %v2293 = vpack.c.b16 %v2276, %v2275
        %v2294 = vpack.c.b16 %v2278, %v2277
        %v2296 = vsel %vm387, %v2246, 0
        %v2299 = vsel %vm387, %v2279, 0
        %v2302 = vsel %vm387, %v2280, 0
        %v2305 = vsel %vm387, %v2281, 0
        %v2308 = vsel %vm387, %v2282, 0
        %v2311 = vsel %vm387, %v2283, 0
        %v2314 = vsel %vm387, %v2284, 0
        %v2317 = vsel %vm387, %v2285, 0
        %v2320 = vsel %vm387, %v2286, 0
        %v2323 = vsel %vm387, %v2287, 0
        %v2326 = vsel %vm387, %v2288, 0
        %v2329 = vsel %vm387, %v2289, 0
        %v2332 = vsel %vm387, %v2290, 0
        %v2335 = vsel %vm387, %v2291, 0
        %v2338 = vsel %vm387, %v2292, 0
        %v2341 = vsel %vm387, %v2293, 0
        %v2344 = vsel %vm387, %v2294, 0
        %2346 = vmatprep.subr.bf16.mxu0 0
        %2347 = vmatpush1.bf16.xpose.msra.mxu0 %v2299
        %2348 = vmatprep.subr.bf16.mxu0 0
        %2349 = vmatpush1.bf16.xpose.msra.mxu0 %v2302
        %2350 = vmatprep.subr.bf16.mxu0 0
        %2351 = vmatpush1.bf16.xpose.msra.mxu0 %v2305
        %2352 = vmatprep.subr.bf16.mxu0 0
        %2353 = vmatpush1.bf16.xpose.msra.mxu0 %v2308
        %2354 = vmatprep.subr.bf16.mxu0 0
        %2355 = vmatpush1.bf16.xpose.msra.mxu0 %v2311
        %2356 = vmatprep.subr.bf16.mxu0 0
        %2357 = vmatpush1.bf16.xpose.msra.mxu0 %v2314
        %2358 = vmatprep.subr.bf16.mxu0 0
        %2359 = vmatpush1.bf16.xpose.msra.mxu0 %v2317
        %2360 = vmatprep.subr.bf16.mxu0 0
        %2361 = vmatpush1.bf16.xpose.msra.mxu0 %v2320
        %2362 = vmatprep.subr.bf16.mxu0 0
        %2363 = vmatpush1.bf16.xpose.msra.mxu0 %v2323
        %2364 = vmatprep.subr.bf16.mxu0 0
        %2365 = vmatpush1.bf16.xpose.msra.mxu0 %v2326
        %2366 = vmatprep.subr.bf16.mxu0 0
        %2367 = vmatpush1.bf16.xpose.msra.mxu0 %v2329
        %2368 = vmatprep.subr.bf16.mxu0 0
        %2369 = vmatpush1.bf16.xpose.msra.mxu0 %v2332
        %2370 = vmatprep.subr.bf16.mxu0 0
        %2371 = vmatpush1.bf16.xpose.msra.mxu0 %v2335
        %2372 = vmatprep.subr.bf16.mxu0 0
        %2373 = vmatpush1.bf16.xpose.msra.mxu0 %v2338
        %2374 = vmatprep.subr.bf16.mxu0 0
        %2375 = vmatpush1.bf16.xpose.msra.mxu0 %v2341
        %2376 = vmatprep.subr.bf16.mxu0 0
        %2377 = vmatpush1.bf16.xpose.msra.mxu0 %v2344
        %2378 = vmatprep.mubr.bf16.mxu0 0
        %2379 = vmatmul.mubr.bf16.gmra.mrb[0].mxu0 %v2296
        %v2380 = vpop.f32.mrb[0].mxu0
        %v2381 = vadd.f32 0.0, %v2380
        %v2382 = vpop.f32.mrb[0].mxu0
        %v2383 = vadd.f32 0.0, %v2382
        %v2384 = vpop.f32.mrb[0].mxu0
        %v2385 = vpop.f32.mrb[0].mxu0
        %2386 = vdwg.mxu0
        %v2387 = vadd.f32 %v1731, %v2381
        %v2388 = vadd.f32 %v1732, %v2383
        %s2389 = sadd.s32 2, %s234
        %s2390 = smul.addr %s2389, 4
        %s2391 = scalar_lea.vmem %s222, %s2390
        %v2392 = vld [vmem:[%s2391] sm:$0xf]
        %v2393 = vld [vmem:[%s2391 + $0x8] sm:$0xf]
        %v2394 = vld [vmem:[%s2391 + $0x10] sm:$0xf]
        %v2395 = vld [vmem:[%s2391 + $0x18] sm:$0xf]
        %v2396 = vld [vmem:[%s2391 + $0x20] sm:$0xf]
        %v2397 = vld [vmem:[%s2391 + $0x28] sm:$0xf]
        %v2398 = vld [vmem:[%s2391 + $0x30] sm:$0xf]
        %v2399 = vld [vmem:[%s2391 + $0x38] sm:$0xf]
        %v2400 = vld [vmem:[%s2391 + $0x48] sm:$0xf]
        %v2401 = vld [vmem:[%s2391 + $0x50] sm:$0xf]
        %v2402 = vld [vmem:[%s2391 + $0x58] sm:$0xf]
        %v2403 = vld [vmem:[%s2391 + $0x60] sm:$0xf]
        %v2404 = vld [vmem:[%s2391 + $0x68] sm:$0xf]
        %v2405 = vld [vmem:[%s2391 + $0x70] sm:$0xf]
        %v2406 = vld [vmem:[%s2391 + $0x78] sm:$0xf]
        %v2407 = vld [vmem:[%s2391 + $0x80] sm:$0xf]
        %v2408 = vld [vmem:[%s2391 + $0x90] sm:$0xf]
        %v2409 = vld [vmem:[%s2391 + $0x98] sm:$0xf]
        %v2410 = vld [vmem:[%s2391 + $0xa0] sm:$0xf]
        %v2411 = vld [vmem:[%s2391 + $0xa8] sm:$0xf]
        %v2412 = vld [vmem:[%s2391 + $0xb0] sm:$0xf]
        %v2413 = vld [vmem:[%s2391 + $0xb8] sm:$0xf]
        %v2414 = vld [vmem:[%s2391 + $0xc0] sm:$0xf]
        %v2415 = vld [vmem:[%s2391 + $0xc8] sm:$0xf]
        %v2416 = vld [vmem:[%s2391 + $0xd8] sm:$0xf]
        %v2417 = vld [vmem:[%s2391 + $0xe0] sm:$0xf]
        %v2418 = vld [vmem:[%s2391 + $0xe8] sm:$0xf]
        %v2419 = vld [vmem:[%s2391 + $0xf0] sm:$0xf]
        %v2420 = vld [vmem:[%s2391 + $0xf8] sm:$0xf]
        %v2421 = vld [vmem:[%s2391 + $0x100] sm:$0xf]
        %v2422 = vld [vmem:[%s2391 + $0x108] sm:$0xf]
        %v2423 = vld [vmem:[%s2391 + $0x110] sm:$0xf]
        %s2424 = scalar_lea.vmem %s1, 24
        %v2425 = vld [vmem:[%s2424] sm:$0xf]
        %v2458 = vunpack.c.l.b16 %v2392
        %v2459 = vunpack.c.l.b16 %v2393
        %v2460 = vunpack.c.l.b16 %v2394
        %v2461 = vunpack.c.l.b16 %v2395
        %v2462 = vunpack.c.l.b16 %v2396
        %v2463 = vunpack.c.l.b16 %v2397
        %v2464 = vunpack.c.l.b16 %v2398
        %v2465 = vunpack.c.l.b16 %v2399
        %v2466 = vunpack.c.l.b16 %v2400
        %v2467 = vunpack.c.l.b16 %v2401
        %v2468 = vunpack.c.l.b16 %v2402
        %v2469 = vunpack.c.l.b16 %v2403
        %v2470 = vunpack.c.l.b16 %v2404
        %v2471 = vunpack.c.l.b16 %v2405
        %v2472 = vunpack.c.l.b16 %v2406
        %v2473 = vunpack.c.l.b16 %v2407
        %v2474 = vunpack.c.l.b16 %v2408
        %v2475 = vunpack.c.l.b16 %v2409
        %v2476 = vunpack.c.l.b16 %v2410
        %v2477 = vunpack.c.l.b16 %v2411
        %v2478 = vunpack.c.l.b16 %v2412
        %v2479 = vunpack.c.l.b16 %v2413
        %v2480 = vunpack.c.l.b16 %v2414
        %v2481 = vunpack.c.l.b16 %v2415
        %v2482 = vunpack.c.l.b16 %v2416
        %v2483 = vunpack.c.l.b16 %v2417
        %v2484 = vunpack.c.l.b16 %v2418
        %v2485 = vunpack.c.l.b16 %v2419
        %v2486 = vunpack.c.l.b16 %v2420
        %v2487 = vunpack.c.l.b16 %v2421
        %v2488 = vunpack.c.l.b16 %v2422
        %v2489 = vunpack.c.l.b16 %v2423
        %v2490 = vpack.c.b16 %v2459, %v2458
        %v2491 = vpack.c.b16 %v2461, %v2460
        %v2492 = vpack.c.b16 %v2463, %v2462
        %v2493 = vpack.c.b16 %v2465, %v2464
        %v2494 = vpack.c.b16 %v2467, %v2466
        %v2495 = vpack.c.b16 %v2469, %v2468
        %v2496 = vpack.c.b16 %v2471, %v2470
        %v2497 = vpack.c.b16 %v2473, %v2472
        %v2498 = vpack.c.b16 %v2475, %v2474
        %v2499 = vpack.c.b16 %v2477, %v2476
        %v2500 = vpack.c.b16 %v2479, %v2478
        %v2501 = vpack.c.b16 %v2481, %v2480
        %v2502 = vpack.c.b16 %v2483, %v2482
        %v2503 = vpack.c.b16 %v2485, %v2484
        %v2504 = vpack.c.b16 %v2487, %v2486
        %v2505 = vpack.c.b16 %v2489, %v2488
        %v2507 = vsel %vm387, %v2425, 0
        %v2510 = vsel %vm387, %v2490, 0
        %v2513 = vsel %vm387, %v2491, 0
        %v2516 = vsel %vm387, %v2492, 0
        %v2519 = vsel %vm387, %v2493, 0
        %v2522 = vsel %vm387, %v2494, 0
        %v2525 = vsel %vm387, %v2495, 0
        %v2528 = vsel %vm387, %v2496, 0
        %v2531 = vsel %vm387, %v2497, 0
        %v2534 = vsel %vm387, %v2498, 0
        %v2537 = vsel %vm387, %v2499, 0
        %v2540 = vsel %vm387, %v2500, 0
        %v2543 = vsel %vm387, %v2501, 0
        %v2546 = vsel %vm387, %v2502, 0
        %v2549 = vsel %vm387, %v2503, 0
        %v2552 = vsel %vm387, %v2504, 0
        %v2555 = vsel %vm387, %v2505, 0
        %2557 = vmatprep.subr.bf16.mxu0 0
        %2558 = vmatpush1.bf16.xpose.msra.mxu0 %v2510
        %2559 = vmatprep.subr.bf16.mxu0 0
        %2560 = vmatpush1.bf16.xpose.msra.mxu0 %v2513
        %2561 = vmatprep.subr.bf16.mxu0 0
        %2562 = vmatpush1.bf16.xpose.msra.mxu0 %v2516
        %2563 = vmatprep.subr.bf16.mxu0 0
        %2564 = vmatpush1.bf16.xpose.msra.mxu0 %v2519
        %2565 = vmatprep.subr.bf16.mxu0 0
        %2566 = vmatpush1.bf16.xpose.msra.mxu0 %v2522
        %2567 = vmatprep.subr.bf16.mxu0 0
        %2568 = vmatpush1.bf16.xpose.msra.mxu0 %v2525
        %2569 = vmatprep.subr.bf16.mxu0 0
        %2570 = vmatpush1.bf16.xpose.msra.mxu0 %v2528
        %2571 = vmatprep.subr.bf16.mxu0 0
        %2572 = vmatpush1.bf16.xpose.msra.mxu0 %v2531
        %2573 = vmatprep.subr.bf16.mxu0 0
        %2574 = vmatpush1.bf16.xpose.msra.mxu0 %v2534
        %2575 = vmatprep.subr.bf16.mxu0 0
        %2576 = vmatpush1.bf16.xpose.msra.mxu0 %v2537
        %2577 = vmatprep.subr.bf16.mxu0 0
        %2578 = vmatpush1.bf16.xpose.msra.mxu0 %v2540
        %2579 = vmatprep.subr.bf16.mxu0 0
        %2580 = vmatpush1.bf16.xpose.msra.mxu0 %v2543
        %2581 = vmatprep.subr.bf16.mxu0 0
        %2582 = vmatpush1.bf16.xpose.msra.mxu0 %v2546
        %2583 = vmatprep.subr.bf16.mxu0 0
        %2584 = vmatpush1.bf16.xpose.msra.mxu0 %v2549
        %2585 = vmatprep.subr.bf16.mxu0 0
        %2586 = vmatpush1.bf16.xpose.msra.mxu0 %v2552
        %2587 = vmatprep.subr.bf16.mxu0 0
        %2588 = vmatpush1.bf16.xpose.msra.mxu0 %v2555
        %2589 = vmatprep.mubr.bf16.mxu0 0
        %2590 = vmatmul.mubr.bf16.gmra.mrb[0].mxu0 %v2507
        %v2591 = vpop.f32.mrb[0].mxu0
        %v2592 = vadd.f32 0.0, %v2591
        %v2593 = vpop.f32.mrb[0].mxu0
        %v2594 = vadd.f32 0.0, %v2593
        %v2595 = vpop.f32.mrb[0].mxu0
        %v2596 = vpop.f32.mrb[0].mxu0
        %2597 = vdwg.mxu0
        %v2598 = vadd.f32 %v2387, %v2592
        %v2599 = vadd.f32 %v2388, %v2594
        %s2600 = sadd.s32 %s2389, 162
        %s2601 = smul.addr %s2600, 4
        %s2602 = scalar_lea.vmem %s222, %s2601
        %v2603 = vld [vmem:[%s2602] sm:$0xf]
        %v2604 = vld [vmem:[%s2602 + $0x8] sm:$0xf]
        %v2605 = vld [vmem:[%s2602 + $0x10] sm:$0xf]
        %v2606 = vld [vmem:[%s2602 + $0x18] sm:$0xf]
        %v2607 = vld [vmem:[%s2602 + $0x20] sm:$0xf]
        %v2608 = vld [vmem:[%s2602 + $0x28] sm:$0xf]
        %v2609 = vld [vmem:[%s2602 + $0x30] sm:$0xf]
        %v2610 = vld [vmem:[%s2602 + $0x38] sm:$0xf]
        %v2611 = vld [vmem:[%s2602 + $0x48] sm:$0xf]
        %v2612 = vld [vmem:[%s2602 + $0x50] sm:$0xf]
        %v2613 = vld [vmem:[%s2602 + $0x58] sm:$0xf]
        %v2614 = vld [vmem:[%s2602 + $0x60] sm:$0xf]
        %v2615 = vld [vmem:[%s2602 + $0x68] sm:$0xf]
        %v2616 = vld [vmem:[%s2602 + $0x70] sm:$0xf]
        %v2617 = vld [vmem:[%s2602 + $0x78] sm:$0xf]
        %v2618 = vld [vmem:[%s2602 + $0x80] sm:$0xf]
        %v2619 = vld [vmem:[%s2602 + $0x90] sm:$0xf]
        %v2620 = vld [vmem:[%s2602 + $0x98] sm:$0xf]
        %v2621 = vld [vmem:[%s2602 + $0xa0] sm:$0xf]
        %v2622 = vld [vmem:[%s2602 + $0xa8] sm:$0xf]
        %v2623 = vld [vmem:[%s2602 + $0xb0] sm:$0xf]
        %v2624 = vld [vmem:[%s2602 + $0xb8] sm:$0xf]
        %v2625 = vld [vmem:[%s2602 + $0xc0] sm:$0xf]
        %v2626 = vld [vmem:[%s2602 + $0xc8] sm:$0xf]
        %v2627 = vld [vmem:[%s2602 + $0xd8] sm:$0xf]
        %v2628 = vld [vmem:[%s2602 + $0xe0] sm:$0xf]
        %v2629 = vld [vmem:[%s2602 + $0xe8] sm:$0xf]
        %v2630 = vld [vmem:[%s2602 + $0xf0] sm:$0xf]
        %v2631 = vld [vmem:[%s2602 + $0xf8] sm:$0xf]
        %v2632 = vld [vmem:[%s2602 + $0x100] sm:$0xf]
        %v2633 = vld [vmem:[%s2602 + $0x108] sm:$0xf]
        %v2634 = vld [vmem:[%s2602 + $0x110] sm:$0xf]
        %s2635 = scalar_lea.vmem %s1, 28
        %v2636 = vld [vmem:[%s2635] sm:$0xf]
        %v2669 = vunpack.c.l.b16 %v2603
        %v2670 = vunpack.c.l.b16 %v2604
        %v2671 = vunpack.c.l.b16 %v2605
        %v2672 = vunpack.c.l.b16 %v2606
        %v2673 = vunpack.c.l.b16 %v2607
        %v2674 = vunpack.c.l.b16 %v2608
        %v2675 = vunpack.c.l.b16 %v2609
        %v2676 = vunpack.c.l.b16 %v2610
        %v2677 = vunpack.c.l.b16 %v2611
        %v2678 = vunpack.c.l.b16 %v2612
        %v2679 = vunpack.c.l.b16 %v2613
        %v2680 = vunpack.c.l.b16 %v2614
        %v2681 = vunpack.c.l.b16 %v2615
        %v2682 = vunpack.c.l.b16 %v2616
        %v2683 = vunpack.c.l.b16 %v2617
        %v2684 = vunpack.c.l.b16 %v2618
        %v2685 = vunpack.c.l.b16 %v2619
        %v2686 = vunpack.c.l.b16 %v2620
        %v2687 = vunpack.c.l.b16 %v2621
        %v2688 = vunpack.c.l.b16 %v2622
        %v2689 = vunpack.c.l.b16 %v2623
        %v2690 = vunpack.c.l.b16 %v2624
        %v2691 = vunpack.c.l.b16 %v2625
        %v2692 = vunpack.c.l.b16 %v2626
        %v2693 = vunpack.c.l.b16 %v2627
        %v2694 = vunpack.c.l.b16 %v2628
        %v2695 = vunpack.c.l.b16 %v2629
        %v2696 = vunpack.c.l.b16 %v2630
        %v2697 = vunpack.c.l.b16 %v2631
        %v2698 = vunpack.c.l.b16 %v2632
        %v2699 = vunpack.c.l.b16 %v2633
        %v2700 = vunpack.c.l.b16 %v2634
        %v2701 = vpack.c.b16 %v2670, %v2669
        %v2702 = vpack.c.b16 %v2672, %v2671
        %v2703 = vpack.c.b16 %v2674, %v2673
        %v2704 = vpack.c.b16 %v2676, %v2675
        %v2705 = vpack.c.b16 %v2678, %v2677
        %v2706 = vpack.c.b16 %v2680, %v2679
        %v2707 = vpack.c.b16 %v2682, %v2681
        %v2708 = vpack.c.b16 %v2684, %v2683
        %v2709 = vpack.c.b16 %v2686, %v2685
        %v2710 = vpack.c.b16 %v2688, %v2687
        %v2711 = vpack.c.b16 %v2690, %v2689
        %v2712 = vpack.c.b16 %v2692, %v2691
        %v2713 = vpack.c.b16 %v2694, %v2693
        %v2714 = vpack.c.b16 %v2696, %v2695
        %v2715 = vpack.c.b16 %v2698, %v2697
        %v2716 = vpack.c.b16 %v2700, %v2699
        %v2718 = vsel %vm387, %v2636, 0
        %v2721 = vsel %vm387, %v2701, 0
        %v2724 = vsel %vm387, %v2702, 0
        %v2727 = vsel %vm387, %v2703, 0
        %v2730 = vsel %vm387, %v2704, 0
        %v2733 = vsel %vm387, %v2705, 0
        %v2736 = vsel %vm387, %v2706, 0
        %v2739 = vsel %vm387, %v2707, 0
        %v2742 = vsel %vm387, %v2708, 0
        %v2745 = vsel %vm387, %v2709, 0
        %v2748 = vsel %vm387, %v2710, 0
        %v2751 = vsel %vm387, %v2711, 0
        %v2754 = vsel %vm387, %v2712, 0
        %v2757 = vsel %vm387, %v2713, 0
        %v2760 = vsel %vm387, %v2714, 0
        %v2763 = vsel %vm387, %v2715, 0
        %v2766 = vsel %vm387, %v2716, 0
        %2768 = vmatprep.subr.bf16.mxu0 0
        %2769 = vmatpush1.bf16.xpose.msra.mxu0 %v2721
        %2770 = vmatprep.subr.bf16.mxu0 0
        %2771 = vmatpush1.bf16.xpose.msra.mxu0 %v2724
        %2772 = vmatprep.subr.bf16.mxu0 0
        %2773 = vmatpush1.bf16.xpose.msra.mxu0 %v2727
        %2774 = vmatprep.subr.bf16.mxu0 0
        %2775 = vmatpush1.bf16.xpose.msra.mxu0 %v2730
        %2776 = vmatprep.subr.bf16.mxu0 0
        %2777 = vmatpush1.bf16.xpose.msra.mxu0 %v2733
        %2778 = vmatprep.subr.bf16.mxu0 0
        %2779 = vmatpush1.bf16.xpose.msra.mxu0 %v2736
        %2780 = vmatprep.subr.bf16.mxu0 0
        %2781 = vmatpush1.bf16.xpose.msra.mxu0 %v2739
        %2782 = vmatprep.subr.bf16.mxu0 0
        %2783 = vmatpush1.bf16.xpose.msra.mxu0 %v2742
        %2784 = vmatprep.subr.bf16.mxu0 0
        %2785 = vmatpush1.bf16.xpose.msra.mxu0 %v2745
        %2786 = vmatprep.subr.bf16.mxu0 0
        %2787 = vmatpush1.bf16.xpose.msra.mxu0 %v2748
        %2788 = vmatprep.subr.bf16.mxu0 0
        %2789 = vmatpush1.bf16.xpose.msra.mxu0 %v2751
        %2790 = vmatprep.subr.bf16.mxu0 0
        %2791 = vmatpush1.bf16.xpose.msra.mxu0 %v2754
        %2792 = vmatprep.subr.bf16.mxu0 0
        %2793 = vmatpush1.bf16.xpose.msra.mxu0 %v2757
        %2794 = vmatprep.subr.bf16.mxu0 0
        %2795 = vmatpush1.bf16.xpose.msra.mxu0 %v2760
        %2796 = vmatprep.subr.bf16.mxu0 0
        %2797 = vmatpush1.bf16.xpose.msra.mxu0 %v2763
        %2798 = vmatprep.subr.bf16.mxu0 0
        %2799 = vmatpush1.bf16.xpose.msra.mxu0 %v2766
        %2800 = vmatprep.mubr.bf16.mxu0 0
        %2801 = vmatmul.mubr.bf16.gmra.mrb[0].mxu0 %v2718
        %v2802 = vpop.f32.mrb[0].mxu0
        %v2803 = vadd.f32 0.0, %v2802
        %v2804 = vpop.f32.mrb[0].mxu0
        %v2805 = vadd.f32 0.0, %v2804
        %v2806 = vpop.f32.mrb[0].mxu0
        %v2807 = vpop.f32.mrb[0].mxu0
        %2808 = vdwg.mxu0
        %v2809 = vadd.f32 %v2598, %v2803
        %v2810 = vadd.f32 %v2599, %v2805
        %v2811 = vld [vmem:[%s2391] sm:$0xf]
        %v2812 = vld [vmem:[%s2391 + $0x4] sm:$0x1]
        %v2813 = vld [vmem:[%s2391 + $0x8] sm:$0xf]
        %v2814 = vld [vmem:[%s2391 + $0xc] sm:$0x1]
        %v2815 = vld [vmem:[%s2391 + $0x10] sm:$0xf]
        %v2816 = vld [vmem:[%s2391 + $0x14] sm:$0x1]
        %v2817 = vld [vmem:[%s2391 + $0x18] sm:$0xf]
        %v2818 = vld [vmem:[%s2391 + $0x1c] sm:$0x1]
        %v2819 = vld [vmem:[%s2391 + $0x20] sm:$0xf]
        %v2820 = vld [vmem:[%s2391 + $0x24] sm:$0x1]
        %v2821 = vld [vmem:[%s2391 + $0x28] sm:$0xf]
        %v2822 = vld [vmem:[%s2391 + $0x2c] sm:$0x1]
        %v2823 = vld [vmem:[%s2391 + $0x30] sm:$0xf]
        %v2824 = vld [vmem:[%s2391 + $0x34] sm:$0x1]
        %v2825 = vld [vmem:[%s2391 + $0x38] sm:$0xf]
        %v2826 = vld [vmem:[%s2391 + $0x3c] sm:$0x1]
        %v2827 = vld [vmem:[%s2391 + $0x48] sm:$0xf]
        %v2828 = vld [vmem:[%s2391 + $0x4c] sm:$0x1]
        %v2829 = vld [vmem:[%s2391 + $0x50] sm:$0xf]
        %v2830 = vld [vmem:[%s2391 + $0x54] sm:$0x1]
        %v2831 = vld [vmem:[%s2391 + $0x58] sm:$0xf]
        %v2832 = vld [vmem:[%s2391 + $0x5c] sm:$0x1]
        %v2833 = vld [vmem:[%s2391 + $0x60] sm:$0xf]
        %v2834 = vld [vmem:[%s2391 + $0x64] sm:$0x1]
        %v2835 = vld [vmem:[%s2391 + $0x68] sm:$0xf]
        %v2836 = vld [vmem:[%s2391 + $0x6c] sm:$0x1]
        %v2837 = vld [vmem:[%s2391 + $0x70] sm:$0xf]
        %v2838 = vld [vmem:[%s2391 + $0x74] sm:$0x1]
        %v2839 = vld [vmem:[%s2391 + $0x78] sm:$0xf]
        %v2840 = vld [vmem:[%s2391 + $0x7c] sm:$0x1]
        %v2841 = vld [vmem:[%s2391 + $0x80] sm:$0xf]
        %v2842 = vld [vmem:[%s2391 + $0x84] sm:$0x1]
        %v2843 = vld [vmem:[%s2391 + $0x90] sm:$0xf]
        %v2844 = vld [vmem:[%s2391 + $0x94] sm:$0x1]
        %v2845 = vld [vmem:[%s2391 + $0x98] sm:$0xf]
        %v2846 = vld [vmem:[%s2391 + $0x9c] sm:$0x1]
        %v2847 = vld [vmem:[%s2391 + $0xa0] sm:$0xf]
        %v2848 = vld [vmem:[%s2391 + $0xa4] sm:$0x1]
        %v2849 = vld [vmem:[%s2391 + $0xa8] sm:$0xf]
        %v2850 = vld [vmem:[%s2391 + $0xac] sm:$0x1]
        %v2851 = vld [vmem:[%s2391 + $0xb0] sm:$0xf]
        %v2852 = vld [vmem:[%s2391 + $0xb4] sm:$0x1]
        %v2853 = vld [vmem:[%s2391 + $0xb8] sm:$0xf]
        %v2854 = vld [vmem:[%s2391 + $0xbc] sm:$0x1]
        %v2855 = vld [vmem:[%s2391 + $0xc0] sm:$0xf]
        %v2856 = vld [vmem:[%s2391 + $0xc4] sm:$0x1]
        %v2857 = vld [vmem:[%s2391 + $0xc8] sm:$0xf]
        %v2858 = vld [vmem:[%s2391 + $0xcc] sm:$0x1]
        %v2859 = vld [vmem:[%s2391 + $0xd8] sm:$0xf]
        %v2860 = vld [vmem:[%s2391 + $0xdc] sm:$0x1]
        %v2861 = vld [vmem:[%s2391 + $0xe0] sm:$0xf]
        %v2862 = vld [vmem:[%s2391 + $0xe4] sm:$0x1]
        %v2863 = vld [vmem:[%s2391 + $0xe8] sm:$0xf]
        %v2864 = vld [vmem:[%s2391 + $0xec] sm:$0x1]
        %v2865 = vld [vmem:[%s2391 + $0xf0] sm:$0xf]
        %v2866 = vld [vmem:[%s2391 + $0xf4] sm:$0x1]
        %v2867 = vld [vmem:[%s2391 + $0xf8] sm:$0xf]
        %v2868 = vld [vmem:[%s2391 + $0xfc] sm:$0x1]
        %v2869 = vld [vmem:[%s2391 + $0x100] sm:$0xf]
        %v2870 = vld [vmem:[%s2391 + $0x104] sm:$0x1]
        %v2871 = vld [vmem:[%s2391 + $0x108] sm:$0xf]
        %v2872 = vld [vmem:[%s2391 + $0x10c] sm:$0x1]
        %v2873 = vld [vmem:[%s2391 + $0x110] sm:$0xf]
        %v2874 = vld [vmem:[%s2391 + $0x114] sm:$0x1]
        %v2876 = vshrl.u32 %v2811, 16
        %v2878 = vrot.slane %v2876, 4
        %v2879 = vshll.u32 %v2811, 16
        %v2881 = vrot.slane %v2879, 5
        %v2882 = vor.u32 %v2878, %v2881
        %v2883 = vrot.slane %v2882, 4
        %v2885 = vshll.u32 %v2812, 16
        %v2887 = vrot.slane %v2885, 5
        %v2888 = vsel %vm718, %v2883, %v2887
        %v2890 = vshrl.u32 %v2813, 16
        %v2892 = vrot.slane %v2890, 4
        %v2893 = vshll.u32 %v2813, 16
        %v2895 = vrot.slane %v2893, 5
        %v2896 = vor.u32 %v2892, %v2895
        %v2897 = vrot.slane %v2896, 4
        %v2899 = vshll.u32 %v2814, 16
        %v2901 = vrot.slane %v2899, 5
        %v2902 = vsel %vm718, %v2897, %v2901
        %v2904 = vshrl.u32 %v2815, 16
        %v2906 = vrot.slane %v2904, 4
        %v2907 = vshll.u32 %v2815, 16
        %v2909 = vrot.slane %v2907, 5
        %v2910 = vor.u32 %v2906, %v2909
        %v2911 = vrot.slane %v2910, 4
        %v2913 = vshll.u32 %v2816, 16
        %v2915 = vrot.slane %v2913, 5
        %v2916 = vsel %vm718, %v2911, %v2915
        %v2918 = vshrl.u32 %v2817, 16
        %v2920 = vrot.slane %v2918, 4
        %v2921 = vshll.u32 %v2817, 16
        %v2923 = vrot.slane %v2921, 5
        %v2924 = vor.u32 %v2920, %v2923
        %v2925 = vrot.slane %v2924, 4
        %v2927 = vshll.u32 %v2818, 16
        %v2929 = vrot.slane %v2927, 5
        %v2930 = vsel %vm718, %v2925, %v2929
        %v2932 = vshrl.u32 %v2819, 16
        %v2934 = vrot.slane %v2932, 4
        %v2935 = vshll.u32 %v2819, 16
        %v2937 = vrot.slane %v2935, 5
        %v2938 = vor.u32 %v2934, %v2937
        %v2939 = vrot.slane %v2938, 4
        %v2941 = vshll.u32 %v2820, 16
        %v2943 = vrot.slane %v2941, 5
        %v2944 = vsel %vm718, %v2939, %v2943
        %v2946 = vshrl.u32 %v2821, 16
        %v2948 = vrot.slane %v2946, 4
        %v2949 = vshll.u32 %v2821, 16
        %v2951 = vrot.slane %v2949, 5
        %v2952 = vor.u32 %v2948, %v2951
        %v2953 = vrot.slane %v2952, 4
        %v2955 = vshll.u32 %v2822, 16
        %v2957 = vrot.slane %v2955, 5
        %v2958 = vsel %vm718, %v2953, %v2957
        %v2960 = vshrl.u32 %v2823, 16
        %v2962 = vrot.slane %v2960, 4
        %v2963 = vshll.u32 %v2823, 16
        %v2965 = vrot.slane %v2963, 5
        %v2966 = vor.u32 %v2962, %v2965
        %v2967 = vrot.slane %v2966, 4
        %v2969 = vshll.u32 %v2824, 16
        %v2971 = vrot.slane %v2969, 5
        %v2972 = vsel %vm718, %v2967, %v2971
        %v2974 = vshrl.u32 %v2825, 16
        %v2976 = vrot.slane %v2974, 4
        %v2977 = vshll.u32 %v2825, 16
        %v2979 = vrot.slane %v2977, 5
        %v2980 = vor.u32 %v2976, %v2979
        %v2981 = vrot.slane %v2980, 4
        %v2983 = vshll.u32 %v2826, 16
        %v2985 = vrot.slane %v2983, 5
        %v2986 = vsel %vm718, %v2981, %v2985
        %v2988 = vshrl.u32 %v2827, 16
        %v2990 = vrot.slane %v2988, 4
        %v2991 = vshll.u32 %v2827, 16
        %v2993 = vrot.slane %v2991, 5
        %v2994 = vor.u32 %v2990, %v2993
        %v2995 = vrot.slane %v2994, 4
        %v2997 = vshll.u32 %v2828, 16
        %v2999 = vrot.slane %v2997, 5
        %v3000 = vsel %vm718, %v2995, %v2999
        %v3002 = vshrl.u32 %v2829, 16
        %v3004 = vrot.slane %v3002, 4
        %v3005 = vshll.u32 %v2829, 16
        %v3007 = vrot.slane %v3005, 5
        %v3008 = vor.u32 %v3004, %v3007
        %v3009 = vrot.slane %v3008, 4
        %v3011 = vshll.u32 %v2830, 16
        %v3013 = vrot.slane %v3011, 5
        %v3014 = vsel %vm718, %v3009, %v3013
        %v3016 = vshrl.u32 %v2831, 16
        %v3018 = vrot.slane %v3016, 4
        %v3019 = vshll.u32 %v2831, 16
        %v3021 = vrot.slane %v3019, 5
        %v3022 = vor.u32 %v3018, %v3021
        %v3023 = vrot.slane %v3022, 4
        %v3025 = vshll.u32 %v2832, 16
        %v3027 = vrot.slane %v3025, 5
        %v3028 = vsel %vm718, %v3023, %v3027
        %v3030 = vshrl.u32 %v2833, 16
        %v3032 = vrot.slane %v3030, 4
        %v3033 = vshll.u32 %v2833, 16
        %v3035 = vrot.slane %v3033, 5
        %v3036 = vor.u32 %v3032, %v3035
        %v3037 = vrot.slane %v3036, 4
        %v3039 = vshll.u32 %v2834, 16
        %v3041 = vrot.slane %v3039, 5
        %v3042 = vsel %vm718, %v3037, %v3041
        %v3044 = vshrl.u32 %v2835, 16
        %v3046 = vrot.slane %v3044, 4
        %v3047 = vshll.u32 %v2835, 16
        %v3049 = vrot.slane %v3047, 5
        %v3050 = vor.u32 %v3046, %v3049
        %v3051 = vrot.slane %v3050, 4
        %v3053 = vshll.u32 %v2836, 16
        %v3055 = vrot.slane %v3053, 5
        %v3056 = vsel %vm718, %v3051, %v3055
        %v3058 = vshrl.u32 %v2837, 16
        %v3060 = vrot.slane %v3058, 4
        %v3061 = vshll.u32 %v2837, 16
        %v3063 = vrot.slane %v3061, 5
        %v3064 = vor.u32 %v3060, %v3063
        %v3065 = vrot.slane %v3064, 4
        %v3067 = vshll.u32 %v2838, 16
        %v3069 = vrot.slane %v3067, 5
        %v3070 = vsel %vm718, %v3065, %v3069
        %v3072 = vshrl.u32 %v2839, 16
        %v3074 = vrot.slane %v3072, 4
        %v3075 = vshll.u32 %v2839, 16
        %v3077 = vrot.slane %v3075, 5
        %v3078 = vor.u32 %v3074, %v3077
        %v3079 = vrot.slane %v3078, 4
        %v3081 = vshll.u32 %v2840, 16
        %v3083 = vrot.slane %v3081, 5
        %v3084 = vsel %vm718, %v3079, %v3083
        %v3086 = vshrl.u32 %v2841, 16
        %v3088 = vrot.slane %v3086, 4
        %v3089 = vshll.u32 %v2841, 16
        %v3091 = vrot.slane %v3089, 5
        %v3092 = vor.u32 %v3088, %v3091
        %v3093 = vrot.slane %v3092, 4
        %v3095 = vshll.u32 %v2842, 16
        %v3097 = vrot.slane %v3095, 5
        %v3098 = vsel %vm718, %v3093, %v3097
        %v3100 = vshrl.u32 %v2843, 16
        %v3102 = vrot.slane %v3100, 4
        %v3103 = vshll.u32 %v2843, 16
        %v3105 = vrot.slane %v3103, 5
        %v3106 = vor.u32 %v3102, %v3105
        %v3107 = vrot.slane %v3106, 4
        %v3109 = vshll.u32 %v2844, 16
        %v3111 = vrot.slane %v3109, 5
        %v3112 = vsel %vm718, %v3107, %v3111
        %v3114 = vshrl.u32 %v2845, 16
        %v3116 = vrot.slane %v3114, 4
        %v3117 = vshll.u32 %v2845, 16
        %v3119 = vrot.slane %v3117, 5
        %v3120 = vor.u32 %v3116, %v3119
        %v3121 = vrot.slane %v3120, 4
        %v3123 = vshll.u32 %v2846, 16
        %v3125 = vrot.slane %v3123, 5
        %v3126 = vsel %vm718, %v3121, %v3125
        %v3128 = vshrl.u32 %v2847, 16
        %v3130 = vrot.slane %v3128, 4
        %v3131 = vshll.u32 %v2847, 16
        %v3133 = vrot.slane %v3131, 5
        %v3134 = vor.u32 %v3130, %v3133
        %v3135 = vrot.slane %v3134, 4
        %v3137 = vshll.u32 %v2848, 16
        %v3139 = vrot.slane %v3137, 5
        %v3140 = vsel %vm718, %v3135, %v3139
        %v3142 = vshrl.u32 %v2849, 16
        %v3144 = vrot.slane %v3142, 4
        %v3145 = vshll.u32 %v2849, 16
        %v3147 = vrot.slane %v3145, 5
        %v3148 = vor.u32 %v3144, %v3147
        %v3149 = vrot.slane %v3148, 4
        %v3151 = vshll.u32 %v2850, 16
        %v3153 = vrot.slane %v3151, 5
        %v3154 = vsel %vm718, %v3149, %v3153
        %v3156 = vshrl.u32 %v2851, 16
        %v3158 = vrot.slane %v3156, 4
        %v3159 = vshll.u32 %v2851, 16
        %v3161 = vrot.slane %v3159, 5
        %v3162 = vor.u32 %v3158, %v3161
        %v3163 = vrot.slane %v3162, 4
        %v3165 = vshll.u32 %v2852, 16
        %v3167 = vrot.slane %v3165, 5
        %v3168 = vsel %vm718, %v3163, %v3167
        %v3170 = vshrl.u32 %v2853, 16
        %v3172 = vrot.slane %v3170, 4
        %v3173 = vshll.u32 %v2853, 16
        %v3175 = vrot.slane %v3173, 5
        %v3176 = vor.u32 %v3172, %v3175
        %v3177 = vrot.slane %v3176, 4
        %v3179 = vshll.u32 %v2854, 16
        %v3181 = vrot.slane %v3179, 5
        %v3182 = vsel %vm718, %v3177, %v3181
        %v3184 = vshrl.u32 %v2855, 16
        %v3186 = vrot.slane %v3184, 4
        %v3187 = vshll.u32 %v2855, 16
        %v3189 = vrot.slane %v3187, 5
        %v3190 = vor.u32 %v3186, %v3189
        %v3191 = vrot.slane %v3190, 4
        %v3193 = vshll.u32 %v2856, 16
        %v3195 = vrot.slane %v3193, 5
        %v3196 = vsel %vm718, %v3191, %v3195
        %v3198 = vshrl.u32 %v2857, 16
        %v3200 = vrot.slane %v3198, 4
        %v3201 = vshll.u32 %v2857, 16
        %v3203 = vrot.slane %v3201, 5
        %v3204 = vor.u32 %v3200, %v3203
        %v3205 = vrot.slane %v3204, 4
        %v3207 = vshll.u32 %v2858, 16
        %v3209 = vrot.slane %v3207, 5
        %v3210 = vsel %vm718, %v3205, %v3209
        %v3212 = vshrl.u32 %v2859, 16
        %v3214 = vrot.slane %v3212, 4
        %v3215 = vshll.u32 %v2859, 16
        %v3217 = vrot.slane %v3215, 5
        %v3218 = vor.u32 %v3214, %v3217
        %v3219 = vrot.slane %v3218, 4
        %v3221 = vshll.u32 %v2860, 16
        %v3223 = vrot.slane %v3221, 5
        %v3224 = vsel %vm718, %v3219, %v3223
        %v3226 = vshrl.u32 %v2861, 16
        %v3228 = vrot.slane %v3226, 4
        %v3229 = vshll.u32 %v2861, 16
        %v3231 = vrot.slane %v3229, 5
        %v3232 = vor.u32 %v3228, %v3231
        %v3233 = vrot.slane %v3232, 4
        %v3235 = vshll.u32 %v2862, 16
        %v3237 = vrot.slane %v3235, 5
        %v3238 = vsel %vm718, %v3233, %v3237
        %v3240 = vshrl.u32 %v2863, 16
        %v3242 = vrot.slane %v3240, 4
        %v3243 = vshll.u32 %v2863, 16
        %v3245 = vrot.slane %v3243, 5
        %v3246 = vor.u32 %v3242, %v3245
        %v3247 = vrot.slane %v3246, 4
        %v3249 = vshll.u32 %v2864, 16
        %v3251 = vrot.slane %v3249, 5
        %v3252 = vsel %vm718, %v3247, %v3251
        %v3254 = vshrl.u32 %v2865, 16
        %v3256 = vrot.slane %v3254, 4
        %v3257 = vshll.u32 %v2865, 16
        %v3259 = vrot.slane %v3257, 5
        %v3260 = vor.u32 %v3256, %v3259
        %v3261 = vrot.slane %v3260, 4
        %v3263 = vshll.u32 %v2866, 16
        %v3265 = vrot.slane %v3263, 5
        %v3266 = vsel %vm718, %v3261, %v3265
        %v3268 = vshrl.u32 %v2867, 16
        %v3270 = vrot.slane %v3268, 4
        %v3271 = vshll.u32 %v2867, 16
        %v3273 = vrot.slane %v3271, 5
        %v3274 = vor.u32 %v3270, %v3273
        %v3275 = vrot.slane %v3274, 4
        %v3277 = vshll.u32 %v2868, 16
        %v3279 = vrot.slane %v3277, 5
        %v3280 = vsel %vm718, %v3275, %v3279
        %v3282 = vshrl.u32 %v2869, 16
        %v3284 = vrot.slane %v3282, 4
        %v3285 = vshll.u32 %v2869, 16
        %v3287 = vrot.slane %v3285, 5
        %v3288 = vor.u32 %v3284, %v3287
        %v3289 = vrot.slane %v3288, 4
        %v3291 = vshll.u32 %v2870, 16
        %v3293 = vrot.slane %v3291, 5
        %v3294 = vsel %vm718, %v3289, %v3293
        %v3296 = vshrl.u32 %v2871, 16
        %v3298 = vrot.slane %v3296, 4
        %v3299 = vshll.u32 %v2871, 16
        %v3301 = vrot.slane %v3299, 5
        %v3302 = vor.u32 %v3298, %v3301
        %v3303 = vrot.slane %v3302, 4
        %v3305 = vshll.u32 %v2872, 16
        %v3307 = vrot.slane %v3305, 5
        %v3308 = vsel %vm718, %v3303, %v3307
        %v3310 = vshrl.u32 %v2873, 16
        %v3312 = vrot.slane %v3310, 4
        %v3313 = vshll.u32 %v2873, 16
        %v3315 = vrot.slane %v3313, 5
        %v3316 = vor.u32 %v3312, %v3315
        %v3317 = vrot.slane %v3316, 4
        %v3319 = vshll.u32 %v2874, 16
        %v3321 = vrot.slane %v3319, 5
        %v3322 = vsel %vm718, %v3317, %v3321
        %s3323 = scalar_lea.vmem %s1, 32
        %v3324 = vld [vmem:[%s3323] sm:$0xf]
        %v3325 = vunpack.c.l.b16 %v2888
        %v3326 = vunpack.c.l.b16 %v2902
        %v3327 = vunpack.c.l.b16 %v2916
        %v3328 = vunpack.c.l.b16 %v2930
        %v3329 = vunpack.c.l.b16 %v2944
        %v3330 = vunpack.c.l.b16 %v2958
        %v3331 = vunpack.c.l.b16 %v2972
        %v3332 = vunpack.c.l.b16 %v2986
        %v3333 = vunpack.c.l.b16 %v3000
        %v3334 = vunpack.c.l.b16 %v3014
        %v3335 = vunpack.c.l.b16 %v3028
        %v3336 = vunpack.c.l.b16 %v3042
        %v3337 = vunpack.c.l.b16 %v3056
        %v3338 = vunpack.c.l.b16 %v3070
        %v3339 = vunpack.c.l.b16 %v3084
        %v3340 = vunpack.c.l.b16 %v3098
        %v3341 = vunpack.c.l.b16 %v3112
        %v3342 = vunpack.c.l.b16 %v3126
        %v3343 = vunpack.c.l.b16 %v3140
        %v3344 = vunpack.c.l.b16 %v3154
        %v3345 = vunpack.c.l.b16 %v3168
        %v3346 = vunpack.c.l.b16 %v3182
        %v3347 = vunpack.c.l.b16 %v3196
        %v3348 = vunpack.c.l.b16 %v3210
        %v3349 = vunpack.c.l.b16 %v3224
        %v3350 = vunpack.c.l.b16 %v3238
        %v3351 = vunpack.c.l.b16 %v3252
        %v3352 = vunpack.c.l.b16 %v3266
        %v3353 = vunpack.c.l.b16 %v3280
        %v3354 = vunpack.c.l.b16 %v3294
        %v3355 = vunpack.c.l.b16 %v3308
        %v3356 = vunpack.c.l.b16 %v3322
        %v3357 = vpack.c.b16 %v3326, %v3325
        %v3358 = vpack.c.b16 %v3328, %v3327
        %v3359 = vpack.c.b16 %v3330, %v3329
        %v3360 = vpack.c.b16 %v3332, %v3331
        %v3361 = vpack.c.b16 %v3334, %v3333
        %v3362 = vpack.c.b16 %v3336, %v3335
        %v3363 = vpack.c.b16 %v3338, %v3337
        %v3364 = vpack.c.b16 %v3340, %v3339
        %v3365 = vpack.c.b16 %v3342, %v3341
        %v3366 = vpack.c.b16 %v3344, %v3343
        %v3367 = vpack.c.b16 %v3346, %v3345
        %v3368 = vpack.c.b16 %v3348, %v3347
        %v3369 = vpack.c.b16 %v3350, %v3349
        %v3370 = vpack.c.b16 %v3352, %v3351
        %v3371 = vpack.c.b16 %v3354, %v3353
        %v3372 = vpack.c.b16 %v3356, %v3355
        %v3374 = vsel %vm387, %v3324, 0
        %v3377 = vsel %vm387, %v3357, 0
        %v3380 = vsel %vm387, %v3358, 0
        %v3383 = vsel %vm387, %v3359, 0
        %v3386 = vsel %vm387, %v3360, 0
        %v3389 = vsel %vm387, %v3361, 0
        %v3392 = vsel %vm387, %v3362, 0
        %v3395 = vsel %vm387, %v3363, 0
        %v3398 = vsel %vm387, %v3364, 0
        %v3401 = vsel %vm387, %v3365, 0
        %v3404 = vsel %vm387, %v3366, 0
        %v3407 = vsel %vm387, %v3367, 0
        %v3410 = vsel %vm387, %v3368, 0
        %v3413 = vsel %vm387, %v3369, 0
        %v3416 = vsel %vm387, %v3370, 0
        %v3419 = vsel %vm387, %v3371, 0
        %v3422 = vsel %vm387, %v3372, 0
        %3424 = vmatprep.subr.bf16.mxu0 0
        %3425 = vmatpush1.bf16.xpose.msra.mxu0 %v3377
        %3426 = vmatprep.subr.bf16.mxu0 0
        %3427 = vmatpush1.bf16.xpose.msra.mxu0 %v3380
        %3428 = vmatprep.subr.bf16.mxu0 0
        %3429 = vmatpush1.bf16.xpose.msra.mxu0 %v3383
        %3430 = vmatprep.subr.bf16.mxu0 0
        %3431 = vmatpush1.bf16.xpose.msra.mxu0 %v3386
        %3432 = vmatprep.subr.bf16.mxu0 0
        %3433 = vmatpush1.bf16.xpose.msra.mxu0 %v3389
        %3434 = vmatprep.subr.bf16.mxu0 0
        %3435 = vmatpush1.bf16.xpose.msra.mxu0 %v3392
        %3436 = vmatprep.subr.bf16.mxu0 0
        %3437 = vmatpush1.bf16.xpose.msra.mxu0 %v3395
        %3438 = vmatprep.subr.bf16.mxu0 0
        %3439 = vmatpush1.bf16.xpose.msra.mxu0 %v3398
        %3440 = vmatprep.subr.bf16.mxu0 0
        %3441 = vmatpush1.bf16.xpose.msra.mxu0 %v3401
        %3442 = vmatprep.subr.bf16.mxu0 0
        %3443 = vmatpush1.bf16.xpose.msra.mxu0 %v3404
        %3444 = vmatprep.subr.bf16.mxu0 0
        %3445 = vmatpush1.bf16.xpose.msra.mxu0 %v3407
        %3446 = vmatprep.subr.bf16.mxu0 0
        %3447 = vmatpush1.bf16.xpose.msra.mxu0 %v3410
        %3448 = vmatprep.subr.bf16.mxu0 0
        %3449 = vmatpush1.bf16.xpose.msra.mxu0 %v3413
        %3450 = vmatprep.subr.bf16.mxu0 0
        %3451 = vmatpush1.bf16.xpose.msra.mxu0 %v3416
        %3452 = vmatprep.subr.bf16.mxu0 0
        %3453 = vmatpush1.bf16.xpose.msra.mxu0 %v3419
        %3454 = vmatprep.subr.bf16.mxu0 0
        %3455 = vmatpush1.bf16.xpose.msra.mxu0 %v3422
        %3456 = vmatprep.mubr.bf16.mxu0 0
        %3457 = vmatmul.mubr.bf16.gmra.mrb[0].mxu0 %v3374
        %v3458 = vpop.f32.mrb[0].mxu0
        %v3459 = vadd.f32 0.0, %v3458
        %v3460 = vpop.f32.mrb[0].mxu0
        %v3461 = vadd.f32 0.0, %v3460
        %v3462 = vpop.f32.mrb[0].mxu0
        %v3463 = vpop.f32.mrb[0].mxu0
        %3464 = vdwg.mxu0
        %v3465 = vadd.f32 %v2809, %v3459
        %v3466 = vadd.f32 %v2810, %v3461
        %s3467 = sadd.s32 %s234, 648
        %s3468 = smul.addr %s3467, 4
        %s3469 = scalar_lea.vmem %s222, %s3468
        %v3470 = vld [vmem:[%s3469] sm:$0xf]
        %v3471 = vld [vmem:[%s3469 + $0x8] sm:$0xf]
        %v3472 = vld [vmem:[%s3469 + $0x10] sm:$0xf]
        %v3473 = vld [vmem:[%s3469 + $0x18] sm:$0xf]
        %v3474 = vld [vmem:[%s3469 + $0x20] sm:$0xf]
        %v3475 = vld [vmem:[%s3469 + $0x28] sm:$0xf]
        %v3476 = vld [vmem:[%s3469 + $0x30] sm:$0xf]
        %v3477 = vld [vmem:[%s3469 + $0x38] sm:$0xf]
        %v3478 = vld [vmem:[%s3469 + $0x48] sm:$0xf]
        %v3479 = vld [vmem:[%s3469 + $0x50] sm:$0xf]
        %v3480 = vld [vmem:[%s3469 + $0x58] sm:$0xf]
        %v3481 = vld [vmem:[%s3469 + $0x60] sm:$0xf]
        %v3482 = vld [vmem:[%s3469 + $0x68] sm:$0xf]
        %v3483 = vld [vmem:[%s3469 + $0x70] sm:$0xf]
        %v3484 = vld [vmem:[%s3469 + $0x78] sm:$0xf]
        %v3485 = vld [vmem:[%s3469 + $0x80] sm:$0xf]
        %v3486 = vld [vmem:[%s3469 + $0x90] sm:$0xf]
        %v3487 = vld [vmem:[%s3469 + $0x98] sm:$0xf]
        %v3488 = vld [vmem:[%s3469 + $0xa0] sm:$0xf]
        %v3489 = vld [vmem:[%s3469 + $0xa8] sm:$0xf]
        %v3490 = vld [vmem:[%s3469 + $0xb0] sm:$0xf]
        %v3491 = vld [vmem:[%s3469 + $0xb8] sm:$0xf]
        %v3492 = vld [vmem:[%s3469 + $0xc0] sm:$0xf]
        %v3493 = vld [vmem:[%s3469 + $0xc8] sm:$0xf]
        %v3494 = vld [vmem:[%s3469 + $0xd8] sm:$0xf]
        %v3495 = vld [vmem:[%s3469 + $0xe0] sm:$0xf]
        %v3496 = vld [vmem:[%s3469 + $0xe8] sm:$0xf]
        %v3497 = vld [vmem:[%s3469 + $0xf0] sm:$0xf]
        %v3498 = vld [vmem:[%s3469 + $0xf8] sm:$0xf]
        %v3499 = vld [vmem:[%s3469 + $0x100] sm:$0xf]
        %v3500 = vld [vmem:[%s3469 + $0x108] sm:$0xf]
        %v3501 = vld [vmem:[%s3469 + $0x110] sm:$0xf]
        %s3502 = scalar_lea.vmem %s1, 36
        %v3503 = vld [vmem:[%s3502] sm:$0xf]
        %v3536 = vunpack.c.l.b16 %v3470
        %v3537 = vunpack.c.l.b16 %v3471
        %v3538 = vunpack.c.l.b16 %v3472
        %v3539 = vunpack.c.l.b16 %v3473
        %v3540 = vunpack.c.l.b16 %v3474
        %v3541 = vunpack.c.l.b16 %v3475
        %v3542 = vunpack.c.l.b16 %v3476
        %v3543 = vunpack.c.l.b16 %v3477
        %v3544 = vunpack.c.l.b16 %v3478
        %v3545 = vunpack.c.l.b16 %v3479
        %v3546 = vunpack.c.l.b16 %v3480
        %v3547 = vunpack.c.l.b16 %v3481
        %v3548 = vunpack.c.l.b16 %v3482
        %v3549 = vunpack.c.l.b16 %v3483
        %v3550 = vunpack.c.l.b16 %v3484
        %v3551 = vunpack.c.l.b16 %v3485
        %v3552 = vunpack.c.l.b16 %v3486
        %v3553 = vunpack.c.l.b16 %v3487
        %v3554 = vunpack.c.l.b16 %v3488
        %v3555 = vunpack.c.l.b16 %v3489
        %v3556 = vunpack.c.l.b16 %v3490
        %v3557 = vunpack.c.l.b16 %v3491
        %v3558 = vunpack.c.l.b16 %v3492
        %v3559 = vunpack.c.l.b16 %v3493
        %v3560 = vunpack.c.l.b16 %v3494
        %v3561 = vunpack.c.l.b16 %v3495
        %v3562 = vunpack.c.l.b16 %v3496
        %v3563 = vunpack.c.l.b16 %v3497
        %v3564 = vunpack.c.l.b16 %v3498
        %v3565 = vunpack.c.l.b16 %v3499
        %v3566 = vunpack.c.l.b16 %v3500
        %v3567 = vunpack.c.l.b16 %v3501
        %v3568 = vpack.c.b16 %v3537, %v3536
        %v3569 = vpack.c.b16 %v3539, %v3538
        %v3570 = vpack.c.b16 %v3541, %v3540
        %v3571 = vpack.c.b16 %v3543, %v3542
        %v3572 = vpack.c.b16 %v3545, %v3544
        %v3573 = vpack.c.b16 %v3547, %v3546
        %v3574 = vpack.c.b16 %v3549, %v3548
        %v3575 = vpack.c.b16 %v3551, %v3550
        %v3576 = vpack.c.b16 %v3553, %v3552
        %v3577 = vpack.c.b16 %v3555, %v3554
        %v3578 = vpack.c.b16 %v3557, %v3556
        %v3579 = vpack.c.b16 %v3559, %v3558
        %v3580 = vpack.c.b16 %v3561, %v3560
        %v3581 = vpack.c.b16 %v3563, %v3562
        %v3582 = vpack.c.b16 %v3565, %v3564
        %v3583 = vpack.c.b16 %v3567, %v3566
        %v3585 = vsel %vm387, %v3503, 0
        %v3588 = vsel %vm387, %v3568, 0
        %v3591 = vsel %vm387, %v3569, 0
        %v3594 = vsel %vm387, %v3570, 0
        %v3597 = vsel %vm387, %v3571, 0
        %v3600 = vsel %vm387, %v3572, 0
        %v3603 = vsel %vm387, %v3573, 0
        %v3606 = vsel %vm387, %v3574, 0
        %v3609 = vsel %vm387, %v3575, 0
        %v3612 = vsel %vm387, %v3576, 0
        %v3615 = vsel %vm387, %v3577, 0
        %v3618 = vsel %vm387, %v3578, 0
        %v3621 = vsel %vm387, %v3579, 0
        %v3624 = vsel %vm387, %v3580, 0
        %v3627 = vsel %vm387, %v3581, 0
        %v3630 = vsel %vm387, %v3582, 0
        %v3633 = vsel %vm387, %v3583, 0
        %3635 = vmatprep.subr.bf16.mxu0 0
        %3636 = vmatpush1.bf16.xpose.msra.mxu0 %v3588
        %3637 = vmatprep.subr.bf16.mxu0 0
        %3638 = vmatpush1.bf16.xpose.msra.mxu0 %v3591
        %3639 = vmatprep.subr.bf16.mxu0 0
        %3640 = vmatpush1.bf16.xpose.msra.mxu0 %v3594
        %3641 = vmatprep.subr.bf16.mxu0 0
        %3642 = vmatpush1.bf16.xpose.msra.mxu0 %v3597
        %3643 = vmatprep.subr.bf16.mxu0 0
        %3644 = vmatpush1.bf16.xpose.msra.mxu0 %v3600
        %3645 = vmatprep.subr.bf16.mxu0 0
        %3646 = vmatpush1.bf16.xpose.msra.mxu0 %v3603
        %3647 = vmatprep.subr.bf16.mxu0 0
        %3648 = vmatpush1.bf16.xpose.msra.mxu0 %v3606
        %3649 = vmatprep.subr.bf16.mxu0 0
        %3650 = vmatpush1.bf16.xpose.msra.mxu0 %v3609
        %3651 = vmatprep.subr.bf16.mxu0 0
        %3652 = vmatpush1.bf16.xpose.msra.mxu0 %v3612
        %3653 = vmatprep.subr.bf16.mxu0 0
        %3654 = vmatpush1.bf16.xpose.msra.mxu0 %v3615
        %3655 = vmatprep.subr.bf16.mxu0 0
        %3656 = vmatpush1.bf16.xpose.msra.mxu0 %v3618
        %3657 = vmatprep.subr.bf16.mxu0 0
        %3658 = vmatpush1.bf16.xpose.msra.mxu0 %v3621
        %3659 = vmatprep.subr.bf16.mxu0 0
        %3660 = vmatpush1.bf16.xpose.msra.mxu0 %v3624
        %3661 = vmatprep.subr.bf16.mxu0 0
        %3662 = vmatpush1.bf16.xpose.msra.mxu0 %v3627
        %3663 = vmatprep.subr.bf16.mxu0 0
        %3664 = vmatpush1.bf16.xpose.msra.mxu0 %v3630
        %3665 = vmatprep.subr.bf16.mxu0 0
        %3666 = vmatpush1.bf16.xpose.msra.mxu0 %v3633
        %3667 = vmatprep.mubr.bf16.mxu0 0
        %3668 = vmatmul.mubr.bf16.gmra.mrb[0].mxu0 %v3585
        %v3669 = vpop.f32.mrb[0].mxu0
        %v3670 = vadd.f32 0.0, %v3669
        %v3671 = vpop.f32.mrb[0].mxu0
        %v3672 = vadd.f32 0.0, %v3671
        %v3673 = vpop.f32.mrb[0].mxu0
        %v3674 = vpop.f32.mrb[0].mxu0
        %3675 = vdwg.mxu0
        %v3676 = vadd.f32 %v3465, %v3670
        %v3677 = vadd.f32 %v3466, %v3672
        %s3678 = sadd.s32 %s234, 810
        %s3679 = smul.addr %s3678, 4
        %s3680 = scalar_lea.vmem %s222, %s3679
        %v3681 = vld [vmem:[%s3680] sm:$0xf]
        %v3682 = vld [vmem:[%s3680 + $0x8] sm:$0xf]
        %v3683 = vld [vmem:[%s3680 + $0x10] sm:$0xf]
        %v3684 = vld [vmem:[%s3680 + $0x18] sm:$0xf]
        %v3685 = vld [vmem:[%s3680 + $0x20] sm:$0xf]
        %v3686 = vld [vmem:[%s3680 + $0x28] sm:$0xf]
        %v3687 = vld [vmem:[%s3680 + $0x30] sm:$0xf]
        %v3688 = vld [vmem:[%s3680 + $0x38] sm:$0xf]
        %v3689 = vld [vmem:[%s3680 + $0x48] sm:$0xf]
        %v3690 = vld [vmem:[%s3680 + $0x50] sm:$0xf]
        %v3691 = vld [vmem:[%s3680 + $0x58] sm:$0xf]
        %v3692 = vld [vmem:[%s3680 + $0x60] sm:$0xf]
        %v3693 = vld [vmem:[%s3680 + $0x68] sm:$0xf]
        %v3694 = vld [vmem:[%s3680 + $0x70] sm:$0xf]
        %v3695 = vld [vmem:[%s3680 + $0x78] sm:$0xf]
        %v3696 = vld [vmem:[%s3680 + $0x80] sm:$0xf]
        %v3697 = vld [vmem:[%s3680 + $0x90] sm:$0xf]
        %v3698 = vld [vmem:[%s3680 + $0x98] sm:$0xf]
        %v3699 = vld [vmem:[%s3680 + $0xa0] sm:$0xf]
        %v3700 = vld [vmem:[%s3680 + $0xa8] sm:$0xf]
        %v3701 = vld [vmem:[%s3680 + $0xb0] sm:$0xf]
        %v3702 = vld [vmem:[%s3680 + $0xb8] sm:$0xf]
        %v3703 = vld [vmem:[%s3680 + $0xc0] sm:$0xf]
        %v3704 = vld [vmem:[%s3680 + $0xc8] sm:$0xf]
        %v3705 = vld [vmem:[%s3680 + $0xd8] sm:$0xf]
        %v3706 = vld [vmem:[%s3680 + $0xe0] sm:$0xf]
        %v3707 = vld [vmem:[%s3680 + $0xe8] sm:$0xf]
        %v3708 = vld [vmem:[%s3680 + $0xf0] sm:$0xf]
        %v3709 = vld [vmem:[%s3680 + $0xf8] sm:$0xf]
        %v3710 = vld [vmem:[%s3680 + $0x100] sm:$0xf]
        %v3711 = vld [vmem:[%s3680 + $0x108] sm:$0xf]
        %v3712 = vld [vmem:[%s3680 + $0x110] sm:$0xf]
        %s3713 = scalar_lea.vmem %s1, 40
        %v3714 = vld [vmem:[%s3713] sm:$0xf]
        %v3747 = vunpack.c.l.b16 %v3681
        %v3748 = vunpack.c.l.b16 %v3682
        %v3749 = vunpack.c.l.b16 %v3683
        %v3750 = vunpack.c.l.b16 %v3684
        %v3751 = vunpack.c.l.b16 %v3685
        %v3752 = vunpack.c.l.b16 %v3686
        %v3753 = vunpack.c.l.b16 %v3687
        %v3754 = vunpack.c.l.b16 %v3688
        %v3755 = vunpack.c.l.b16 %v3689
        %v3756 = vunpack.c.l.b16 %v3690
        %v3757 = vunpack.c.l.b16 %v3691
        %v3758 = vunpack.c.l.b16 %v3692
        %v3759 = vunpack.c.l.b16 %v3693
        %v3760 = vunpack.c.l.b16 %v3694
        %v3761 = vunpack.c.l.b16 %v3695
        %v3762 = vunpack.c.l.b16 %v3696
        %v3763 = vunpack.c.l.b16 %v3697
        %v3764 = vunpack.c.l.b16 %v3698
        %v3765 = vunpack.c.l.b16 %v3699
        %v3766 = vunpack.c.l.b16 %v3700
        %v3767 = vunpack.c.l.b16 %v3701
        %v3768 = vunpack.c.l.b16 %v3702
        %v3769 = vunpack.c.l.b16 %v3703
        %v3770 = vunpack.c.l.b16 %v3704
        %v3771 = vunpack.c.l.b16 %v3705
        %v3772 = vunpack.c.l.b16 %v3706
        %v3773 = vunpack.c.l.b16 %v3707
        %v3774 = vunpack.c.l.b16 %v3708
        %v3775 = vunpack.c.l.b16 %v3709
        %v3776 = vunpack.c.l.b16 %v3710
        %v3777 = vunpack.c.l.b16 %v3711
        %v3778 = vunpack.c.l.b16 %v3712
        %v3779 = vpack.c.b16 %v3748, %v3747
        %v3780 = vpack.c.b16 %v3750, %v3749
        %v3781 = vpack.c.b16 %v3752, %v3751
        %v3782 = vpack.c.b16 %v3754, %v3753
        %v3783 = vpack.c.b16 %v3756, %v3755
        %v3784 = vpack.c.b16 %v3758, %v3757
        %v3785 = vpack.c.b16 %v3760, %v3759
        %v3786 = vpack.c.b16 %v3762, %v3761
        %v3787 = vpack.c.b16 %v3764, %v3763
        %v3788 = vpack.c.b16 %v3766, %v3765
        %v3789 = vpack.c.b16 %v3768, %v3767
        %v3790 = vpack.c.b16 %v3770, %v3769
        %v3791 = vpack.c.b16 %v3772, %v3771
        %v3792 = vpack.c.b16 %v3774, %v3773
        %v3793 = vpack.c.b16 %v3776, %v3775
        %v3794 = vpack.c.b16 %v3778, %v3777
        %v3796 = vsel %vm387, %v3714, 0
        %v3799 = vsel %vm387, %v3779, 0
        %v3802 = vsel %vm387, %v3780, 0
        %v3805 = vsel %vm387, %v3781, 0
        %v3808 = vsel %vm387, %v3782, 0
        %v3811 = vsel %vm387, %v3783, 0
        %v3814 = vsel %vm387, %v3784, 0
        %v3817 = vsel %vm387, %v3785, 0
        %v3820 = vsel %vm387, %v3786, 0
        %v3823 = vsel %vm387, %v3787, 0
        %v3826 = vsel %vm387, %v3788, 0
        %v3829 = vsel %vm387, %v3789, 0
        %v3832 = vsel %vm387, %v3790, 0
        %v3835 = vsel %vm387, %v3791, 0
        %v3838 = vsel %vm387, %v3792, 0
        %v3841 = vsel %vm387, %v3793, 0
        %v3844 = vsel %vm387, %v3794, 0
        %3846 = vmatprep.subr.bf16.mxu0 0
        %3847 = vmatpush1.bf16.xpose.msra.mxu0 %v3799
        %3848 = vmatprep.subr.bf16.mxu0 0
        %3849 = vmatpush1.bf16.xpose.msra.mxu0 %v3802
        %3850 = vmatprep.subr.bf16.mxu0 0
        %3851 = vmatpush1.bf16.xpose.msra.mxu0 %v3805
        %3852 = vmatprep.subr.bf16.mxu0 0
        %3853 = vmatpush1.bf16.xpose.msra.mxu0 %v3808
        %3854 = vmatprep.subr.bf16.mxu0 0
        %3855 = vmatpush1.bf16.xpose.msra.mxu0 %v3811
        %3856 = vmatprep.subr.bf16.mxu0 0
        %3857 = vmatpush1.bf16.xpose.msra.mxu0 %v3814
        %3858 = vmatprep.subr.bf16.mxu0 0
        %3859 = vmatpush1.bf16.xpose.msra.mxu0 %v3817
        %3860 = vmatprep.subr.bf16.mxu0 0
        %3861 = vmatpush1.bf16.xpose.msra.mxu0 %v3820
        %3862 = vmatprep.subr.bf16.mxu0 0
        %3863 = vmatpush1.bf16.xpose.msra.mxu0 %v3823
        %3864 = vmatprep.subr.bf16.mxu0 0
        %3865 = vmatpush1.bf16.xpose.msra.mxu0 %v3826
        %3866 = vmatprep.subr.bf16.mxu0 0
        %3867 = vmatpush1.bf16.xpose.msra.mxu0 %v3829
        %3868 = vmatprep.subr.bf16.mxu0 0
        %3869 = vmatpush1.bf16.xpose.msra.mxu0 %v3832
        %3870 = vmatprep.subr.bf16.mxu0 0
        %3871 = vmatpush1.bf16.xpose.msra.mxu0 %v3835
        %3872 = vmatprep.subr.bf16.mxu0 0
        %3873 = vmatpush1.bf16.xpose.msra.mxu0 %v3838
        %3874 = vmatprep.subr.bf16.mxu0 0
        %3875 = vmatpush1.bf16.xpose.msra.mxu0 %v3841
        %3876 = vmatprep.subr.bf16.mxu0 0
        %3877 = vmatpush1.bf16.xpose.msra.mxu0 %v3844
        %3878 = vmatprep.mubr.bf16.mxu0 0
        %3879 = vmatmul.mubr.bf16.gmra.mrb[0].mxu0 %v3796
        %v3880 = vpop.f32.mrb[0].mxu0
        %v3881 = vadd.f32 0.0, %v3880
        %v3882 = vpop.f32.mrb[0].mxu0
        %v3883 = vadd.f32 0.0, %v3882
        %v3884 = vpop.f32.mrb[0].mxu0
        %v3885 = vpop.f32.mrb[0].mxu0
        %3886 = vdwg.mxu0
        %v3887 = vadd.f32 %v3676, %v3881
        %v3888 = vadd.f32 %v3677, %v3883
        %v3889 = vld [vmem:[%s3469] sm:$0xf]
        %v3890 = vld [vmem:[%s3469 + $0x4] sm:$0x1]
        %v3891 = vld [vmem:[%s3469 + $0x8] sm:$0xf]
        %v3892 = vld [vmem:[%s3469 + $0xc] sm:$0x1]
        %v3893 = vld [vmem:[%s3469 + $0x10] sm:$0xf]
        %v3894 = vld [vmem:[%s3469 + $0x14] sm:$0x1]
        %v3895 = vld [vmem:[%s3469 + $0x18] sm:$0xf]
        %v3896 = vld [vmem:[%s3469 + $0x1c] sm:$0x1]
        %v3897 = vld [vmem:[%s3469 + $0x20] sm:$0xf]
        %v3898 = vld [vmem:[%s3469 + $0x24] sm:$0x1]
        %v3899 = vld [vmem:[%s3469 + $0x28] sm:$0xf]
        %v3900 = vld [vmem:[%s3469 + $0x2c] sm:$0x1]
        %v3901 = vld [vmem:[%s3469 + $0x30] sm:$0xf]
        %v3902 = vld [vmem:[%s3469 + $0x34] sm:$0x1]
        %v3903 = vld [vmem:[%s3469 + $0x38] sm:$0xf]
        %v3904 = vld [vmem:[%s3469 + $0x3c] sm:$0x1]
        %v3905 = vld [vmem:[%s3469 + $0x48] sm:$0xf]
        %v3906 = vld [vmem:[%s3469 + $0x4c] sm:$0x1]
        %v3907 = vld [vmem:[%s3469 + $0x50] sm:$0xf]
        %v3908 = vld [vmem:[%s3469 + $0x54] sm:$0x1]
        %v3909 = vld [vmem:[%s3469 + $0x58] sm:$0xf]
        %v3910 = vld [vmem:[%s3469 + $0x5c] sm:$0x1]
        %v3911 = vld [vmem:[%s3469 + $0x60] sm:$0xf]
        %v3912 = vld [vmem:[%s3469 + $0x64] sm:$0x1]
        %v3913 = vld [vmem:[%s3469 + $0x68] sm:$0xf]
        %v3914 = vld [vmem:[%s3469 + $0x6c] sm:$0x1]
        %v3915 = vld [vmem:[%s3469 + $0x70] sm:$0xf]
        %v3916 = vld [vmem:[%s3469 + $0x74] sm:$0x1]
        %v3917 = vld [vmem:[%s3469 + $0x78] sm:$0xf]
        %v3918 = vld [vmem:[%s3469 + $0x7c] sm:$0x1]
        %v3919 = vld [vmem:[%s3469 + $0x80] sm:$0xf]
        %v3920 = vld [vmem:[%s3469 + $0x84] sm:$0x1]
        %v3921 = vld [vmem:[%s3469 + $0x90] sm:$0xf]
        %v3922 = vld [vmem:[%s3469 + $0x94] sm:$0x1]
        %v3923 = vld [vmem:[%s3469 + $0x98] sm:$0xf]
        %v3924 = vld [vmem:[%s3469 + $0x9c] sm:$0x1]
        %v3925 = vld [vmem:[%s3469 + $0xa0] sm:$0xf]
        %v3926 = vld [vmem:[%s3469 + $0xa4] sm:$0x1]
        %v3927 = vld [vmem:[%s3469 + $0xa8] sm:$0xf]
        %v3928 = vld [vmem:[%s3469 + $0xac] sm:$0x1]
        %v3929 = vld [vmem:[%s3469 + $0xb0] sm:$0xf]
        %v3930 = vld [vmem:[%s3469 + $0xb4] sm:$0x1]
        %v3931 = vld [vmem:[%s3469 + $0xb8] sm:$0xf]
        %v3932 = vld [vmem:[%s3469 + $0xbc] sm:$0x1]
        %v3933 = vld [vmem:[%s3469 + $0xc0] sm:$0xf]
        %v3934 = vld [vmem:[%s3469 + $0xc4] sm:$0x1]
        %v3935 = vld [vmem:[%s3469 + $0xc8] sm:$0xf]
        %v3936 = vld [vmem:[%s3469 + $0xcc] sm:$0x1]
        %v3937 = vld [vmem:[%s3469 + $0xd8] sm:$0xf]
        %v3938 = vld [vmem:[%s3469 + $0xdc] sm:$0x1]
        %v3939 = vld [vmem:[%s3469 + $0xe0] sm:$0xf]
        %v3940 = vld [vmem:[%s3469 + $0xe4] sm:$0x1]
        %v3941 = vld [vmem:[%s3469 + $0xe8] sm:$0xf]
        %v3942 = vld [vmem:[%s3469 + $0xec] sm:$0x1]
        %v3943 = vld [vmem:[%s3469 + $0xf0] sm:$0xf]
        %v3944 = vld [vmem:[%s3469 + $0xf4] sm:$0x1]
        %v3945 = vld [vmem:[%s3469 + $0xf8] sm:$0xf]
        %v3946 = vld [vmem:[%s3469 + $0xfc] sm:$0x1]
        %v3947 = vld [vmem:[%s3469 + $0x100] sm:$0xf]
        %v3948 = vld [vmem:[%s3469 + $0x104] sm:$0x1]
        %v3949 = vld [vmem:[%s3469 + $0x108] sm:$0xf]
        %v3950 = vld [vmem:[%s3469 + $0x10c] sm:$0x1]
        %v3951 = vld [vmem:[%s3469 + $0x110] sm:$0xf]
        %v3952 = vld [vmem:[%s3469 + $0x114] sm:$0x1]
        %v3954 = vshrl.u32 %v3889, 16
        %v3956 = vrot.slane %v3954, 4
        %v3957 = vshll.u32 %v3889, 16
        %v3959 = vrot.slane %v3957, 5
        %v3960 = vor.u32 %v3956, %v3959
        %v3961 = vrot.slane %v3960, 4
        %v3963 = vshll.u32 %v3890, 16
        %v3965 = vrot.slane %v3963, 5
        %v3966 = vsel %vm718, %v3961, %v3965
        %v3968 = vshrl.u32 %v3891, 16
        %v3970 = vrot.slane %v3968, 4
        %v3971 = vshll.u32 %v3891, 16
        %v3973 = vrot.slane %v3971, 5
        %v3974 = vor.u32 %v3970, %v3973
        %v3975 = vrot.slane %v3974, 4
        %v3977 = vshll.u32 %v3892, 16
        %v3979 = vrot.slane %v3977, 5
        %v3980 = vsel %vm718, %v3975, %v3979
        %v3982 = vshrl.u32 %v3893, 16
        %v3984 = vrot.slane %v3982, 4
        %v3985 = vshll.u32 %v3893, 16
        %v3987 = vrot.slane %v3985, 5
        %v3988 = vor.u32 %v3984, %v3987
        %v3989 = vrot.slane %v3988, 4
        %v3991 = vshll.u32 %v3894, 16
        %v3993 = vrot.slane %v3991, 5
        %v3994 = vsel %vm718, %v3989, %v3993
        %v3996 = vshrl.u32 %v3895, 16
        %v3998 = vrot.slane %v3996, 4
        %v3999 = vshll.u32 %v3895, 16
        %v4001 = vrot.slane %v3999, 5
        %v4002 = vor.u32 %v3998, %v4001
        %v4003 = vrot.slane %v4002, 4
        %v4005 = vshll.u32 %v3896, 16
        %v4007 = vrot.slane %v4005, 5
        %v4008 = vsel %vm718, %v4003, %v4007
        %v4010 = vshrl.u32 %v3897, 16
        %v4012 = vrot.slane %v4010, 4
        %v4013 = vshll.u32 %v3897, 16
        %v4015 = vrot.slane %v4013, 5
        %v4016 = vor.u32 %v4012, %v4015
        %v4017 = vrot.slane %v4016, 4
        %v4019 = vshll.u32 %v3898, 16
        %v4021 = vrot.slane %v4019, 5
        %v4022 = vsel %vm718, %v4017, %v4021
        %v4024 = vshrl.u32 %v3899, 16
        %v4026 = vrot.slane %v4024, 4
        %v4027 = vshll.u32 %v3899, 16
        %v4029 = vrot.slane %v4027, 5
        %v4030 = vor.u32 %v4026, %v4029
        %v4031 = vrot.slane %v4030, 4
        %v4033 = vshll.u32 %v3900, 16
        %v4035 = vrot.slane %v4033, 5
        %v4036 = vsel %vm718, %v4031, %v4035
        %v4038 = vshrl.u32 %v3901, 16
        %v4040 = vrot.slane %v4038, 4
        %v4041 = vshll.u32 %v3901, 16
        %v4043 = vrot.slane %v4041, 5
        %v4044 = vor.u32 %v4040, %v4043
        %v4045 = vrot.slane %v4044, 4
        %v4047 = vshll.u32 %v3902, 16
        %v4049 = vrot.slane %v4047, 5
        %v4050 = vsel %vm718, %v4045, %v4049
        %v4052 = vshrl.u32 %v3903, 16
        %v4054 = vrot.slane %v4052, 4
        %v4055 = vshll.u32 %v3903, 16
        %v4057 = vrot.slane %v4055, 5
        %v4058 = vor.u32 %v4054, %v4057
        %v4059 = vrot.slane %v4058, 4
        %v4061 = vshll.u32 %v3904, 16
        %v4063 = vrot.slane %v4061, 5
        %v4064 = vsel %vm718, %v4059, %v4063
        %v4066 = vshrl.u32 %v3905, 16
        %v4068 = vrot.slane %v4066, 4
        %v4069 = vshll.u32 %v3905, 16
        %v4071 = vrot.slane %v4069, 5
        %v4072 = vor.u32 %v4068, %v4071
        %v4073 = vrot.slane %v4072, 4
        %v4075 = vshll.u32 %v3906, 16
        %v4077 = vrot.slane %v4075, 5
        %v4078 = vsel %vm718, %v4073, %v4077
        %v4080 = vshrl.u32 %v3907, 16
        %v4082 = vrot.slane %v4080, 4
        %v4083 = vshll.u32 %v3907, 16
        %v4085 = vrot.slane %v4083, 5
        %v4086 = vor.u32 %v4082, %v4085
        %v4087 = vrot.slane %v4086, 4
        %v4089 = vshll.u32 %v3908, 16
        %v4091 = vrot.slane %v4089, 5
        %v4092 = vsel %vm718, %v4087, %v4091
        %v4094 = vshrl.u32 %v3909, 16
        %v4096 = vrot.slane %v4094, 4
        %v4097 = vshll.u32 %v3909, 16
        %v4099 = vrot.slane %v4097, 5
        %v4100 = vor.u32 %v4096, %v4099
        %v4101 = vrot.slane %v4100, 4
        %v4103 = vshll.u32 %v3910, 16
        %v4105 = vrot.slane %v4103, 5
        %v4106 = vsel %vm718, %v4101, %v4105
        %v4108 = vshrl.u32 %v3911, 16
        %v4110 = vrot.slane %v4108, 4
        %v4111 = vshll.u32 %v3911, 16
        %v4113 = vrot.slane %v4111, 5
        %v4114 = vor.u32 %v4110, %v4113
        %v4115 = vrot.slane %v4114, 4
        %v4117 = vshll.u32 %v3912, 16
        %v4119 = vrot.slane %v4117, 5
        %v4120 = vsel %vm718, %v4115, %v4119
        %v4122 = vshrl.u32 %v3913, 16
        %v4124 = vrot.slane %v4122, 4
        %v4125 = vshll.u32 %v3913, 16
        %v4127 = vrot.slane %v4125, 5
        %v4128 = vor.u32 %v4124, %v4127
        %v4129 = vrot.slane %v4128, 4
        %v4131 = vshll.u32 %v3914, 16
        %v4133 = vrot.slane %v4131, 5
        %v4134 = vsel %vm718, %v4129, %v4133
        %v4136 = vshrl.u32 %v3915, 16
        %v4138 = vrot.slane %v4136, 4
        %v4139 = vshll.u32 %v3915, 16
        %v4141 = vrot.slane %v4139, 5
        %v4142 = vor.u32 %v4138, %v4141
        %v4143 = vrot.slane %v4142, 4
        %v4145 = vshll.u32 %v3916, 16
        %v4147 = vrot.slane %v4145, 5
        %v4148 = vsel %vm718, %v4143, %v4147
        %v4150 = vshrl.u32 %v3917, 16
        %v4152 = vrot.slane %v4150, 4
        %v4153 = vshll.u32 %v3917, 16
        %v4155 = vrot.slane %v4153, 5
        %v4156 = vor.u32 %v4152, %v4155
        %v4157 = vrot.slane %v4156, 4
        %v4159 = vshll.u32 %v3918, 16
        %v4161 = vrot.slane %v4159, 5
        %v4162 = vsel %vm718, %v4157, %v4161
        %v4164 = vshrl.u32 %v3919, 16
        %v4166 = vrot.slane %v4164, 4
        %v4167 = vshll.u32 %v3919, 16
        %v4169 = vrot.slane %v4167, 5
        %v4170 = vor.u32 %v4166, %v4169
        %v4171 = vrot.slane %v4170, 4
        %v4173 = vshll.u32 %v3920, 16
        %v4175 = vrot.slane %v4173, 5
        %v4176 = vsel %vm718, %v4171, %v4175
        %v4178 = vshrl.u32 %v3921, 16
        %v4180 = vrot.slane %v4178, 4
        %v4181 = vshll.u32 %v3921, 16
        %v4183 = vrot.slane %v4181, 5
        %v4184 = vor.u32 %v4180, %v4183
        %v4185 = vrot.slane %v4184, 4
        %v4187 = vshll.u32 %v3922, 16
        %v4189 = vrot.slane %v4187, 5
        %v4190 = vsel %vm718, %v4185, %v4189
        %v4192 = vshrl.u32 %v3923, 16
        %v4194 = vrot.slane %v4192, 4
        %v4195 = vshll.u32 %v3923, 16
        %v4197 = vrot.slane %v4195, 5
        %v4198 = vor.u32 %v4194, %v4197
        %v4199 = vrot.slane %v4198, 4
        %v4201 = vshll.u32 %v3924, 16
        %v4203 = vrot.slane %v4201, 5
        %v4204 = vsel %vm718, %v4199, %v4203
        %v4206 = vshrl.u32 %v3925, 16
        %v4208 = vrot.slane %v4206, 4
        %v4209 = vshll.u32 %v3925, 16
        %v4211 = vrot.slane %v4209, 5
        %v4212 = vor.u32 %v4208, %v4211
        %v4213 = vrot.slane %v4212, 4
        %v4215 = vshll.u32 %v3926, 16
        %v4217 = vrot.slane %v4215, 5
        %v4218 = vsel %vm718, %v4213, %v4217
        %v4220 = vshrl.u32 %v3927, 16
        %v4222 = vrot.slane %v4220, 4
        %v4223 = vshll.u32 %v3927, 16
        %v4225 = vrot.slane %v4223, 5
        %v4226 = vor.u32 %v4222, %v4225
        %v4227 = vrot.slane %v4226, 4
        %v4229 = vshll.u32 %v3928, 16
        %v4231 = vrot.slane %v4229, 5
        %v4232 = vsel %vm718, %v4227, %v4231
        %v4234 = vshrl.u32 %v3929, 16
        %v4236 = vrot.slane %v4234, 4
        %v4237 = vshll.u32 %v3929, 16
        %v4239 = vrot.slane %v4237, 5
        %v4240 = vor.u32 %v4236, %v4239
        %v4241 = vrot.slane %v4240, 4
        %v4243 = vshll.u32 %v3930, 16
        %v4245 = vrot.slane %v4243, 5
        %v4246 = vsel %vm718, %v4241, %v4245
        %v4248 = vshrl.u32 %v3931, 16
        %v4250 = vrot.slane %v4248, 4
        %v4251 = vshll.u32 %v3931, 16
        %v4253 = vrot.slane %v4251, 5
        %v4254 = vor.u32 %v4250, %v4253
        %v4255 = vrot.slane %v4254, 4
        %v4257 = vshll.u32 %v3932, 16
        %v4259 = vrot.slane %v4257, 5
        %v4260 = vsel %vm718, %v4255, %v4259
        %v4262 = vshrl.u32 %v3933, 16
        %v4264 = vrot.slane %v4262, 4
        %v4265 = vshll.u32 %v3933, 16
        %v4267 = vrot.slane %v4265, 5
        %v4268 = vor.u32 %v4264, %v4267
        %v4269 = vrot.slane %v4268, 4
        %v4271 = vshll.u32 %v3934, 16
        %v4273 = vrot.slane %v4271, 5
        %v4274 = vsel %vm718, %v4269, %v4273
        %v4276 = vshrl.u32 %v3935, 16
        %v4278 = vrot.slane %v4276, 4
        %v4279 = vshll.u32 %v3935, 16
        %v4281 = vrot.slane %v4279, 5
        %v4282 = vor.u32 %v4278, %v4281
        %v4283 = vrot.slane %v4282, 4
        %v4285 = vshll.u32 %v3936, 16
        %v4287 = vrot.slane %v4285, 5
        %v4288 = vsel %vm718, %v4283, %v4287
        %v4290 = vshrl.u32 %v3937, 16
        %v4292 = vrot.slane %v4290, 4
        %v4293 = vshll.u32 %v3937, 16
        %v4295 = vrot.slane %v4293, 5
        %v4296 = vor.u32 %v4292, %v4295
        %v4297 = vrot.slane %v4296, 4
        %v4299 = vshll.u32 %v3938, 16
        %v4301 = vrot.slane %v4299, 5
        %v4302 = vsel %vm718, %v4297, %v4301
        %v4304 = vshrl.u32 %v3939, 16
        %v4306 = vrot.slane %v4304, 4
        %v4307 = vshll.u32 %v3939, 16
        %v4309 = vrot.slane %v4307, 5
        %v4310 = vor.u32 %v4306, %v4309
        %v4311 = vrot.slane %v4310, 4
        %v4313 = vshll.u32 %v3940, 16
        %v4315 = vrot.slane %v4313, 5
        %v4316 = vsel %vm718, %v4311, %v4315
        %v4318 = vshrl.u32 %v3941, 16
        %v4320 = vrot.slane %v4318, 4
        %v4321 = vshll.u32 %v3941, 16
        %v4323 = vrot.slane %v4321, 5
        %v4324 = vor.u32 %v4320, %v4323
        %v4325 = vrot.slane %v4324, 4
        %v4327 = vshll.u32 %v3942, 16
        %v4329 = vrot.slane %v4327, 5
        %v4330 = vsel %vm718, %v4325, %v4329
        %v4332 = vshrl.u32 %v3943, 16
        %v4334 = vrot.slane %v4332, 4
        %v4335 = vshll.u32 %v3943, 16
        %v4337 = vrot.slane %v4335, 5
        %v4338 = vor.u32 %v4334, %v4337
        %v4339 = vrot.slane %v4338, 4
        %v4341 = vshll.u32 %v3944, 16
        %v4343 = vrot.slane %v4341, 5
        %v4344 = vsel %vm718, %v4339, %v4343
        %v4346 = vshrl.u32 %v3945, 16
        %v4348 = vrot.slane %v4346, 4
        %v4349 = vshll.u32 %v3945, 16
        %v4351 = vrot.slane %v4349, 5
        %v4352 = vor.u32 %v4348, %v4351
        %v4353 = vrot.slane %v4352, 4
        %v4355 = vshll.u32 %v3946, 16
        %v4357 = vrot.slane %v4355, 5
        %v4358 = vsel %vm718, %v4353, %v4357
        %v4360 = vshrl.u32 %v3947, 16
        %v4362 = vrot.slane %v4360, 4
        %v4363 = vshll.u32 %v3947, 16
        %v4365 = vrot.slane %v4363, 5
        %v4366 = vor.u32 %v4362, %v4365
        %v4367 = vrot.slane %v4366, 4
        %v4369 = vshll.u32 %v3948, 16
        %v4371 = vrot.slane %v4369, 5
        %v4372 = vsel %vm718, %v4367, %v4371
        %v4374 = vshrl.u32 %v3949, 16
        %v4376 = vrot.slane %v4374, 4
        %v4377 = vshll.u32 %v3949, 16
        %v4379 = vrot.slane %v4377, 5
        %v4380 = vor.u32 %v4376, %v4379
        %v4381 = vrot.slane %v4380, 4
        %v4383 = vshll.u32 %v3950, 16
        %v4385 = vrot.slane %v4383, 5
        %v4386 = vsel %vm718, %v4381, %v4385
        %v4388 = vshrl.u32 %v3951, 16
        %v4390 = vrot.slane %v4388, 4
        %v4391 = vshll.u32 %v3951, 16
        %v4393 = vrot.slane %v4391, 5
        %v4394 = vor.u32 %v4390, %v4393
        %v4395 = vrot.slane %v4394, 4
        %v4397 = vshll.u32 %v3952, 16
        %v4399 = vrot.slane %v4397, 5
        %v4400 = vsel %vm718, %v4395, %v4399
        %s4401 = scalar_lea.vmem %s1, 44
        %v4402 = vld [vmem:[%s4401] sm:$0xf]
        %v4403 = vunpack.c.l.b16 %v3966
        %v4404 = vunpack.c.l.b16 %v3980
        %v4405 = vunpack.c.l.b16 %v3994
        %v4406 = vunpack.c.l.b16 %v4008
        %v4407 = vunpack.c.l.b16 %v4022
        %v4408 = vunpack.c.l.b16 %v4036
        %v4409 = vunpack.c.l.b16 %v4050
        %v4410 = vunpack.c.l.b16 %v4064
        %v4411 = vunpack.c.l.b16 %v4078
        %v4412 = vunpack.c.l.b16 %v4092
        %v4413 = vunpack.c.l.b16 %v4106
        %v4414 = vunpack.c.l.b16 %v4120
        %v4415 = vunpack.c.l.b16 %v4134
        %v4416 = vunpack.c.l.b16 %v4148
        %v4417 = vunpack.c.l.b16 %v4162
        %v4418 = vunpack.c.l.b16 %v4176
        %v4419 = vunpack.c.l.b16 %v4190
        %v4420 = vunpack.c.l.b16 %v4204
        %v4421 = vunpack.c.l.b16 %v4218
        %v4422 = vunpack.c.l.b16 %v4232
        %v4423 = vunpack.c.l.b16 %v4246
        %v4424 = vunpack.c.l.b16 %v4260
        %v4425 = vunpack.c.l.b16 %v4274
        %v4426 = vunpack.c.l.b16 %v4288
        %v4427 = vunpack.c.l.b16 %v4302
        %v4428 = vunpack.c.l.b16 %v4316
        %v4429 = vunpack.c.l.b16 %v4330
        %v4430 = vunpack.c.l.b16 %v4344
        %v4431 = vunpack.c.l.b16 %v4358
        %v4432 = vunpack.c.l.b16 %v4372
        %v4433 = vunpack.c.l.b16 %v4386
        %v4434 = vunpack.c.l.b16 %v4400
        %v4435 = vpack.c.b16 %v4404, %v4403
        %v4436 = vpack.c.b16 %v4406, %v4405
        %v4437 = vpack.c.b16 %v4408, %v4407
        %v4438 = vpack.c.b16 %v4410, %v4409
        %v4439 = vpack.c.b16 %v4412, %v4411
        %v4440 = vpack.c.b16 %v4414, %v4413
        %v4441 = vpack.c.b16 %v4416, %v4415
        %v4442 = vpack.c.b16 %v4418, %v4417
        %v4443 = vpack.c.b16 %v4420, %v4419
        %v4444 = vpack.c.b16 %v4422, %v4421
        %v4445 = vpack.c.b16 %v4424, %v4423
        %v4446 = vpack.c.b16 %v4426, %v4425
        %v4447 = vpack.c.b16 %v4428, %v4427
        %v4448 = vpack.c.b16 %v4430, %v4429
        %v4449 = vpack.c.b16 %v4432, %v4431
        %v4450 = vpack.c.b16 %v4434, %v4433
        %v4452 = vsel %vm387, %v4402, 0
        %v4455 = vsel %vm387, %v4435, 0
        %v4458 = vsel %vm387, %v4436, 0
        %v4461 = vsel %vm387, %v4437, 0
        %v4464 = vsel %vm387, %v4438, 0
        %v4467 = vsel %vm387, %v4439, 0
        %v4470 = vsel %vm387, %v4440, 0
        %v4473 = vsel %vm387, %v4441, 0
        %v4476 = vsel %vm387, %v4442, 0
        %v4479 = vsel %vm387, %v4443, 0
        %v4482 = vsel %vm387, %v4444, 0
        %v4485 = vsel %vm387, %v4445, 0
        %v4488 = vsel %vm387, %v4446, 0
        %v4491 = vsel %vm387, %v4447, 0
        %v4494 = vsel %vm387, %v4448, 0
        %v4497 = vsel %vm387, %v4449, 0
        %v4500 = vsel %vm387, %v4450, 0
        %4502 = vmatprep.subr.bf16.mxu0 0
        %4503 = vmatpush1.bf16.xpose.msra.mxu0 %v4455
        %4504 = vmatprep.subr.bf16.mxu0 0
        %4505 = vmatpush1.bf16.xpose.msra.mxu0 %v4458
        %4506 = vmatprep.subr.bf16.mxu0 0
        %4507 = vmatpush1.bf16.xpose.msra.mxu0 %v4461
        %4508 = vmatprep.subr.bf16.mxu0 0
        %4509 = vmatpush1.bf16.xpose.msra.mxu0 %v4464
        %4510 = vmatprep.subr.bf16.mxu0 0
        %4511 = vmatpush1.bf16.xpose.msra.mxu0 %v4467
        %4512 = vmatprep.subr.bf16.mxu0 0
        %4513 = vmatpush1.bf16.xpose.msra.mxu0 %v4470
        %4514 = vmatprep.subr.bf16.mxu0 0
        %4515 = vmatpush1.bf16.xpose.msra.mxu0 %v4473
        %4516 = vmatprep.subr.bf16.mxu0 0
        %4517 = vmatpush1.bf16.xpose.msra.mxu0 %v4476
        %4518 = vmatprep.subr.bf16.mxu0 0
        %4519 = vmatpush1.bf16.xpose.msra.mxu0 %v4479
        %4520 = vmatprep.subr.bf16.mxu0 0
        %4521 = vmatpush1.bf16.xpose.msra.mxu0 %v4482
        %4522 = vmatprep.subr.bf16.mxu0 0
        %4523 = vmatpush1.bf16.xpose.msra.mxu0 %v4485
        %4524 = vmatprep.subr.bf16.mxu0 0
        %4525 = vmatpush1.bf16.xpose.msra.mxu0 %v4488
        %4526 = vmatprep.subr.bf16.mxu0 0
        %4527 = vmatpush1.bf16.xpose.msra.mxu0 %v4491
        %4528 = vmatprep.subr.bf16.mxu0 0
        %4529 = vmatpush1.bf16.xpose.msra.mxu0 %v4494
        %4530 = vmatprep.subr.bf16.mxu0 0
        %4531 = vmatpush1.bf16.xpose.msra.mxu0 %v4497
        %4532 = vmatprep.subr.bf16.mxu0 0
        %4533 = vmatpush1.bf16.xpose.msra.mxu0 %v4500
        %4534 = vmatprep.mubr.bf16.mxu0 0
        %4535 = vmatmul.mubr.bf16.gmra.mrb[0].mxu0 %v4452
        %v4536 = vpop.f32.mrb[0].mxu0
        %v4537 = vadd.f32 0.0, %v4536
        %v4538 = vpop.f32.mrb[0].mxu0
        %v4539 = vadd.f32 0.0, %v4538
        %v4540 = vpop.f32.mrb[0].mxu0
        %v4541 = vpop.f32.mrb[0].mxu0
        %4542 = vdwg.mxu0
        %v4543 = vadd.f32 %v3887, %v4537
        %v4544 = vadd.f32 %v3888, %v4539
        %s4545 = sadd.s32 %s234, 972
        %s4546 = smul.addr %s4545, 4
        %s4547 = scalar_lea.vmem %s222, %s4546
        %v4548 = vld [vmem:[%s4547] sm:$0xf]
        %v4549 = vld [vmem:[%s4547 + $0x8] sm:$0xf]
        %v4550 = vld [vmem:[%s4547 + $0x10] sm:$0xf]
        %v4551 = vld [vmem:[%s4547 + $0x18] sm:$0xf]
        %v4552 = vld [vmem:[%s4547 + $0x20] sm:$0xf]
        %v4553 = vld [vmem:[%s4547 + $0x28] sm:$0xf]
        %v4554 = vld [vmem:[%s4547 + $0x30] sm:$0xf]
        %v4555 = vld [vmem:[%s4547 + $0x38] sm:$0xf]
        %v4556 = vld [vmem:[%s4547 + $0x48] sm:$0xf]
        %v4557 = vld [vmem:[%s4547 + $0x50] sm:$0xf]
        %v4558 = vld [vmem:[%s4547 + $0x58] sm:$0xf]
        %v4559 = vld [vmem:[%s4547 + $0x60] sm:$0xf]
        %v4560 = vld [vmem:[%s4547 + $0x68] sm:$0xf]
        %v4561 = vld [vmem:[%s4547 + $0x70] sm:$0xf]
        %v4562 = vld [vmem:[%s4547 + $0x78] sm:$0xf]
        %v4563 = vld [vmem:[%s4547 + $0x80] sm:$0xf]
        %v4564 = vld [vmem:[%s4547 + $0x90] sm:$0xf]
        %v4565 = vld [vmem:[%s4547 + $0x98] sm:$0xf]
        %v4566 = vld [vmem:[%s4547 + $0xa0] sm:$0xf]
        %v4567 = vld [vmem:[%s4547 + $0xa8] sm:$0xf]
        %v4568 = vld [vmem:[%s4547 + $0xb0] sm:$0xf]
        %v4569 = vld [vmem:[%s4547 + $0xb8] sm:$0xf]
        %v4570 = vld [vmem:[%s4547 + $0xc0] sm:$0xf]
        %v4571 = vld [vmem:[%s4547 + $0xc8] sm:$0xf]
        %v4572 = vld [vmem:[%s4547 + $0xd8] sm:$0xf]
        %v4573 = vld [vmem:[%s4547 + $0xe0] sm:$0xf]
        %v4574 = vld [vmem:[%s4547 + $0xe8] sm:$0xf]
        %v4575 = vld [vmem:[%s4547 + $0xf0] sm:$0xf]
        %v4576 = vld [vmem:[%s4547 + $0xf8] sm:$0xf]
        %v4577 = vld [vmem:[%s4547 + $0x100] sm:$0xf]
        %v4578 = vld [vmem:[%s4547 + $0x108] sm:$0xf]
        %v4579 = vld [vmem:[%s4547 + $0x110] sm:$0xf]
        %s4580 = scalar_lea.vmem %s1, 48
        %v4581 = vld [vmem:[%s4580] sm:$0xf]
        %v4614 = vunpack.c.l.b16 %v4548
        %v4615 = vunpack.c.l.b16 %v4549
        %v4616 = vunpack.c.l.b16 %v4550
        %v4617 = vunpack.c.l.b16 %v4551
        %v4618 = vunpack.c.l.b16 %v4552
        %v4619 = vunpack.c.l.b16 %v4553
        %v4620 = vunpack.c.l.b16 %v4554
        %v4621 = vunpack.c.l.b16 %v4555
        %v4622 = vunpack.c.l.b16 %v4556
        %v4623 = vunpack.c.l.b16 %v4557
        %v4624 = vunpack.c.l.b16 %v4558
        %v4625 = vunpack.c.l.b16 %v4559
        %v4626 = vunpack.c.l.b16 %v4560
        %v4627 = vunpack.c.l.b16 %v4561
        %v4628 = vunpack.c.l.b16 %v4562
        %v4629 = vunpack.c.l.b16 %v4563
        %v4630 = vunpack.c.l.b16 %v4564
        %v4631 = vunpack.c.l.b16 %v4565
        %v4632 = vunpack.c.l.b16 %v4566
        %v4633 = vunpack.c.l.b16 %v4567
        %v4634 = vunpack.c.l.b16 %v4568
        %v4635 = vunpack.c.l.b16 %v4569
        %v4636 = vunpack.c.l.b16 %v4570
        %v4637 = vunpack.c.l.b16 %v4571
        %v4638 = vunpack.c.l.b16 %v4572
        %v4639 = vunpack.c.l.b16 %v4573
        %v4640 = vunpack.c.l.b16 %v4574
        %v4641 = vunpack.c.l.b16 %v4575
        %v4642 = vunpack.c.l.b16 %v4576
        %v4643 = vunpack.c.l.b16 %v4577
        %v4644 = vunpack.c.l.b16 %v4578
        %v4645 = vunpack.c.l.b16 %v4579
        %v4646 = vpack.c.b16 %v4615, %v4614
        %v4647 = vpack.c.b16 %v4617, %v4616
        %v4648 = vpack.c.b16 %v4619, %v4618
        %v4649 = vpack.c.b16 %v4621, %v4620
        %v4650 = vpack.c.b16 %v4623, %v4622
        %v4651 = vpack.c.b16 %v4625, %v4624
        %v4652 = vpack.c.b16 %v4627, %v4626
        %v4653 = vpack.c.b16 %v4629, %v4628
        %v4654 = vpack.c.b16 %v4631, %v4630
        %v4655 = vpack.c.b16 %v4633, %v4632
        %v4656 = vpack.c.b16 %v4635, %v4634
        %v4657 = vpack.c.b16 %v4637, %v4636
        %v4658 = vpack.c.b16 %v4639, %v4638
        %v4659 = vpack.c.b16 %v4641, %v4640
        %v4660 = vpack.c.b16 %v4643, %v4642
        %v4661 = vpack.c.b16 %v4645, %v4644
        %v4663 = vsel %vm387, %v4581, 0
        %v4666 = vsel %vm387, %v4646, 0
        %v4669 = vsel %vm387, %v4647, 0
        %v4672 = vsel %vm387, %v4648, 0
        %v4675 = vsel %vm387, %v4649, 0
        %v4678 = vsel %vm387, %v4650, 0
        %v4681 = vsel %vm387, %v4651, 0
        %v4684 = vsel %vm387, %v4652, 0
        %v4687 = vsel %vm387, %v4653, 0
        %v4690 = vsel %vm387, %v4654, 0
        %v4693 = vsel %vm387, %v4655, 0
        %v4696 = vsel %vm387, %v4656, 0
        %v4699 = vsel %vm387, %v4657, 0
        %v4702 = vsel %vm387, %v4658, 0
        %v4705 = vsel %vm387, %v4659, 0
        %v4708 = vsel %vm387, %v4660, 0
        %v4711 = vsel %vm387, %v4661, 0
        %4713 = vmatprep.subr.bf16.mxu0 0
        %4714 = vmatpush1.bf16.xpose.msra.mxu0 %v4666
        %4715 = vmatprep.subr.bf16.mxu0 0
        %4716 = vmatpush1.bf16.xpose.msra.mxu0 %v4669
        %4717 = vmatprep.subr.bf16.mxu0 0
        %4718 = vmatpush1.bf16.xpose.msra.mxu0 %v4672
        %4719 = vmatprep.subr.bf16.mxu0 0
        %4720 = vmatpush1.bf16.xpose.msra.mxu0 %v4675
        %4721 = vmatprep.subr.bf16.mxu0 0
        %4722 = vmatpush1.bf16.xpose.msra.mxu0 %v4678
        %4723 = vmatprep.subr.bf16.mxu0 0
        %4724 = vmatpush1.bf16.xpose.msra.mxu0 %v4681
        %4725 = vmatprep.subr.bf16.mxu0 0
        %4726 = vmatpush1.bf16.xpose.msra.mxu0 %v4684
        %4727 = vmatprep.subr.bf16.mxu0 0
        %4728 = vmatpush1.bf16.xpose.msra.mxu0 %v4687
        %4729 = vmatprep.subr.bf16.mxu0 0
        %4730 = vmatpush1.bf16.xpose.msra.mxu0 %v4690
        %4731 = vmatprep.subr.bf16.mxu0 0
        %4732 = vmatpush1.bf16.xpose.msra.mxu0 %v4693
        %4733 = vmatprep.subr.bf16.mxu0 0
        %4734 = vmatpush1.bf16.xpose.msra.mxu0 %v4696
        %4735 = vmatprep.subr.bf16.mxu0 0
        %4736 = vmatpush1.bf16.xpose.msra.mxu0 %v4699
        %4737 = vmatprep.subr.bf16.mxu0 0
        %4738 = vmatpush1.bf16.xpose.msra.mxu0 %v4702
        %4739 = vmatprep.subr.bf16.mxu0 0
        %4740 = vmatpush1.bf16.xpose.msra.mxu0 %v4705
        %4741 = vmatprep.subr.bf16.mxu0 0
        %4742 = vmatpush1.bf16.xpose.msra.mxu0 %v4708
        %4743 = vmatprep.subr.bf16.mxu0 0
        %4744 = vmatpush1.bf16.xpose.msra.mxu0 %v4711
        %4745 = vmatprep.mubr.bf16.mxu0 0
        %4746 = vmatmul.mubr.bf16.gmra.mrb[0].mxu0 %v4663
        %v4747 = vpop.f32.mrb[0].mxu0
        %v4748 = vadd.f32 0.0, %v4747
        %v4749 = vpop.f32.mrb[0].mxu0
        %v4750 = vadd.f32 0.0, %v4749
        %v4751 = vpop.f32.mrb[0].mxu0
        %v4752 = vpop.f32.mrb[0].mxu0
        %4753 = vdwg.mxu0
        %v4754 = vadd.f32 %v4543, %v4748
        %v4755 = vadd.f32 %v4544, %v4750
        %s4756 = sadd.s32 %s234, 1134
        %s4757 = smul.addr %s4756, 4
        %s4758 = scalar_lea.vmem %s222, %s4757
        %v4759 = vld [vmem:[%s4758] sm:$0xf]
        %v4760 = vld [vmem:[%s4758 + $0x8] sm:$0xf]
        %v4761 = vld [vmem:[%s4758 + $0x10] sm:$0xf]
        %v4762 = vld [vmem:[%s4758 + $0x18] sm:$0xf]
        %v4763 = vld [vmem:[%s4758 + $0x20] sm:$0xf]
        %v4764 = vld [vmem:[%s4758 + $0x28] sm:$0xf]
        %v4765 = vld [vmem:[%s4758 + $0x30] sm:$0xf]
        %v4766 = vld [vmem:[%s4758 + $0x38] sm:$0xf]
        %v4767 = vld [vmem:[%s4758 + $0x48] sm:$0xf]
        %v4768 = vld [vmem:[%s4758 + $0x50] sm:$0xf]
        %v4769 = vld [vmem:[%s4758 + $0x58] sm:$0xf]
        %v4770 = vld [vmem:[%s4758 + $0x60] sm:$0xf]
        %v4771 = vld [vmem:[%s4758 + $0x68] sm:$0xf]
        %v4772 = vld [vmem:[%s4758 + $0x70] sm:$0xf]
        %v4773 = vld [vmem:[%s4758 + $0x78] sm:$0xf]
        %v4774 = vld [vmem:[%s4758 + $0x80] sm:$0xf]
        %v4775 = vld [vmem:[%s4758 + $0x90] sm:$0xf]
        %v4776 = vld [vmem:[%s4758 + $0x98] sm:$0xf]
        %v4777 = vld [vmem:[%s4758 + $0xa0] sm:$0xf]
        %v4778 = vld [vmem:[%s4758 + $0xa8] sm:$0xf]
        %v4779 = vld [vmem:[%s4758 + $0xb0] sm:$0xf]
        %v4780 = vld [vmem:[%s4758 + $0xb8] sm:$0xf]
        %v4781 = vld [vmem:[%s4758 + $0xc0] sm:$0xf]
        %v4782 = vld [vmem:[%s4758 + $0xc8] sm:$0xf]
        %v4783 = vld [vmem:[%s4758 + $0xd8] sm:$0xf]
        %v4784 = vld [vmem:[%s4758 + $0xe0] sm:$0xf]
        %v4785 = vld [vmem:[%s4758 + $0xe8] sm:$0xf]
        %v4786 = vld [vmem:[%s4758 + $0xf0] sm:$0xf]
        %v4787 = vld [vmem:[%s4758 + $0xf8] sm:$0xf]
        %v4788 = vld [vmem:[%s4758 + $0x100] sm:$0xf]
        %v4789 = vld [vmem:[%s4758 + $0x108] sm:$0xf]
        %v4790 = vld [vmem:[%s4758 + $0x110] sm:$0xf]
        %s4791 = scalar_lea.vmem %s1, 52
        %v4792 = vld [vmem:[%s4791] sm:$0xf]
        %v4825 = vunpack.c.l.b16 %v4759
        %v4826 = vunpack.c.l.b16 %v4760
        %v4827 = vunpack.c.l.b16 %v4761
        %v4828 = vunpack.c.l.b16 %v4762
        %v4829 = vunpack.c.l.b16 %v4763
        %v4830 = vunpack.c.l.b16 %v4764
        %v4831 = vunpack.c.l.b16 %v4765
        %v4832 = vunpack.c.l.b16 %v4766
        %v4833 = vunpack.c.l.b16 %v4767
        %v4834 = vunpack.c.l.b16 %v4768
        %v4835 = vunpack.c.l.b16 %v4769
        %v4836 = vunpack.c.l.b16 %v4770
        %v4837 = vunpack.c.l.b16 %v4771
        %v4838 = vunpack.c.l.b16 %v4772
        %v4839 = vunpack.c.l.b16 %v4773
        %v4840 = vunpack.c.l.b16 %v4774
        %v4841 = vunpack.c.l.b16 %v4775
        %v4842 = vunpack.c.l.b16 %v4776
        %v4843 = vunpack.c.l.b16 %v4777
        %v4844 = vunpack.c.l.b16 %v4778
        %v4845 = vunpack.c.l.b16 %v4779
        %v4846 = vunpack.c.l.b16 %v4780
        %v4847 = vunpack.c.l.b16 %v4781
        %v4848 = vunpack.c.l.b16 %v4782
        %v4849 = vunpack.c.l.b16 %v4783
        %v4850 = vunpack.c.l.b16 %v4784
        %v4851 = vunpack.c.l.b16 %v4785
        %v4852 = vunpack.c.l.b16 %v4786
        %v4853 = vunpack.c.l.b16 %v4787
        %v4854 = vunpack.c.l.b16 %v4788
        %v4855 = vunpack.c.l.b16 %v4789
        %v4856 = vunpack.c.l.b16 %v4790
        %v4857 = vpack.c.b16 %v4826, %v4825
        %v4858 = vpack.c.b16 %v4828, %v4827
        %v4859 = vpack.c.b16 %v4830, %v4829
        %v4860 = vpack.c.b16 %v4832, %v4831
        %v4861 = vpack.c.b16 %v4834, %v4833
        %v4862 = vpack.c.b16 %v4836, %v4835
        %v4863 = vpack.c.b16 %v4838, %v4837
        %v4864 = vpack.c.b16 %v4840, %v4839
        %v4865 = vpack.c.b16 %v4842, %v4841
        %v4866 = vpack.c.b16 %v4844, %v4843
        %v4867 = vpack.c.b16 %v4846, %v4845
        %v4868 = vpack.c.b16 %v4848, %v4847
        %v4869 = vpack.c.b16 %v4850, %v4849
        %v4870 = vpack.c.b16 %v4852, %v4851
        %v4871 = vpack.c.b16 %v4854, %v4853
        %v4872 = vpack.c.b16 %v4856, %v4855
        %v4874 = vsel %vm387, %v4792, 0
        %v4877 = vsel %vm387, %v4857, 0
        %v4880 = vsel %vm387, %v4858, 0
        %v4883 = vsel %vm387, %v4859, 0
        %v4886 = vsel %vm387, %v4860, 0
        %v4889 = vsel %vm387, %v4861, 0
        %v4892 = vsel %vm387, %v4862, 0
        %v4895 = vsel %vm387, %v4863, 0
        %v4898 = vsel %vm387, %v4864, 0
        %v4901 = vsel %vm387, %v4865, 0
        %v4904 = vsel %vm387, %v4866, 0
        %v4907 = vsel %vm387, %v4867, 0
        %v4910 = vsel %vm387, %v4868, 0
        %v4913 = vsel %vm387, %v4869, 0
        %v4916 = vsel %vm387, %v4870, 0
        %v4919 = vsel %vm387, %v4871, 0
        %v4922 = vsel %vm387, %v4872, 0
        %4924 = vmatprep.subr.bf16.mxu0 0
        %4925 = vmatpush1.bf16.xpose.msra.mxu0 %v4877
        %4926 = vmatprep.subr.bf16.mxu0 0
        %4927 = vmatpush1.bf16.xpose.msra.mxu0 %v4880
        %4928 = vmatprep.subr.bf16.mxu0 0
        %4929 = vmatpush1.bf16.xpose.msra.mxu0 %v4883
        %4930 = vmatprep.subr.bf16.mxu0 0
        %4931 = vmatpush1.bf16.xpose.msra.mxu0 %v4886
        %4932 = vmatprep.subr.bf16.mxu0 0
        %4933 = vmatpush1.bf16.xpose.msra.mxu0 %v4889
        %4934 = vmatprep.subr.bf16.mxu0 0
        %4935 = vmatpush1.bf16.xpose.msra.mxu0 %v4892
        %4936 = vmatprep.subr.bf16.mxu0 0
        %4937 = vmatpush1.bf16.xpose.msra.mxu0 %v4895
        %4938 = vmatprep.subr.bf16.mxu0 0
        %4939 = vmatpush1.bf16.xpose.msra.mxu0 %v4898
        %4940 = vmatprep.subr.bf16.mxu0 0
        %4941 = vmatpush1.bf16.xpose.msra.mxu0 %v4901
        %4942 = vmatprep.subr.bf16.mxu0 0
        %4943 = vmatpush1.bf16.xpose.msra.mxu0 %v4904
        %4944 = vmatprep.subr.bf16.mxu0 0
        %4945 = vmatpush1.bf16.xpose.msra.mxu0 %v4907
        %4946 = vmatprep.subr.bf16.mxu0 0
        %4947 = vmatpush1.bf16.xpose.msra.mxu0 %v4910
        %4948 = vmatprep.subr.bf16.mxu0 0
        %4949 = vmatpush1.bf16.xpose.msra.mxu0 %v4913
        %4950 = vmatprep.subr.bf16.mxu0 0
        %4951 = vmatpush1.bf16.xpose.msra.mxu0 %v4916
        %4952 = vmatprep.subr.bf16.mxu0 0
        %4953 = vmatpush1.bf16.xpose.msra.mxu0 %v4919
        %4954 = vmatprep.subr.bf16.mxu0 0
        %4955 = vmatpush1.bf16.xpose.msra.mxu0 %v4922
        %4956 = vmatprep.mubr.bf16.mxu0 0
        %4957 = vmatmul.mubr.bf16.gmra.mrb[0].mxu0 %v4874
        %v4958 = vpop.f32.mrb[0].mxu0
        %v4959 = vadd.f32 0.0, %v4958
        %v4960 = vpop.f32.mrb[0].mxu0
        %v4961 = vadd.f32 0.0, %v4960
        %v4962 = vpop.f32.mrb[0].mxu0
        %v4963 = vpop.f32.mrb[0].mxu0
        %4964 = vdwg.mxu0
        %v4965 = vadd.f32 %v4754, %v4959
        %v4966 = vadd.f32 %v4755, %v4961
        %v4967 = vld [vmem:[%s4547] sm:$0xf]
        %v4968 = vld [vmem:[%s4547 + $0x4] sm:$0x1]
        %v4969 = vld [vmem:[%s4547 + $0x8] sm:$0xf]
        %v4970 = vld [vmem:[%s4547 + $0xc] sm:$0x1]
        %v4971 = vld [vmem:[%s4547 + $0x10] sm:$0xf]
        %v4972 = vld [vmem:[%s4547 + $0x14] sm:$0x1]
        %v4973 = vld [vmem:[%s4547 + $0x18] sm:$0xf]
        %v4974 = vld [vmem:[%s4547 + $0x1c] sm:$0x1]
        %v4975 = vld [vmem:[%s4547 + $0x20] sm:$0xf]
        %v4976 = vld [vmem:[%s4547 + $0x24] sm:$0x1]
        %v4977 = vld [vmem:[%s4547 + $0x28] sm:$0xf]
        %v4978 = vld [vmem:[%s4547 + $0x2c] sm:$0x1]
        %v4979 = vld [vmem:[%s4547 + $0x30] sm:$0xf]
        %v4980 = vld [vmem:[%s4547 + $0x34] sm:$0x1]
        %v4981 = vld [vmem:[%s4547 + $0x38] sm:$0xf]
        %v4982 = vld [vmem:[%s4547 + $0x3c] sm:$0x1]
        %v4983 = vld [vmem:[%s4547 + $0x48] sm:$0xf]
        %v4984 = vld [vmem:[%s4547 + $0x4c] sm:$0x1]
        %v4985 = vld [vmem:[%s4547 + $0x50] sm:$0xf]
        %v4986 = vld [vmem:[%s4547 + $0x54] sm:$0x1]
        %v4987 = vld [vmem:[%s4547 + $0x58] sm:$0xf]
        %v4988 = vld [vmem:[%s4547 + $0x5c] sm:$0x1]
        %v4989 = vld [vmem:[%s4547 + $0x60] sm:$0xf]
        %v4990 = vld [vmem:[%s4547 + $0x64] sm:$0x1]
        %v4991 = vld [vmem:[%s4547 + $0x68] sm:$0xf]
        %v4992 = vld [vmem:[%s4547 + $0x6c] sm:$0x1]
        %v4993 = vld [vmem:[%s4547 + $0x70] sm:$0xf]
        %v4994 = vld [vmem:[%s4547 + $0x74] sm:$0x1]
        %v4995 = vld [vmem:[%s4547 + $0x78] sm:$0xf]
        %v4996 = vld [vmem:[%s4547 + $0x7c] sm:$0x1]
        %v4997 = vld [vmem:[%s4547 + $0x80] sm:$0xf]
        %v4998 = vld [vmem:[%s4547 + $0x84] sm:$0x1]
        %v4999 = vld [vmem:[%s4547 + $0x90] sm:$0xf]
        %v5000 = vld [vmem:[%s4547 + $0x94] sm:$0x1]
        %v5001 = vld [vmem:[%s4547 + $0x98] sm:$0xf]
        %v5002 = vld [vmem:[%s4547 + $0x9c] sm:$0x1]
        %v5003 = vld [vmem:[%s4547 + $0xa0] sm:$0xf]
        %v5004 = vld [vmem:[%s4547 + $0xa4] sm:$0x1]
        %v5005 = vld [vmem:[%s4547 + $0xa8] sm:$0xf]
        %v5006 = vld [vmem:[%s4547 + $0xac] sm:$0x1]
        %v5007 = vld [vmem:[%s4547 + $0xb0] sm:$0xf]
        %v5008 = vld [vmem:[%s4547 + $0xb4] sm:$0x1]
        %v5009 = vld [vmem:[%s4547 + $0xb8] sm:$0xf]
        %v5010 = vld [vmem:[%s4547 + $0xbc] sm:$0x1]
        %v5011 = vld [vmem:[%s4547 + $0xc0] sm:$0xf]
        %v5012 = vld [vmem:[%s4547 + $0xc4] sm:$0x1]
        %v5013 = vld [vmem:[%s4547 + $0xc8] sm:$0xf]
        %v5014 = vld [vmem:[%s4547 + $0xcc] sm:$0x1]
        %v5015 = vld [vmem:[%s4547 + $0xd8] sm:$0xf]
        %v5016 = vld [vmem:[%s4547 + $0xdc] sm:$0x1]
        %v5017 = vld [vmem:[%s4547 + $0xe0] sm:$0xf]
        %v5018 = vld [vmem:[%s4547 + $0xe4] sm:$0x1]
        %v5019 = vld [vmem:[%s4547 + $0xe8] sm:$0xf]
        %v5020 = vld [vmem:[%s4547 + $0xec] sm:$0x1]
        %v5021 = vld [vmem:[%s4547 + $0xf0] sm:$0xf]
        %v5022 = vld [vmem:[%s4547 + $0xf4] sm:$0x1]
        %v5023 = vld [vmem:[%s4547 + $0xf8] sm:$0xf]
        %v5024 = vld [vmem:[%s4547 + $0xfc] sm:$0x1]
        %v5025 = vld [vmem:[%s4547 + $0x100] sm:$0xf]
        %v5026 = vld [vmem:[%s4547 + $0x104] sm:$0x1]
        %v5027 = vld [vmem:[%s4547 + $0x108] sm:$0xf]
        %v5028 = vld [vmem:[%s4547 + $0x10c] sm:$0x1]
        %v5029 = vld [vmem:[%s4547 + $0x110] sm:$0xf]
        %v5030 = vld [vmem:[%s4547 + $0x114] sm:$0x1]
        %v5032 = vshrl.u32 %v4967, 16
        %v5034 = vrot.slane %v5032, 4
        %v5035 = vshll.u32 %v4967, 16
        %v5037 = vrot.slane %v5035, 5
        %v5038 = vor.u32 %v5034, %v5037
        %v5039 = vrot.slane %v5038, 4
        %v5041 = vshll.u32 %v4968, 16
        %v5043 = vrot.slane %v5041, 5
        %v5044 = vsel %vm718, %v5039, %v5043
        %v5046 = vshrl.u32 %v4969, 16
        %v5048 = vrot.slane %v5046, 4
        %v5049 = vshll.u32 %v4969, 16
        %v5051 = vrot.slane %v5049, 5
        %v5052 = vor.u32 %v5048, %v5051
        %v5053 = vrot.slane %v5052, 4
        %v5055 = vshll.u32 %v4970, 16
        %v5057 = vrot.slane %v5055, 5
        %v5058 = vsel %vm718, %v5053, %v5057
        %v5060 = vshrl.u32 %v4971, 16
        %v5062 = vrot.slane %v5060, 4
        %v5063 = vshll.u32 %v4971, 16
        %v5065 = vrot.slane %v5063, 5
        %v5066 = vor.u32 %v5062, %v5065
        %v5067 = vrot.slane %v5066, 4
        %v5069 = vshll.u32 %v4972, 16
        %v5071 = vrot.slane %v5069, 5
        %v5072 = vsel %vm718, %v5067, %v5071
        %v5074 = vshrl.u32 %v4973, 16
        %v5076 = vrot.slane %v5074, 4
        %v5077 = vshll.u32 %v4973, 16
        %v5079 = vrot.slane %v5077, 5
        %v5080 = vor.u32 %v5076, %v5079
        %v5081 = vrot.slane %v5080, 4
        %v5083 = vshll.u32 %v4974, 16
        %v5085 = vrot.slane %v5083, 5
        %v5086 = vsel %vm718, %v5081, %v5085
        %v5088 = vshrl.u32 %v4975, 16
        %v5090 = vrot.slane %v5088, 4
        %v5091 = vshll.u32 %v4975, 16
        %v5093 = vrot.slane %v5091, 5
        %v5094 = vor.u32 %v5090, %v5093
        %v5095 = vrot.slane %v5094, 4
        %v5097 = vshll.u32 %v4976, 16
        %v5099 = vrot.slane %v5097, 5
        %v5100 = vsel %vm718, %v5095, %v5099
        %v5102 = vshrl.u32 %v4977, 16
        %v5104 = vrot.slane %v5102, 4
        %v5105 = vshll.u32 %v4977, 16
        %v5107 = vrot.slane %v5105, 5
        %v5108 = vor.u32 %v5104, %v5107
        %v5109 = vrot.slane %v5108, 4
        %v5111 = vshll.u32 %v4978, 16
        %v5113 = vrot.slane %v5111, 5
        %v5114 = vsel %vm718, %v5109, %v5113
        %v5116 = vshrl.u32 %v4979, 16
        %v5118 = vrot.slane %v5116, 4
        %v5119 = vshll.u32 %v4979, 16
        %v5121 = vrot.slane %v5119, 5
        %v5122 = vor.u32 %v5118, %v5121
        %v5123 = vrot.slane %v5122, 4
        %v5125 = vshll.u32 %v4980, 16
        %v5127 = vrot.slane %v5125, 5
        %v5128 = vsel %vm718, %v5123, %v5127
        %v5130 = vshrl.u32 %v4981, 16
        %v5132 = vrot.slane %v5130, 4
        %v5133 = vshll.u32 %v4981, 16
        %v5135 = vrot.slane %v5133, 5
        %v5136 = vor.u32 %v5132, %v5135
        %v5137 = vrot.slane %v5136, 4
        %v5139 = vshll.u32 %v4982, 16
        %v5141 = vrot.slane %v5139, 5
        %v5142 = vsel %vm718, %v5137, %v5141
        %v5144 = vshrl.u32 %v4983, 16
        %v5146 = vrot.slane %v5144, 4
        %v5147 = vshll.u32 %v4983, 16
        %v5149 = vrot.slane %v5147, 5
        %v5150 = vor.u32 %v5146, %v5149
        %v5151 = vrot.slane %v5150, 4
        %v5153 = vshll.u32 %v4984, 16
        %v5155 = vrot.slane %v5153, 5
        %v5156 = vsel %vm718, %v5151, %v5155
        %v5158 = vshrl.u32 %v4985, 16
        %v5160 = vrot.slane %v5158, 4
        %v5161 = vshll.u32 %v4985, 16
        %v5163 = vrot.slane %v5161, 5
        %v5164 = vor.u32 %v5160, %v5163
        %v5165 = vrot.slane %v5164, 4
        %v5167 = vshll.u32 %v4986, 16
        %v5169 = vrot.slane %v5167, 5
        %v5170 = vsel %vm718, %v5165, %v5169
        %v5172 = vshrl.u32 %v4987, 16
        %v5174 = vrot.slane %v5172, 4
        %v5175 = vshll.u32 %v4987, 16
        %v5177 = vrot.slane %v5175, 5
        %v5178 = vor.u32 %v5174, %v5177
        %v5179 = vrot.slane %v5178, 4
        %v5181 = vshll.u32 %v4988, 16
        %v5183 = vrot.slane %v5181, 5
        %v5184 = vsel %vm718, %v5179, %v5183
        %v5186 = vshrl.u32 %v4989, 16
        %v5188 = vrot.slane %v5186, 4
        %v5189 = vshll.u32 %v4989, 16
        %v5191 = vrot.slane %v5189, 5
        %v5192 = vor.u32 %v5188, %v5191
        %v5193 = vrot.slane %v5192, 4
        %v5195 = vshll.u32 %v4990, 16
        %v5197 = vrot.slane %v5195, 5
        %v5198 = vsel %vm718, %v5193, %v5197
        %v5200 = vshrl.u32 %v4991, 16
        %v5202 = vrot.slane %v5200, 4
        %v5203 = vshll.u32 %v4991, 16
        %v5205 = vrot.slane %v5203, 5
        %v5206 = vor.u32 %v5202, %v5205
        %v5207 = vrot.slane %v5206, 4
        %v5209 = vshll.u32 %v4992, 16
        %v5211 = vrot.slane %v5209, 5
        %v5212 = vsel %vm718, %v5207, %v5211
        %v5214 = vshrl.u32 %v4993, 16
        %v5216 = vrot.slane %v5214, 4
        %v5217 = vshll.u32 %v4993, 16
        %v5219 = vrot.slane %v5217, 5
        %v5220 = vor.u32 %v5216, %v5219
        %v5221 = vrot.slane %v5220, 4
        %v5223 = vshll.u32 %v4994, 16
        %v5225 = vrot.slane %v5223, 5
        %v5226 = vsel %vm718, %v5221, %v5225
        %v5228 = vshrl.u32 %v4995, 16
        %v5230 = vrot.slane %v5228, 4
        %v5231 = vshll.u32 %v4995, 16
        %v5233 = vrot.slane %v5231, 5
        %v5234 = vor.u32 %v5230, %v5233
        %v5235 = vrot.slane %v5234, 4
        %v5237 = vshll.u32 %v4996, 16
        %v5239 = vrot.slane %v5237, 5
        %v5240 = vsel %vm718, %v5235, %v5239
        %v5242 = vshrl.u32 %v4997, 16
        %v5244 = vrot.slane %v5242, 4
        %v5245 = vshll.u32 %v4997, 16
        %v5247 = vrot.slane %v5245, 5
        %v5248 = vor.u32 %v5244, %v5247
        %v5249 = vrot.slane %v5248, 4
        %v5251 = vshll.u32 %v4998, 16
        %v5253 = vrot.slane %v5251, 5
        %v5254 = vsel %vm718, %v5249, %v5253
        %v5256 = vshrl.u32 %v4999, 16
        %v5258 = vrot.slane %v5256, 4
        %v5259 = vshll.u32 %v4999, 16
        %v5261 = vrot.slane %v5259, 5
        %v5262 = vor.u32 %v5258, %v5261
        %v5263 = vrot.slane %v5262, 4
        %v5265 = vshll.u32 %v5000, 16
        %v5267 = vrot.slane %v5265, 5
        %v5268 = vsel %vm718, %v5263, %v5267
        %v5270 = vshrl.u32 %v5001, 16
        %v5272 = vrot.slane %v5270, 4
        %v5273 = vshll.u32 %v5001, 16
        %v5275 = vrot.slane %v5273, 5
        %v5276 = vor.u32 %v5272, %v5275
        %v5277 = vrot.slane %v5276, 4
        %v5279 = vshll.u32 %v5002, 16
        %v5281 = vrot.slane %v5279, 5
        %v5282 = vsel %vm718, %v5277, %v5281
        %v5284 = vshrl.u32 %v5003, 16
        %v5286 = vrot.slane %v5284, 4
        %v5287 = vshll.u32 %v5003, 16
        %v5289 = vrot.slane %v5287, 5
        %v5290 = vor.u32 %v5286, %v5289
        %v5291 = vrot.slane %v5290, 4
        %v5293 = vshll.u32 %v5004, 16
        %v5295 = vrot.slane %v5293, 5
        %v5296 = vsel %vm718, %v5291, %v5295
        %v5298 = vshrl.u32 %v5005, 16
        %v5300 = vrot.slane %v5298, 4
        %v5301 = vshll.u32 %v5005, 16
        %v5303 = vrot.slane %v5301, 5
        %v5304 = vor.u32 %v5300, %v5303
        %v5305 = vrot.slane %v5304, 4
        %v5307 = vshll.u32 %v5006, 16
        %v5309 = vrot.slane %v5307, 5
        %v5310 = vsel %vm718, %v5305, %v5309
        %v5312 = vshrl.u32 %v5007, 16
        %v5314 = vrot.slane %v5312, 4
        %v5315 = vshll.u32 %v5007, 16
        %v5317 = vrot.slane %v5315, 5
        %v5318 = vor.u32 %v5314, %v5317
        %v5319 = vrot.slane %v5318, 4
        %v5321 = vshll.u32 %v5008, 16
        %v5323 = vrot.slane %v5321, 5
        %v5324 = vsel %vm718, %v5319, %v5323
        %v5326 = vshrl.u32 %v5009, 16
        %v5328 = vrot.slane %v5326, 4
        %v5329 = vshll.u32 %v5009, 16
        %v5331 = vrot.slane %v5329, 5
        %v5332 = vor.u32 %v5328, %v5331
        %v5333 = vrot.slane %v5332, 4
        %v5335 = vshll.u32 %v5010, 16
        %v5337 = vrot.slane %v5335, 5
        %v5338 = vsel %vm718, %v5333, %v5337
        %v5340 = vshrl.u32 %v5011, 16
        %v5342 = vrot.slane %v5340, 4
        %v5343 = vshll.u32 %v5011, 16
        %v5345 = vrot.slane %v5343, 5
        %v5346 = vor.u32 %v5342, %v5345
        %v5347 = vrot.slane %v5346, 4
        %v5349 = vshll.u32 %v5012, 16
        %v5351 = vrot.slane %v5349, 5
        %v5352 = vsel %vm718, %v5347, %v5351
        %v5354 = vshrl.u32 %v5013, 16
        %v5356 = vrot.slane %v5354, 4
        %v5357 = vshll.u32 %v5013, 16
        %v5359 = vrot.slane %v5357, 5
        %v5360 = vor.u32 %v5356, %v5359
        %v5361 = vrot.slane %v5360, 4
        %v5363 = vshll.u32 %v5014, 16
        %v5365 = vrot.slane %v5363, 5
        %v5366 = vsel %vm718, %v5361, %v5365
        %v5368 = vshrl.u32 %v5015, 16
        %v5370 = vrot.slane %v5368, 4
        %v5371 = vshll.u32 %v5015, 16
        %v5373 = vrot.slane %v5371, 5
        %v5374 = vor.u32 %v5370, %v5373
        %v5375 = vrot.slane %v5374, 4
        %v5377 = vshll.u32 %v5016, 16
        %v5379 = vrot.slane %v5377, 5
        %v5380 = vsel %vm718, %v5375, %v5379
        %v5382 = vshrl.u32 %v5017, 16
        %v5384 = vrot.slane %v5382, 4
        %v5385 = vshll.u32 %v5017, 16
        %v5387 = vrot.slane %v5385, 5
        %v5388 = vor.u32 %v5384, %v5387
        %v5389 = vrot.slane %v5388, 4
        %v5391 = vshll.u32 %v5018, 16
        %v5393 = vrot.slane %v5391, 5
        %v5394 = vsel %vm718, %v5389, %v5393
        %v5396 = vshrl.u32 %v5019, 16
        %v5398 = vrot.slane %v5396, 4
        %v5399 = vshll.u32 %v5019, 16
        %v5401 = vrot.slane %v5399, 5
        %v5402 = vor.u32 %v5398, %v5401
        %v5403 = vrot.slane %v5402, 4
        %v5405 = vshll.u32 %v5020, 16
        %v5407 = vrot.slane %v5405, 5
        %v5408 = vsel %vm718, %v5403, %v5407
        %v5410 = vshrl.u32 %v5021, 16
        %v5412 = vrot.slane %v5410, 4
        %v5413 = vshll.u32 %v5021, 16
        %v5415 = vrot.slane %v5413, 5
        %v5416 = vor.u32 %v5412, %v5415
        %v5417 = vrot.slane %v5416, 4
        %v5419 = vshll.u32 %v5022, 16
        %v5421 = vrot.slane %v5419, 5
        %v5422 = vsel %vm718, %v5417, %v5421
        %v5424 = vshrl.u32 %v5023, 16
        %v5426 = vrot.slane %v5424, 4
        %v5427 = vshll.u32 %v5023, 16
        %v5429 = vrot.slane %v5427, 5
        %v5430 = vor.u32 %v5426, %v5429
        %v5431 = vrot.slane %v5430, 4
        %v5433 = vshll.u32 %v5024, 16
        %v5435 = vrot.slane %v5433, 5
        %v5436 = vsel %vm718, %v5431, %v5435
        %v5438 = vshrl.u32 %v5025, 16
        %v5440 = vrot.slane %v5438, 4
        %v5441 = vshll.u32 %v5025, 16
        %v5443 = vrot.slane %v5441, 5
        %v5444 = vor.u32 %v5440, %v5443
        %v5445 = vrot.slane %v5444, 4
        %v5447 = vshll.u32 %v5026, 16
        %v5449 = vrot.slane %v5447, 5
        %v5450 = vsel %vm718, %v5445, %v5449
        %v5452 = vshrl.u32 %v5027, 16
        %v5454 = vrot.slane %v5452, 4
        %v5455 = vshll.u32 %v5027, 16
        %v5457 = vrot.slane %v5455, 5
        %v5458 = vor.u32 %v5454, %v5457
        %v5459 = vrot.slane %v5458, 4
        %v5461 = vshll.u32 %v5028, 16
        %v5463 = vrot.slane %v5461, 5
        %v5464 = vsel %vm718, %v5459, %v5463
        %v5466 = vshrl.u32 %v5029, 16
        %v5468 = vrot.slane %v5466, 4
        %v5469 = vshll.u32 %v5029, 16
        %v5471 = vrot.slane %v5469, 5
        %v5472 = vor.u32 %v5468, %v5471
        %v5473 = vrot.slane %v5472, 4
        %v5475 = vshll.u32 %v5030, 16
        %v5477 = vrot.slane %v5475, 5
        %v5478 = vsel %vm718, %v5473, %v5477
        %s5479 = scalar_lea.vmem %s1, 56
        %v5480 = vld [vmem:[%s5479] sm:$0xf]
        %v5481 = vunpack.c.l.b16 %v5044
        %v5482 = vunpack.c.l.b16 %v5058
        %v5483 = vunpack.c.l.b16 %v5072
        %v5484 = vunpack.c.l.b16 %v5086
        %v5485 = vunpack.c.l.b16 %v5100
        %v5486 = vunpack.c.l.b16 %v5114
        %v5487 = vunpack.c.l.b16 %v5128
        %v5488 = vunpack.c.l.b16 %v5142
        %v5489 = vunpack.c.l.b16 %v5156
        %v5490 = vunpack.c.l.b16 %v5170
        %v5491 = vunpack.c.l.b16 %v5184
        %v5492 = vunpack.c.l.b16 %v5198
        %v5493 = vunpack.c.l.b16 %v5212
        %v5494 = vunpack.c.l.b16 %v5226
        %v5495 = vunpack.c.l.b16 %v5240
        %v5496 = vunpack.c.l.b16 %v5254
        %v5497 = vunpack.c.l.b16 %v5268
        %v5498 = vunpack.c.l.b16 %v5282
        %v5499 = vunpack.c.l.b16 %v5296
        %v5500 = vunpack.c.l.b16 %v5310
        %v5501 = vunpack.c.l.b16 %v5324
        %v5502 = vunpack.c.l.b16 %v5338
        %v5503 = vunpack.c.l.b16 %v5352
        %v5504 = vunpack.c.l.b16 %v5366
        %v5505 = vunpack.c.l.b16 %v5380
        %v5506 = vunpack.c.l.b16 %v5394
        %v5507 = vunpack.c.l.b16 %v5408
        %v5508 = vunpack.c.l.b16 %v5422
        %v5509 = vunpack.c.l.b16 %v5436
        %v5510 = vunpack.c.l.b16 %v5450
        %v5511 = vunpack.c.l.b16 %v5464
        %v5512 = vunpack.c.l.b16 %v5478
        %v5513 = vpack.c.b16 %v5482, %v5481
        %v5514 = vpack.c.b16 %v5484, %v5483
        %v5515 = vpack.c.b16 %v5486, %v5485
        %v5516 = vpack.c.b16 %v5488, %v5487
        %v5517 = vpack.c.b16 %v5490, %v5489
        %v5518 = vpack.c.b16 %v5492, %v5491
        %v5519 = vpack.c.b16 %v5494, %v5493
        %v5520 = vpack.c.b16 %v5496, %v5495
        %v5521 = vpack.c.b16 %v5498, %v5497
        %v5522 = vpack.c.b16 %v5500, %v5499
        %v5523 = vpack.c.b16 %v5502, %v5501
        %v5524 = vpack.c.b16 %v5504, %v5503
        %v5525 = vpack.c.b16 %v5506, %v5505
        %v5526 = vpack.c.b16 %v5508, %v5507
        %v5527 = vpack.c.b16 %v5510, %v5509
        %v5528 = vpack.c.b16 %v5512, %v5511
        %v5530 = vsel %vm387, %v5480, 0
        %v5533 = vsel %vm387, %v5513, 0
        %v5536 = vsel %vm387, %v5514, 0
        %v5539 = vsel %vm387, %v5515, 0
        %v5542 = vsel %vm387, %v5516, 0
        %v5545 = vsel %vm387, %v5517, 0
        %v5548 = vsel %vm387, %v5518, 0
        %v5551 = vsel %vm387, %v5519, 0
        %v5554 = vsel %vm387, %v5520, 0
        %v5557 = vsel %vm387, %v5521, 0
        %v5560 = vsel %vm387, %v5522, 0
        %v5563 = vsel %vm387, %v5523, 0
        %v5566 = vsel %vm387, %v5524, 0
        %v5569 = vsel %vm387, %v5525, 0
        %v5572 = vsel %vm387, %v5526, 0
        %v5575 = vsel %vm387, %v5527, 0
        %v5578 = vsel %vm387, %v5528, 0
        %5580 = vmatprep.subr.bf16.mxu0 0
        %5581 = vmatpush1.bf16.xpose.msra.mxu0 %v5533
        %5582 = vmatprep.subr.bf16.mxu0 0
        %5583 = vmatpush1.bf16.xpose.msra.mxu0 %v5536
        %5584 = vmatprep.subr.bf16.mxu0 0
        %5585 = vmatpush1.bf16.xpose.msra.mxu0 %v5539
        %5586 = vmatprep.subr.bf16.mxu0 0
        %5587 = vmatpush1.bf16.xpose.msra.mxu0 %v5542
        %5588 = vmatprep.subr.bf16.mxu0 0
        %5589 = vmatpush1.bf16.xpose.msra.mxu0 %v5545
        %5590 = vmatprep.subr.bf16.mxu0 0
        %5591 = vmatpush1.bf16.xpose.msra.mxu0 %v5548
        %5592 = vmatprep.subr.bf16.mxu0 0
        %5593 = vmatpush1.bf16.xpose.msra.mxu0 %v5551
        %5594 = vmatprep.subr.bf16.mxu0 0
        %5595 = vmatpush1.bf16.xpose.msra.mxu0 %v5554
        %5596 = vmatprep.subr.bf16.mxu0 0
        %5597 = vmatpush1.bf16.xpose.msra.mxu0 %v5557
        %5598 = vmatprep.subr.bf16.mxu0 0
        %5599 = vmatpush1.bf16.xpose.msra.mxu0 %v5560
        %5600 = vmatprep.subr.bf16.mxu0 0
        %5601 = vmatpush1.bf16.xpose.msra.mxu0 %v5563
        %5602 = vmatprep.subr.bf16.mxu0 0
        %5603 = vmatpush1.bf16.xpose.msra.mxu0 %v5566
        %5604 = vmatprep.subr.bf16.mxu0 0
        %5605 = vmatpush1.bf16.xpose.msra.mxu0 %v5569
        %5606 = vmatprep.subr.bf16.mxu0 0
        %5607 = vmatpush1.bf16.xpose.msra.mxu0 %v5572
        %5608 = vmatprep.subr.bf16.mxu0 0
        %5609 = vmatpush1.bf16.xpose.msra.mxu0 %v5575
        %5610 = vmatprep.subr.bf16.mxu0 0
        %5611 = vmatpush1.bf16.xpose.msra.mxu0 %v5578
        %5612 = vmatprep.mubr.bf16.mxu0 0
        %5613 = vmatmul.mubr.bf16.gmra.mrb[0].mxu0 %v5530
        %v5614 = vpop.f32.mrb[0].mxu0
        %v5615 = vadd.f32 0.0, %v5614
        %v5616 = vpop.f32.mrb[0].mxu0
        %v5617 = vadd.f32 0.0, %v5616
        %v5618 = vpop.f32.mrb[0].mxu0
        %v5619 = vpop.f32.mrb[0].mxu0
        %5620 = vdwg.mxu0
        %v5621 = vadd.f32 %v4965, %v5615
        %v5622 = vadd.f32 %v4966, %v5617
        %s5623 = sadd.s32 %s2389, 648
        %s5624 = smul.addr %s5623, 4
        %s5625 = scalar_lea.vmem %s222, %s5624
        %v5626 = vld [vmem:[%s5625] sm:$0xf]
        %v5627 = vld [vmem:[%s5625 + $0x8] sm:$0xf]
        %v5628 = vld [vmem:[%s5625 + $0x10] sm:$0xf]
        %v5629 = vld [vmem:[%s5625 + $0x18] sm:$0xf]
        %v5630 = vld [vmem:[%s5625 + $0x20] sm:$0xf]
        %v5631 = vld [vmem:[%s5625 + $0x28] sm:$0xf]
        %v5632 = vld [vmem:[%s5625 + $0x30] sm:$0xf]
        %v5633 = vld [vmem:[%s5625 + $0x38] sm:$0xf]
        %v5634 = vld [vmem:[%s5625 + $0x48] sm:$0xf]
        %v5635 = vld [vmem:[%s5625 + $0x50] sm:$0xf]
        %v5636 = vld [vmem:[%s5625 + $0x58] sm:$0xf]
        %v5637 = vld [vmem:[%s5625 + $0x60] sm:$0xf]
        %v5638 = vld [vmem:[%s5625 + $0x68] sm:$0xf]
        %v5639 = vld [vmem:[%s5625 + $0x70] sm:$0xf]
        %v5640 = vld [vmem:[%s5625 + $0x78] sm:$0xf]
        %v5641 = vld [vmem:[%s5625 + $0x80] sm:$0xf]
        %v5642 = vld [vmem:[%s5625 + $0x90] sm:$0xf]
        %v5643 = vld [vmem:[%s5625 + $0x98] sm:$0xf]
        %v5644 = vld [vmem:[%s5625 + $0xa0] sm:$0xf]
        %v5645 = vld [vmem:[%s5625 + $0xa8] sm:$0xf]
        %v5646 = vld [vmem:[%s5625 + $0xb0] sm:$0xf]
        %v5647 = vld [vmem:[%s5625 + $0xb8] sm:$0xf]
        %v5648 = vld [vmem:[%s5625 + $0xc0] sm:$0xf]
        %v5649 = vld [vmem:[%s5625 + $0xc8] sm:$0xf]
        %v5650 = vld [vmem:[%s5625 + $0xd8] sm:$0xf]
        %v5651 = vld [vmem:[%s5625 + $0xe0] sm:$0xf]
        %v5652 = vld [vmem:[%s5625 + $0xe8] sm:$0xf]
        %v5653 = vld [vmem:[%s5625 + $0xf0] sm:$0xf]
        %v5654 = vld [vmem:[%s5625 + $0xf8] sm:$0xf]
        %v5655 = vld [vmem:[%s5625 + $0x100] sm:$0xf]
        %v5656 = vld [vmem:[%s5625 + $0x108] sm:$0xf]
        %v5657 = vld [vmem:[%s5625 + $0x110] sm:$0xf]
        %s5658 = scalar_lea.vmem %s1, 60
        %v5659 = vld [vmem:[%s5658] sm:$0xf]
        %v5692 = vunpack.c.l.b16 %v5626
        %v5693 = vunpack.c.l.b16 %v5627
        %v5694 = vunpack.c.l.b16 %v5628
        %v5695 = vunpack.c.l.b16 %v5629
        %v5696 = vunpack.c.l.b16 %v5630
        %v5697 = vunpack.c.l.b16 %v5631
        %v5698 = vunpack.c.l.b16 %v5632
        %v5699 = vunpack.c.l.b16 %v5633
        %v5700 = vunpack.c.l.b16 %v5634
        %v5701 = vunpack.c.l.b16 %v5635
        %v5702 = vunpack.c.l.b16 %v5636
        %v5703 = vunpack.c.l.b16 %v5637
        %v5704 = vunpack.c.l.b16 %v5638
        %v5705 = vunpack.c.l.b16 %v5639
        %v5706 = vunpack.c.l.b16 %v5640
        %v5707 = vunpack.c.l.b16 %v5641
        %v5708 = vunpack.c.l.b16 %v5642
        %v5709 = vunpack.c.l.b16 %v5643
        %v5710 = vunpack.c.l.b16 %v5644
        %v5711 = vunpack.c.l.b16 %v5645
        %v5712 = vunpack.c.l.b16 %v5646
        %v5713 = vunpack.c.l.b16 %v5647
        %v5714 = vunpack.c.l.b16 %v5648
        %v5715 = vunpack.c.l.b16 %v5649
        %v5716 = vunpack.c.l.b16 %v5650
        %v5717 = vunpack.c.l.b16 %v5651
        %v5718 = vunpack.c.l.b16 %v5652
        %v5719 = vunpack.c.l.b16 %v5653
        %v5720 = vunpack.c.l.b16 %v5654
        %v5721 = vunpack.c.l.b16 %v5655
        %v5722 = vunpack.c.l.b16 %v5656
        %v5723 = vunpack.c.l.b16 %v5657
        %v5724 = vpack.c.b16 %v5693, %v5692
        %v5725 = vpack.c.b16 %v5695, %v5694
        %v5726 = vpack.c.b16 %v5697, %v5696
        %v5727 = vpack.c.b16 %v5699, %v5698
        %v5728 = vpack.c.b16 %v5701, %v5700
        %v5729 = vpack.c.b16 %v5703, %v5702
        %v5730 = vpack.c.b16 %v5705, %v5704
        %v5731 = vpack.c.b16 %v5707, %v5706
        %v5732 = vpack.c.b16 %v5709, %v5708
        %v5733 = vpack.c.b16 %v5711, %v5710
        %v5734 = vpack.c.b16 %v5713, %v5712
        %v5735 = vpack.c.b16 %v5715, %v5714
        %v5736 = vpack.c.b16 %v5717, %v5716
        %v5737 = vpack.c.b16 %v5719, %v5718
        %v5738 = vpack.c.b16 %v5721, %v5720
        %v5739 = vpack.c.b16 %v5723, %v5722
        %v5741 = vsel %vm387, %v5659, 0
        %v5744 = vsel %vm387, %v5724, 0
        %v5747 = vsel %vm387, %v5725, 0
        %v5750 = vsel %vm387, %v5726, 0
        %v5753 = vsel %vm387, %v5727, 0
        %v5756 = vsel %vm387, %v5728, 0
        %v5759 = vsel %vm387, %v5729, 0
        %v5762 = vsel %vm387, %v5730, 0
        %v5765 = vsel %vm387, %v5731, 0
        %v5768 = vsel %vm387, %v5732, 0
        %v5771 = vsel %vm387, %v5733, 0
        %v5774 = vsel %vm387, %v5734, 0
        %v5777 = vsel %vm387, %v5735, 0
        %v5780 = vsel %vm387, %v5736, 0
        %v5783 = vsel %vm387, %v5737, 0
        %v5786 = vsel %vm387, %v5738, 0
        %v5789 = vsel %vm387, %v5739, 0
        %5791 = vmatprep.subr.bf16.mxu0 0
        %5792 = vmatpush1.bf16.xpose.msra.mxu0 %v5744
        %5793 = vmatprep.subr.bf16.mxu0 0
        %5794 = vmatpush1.bf16.xpose.msra.mxu0 %v5747
        %5795 = vmatprep.subr.bf16.mxu0 0
        %5796 = vmatpush1.bf16.xpose.msra.mxu0 %v5750
        %5797 = vmatprep.subr.bf16.mxu0 0
        %5798 = vmatpush1.bf16.xpose.msra.mxu0 %v5753
        %5799 = vmatprep.subr.bf16.mxu0 0
        %5800 = vmatpush1.bf16.xpose.msra.mxu0 %v5756
        %5801 = vmatprep.subr.bf16.mxu0 0
        %5802 = vmatpush1.bf16.xpose.msra.mxu0 %v5759
        %5803 = vmatprep.subr.bf16.mxu0 0
        %5804 = vmatpush1.bf16.xpose.msra.mxu0 %v5762
        %5805 = vmatprep.subr.bf16.mxu0 0
        %5806 = vmatpush1.bf16.xpose.msra.mxu0 %v5765
        %5807 = vmatprep.subr.bf16.mxu0 0
        %5808 = vmatpush1.bf16.xpose.msra.mxu0 %v5768
        %5809 = vmatprep.subr.bf16.mxu0 0
        %5810 = vmatpush1.bf16.xpose.msra.mxu0 %v5771
        %5811 = vmatprep.subr.bf16.mxu0 0
        %5812 = vmatpush1.bf16.xpose.msra.mxu0 %v5774
        %5813 = vmatprep.subr.bf16.mxu0 0
        %5814 = vmatpush1.bf16.xpose.msra.mxu0 %v5777
        %5815 = vmatprep.subr.bf16.mxu0 0
        %5816 = vmatpush1.bf16.xpose.msra.mxu0 %v5780
        %5817 = vmatprep.subr.bf16.mxu0 0
        %5818 = vmatpush1.bf16.xpose.msra.mxu0 %v5783
        %5819 = vmatprep.subr.bf16.mxu0 0
        %5820 = vmatpush1.bf16.xpose.msra.mxu0 %v5786
        %5821 = vmatprep.subr.bf16.mxu0 0
        %5822 = vmatpush1.bf16.xpose.msra.mxu0 %v5789
        %5823 = vmatprep.mubr.bf16.mxu0 0
        %5824 = vmatmul.mubr.bf16.gmra.mrb[0].mxu0 %v5741
        %v5825 = vpop.f32.mrb[0].mxu0
        %v5826 = vadd.f32 0.0, %v5825
        %v5827 = vpop.f32.mrb[0].mxu0
        %v5828 = vadd.f32 0.0, %v5827
        %v5829 = vpop.f32.mrb[0].mxu0
        %v5830 = vpop.f32.mrb[0].mxu0
        %5831 = vdwg.mxu0
        %v5832 = vadd.f32 %v5621, %v5826
        %v5833 = vadd.f32 %v5622, %v5828
        %s5834 = sadd.s32 %s2389, 810
        %s5835 = smul.addr %s5834, 4
        %s5836 = scalar_lea.vmem %s222, %s5835
        %v5837 = vld [vmem:[%s5836] sm:$0xf]
        %v5838 = vld [vmem:[%s5836 + $0x8] sm:$0xf]
        %v5839 = vld [vmem:[%s5836 + $0x10] sm:$0xf]
        %v5840 = vld [vmem:[%s5836 + $0x18] sm:$0xf]
        %v5841 = vld [vmem:[%s5836 + $0x20] sm:$0xf]
        %v5842 = vld [vmem:[%s5836 + $0x28] sm:$0xf]
        %v5843 = vld [vmem:[%s5836 + $0x30] sm:$0xf]
        %v5844 = vld [vmem:[%s5836 + $0x38] sm:$0xf]
        %v5845 = vld [vmem:[%s5836 + $0x48] sm:$0xf]
        %v5846 = vld [vmem:[%s5836 + $0x50] sm:$0xf]
        %v5847 = vld [vmem:[%s5836 + $0x58] sm:$0xf]
        %v5848 = vld [vmem:[%s5836 + $0x60] sm:$0xf]
        %v5849 = vld [vmem:[%s5836 + $0x68] sm:$0xf]
        %v5850 = vld [vmem:[%s5836 + $0x70] sm:$0xf]
        %v5851 = vld [vmem:[%s5836 + $0x78] sm:$0xf]
        %v5852 = vld [vmem:[%s5836 + $0x80] sm:$0xf]
        %v5853 = vld [vmem:[%s5836 + $0x90] sm:$0xf]
        %v5854 = vld [vmem:[%s5836 + $0x98] sm:$0xf]
        %v5855 = vld [vmem:[%s5836 + $0xa0] sm:$0xf]
        %v5856 = vld [vmem:[%s5836 + $0xa8] sm:$0xf]
        %v5857 = vld [vmem:[%s5836 + $0xb0] sm:$0xf]
        %v5858 = vld [vmem:[%s5836 + $0xb8] sm:$0xf]
        %v5859 = vld [vmem:[%s5836 + $0xc0] sm:$0xf]
        %v5860 = vld [vmem:[%s5836 + $0xc8] sm:$0xf]
        %v5861 = vld [vmem:[%s5836 + $0xd8] sm:$0xf]
        %v5862 = vld [vmem:[%s5836 + $0xe0] sm:$0xf]
        %v5863 = vld [vmem:[%s5836 + $0xe8] sm:$0xf]
        %v5864 = vld [vmem:[%s5836 + $0xf0] sm:$0xf]
        %v5865 = vld [vmem:[%s5836 + $0xf8] sm:$0xf]
        %v5866 = vld [vmem:[%s5836 + $0x100] sm:$0xf]
        %v5867 = vld [vmem:[%s5836 + $0x108] sm:$0xf]
        %v5868 = vld [vmem:[%s5836 + $0x110] sm:$0xf]
        %s5869 = scalar_lea.vmem %s1, 64
        %v5870 = vld [vmem:[%s5869] sm:$0xf]
        %v5903 = vunpack.c.l.b16 %v5837
        %v5904 = vunpack.c.l.b16 %v5838
        %v5905 = vunpack.c.l.b16 %v5839
        %v5906 = vunpack.c.l.b16 %v5840
        %v5907 = vunpack.c.l.b16 %v5841
        %v5908 = vunpack.c.l.b16 %v5842
        %v5909 = vunpack.c.l.b16 %v5843
        %v5910 = vunpack.c.l.b16 %v5844
        %v5911 = vunpack.c.l.b16 %v5845
        %v5912 = vunpack.c.l.b16 %v5846
        %v5913 = vunpack.c.l.b16 %v5847
        %v5914 = vunpack.c.l.b16 %v5848
        %v5915 = vunpack.c.l.b16 %v5849
        %v5916 = vunpack.c.l.b16 %v5850
        %v5917 = vunpack.c.l.b16 %v5851
        %v5918 = vunpack.c.l.b16 %v5852
        %v5919 = vunpack.c.l.b16 %v5853
        %v5920 = vunpack.c.l.b16 %v5854
        %v5921 = vunpack.c.l.b16 %v5855
        %v5922 = vunpack.c.l.b16 %v5856
        %v5923 = vunpack.c.l.b16 %v5857
        %v5924 = vunpack.c.l.b16 %v5858
        %v5925 = vunpack.c.l.b16 %v5859
        %v5926 = vunpack.c.l.b16 %v5860
        %v5927 = vunpack.c.l.b16 %v5861
        %v5928 = vunpack.c.l.b16 %v5862
        %v5929 = vunpack.c.l.b16 %v5863
        %v5930 = vunpack.c.l.b16 %v5864
        %v5931 = vunpack.c.l.b16 %v5865
        %v5932 = vunpack.c.l.b16 %v5866
        %v5933 = vunpack.c.l.b16 %v5867
        %v5934 = vunpack.c.l.b16 %v5868
        %v5935 = vpack.c.b16 %v5904, %v5903
        %v5936 = vpack.c.b16 %v5906, %v5905
        %v5937 = vpack.c.b16 %v5908, %v5907
        %v5938 = vpack.c.b16 %v5910, %v5909
        %v5939 = vpack.c.b16 %v5912, %v5911
        %v5940 = vpack.c.b16 %v5914, %v5913
        %v5941 = vpack.c.b16 %v5916, %v5915
        %v5942 = vpack.c.b16 %v5918, %v5917
        %v5943 = vpack.c.b16 %v5920, %v5919
        %v5944 = vpack.c.b16 %v5922, %v5921
        %v5945 = vpack.c.b16 %v5924, %v5923
        %v5946 = vpack.c.b16 %v5926, %v5925
        %v5947 = vpack.c.b16 %v5928, %v5927
        %v5948 = vpack.c.b16 %v5930, %v5929
        %v5949 = vpack.c.b16 %v5932, %v5931
        %v5950 = vpack.c.b16 %v5934, %v5933
        %v5952 = vsel %vm387, %v5870, 0
        %v5955 = vsel %vm387, %v5935, 0
        %v5958 = vsel %vm387, %v5936, 0
        %v5961 = vsel %vm387, %v5937, 0
        %v5964 = vsel %vm387, %v5938, 0
        %v5967 = vsel %vm387, %v5939, 0
        %v5970 = vsel %vm387, %v5940, 0
        %v5973 = vsel %vm387, %v5941, 0
        %v5976 = vsel %vm387, %v5942, 0
        %v5979 = vsel %vm387, %v5943, 0
        %v5982 = vsel %vm387, %v5944, 0
        %v5985 = vsel %vm387, %v5945, 0
        %v5988 = vsel %vm387, %v5946, 0
        %v5991 = vsel %vm387, %v5947, 0
        %v5994 = vsel %vm387, %v5948, 0
        %v5997 = vsel %vm387, %v5949, 0
        %v6000 = vsel %vm387, %v5950, 0
        %6002 = vmatprep.subr.bf16.mxu0 0
        %6003 = vmatpush1.bf16.xpose.msra.mxu0 %v5955
        %6004 = vmatprep.subr.bf16.mxu0 0
        %6005 = vmatpush1.bf16.xpose.msra.mxu0 %v5958
        %6006 = vmatprep.subr.bf16.mxu0 0
        %6007 = vmatpush1.bf16.xpose.msra.mxu0 %v5961
        %6008 = vmatprep.subr.bf16.mxu0 0
        %6009 = vmatpush1.bf16.xpose.msra.mxu0 %v5964
        %6010 = vmatprep.subr.bf16.mxu0 0
        %6011 = vmatpush1.bf16.xpose.msra.mxu0 %v5967
        %6012 = vmatprep.subr.bf16.mxu0 0
        %6013 = vmatpush1.bf16.xpose.msra.mxu0 %v5970
        %6014 = vmatprep.subr.bf16.mxu0 0
        %6015 = vmatpush1.bf16.xpose.msra.mxu0 %v5973
        %6016 = vmatprep.subr.bf16.mxu0 0
        %6017 = vmatpush1.bf16.xpose.msra.mxu0 %v5976
        %6018 = vmatprep.subr.bf16.mxu0 0
        %6019 = vmatpush1.bf16.xpose.msra.mxu0 %v5979
        %6020 = vmatprep.subr.bf16.mxu0 0
        %6021 = vmatpush1.bf16.xpose.msra.mxu0 %v5982
        %6022 = vmatprep.subr.bf16.mxu0 0
        %6023 = vmatpush1.bf16.xpose.msra.mxu0 %v5985
        %6024 = vmatprep.subr.bf16.mxu0 0
        %6025 = vmatpush1.bf16.xpose.msra.mxu0 %v5988
        %6026 = vmatprep.subr.bf16.mxu0 0
        %6027 = vmatpush1.bf16.xpose.msra.mxu0 %v5991
        %6028 = vmatprep.subr.bf16.mxu0 0
        %6029 = vmatpush1.bf16.xpose.msra.mxu0 %v5994
        %6030 = vmatprep.subr.bf16.mxu0 0
        %6031 = vmatpush1.bf16.xpose.msra.mxu0 %v5997
        %6032 = vmatprep.subr.bf16.mxu0 0
        %6033 = vmatpush1.bf16.xpose.msra.mxu0 %v6000
        %6034 = vmatprep.mubr.bf16.mxu0 0
        %6035 = vmatmul.mubr.bf16.gmra.mrb[0].mxu0 %v5952
        %v6036 = vpop.f32.mrb[0].mxu0
        %v6037 = vadd.f32 0.0, %v6036
        %v6038 = vpop.f32.mrb[0].mxu0
        %v6039 = vadd.f32 0.0, %v6038
        %v6040 = vpop.f32.mrb[0].mxu0
        %v6041 = vpop.f32.mrb[0].mxu0
        %6042 = vdwg.mxu0
        %v6043 = vadd.f32 %v5832, %v6037
        %v6044 = vadd.f32 %v5833, %v6039
        %v6045 = vld [vmem:[%s5625] sm:$0xf]
        %v6046 = vld [vmem:[%s5625 + $0x4] sm:$0x1]
        %v6047 = vld [vmem:[%s5625 + $0x8] sm:$0xf]
        %v6048 = vld [vmem:[%s5625 + $0xc] sm:$0x1]
        %v6049 = vld [vmem:[%s5625 + $0x10] sm:$0xf]
        %v6050 = vld [vmem:[%s5625 + $0x14] sm:$0x1]
        %v6051 = vld [vmem:[%s5625 + $0x18] sm:$0xf]
        %v6052 = vld [vmem:[%s5625 + $0x1c] sm:$0x1]
        %v6053 = vld [vmem:[%s5625 + $0x20] sm:$0xf]
        %v6054 = vld [vmem:[%s5625 + $0x24] sm:$0x1]
        %v6055 = vld [vmem:[%s5625 + $0x28] sm:$0xf]
        %v6056 = vld [vmem:[%s5625 + $0x2c] sm:$0x1]
        %v6057 = vld [vmem:[%s5625 + $0x30] sm:$0xf]
        %v6058 = vld [vmem:[%s5625 + $0x34] sm:$0x1]
        %v6059 = vld [vmem:[%s5625 + $0x38] sm:$0xf]
        %v6060 = vld [vmem:[%s5625 + $0x3c] sm:$0x1]
        %v6061 = vld [vmem:[%s5625 + $0x48] sm:$0xf]
        %v6062 = vld [vmem:[%s5625 + $0x4c] sm:$0x1]
        %v6063 = vld [vmem:[%s5625 + $0x50] sm:$0xf]
        %v6064 = vld [vmem:[%s5625 + $0x54] sm:$0x1]
        %v6065 = vld [vmem:[%s5625 + $0x58] sm:$0xf]
        %v6066 = vld [vmem:[%s5625 + $0x5c] sm:$0x1]
        %v6067 = vld [vmem:[%s5625 + $0x60] sm:$0xf]
        %v6068 = vld [vmem:[%s5625 + $0x64] sm:$0x1]
        %v6069 = vld [vmem:[%s5625 + $0x68] sm:$0xf]
        %v6070 = vld [vmem:[%s5625 + $0x6c] sm:$0x1]
        %v6071 = vld [vmem:[%s5625 + $0x70] sm:$0xf]
        %v6072 = vld [vmem:[%s5625 + $0x74] sm:$0x1]
        %v6073 = vld [vmem:[%s5625 + $0x78] sm:$0xf]
        %v6074 = vld [vmem:[%s5625 + $0x7c] sm:$0x1]
        %v6075 = vld [vmem:[%s5625 + $0x80] sm:$0xf]
        %v6076 = vld [vmem:[%s5625 + $0x84] sm:$0x1]
        %v6077 = vld [vmem:[%s5625 + $0x90] sm:$0xf]
        %v6078 = vld [vmem:[%s5625 + $0x94] sm:$0x1]
        %v6079 = vld [vmem:[%s5625 + $0x98] sm:$0xf]
        %v6080 = vld [vmem:[%s5625 + $0x9c] sm:$0x1]
        %v6081 = vld [vmem:[%s5625 + $0xa0] sm:$0xf]
        %v6082 = vld [vmem:[%s5625 + $0xa4] sm:$0x1]
        %v6083 = vld [vmem:[%s5625 + $0xa8] sm:$0xf]
        %v6084 = vld [vmem:[%s5625 + $0xac] sm:$0x1]
        %v6085 = vld [vmem:[%s5625 + $0xb0] sm:$0xf]
        %v6086 = vld [vmem:[%s5625 + $0xb4] sm:$0x1]
        %v6087 = vld [vmem:[%s5625 + $0xb8] sm:$0xf]
        %v6088 = vld [vmem:[%s5625 + $0xbc] sm:$0x1]
        %v6089 = vld [vmem:[%s5625 + $0xc0] sm:$0xf]
        %v6090 = vld [vmem:[%s5625 + $0xc4] sm:$0x1]
        %v6091 = vld [vmem:[%s5625 + $0xc8] sm:$0xf]
        %v6092 = vld [vmem:[%s5625 + $0xcc] sm:$0x1]
        %v6093 = vld [vmem:[%s5625 + $0xd8] sm:$0xf]
        %v6094 = vld [vmem:[%s5625 + $0xdc] sm:$0x1]
        %v6095 = vld [vmem:[%s5625 + $0xe0] sm:$0xf]
        %v6096 = vld [vmem:[%s5625 + $0xe4] sm:$0x1]
        %v6097 = vld [vmem:[%s5625 + $0xe8] sm:$0xf]
        %v6098 = vld [vmem:[%s5625 + $0xec] sm:$0x1]
        %v6099 = vld [vmem:[%s5625 + $0xf0] sm:$0xf]
        %v6100 = vld [vmem:[%s5625 + $0xf4] sm:$0x1]
        %v6101 = vld [vmem:[%s5625 + $0xf8] sm:$0xf]
        %v6102 = vld [vmem:[%s5625 + $0xfc] sm:$0x1]
        %v6103 = vld [vmem:[%s5625 + $0x100] sm:$0xf]
        %v6104 = vld [vmem:[%s5625 + $0x104] sm:$0x1]
        %v6105 = vld [vmem:[%s5625 + $0x108] sm:$0xf]
        %v6106 = vld [vmem:[%s5625 + $0x10c] sm:$0x1]
        %v6107 = vld [vmem:[%s5625 + $0x110] sm:$0xf]
        %v6108 = vld [vmem:[%s5625 + $0x114] sm:$0x1]
        %v6110 = vshrl.u32 %v6045, 16
        %v6112 = vrot.slane %v6110, 4
        %v6113 = vshll.u32 %v6045, 16
        %v6115 = vrot.slane %v6113, 5
        %v6116 = vor.u32 %v6112, %v6115
        %v6117 = vrot.slane %v6116, 4
        %v6119 = vshll.u32 %v6046, 16
        %v6121 = vrot.slane %v6119, 5
        %v6122 = vsel %vm718, %v6117, %v6121
        %v6124 = vshrl.u32 %v6047, 16
        %v6126 = vrot.slane %v6124, 4
        %v6127 = vshll.u32 %v6047, 16
        %v6129 = vrot.slane %v6127, 5
        %v6130 = vor.u32 %v6126, %v6129
        %v6131 = vrot.slane %v6130, 4
        %v6133 = vshll.u32 %v6048, 16
        %v6135 = vrot.slane %v6133, 5
        %v6136 = vsel %vm718, %v6131, %v6135
        %v6138 = vshrl.u32 %v6049, 16
        %v6140 = vrot.slane %v6138, 4
        %v6141 = vshll.u32 %v6049, 16
        %v6143 = vrot.slane %v6141, 5
        %v6144 = vor.u32 %v6140, %v6143
        %v6145 = vrot.slane %v6144, 4
        %v6147 = vshll.u32 %v6050, 16
        %v6149 = vrot.slane %v6147, 5
        %v6150 = vsel %vm718, %v6145, %v6149
        %v6152 = vshrl.u32 %v6051, 16
        %v6154 = vrot.slane %v6152, 4
        %v6155 = vshll.u32 %v6051, 16
        %v6157 = vrot.slane %v6155, 5
        %v6158 = vor.u32 %v6154, %v6157
        %v6159 = vrot.slane %v6158, 4
        %v6161 = vshll.u32 %v6052, 16
        %v6163 = vrot.slane %v6161, 5
        %v6164 = vsel %vm718, %v6159, %v6163
        %v6166 = vshrl.u32 %v6053, 16
        %v6168 = vrot.slane %v6166, 4
        %v6169 = vshll.u32 %v6053, 16
        %v6171 = vrot.slane %v6169, 5
        %v6172 = vor.u32 %v6168, %v6171
        %v6173 = vrot.slane %v6172, 4
        %v6175 = vshll.u32 %v6054, 16
        %v6177 = vrot.slane %v6175, 5
        %v6178 = vsel %vm718, %v6173, %v6177
        %v6180 = vshrl.u32 %v6055, 16
        %v6182 = vrot.slane %v6180, 4
        %v6183 = vshll.u32 %v6055, 16
        %v6185 = vrot.slane %v6183, 5
        %v6186 = vor.u32 %v6182, %v6185
        %v6187 = vrot.slane %v6186, 4
        %v6189 = vshll.u32 %v6056, 16
        %v6191 = vrot.slane %v6189, 5
        %v6192 = vsel %vm718, %v6187, %v6191
        %v6194 = vshrl.u32 %v6057, 16
        %v6196 = vrot.slane %v6194, 4
        %v6197 = vshll.u32 %v6057, 16
        %v6199 = vrot.slane %v6197, 5
        %v6200 = vor.u32 %v6196, %v6199
        %v6201 = vrot.slane %v6200, 4
        %v6203 = vshll.u32 %v6058, 16
        %v6205 = vrot.slane %v6203, 5
        %v6206 = vsel %vm718, %v6201, %v6205
        %v6208 = vshrl.u32 %v6059, 16
        %v6210 = vrot.slane %v6208, 4
        %v6211 = vshll.u32 %v6059, 16
        %v6213 = vrot.slane %v6211, 5
        %v6214 = vor.u32 %v6210, %v6213
        %v6215 = vrot.slane %v6214, 4
        %v6217 = vshll.u32 %v6060, 16
        %v6219 = vrot.slane %v6217, 5
        %v6220 = vsel %vm718, %v6215, %v6219
        %v6222 = vshrl.u32 %v6061, 16
        %v6224 = vrot.slane %v6222, 4
        %v6225 = vshll.u32 %v6061, 16
        %v6227 = vrot.slane %v6225, 5
        %v6228 = vor.u32 %v6224, %v6227
        %v6229 = vrot.slane %v6228, 4
        %v6231 = vshll.u32 %v6062, 16
        %v6233 = vrot.slane %v6231, 5
        %v6234 = vsel %vm718, %v6229, %v6233
        %v6236 = vshrl.u32 %v6063, 16
        %v6238 = vrot.slane %v6236, 4
        %v6239 = vshll.u32 %v6063, 16
        %v6241 = vrot.slane %v6239, 5
        %v6242 = vor.u32 %v6238, %v6241
        %v6243 = vrot.slane %v6242, 4
        %v6245 = vshll.u32 %v6064, 16
        %v6247 = vrot.slane %v6245, 5
        %v6248 = vsel %vm718, %v6243, %v6247
        %v6250 = vshrl.u32 %v6065, 16
        %v6252 = vrot.slane %v6250, 4
        %v6253 = vshll.u32 %v6065, 16
        %v6255 = vrot.slane %v6253, 5
        %v6256 = vor.u32 %v6252, %v6255
        %v6257 = vrot.slane %v6256, 4
        %v6259 = vshll.u32 %v6066, 16
        %v6261 = vrot.slane %v6259, 5
        %v6262 = vsel %vm718, %v6257, %v6261
        %v6264 = vshrl.u32 %v6067, 16
        %v6266 = vrot.slane %v6264, 4
        %v6267 = vshll.u32 %v6067, 16
        %v6269 = vrot.slane %v6267, 5
        %v6270 = vor.u32 %v6266, %v6269
        %v6271 = vrot.slane %v6270, 4
        %v6273 = vshll.u32 %v6068, 16
        %v6275 = vrot.slane %v6273, 5
        %v6276 = vsel %vm718, %v6271, %v6275
        %v6278 = vshrl.u32 %v6069, 16
        %v6280 = vrot.slane %v6278, 4
        %v6281 = vshll.u32 %v6069, 16
        %v6283 = vrot.slane %v6281, 5
        %v6284 = vor.u32 %v6280, %v6283
        %v6285 = vrot.slane %v6284, 4
        %v6287 = vshll.u32 %v6070, 16
        %v6289 = vrot.slane %v6287, 5
        %v6290 = vsel %vm718, %v6285, %v6289
        %v6292 = vshrl.u32 %v6071, 16
        %v6294 = vrot.slane %v6292, 4
        %v6295 = vshll.u32 %v6071, 16
        %v6297 = vrot.slane %v6295, 5
        %v6298 = vor.u32 %v6294, %v6297
        %v6299 = vrot.slane %v6298, 4
        %v6301 = vshll.u32 %v6072, 16
        %v6303 = vrot.slane %v6301, 5
        %v6304 = vsel %vm718, %v6299, %v6303
        %v6306 = vshrl.u32 %v6073, 16
        %v6308 = vrot.slane %v6306, 4
        %v6309 = vshll.u32 %v6073, 16
        %v6311 = vrot.slane %v6309, 5
        %v6312 = vor.u32 %v6308, %v6311
        %v6313 = vrot.slane %v6312, 4
        %v6315 = vshll.u32 %v6074, 16
        %v6317 = vrot.slane %v6315, 5
        %v6318 = vsel %vm718, %v6313, %v6317
        %v6320 = vshrl.u32 %v6075, 16
        %v6322 = vrot.slane %v6320, 4
        %v6323 = vshll.u32 %v6075, 16
        %v6325 = vrot.slane %v6323, 5
        %v6326 = vor.u32 %v6322, %v6325
        %v6327 = vrot.slane %v6326, 4
        %v6329 = vshll.u32 %v6076, 16
        %v6331 = vrot.slane %v6329, 5
        %v6332 = vsel %vm718, %v6327, %v6331
        %v6334 = vshrl.u32 %v6077, 16
        %v6336 = vrot.slane %v6334, 4
        %v6337 = vshll.u32 %v6077, 16
        %v6339 = vrot.slane %v6337, 5
        %v6340 = vor.u32 %v6336, %v6339
        %v6341 = vrot.slane %v6340, 4
        %v6343 = vshll.u32 %v6078, 16
        %v6345 = vrot.slane %v6343, 5
        %v6346 = vsel %vm718, %v6341, %v6345
        %v6348 = vshrl.u32 %v6079, 16
        %v6350 = vrot.slane %v6348, 4
        %v6351 = vshll.u32 %v6079, 16
        %v6353 = vrot.slane %v6351, 5
        %v6354 = vor.u32 %v6350, %v6353
        %v6355 = vrot.slane %v6354, 4
        %v6357 = vshll.u32 %v6080, 16
        %v6359 = vrot.slane %v6357, 5
        %v6360 = vsel %vm718, %v6355, %v6359
        %v6362 = vshrl.u32 %v6081, 16
        %v6364 = vrot.slane %v6362, 4
        %v6365 = vshll.u32 %v6081, 16
        %v6367 = vrot.slane %v6365, 5
        %v6368 = vor.u32 %v6364, %v6367
        %v6369 = vrot.slane %v6368, 4
        %v6371 = vshll.u32 %v6082, 16
        %v6373 = vrot.slane %v6371, 5
        %v6374 = vsel %vm718, %v6369, %v6373
        %v6376 = vshrl.u32 %v6083, 16
        %v6378 = vrot.slane %v6376, 4
        %v6379 = vshll.u32 %v6083, 16
        %v6381 = vrot.slane %v6379, 5
        %v6382 = vor.u32 %v6378, %v6381
        %v6383 = vrot.slane %v6382, 4
        %v6385 = vshll.u32 %v6084, 16
        %v6387 = vrot.slane %v6385, 5
        %v6388 = vsel %vm718, %v6383, %v6387
        %v6390 = vshrl.u32 %v6085, 16
        %v6392 = vrot.slane %v6390, 4
        %v6393 = vshll.u32 %v6085, 16
        %v6395 = vrot.slane %v6393, 5
        %v6396 = vor.u32 %v6392, %v6395
        %v6397 = vrot.slane %v6396, 4
        %v6399 = vshll.u32 %v6086, 16
        %v6401 = vrot.slane %v6399, 5
        %v6402 = vsel %vm718, %v6397, %v6401
        %v6404 = vshrl.u32 %v6087, 16
        %v6406 = vrot.slane %v6404, 4
        %v6407 = vshll.u32 %v6087, 16
        %v6409 = vrot.slane %v6407, 5
        %v6410 = vor.u32 %v6406, %v6409
        %v6411 = vrot.slane %v6410, 4
        %v6413 = vshll.u32 %v6088, 16
        %v6415 = vrot.slane %v6413, 5
        %v6416 = vsel %vm718, %v6411, %v6415
        %v6418 = vshrl.u32 %v6089, 16
        %v6420 = vrot.slane %v6418, 4
        %v6421 = vshll.u32 %v6089, 16
        %v6423 = vrot.slane %v6421, 5
        %v6424 = vor.u32 %v6420, %v6423
        %v6425 = vrot.slane %v6424, 4
        %v6427 = vshll.u32 %v6090, 16
        %v6429 = vrot.slane %v6427, 5
        %v6430 = vsel %vm718, %v6425, %v6429
        %v6432 = vshrl.u32 %v6091, 16
        %v6434 = vrot.slane %v6432, 4
        %v6435 = vshll.u32 %v6091, 16
        %v6437 = vrot.slane %v6435, 5
        %v6438 = vor.u32 %v6434, %v6437
        %v6439 = vrot.slane %v6438, 4
        %v6441 = vshll.u32 %v6092, 16
        %v6443 = vrot.slane %v6441, 5
        %v6444 = vsel %vm718, %v6439, %v6443
        %v6446 = vshrl.u32 %v6093, 16
        %v6448 = vrot.slane %v6446, 4
        %v6449 = vshll.u32 %v6093, 16
        %v6451 = vrot.slane %v6449, 5
        %v6452 = vor.u32 %v6448, %v6451
        %v6453 = vrot.slane %v6452, 4
        %v6455 = vshll.u32 %v6094, 16
        %v6457 = vrot.slane %v6455, 5
        %v6458 = vsel %vm718, %v6453, %v6457
        %v6460 = vshrl.u32 %v6095, 16
        %v6462 = vrot.slane %v6460, 4
        %v6463 = vshll.u32 %v6095, 16
        %v6465 = vrot.slane %v6463, 5
        %v6466 = vor.u32 %v6462, %v6465
        %v6467 = vrot.slane %v6466, 4
        %v6469 = vshll.u32 %v6096, 16
        %v6471 = vrot.slane %v6469, 5
        %v6472 = vsel %vm718, %v6467, %v6471
        %v6474 = vshrl.u32 %v6097, 16
        %v6476 = vrot.slane %v6474, 4
        %v6477 = vshll.u32 %v6097, 16
        %v6479 = vrot.slane %v6477, 5
        %v6480 = vor.u32 %v6476, %v6479
        %v6481 = vrot.slane %v6480, 4
        %v6483 = vshll.u32 %v6098, 16
        %v6485 = vrot.slane %v6483, 5
        %v6486 = vsel %vm718, %v6481, %v6485
        %v6488 = vshrl.u32 %v6099, 16
        %v6490 = vrot.slane %v6488, 4
        %v6491 = vshll.u32 %v6099, 16
        %v6493 = vrot.slane %v6491, 5
        %v6494 = vor.u32 %v6490, %v6493
        %v6495 = vrot.slane %v6494, 4
        %v6497 = vshll.u32 %v6100, 16
        %v6499 = vrot.slane %v6497, 5
        %v6500 = vsel %vm718, %v6495, %v6499
        %v6502 = vshrl.u32 %v6101, 16
        %v6504 = vrot.slane %v6502, 4
        %v6505 = vshll.u32 %v6101, 16
        %v6507 = vrot.slane %v6505, 5
        %v6508 = vor.u32 %v6504, %v6507
        %v6509 = vrot.slane %v6508, 4
        %v6511 = vshll.u32 %v6102, 16
        %v6513 = vrot.slane %v6511, 5
        %v6514 = vsel %vm718, %v6509, %v6513
        %v6516 = vshrl.u32 %v6103, 16
        %v6518 = vrot.slane %v6516, 4
        %v6519 = vshll.u32 %v6103, 16
        %v6521 = vrot.slane %v6519, 5
        %v6522 = vor.u32 %v6518, %v6521
        %v6523 = vrot.slane %v6522, 4
        %v6525 = vshll.u32 %v6104, 16
        %v6527 = vrot.slane %v6525, 5
        %v6528 = vsel %vm718, %v6523, %v6527
        %v6530 = vshrl.u32 %v6105, 16
        %v6532 = vrot.slane %v6530, 4
        %v6533 = vshll.u32 %v6105, 16
        %v6535 = vrot.slane %v6533, 5
        %v6536 = vor.u32 %v6532, %v6535
        %v6537 = vrot.slane %v6536, 4
        %v6539 = vshll.u32 %v6106, 16
        %v6541 = vrot.slane %v6539, 5
        %v6542 = vsel %vm718, %v6537, %v6541
        %v6544 = vshrl.u32 %v6107, 16
        %v6546 = vrot.slane %v6544, 4
        %v6547 = vshll.u32 %v6107, 16
        %v6549 = vrot.slane %v6547, 5
        %v6550 = vor.u32 %v6546, %v6549
        %v6551 = vrot.slane %v6550, 4
        %v6553 = vshll.u32 %v6108, 16
        %v6555 = vrot.slane %v6553, 5
        %v6556 = vsel %vm718, %v6551, %v6555
        %s6557 = scalar_lea.vmem %s1, 68
        %v6558 = vld [vmem:[%s6557] sm:$0xf]
        %v6559 = vunpack.c.l.b16 %v6122
        %v6560 = vunpack.c.l.b16 %v6136
        %v6561 = vunpack.c.l.b16 %v6150
        %v6562 = vunpack.c.l.b16 %v6164
        %v6563 = vunpack.c.l.b16 %v6178
        %v6564 = vunpack.c.l.b16 %v6192
        %v6565 = vunpack.c.l.b16 %v6206
        %v6566 = vunpack.c.l.b16 %v6220
        %v6567 = vunpack.c.l.b16 %v6234
        %v6568 = vunpack.c.l.b16 %v6248
        %v6569 = vunpack.c.l.b16 %v6262
        %v6570 = vunpack.c.l.b16 %v6276
        %v6571 = vunpack.c.l.b16 %v6290
        %v6572 = vunpack.c.l.b16 %v6304
        %v6573 = vunpack.c.l.b16 %v6318
        %v6574 = vunpack.c.l.b16 %v6332
        %v6575 = vunpack.c.l.b16 %v6346
        %v6576 = vunpack.c.l.b16 %v6360
        %v6577 = vunpack.c.l.b16 %v6374
        %v6578 = vunpack.c.l.b16 %v6388
        %v6579 = vunpack.c.l.b16 %v6402
        %v6580 = vunpack.c.l.b16 %v6416
        %v6581 = vunpack.c.l.b16 %v6430
        %v6582 = vunpack.c.l.b16 %v6444
        %v6583 = vunpack.c.l.b16 %v6458
        %v6584 = vunpack.c.l.b16 %v6472
        %v6585 = vunpack.c.l.b16 %v6486
        %v6586 = vunpack.c.l.b16 %v6500
        %v6587 = vunpack.c.l.b16 %v6514
        %v6588 = vunpack.c.l.b16 %v6528
        %v6589 = vunpack.c.l.b16 %v6542
        %v6590 = vunpack.c.l.b16 %v6556
        %v6591 = vpack.c.b16 %v6560, %v6559
        %v6592 = vpack.c.b16 %v6562, %v6561
        %v6593 = vpack.c.b16 %v6564, %v6563
        %v6594 = vpack.c.b16 %v6566, %v6565
        %v6595 = vpack.c.b16 %v6568, %v6567
        %v6596 = vpack.c.b16 %v6570, %v6569
        %v6597 = vpack.c.b16 %v6572, %v6571
        %v6598 = vpack.c.b16 %v6574, %v6573
        %v6599 = vpack.c.b16 %v6576, %v6575
        %v6600 = vpack.c.b16 %v6578, %v6577
        %v6601 = vpack.c.b16 %v6580, %v6579
        %v6602 = vpack.c.b16 %v6582, %v6581
        %v6603 = vpack.c.b16 %v6584, %v6583
        %v6604 = vpack.c.b16 %v6586, %v6585
        %v6605 = vpack.c.b16 %v6588, %v6587
        %v6606 = vpack.c.b16 %v6590, %v6589
        %v6608 = vsel %vm387, %v6558, 0
        %v6611 = vsel %vm387, %v6591, 0
        %v6614 = vsel %vm387, %v6592, 0
        %v6617 = vsel %vm387, %v6593, 0
        %v6620 = vsel %vm387, %v6594, 0
        %v6623 = vsel %vm387, %v6595, 0
        %v6626 = vsel %vm387, %v6596, 0
        %v6629 = vsel %vm387, %v6597, 0
        %v6632 = vsel %vm387, %v6598, 0
        %v6635 = vsel %vm387, %v6599, 0
        %v6638 = vsel %vm387, %v6600, 0
        %v6641 = vsel %vm387, %v6601, 0
        %v6644 = vsel %vm387, %v6602, 0
        %v6647 = vsel %vm387, %v6603, 0
        %v6650 = vsel %vm387, %v6604, 0
        %v6653 = vsel %vm387, %v6605, 0
        %v6656 = vsel %vm387, %v6606, 0
        %6658 = vmatprep.subr.bf16.mxu0 0
        %6659 = vmatpush1.bf16.xpose.msra.mxu0 %v6611
        %6660 = vmatprep.subr.bf16.mxu0 0
        %6661 = vmatpush1.bf16.xpose.msra.mxu0 %v6614
        %6662 = vmatprep.subr.bf16.mxu0 0
        %6663 = vmatpush1.bf16.xpose.msra.mxu0 %v6617
        %6664 = vmatprep.subr.bf16.mxu0 0
        %6665 = vmatpush1.bf16.xpose.msra.mxu0 %v6620
        %6666 = vmatprep.subr.bf16.mxu0 0
        %6667 = vmatpush1.bf16.xpose.msra.mxu0 %v6623
        %6668 = vmatprep.subr.bf16.mxu0 0
        %6669 = vmatpush1.bf16.xpose.msra.mxu0 %v6626
        %6670 = vmatprep.subr.bf16.mxu0 0
        %6671 = vmatpush1.bf16.xpose.msra.mxu0 %v6629
        %6672 = vmatprep.subr.bf16.mxu0 0
        %6673 = vmatpush1.bf16.xpose.msra.mxu0 %v6632
        %6674 = vmatprep.subr.bf16.mxu0 0
        %6675 = vmatpush1.bf16.xpose.msra.mxu0 %v6635
        %6676 = vmatprep.subr.bf16.mxu0 0
        %6677 = vmatpush1.bf16.xpose.msra.mxu0 %v6638
        %6678 = vmatprep.subr.bf16.mxu0 0
        %6679 = vmatpush1.bf16.xpose.msra.mxu0 %v6641
        %6680 = vmatprep.subr.bf16.mxu0 0
        %6681 = vmatpush1.bf16.xpose.msra.mxu0 %v6644
        %6682 = vmatprep.subr.bf16.mxu0 0
        %6683 = vmatpush1.bf16.xpose.msra.mxu0 %v6647
        %6684 = vmatprep.subr.bf16.mxu0 0
        %6685 = vmatpush1.bf16.xpose.msra.mxu0 %v6650
        %6686 = vmatprep.subr.bf16.mxu0 0
        %6687 = vmatpush1.bf16.xpose.msra.mxu0 %v6653
        %6688 = vmatprep.subr.bf16.mxu0 0
        %6689 = vmatpush1.bf16.xpose.msra.mxu0 %v6656
        %6690 = vmatprep.mubr.bf16.mxu0 0
        %6691 = vmatmul.mubr.bf16.gmra.mrb[0].mxu0 %v6608
        %v6692 = vpop.f32.mrb[0].mxu0
        %v6693 = vadd.f32 0.0, %v6692
        %v6694 = vpop.f32.mrb[0].mxu0
        %v6695 = vadd.f32 0.0, %v6694
        %v6696 = vpop.f32.mrb[0].mxu0
        %v6697 = vpop.f32.mrb[0].mxu0
        %6698 = vdwg.mxu0
        %v6699 = vadd.f32 %v6043, %v6693
        %v6700 = vadd.f32 %v6044, %v6695
        %s6701 = sadd.s32 %s233, 1
        %s6702 = smul.u32 %s6701, 18
        %s6703 = smul.addr %s6702, 4
        %s6704 = scalar_lea.vmem %s222, %s6703
        %v6705 = vld [vmem:[%s6704] sm:$0xf]
        %v6706 = vld [vmem:[%s6704 + $0x8] sm:$0xf]
        %v6707 = vld [vmem:[%s6704 + $0x10] sm:$0xf]
        %v6708 = vld [vmem:[%s6704 + $0x18] sm:$0xf]
        %v6709 = vld [vmem:[%s6704 + $0x20] sm:$0xf]
        %v6710 = vld [vmem:[%s6704 + $0x28] sm:$0xf]
        %v6711 = vld [vmem:[%s6704 + $0x30] sm:$0xf]
        %v6712 = vld [vmem:[%s6704 + $0x38] sm:$0xf]
        %v6713 = vld [vmem:[%s6704 + $0x48] sm:$0xf]
        %v6714 = vld [vmem:[%s6704 + $0x50] sm:$0xf]
        %v6715 = vld [vmem:[%s6704 + $0x58] sm:$0xf]
        %v6716 = vld [vmem:[%s6704 + $0x60] sm:$0xf]
        %v6717 = vld [vmem:[%s6704 + $0x68] sm:$0xf]
        %v6718 = vld [vmem:[%s6704 + $0x70] sm:$0xf]
        %v6719 = vld [vmem:[%s6704 + $0x78] sm:$0xf]
        %v6720 = vld [vmem:[%s6704 + $0x80] sm:$0xf]
        %v6721 = vld [vmem:[%s6704 + $0x90] sm:$0xf]
        %v6722 = vld [vmem:[%s6704 + $0x98] sm:$0xf]
        %v6723 = vld [vmem:[%s6704 + $0xa0] sm:$0xf]
        %v6724 = vld [vmem:[%s6704 + $0xa8] sm:$0xf]
        %v6725 = vld [vmem:[%s6704 + $0xb0] sm:$0xf]
        %v6726 = vld [vmem:[%s6704 + $0xb8] sm:$0xf]
        %v6727 = vld [vmem:[%s6704 + $0xc0] sm:$0xf]
        %v6728 = vld [vmem:[%s6704 + $0xc8] sm:$0xf]
        %v6729 = vld [vmem:[%s6704 + $0xd8] sm:$0xf]
        %v6730 = vld [vmem:[%s6704 + $0xe0] sm:$0xf]
        %v6731 = vld [vmem:[%s6704 + $0xe8] sm:$0xf]
        %v6732 = vld [vmem:[%s6704 + $0xf0] sm:$0xf]
        %v6733 = vld [vmem:[%s6704 + $0xf8] sm:$0xf]
        %v6734 = vld [vmem:[%s6704 + $0x100] sm:$0xf]
        %v6735 = vld [vmem:[%s6704 + $0x108] sm:$0xf]
        %v6736 = vld [vmem:[%s6704 + $0x110] sm:$0xf]
        %s6737 = scalar_lea.vmem %s1, 72
        %v6738 = vld [vmem:[%s6737] sm:$0xf]
        %v6771 = vunpack.c.l.b16 %v6705
        %v6772 = vunpack.c.l.b16 %v6706
        %v6773 = vunpack.c.l.b16 %v6707
        %v6774 = vunpack.c.l.b16 %v6708
        %v6775 = vunpack.c.l.b16 %v6709
        %v6776 = vunpack.c.l.b16 %v6710
        %v6777 = vunpack.c.l.b16 %v6711
        %v6778 = vunpack.c.l.b16 %v6712
        %v6779 = vunpack.c.l.b16 %v6713
        %v6780 = vunpack.c.l.b16 %v6714
        %v6781 = vunpack.c.l.b16 %v6715
        %v6782 = vunpack.c.l.b16 %v6716
        %v6783 = vunpack.c.l.b16 %v6717
        %v6784 = vunpack.c.l.b16 %v6718
        %v6785 = vunpack.c.l.b16 %v6719
        %v6786 = vunpack.c.l.b16 %v6720
        %v6787 = vunpack.c.l.b16 %v6721
        %v6788 = vunpack.c.l.b16 %v6722
        %v6789 = vunpack.c.l.b16 %v6723
        %v6790 = vunpack.c.l.b16 %v6724
        %v6791 = vunpack.c.l.b16 %v6725
        %v6792 = vunpack.c.l.b16 %v6726
        %v6793 = vunpack.c.l.b16 %v6727
        %v6794 = vunpack.c.l.b16 %v6728
        %v6795 = vunpack.c.l.b16 %v6729
        %v6796 = vunpack.c.l.b16 %v6730
        %v6797 = vunpack.c.l.b16 %v6731
        %v6798 = vunpack.c.l.b16 %v6732
        %v6799 = vunpack.c.l.b16 %v6733
        %v6800 = vunpack.c.l.b16 %v6734
        %v6801 = vunpack.c.l.b16 %v6735
        %v6802 = vunpack.c.l.b16 %v6736
        %v6803 = vpack.c.b16 %v6772, %v6771
        %v6804 = vpack.c.b16 %v6774, %v6773
        %v6805 = vpack.c.b16 %v6776, %v6775
        %v6806 = vpack.c.b16 %v6778, %v6777
        %v6807 = vpack.c.b16 %v6780, %v6779
        %v6808 = vpack.c.b16 %v6782, %v6781
        %v6809 = vpack.c.b16 %v6784, %v6783
        %v6810 = vpack.c.b16 %v6786, %v6785
        %v6811 = vpack.c.b16 %v6788, %v6787
        %v6812 = vpack.c.b16 %v6790, %v6789
        %v6813 = vpack.c.b16 %v6792, %v6791
        %v6814 = vpack.c.b16 %v6794, %v6793
        %v6815 = vpack.c.b16 %v6796, %v6795
        %v6816 = vpack.c.b16 %v6798, %v6797
        %v6817 = vpack.c.b16 %v6800, %v6799
        %v6818 = vpack.c.b16 %v6802, %v6801
        %v6820 = vsel %vm387, %v6738, 0
        %v6823 = vsel %vm387, %v6803, 0
        %v6826 = vsel %vm387, %v6804, 0
        %v6829 = vsel %vm387, %v6805, 0
        %v6832 = vsel %vm387, %v6806, 0
        %v6835 = vsel %vm387, %v6807, 0
        %v6838 = vsel %vm387, %v6808, 0
        %v6841 = vsel %vm387, %v6809, 0
        %v6844 = vsel %vm387, %v6810, 0
        %v6847 = vsel %vm387, %v6811, 0
        %v6850 = vsel %vm387, %v6812, 0
        %v6853 = vsel %vm387, %v6813, 0
        %v6856 = vsel %vm387, %v6814, 0
        %v6859 = vsel %vm387, %v6815, 0
        %v6862 = vsel %vm387, %v6816, 0
        %v6865 = vsel %vm387, %v6817, 0
        %v6868 = vsel %vm387, %v6818, 0
        %6870 = vmatprep.subr.bf16.mxu0 0
        %6871 = vmatpush1.bf16.xpose.msra.mxu0 %v6823
        %6872 = vmatprep.subr.bf16.mxu0 0
        %6873 = vmatpush1.bf16.xpose.msra.mxu0 %v6826
        %6874 = vmatprep.subr.bf16.mxu0 0
        %6875 = vmatpush1.bf16.xpose.msra.mxu0 %v6829
        %6876 = vmatprep.subr.bf16.mxu0 0
        %6877 = vmatpush1.bf16.xpose.msra.mxu0 %v6832
        %6878 = vmatprep.subr.bf16.mxu0 0
        %6879 = vmatpush1.bf16.xpose.msra.mxu0 %v6835
        %6880 = vmatprep.subr.bf16.mxu0 0
        %6881 = vmatpush1.bf16.xpose.msra.mxu0 %v6838
        %6882 = vmatprep.subr.bf16.mxu0 0
        %6883 = vmatpush1.bf16.xpose.msra.mxu0 %v6841
        %6884 = vmatprep.subr.bf16.mxu0 0
        %6885 = vmatpush1.bf16.xpose.msra.mxu0 %v6844
        %6886 = vmatprep.subr.bf16.mxu0 0
        %6887 = vmatpush1.bf16.xpose.msra.mxu0 %v6847
        %6888 = vmatprep.subr.bf16.mxu0 0
        %6889 = vmatpush1.bf16.xpose.msra.mxu0 %v6850
        %6890 = vmatprep.subr.bf16.mxu0 0
        %6891 = vmatpush1.bf16.xpose.msra.mxu0 %v6853
        %6892 = vmatprep.subr.bf16.mxu0 0
        %6893 = vmatpush1.bf16.xpose.msra.mxu0 %v6856
        %6894 = vmatprep.subr.bf16.mxu0 0
        %6895 = vmatpush1.bf16.xpose.msra.mxu0 %v6859
        %6896 = vmatprep.subr.bf16.mxu0 0
        %6897 = vmatpush1.bf16.xpose.msra.mxu0 %v6862
        %6898 = vmatprep.subr.bf16.mxu0 0
        %6899 = vmatpush1.bf16.xpose.msra.mxu0 %v6865
        %6900 = vmatprep.subr.bf16.mxu0 0
        %6901 = vmatpush1.bf16.xpose.msra.mxu0 %v6868
        %6902 = vmatprep.mubr.bf16.mxu0 0
        %6903 = vmatmul.mubr.bf16.gmra.mrb[0].mxu0 %v6820
        %v6904 = vpop.f32.mrb[0].mxu0
        %v6905 = vadd.f32 0.0, %v6904
        %v6906 = vpop.f32.mrb[0].mxu0
        %v6907 = vadd.f32 0.0, %v6906
        %v6908 = vpop.f32.mrb[0].mxu0
        %v6909 = vpop.f32.mrb[0].mxu0
        %6910 = vdwg.mxu0
        %v6911 = vadd.f32 %v6699, %v6905
        %v6912 = vadd.f32 %v6700, %v6907
        %s6913 = sadd.s32 %s6702, 162
        %s6914 = smul.addr %s6913, 4
        %s6915 = scalar_lea.vmem %s222, %s6914
        %v6916 = vld [vmem:[%s6915] sm:$0xf]
        %v6917 = vld [vmem:[%s6915 + $0x8] sm:$0xf]
        %v6918 = vld [vmem:[%s6915 + $0x10] sm:$0xf]
        %v6919 = vld [vmem:[%s6915 + $0x18] sm:$0xf]
        %v6920 = vld [vmem:[%s6915 + $0x20] sm:$0xf]
        %v6921 = vld [vmem:[%s6915 + $0x28] sm:$0xf]
        %v6922 = vld [vmem:[%s6915 + $0x30] sm:$0xf]
        %v6923 = vld [vmem:[%s6915 + $0x38] sm:$0xf]
        %v6924 = vld [vmem:[%s6915 + $0x48] sm:$0xf]
        %v6925 = vld [vmem:[%s6915 + $0x50] sm:$0xf]
        %v6926 = vld [vmem:[%s6915 + $0x58] sm:$0xf]
        %v6927 = vld [vmem:[%s6915 + $0x60] sm:$0xf]
        %v6928 = vld [vmem:[%s6915 + $0x68] sm:$0xf]
        %v6929 = vld [vmem:[%s6915 + $0x70] sm:$0xf]
        %v6930 = vld [vmem:[%s6915 + $0x78] sm:$0xf]
        %v6931 = vld [vmem:[%s6915 + $0x80] sm:$0xf]
        %v6932 = vld [vmem:[%s6915 + $0x90] sm:$0xf]
        %v6933 = vld [vmem:[%s6915 + $0x98] sm:$0xf]
        %v6934 = vld [vmem:[%s6915 + $0xa0] sm:$0xf]
        %v6935 = vld [vmem:[%s6915 + $0xa8] sm:$0xf]
        %v6936 = vld [vmem:[%s6915 + $0xb0] sm:$0xf]
        %v6937 = vld [vmem:[%s6915 + $0xb8] sm:$0xf]
        %v6938 = vld [vmem:[%s6915 + $0xc0] sm:$0xf]
        %v6939 = vld [vmem:[%s6915 + $0xc8] sm:$0xf]
        %v6940 = vld [vmem:[%s6915 + $0xd8] sm:$0xf]
        %v6941 = vld [vmem:[%s6915 + $0xe0] sm:$0xf]
        %v6942 = vld [vmem:[%s6915 + $0xe8] sm:$0xf]
        %v6943 = vld [vmem:[%s6915 + $0xf0] sm:$0xf]
        %v6944 = vld [vmem:[%s6915 + $0xf8] sm:$0xf]
        %v6945 = vld [vmem:[%s6915 + $0x100] sm:$0xf]
        %v6946 = vld [vmem:[%s6915 + $0x108] sm:$0xf]
        %v6947 = vld [vmem:[%s6915 + $0x110] sm:$0xf]
        %s6948 = scalar_lea.vmem %s1, 76
        %v6949 = vld [vmem:[%s6948] sm:$0xf]
        %v6982 = vunpack.c.l.b16 %v6916
        %v6983 = vunpack.c.l.b16 %v6917
        %v6984 = vunpack.c.l.b16 %v6918
        %v6985 = vunpack.c.l.b16 %v6919
        %v6986 = vunpack.c.l.b16 %v6920
        %v6987 = vunpack.c.l.b16 %v6921
        %v6988 = vunpack.c.l.b16 %v6922
        %v6989 = vunpack.c.l.b16 %v6923
        %v6990 = vunpack.c.l.b16 %v6924
        %v6991 = vunpack.c.l.b16 %v6925
        %v6992 = vunpack.c.l.b16 %v6926
        %v6993 = vunpack.c.l.b16 %v6927
        %v6994 = vunpack.c.l.b16 %v6928
        %v6995 = vunpack.c.l.b16 %v6929
        %v6996 = vunpack.c.l.b16 %v6930
        %v6997 = vunpack.c.l.b16 %v6931
        %v6998 = vunpack.c.l.b16 %v6932
        %v6999 = vunpack.c.l.b16 %v6933
        %v7000 = vunpack.c.l.b16 %v6934
        %v7001 = vunpack.c.l.b16 %v6935
        %v7002 = vunpack.c.l.b16 %v6936
        %v7003 = vunpack.c.l.b16 %v6937
        %v7004 = vunpack.c.l.b16 %v6938
        %v7005 = vunpack.c.l.b16 %v6939
        %v7006 = vunpack.c.l.b16 %v6940
        %v7007 = vunpack.c.l.b16 %v6941
        %v7008 = vunpack.c.l.b16 %v6942
        %v7009 = vunpack.c.l.b16 %v6943
        %v7010 = vunpack.c.l.b16 %v6944
        %v7011 = vunpack.c.l.b16 %v6945
        %v7012 = vunpack.c.l.b16 %v6946
        %v7013 = vunpack.c.l.b16 %v6947
        %v7014 = vpack.c.b16 %v6983, %v6982
        %v7015 = vpack.c.b16 %v6985, %v6984
        %v7016 = vpack.c.b16 %v6987, %v6986
        %v7017 = vpack.c.b16 %v6989, %v6988
        %v7018 = vpack.c.b16 %v6991, %v6990
        %v7019 = vpack.c.b16 %v6993, %v6992
        %v7020 = vpack.c.b16 %v6995, %v6994
        %v7021 = vpack.c.b16 %v6997, %v6996
        %v7022 = vpack.c.b16 %v6999, %v6998
        %v7023 = vpack.c.b16 %v7001, %v7000
        %v7024 = vpack.c.b16 %v7003, %v7002
        %v7025 = vpack.c.b16 %v7005, %v7004
        %v7026 = vpack.c.b16 %v7007, %v7006
        %v7027 = vpack.c.b16 %v7009, %v7008
        %v7028 = vpack.c.b16 %v7011, %v7010
        %v7029 = vpack.c.b16 %v7013, %v7012
        %v7031 = vsel %vm387, %v6949, 0
        %v7034 = vsel %vm387, %v7014, 0
        %v7037 = vsel %vm387, %v7015, 0
        %v7040 = vsel %vm387, %v7016, 0
        %v7043 = vsel %vm387, %v7017, 0
        %v7046 = vsel %vm387, %v7018, 0
        %v7049 = vsel %vm387, %v7019, 0
        %v7052 = vsel %vm387, %v7020, 0
        %v7055 = vsel %vm387, %v7021, 0
        %v7058 = vsel %vm387, %v7022, 0
        %v7061 = vsel %vm387, %v7023, 0
        %v7064 = vsel %vm387, %v7024, 0
        %v7067 = vsel %vm387, %v7025, 0
        %v7070 = vsel %vm387, %v7026, 0
        %v7073 = vsel %vm387, %v7027, 0
        %v7076 = vsel %vm387, %v7028, 0
        %v7079 = vsel %vm387, %v7029, 0
        %7081 = vmatprep.subr.bf16.mxu0 0
        %7082 = vmatpush1.bf16.xpose.msra.mxu0 %v7034
        %7083 = vmatprep.subr.bf16.mxu0 0
        %7084 = vmatpush1.bf16.xpose.msra.mxu0 %v7037
        %7085 = vmatprep.subr.bf16.mxu0 0
        %7086 = vmatpush1.bf16.xpose.msra.mxu0 %v7040
        %7087 = vmatprep.subr.bf16.mxu0 0
        %7088 = vmatpush1.bf16.xpose.msra.mxu0 %v7043
        %7089 = vmatprep.subr.bf16.mxu0 0
        %7090 = vmatpush1.bf16.xpose.msra.mxu0 %v7046
        %7091 = vmatprep.subr.bf16.mxu0 0
        %7092 = vmatpush1.bf16.xpose.msra.mxu0 %v7049
        %7093 = vmatprep.subr.bf16.mxu0 0
        %7094 = vmatpush1.bf16.xpose.msra.mxu0 %v7052
        %7095 = vmatprep.subr.bf16.mxu0 0
        %7096 = vmatpush1.bf16.xpose.msra.mxu0 %v7055
        %7097 = vmatprep.subr.bf16.mxu0 0
        %7098 = vmatpush1.bf16.xpose.msra.mxu0 %v7058
        %7099 = vmatprep.subr.bf16.mxu0 0
        %7100 = vmatpush1.bf16.xpose.msra.mxu0 %v7061
        %7101 = vmatprep.subr.bf16.mxu0 0
        %7102 = vmatpush1.bf16.xpose.msra.mxu0 %v7064
        %7103 = vmatprep.subr.bf16.mxu0 0
        %7104 = vmatpush1.bf16.xpose.msra.mxu0 %v7067
        %7105 = vmatprep.subr.bf16.mxu0 0
        %7106 = vmatpush1.bf16.xpose.msra.mxu0 %v7070
        %7107 = vmatprep.subr.bf16.mxu0 0
        %7108 = vmatpush1.bf16.xpose.msra.mxu0 %v7073
        %7109 = vmatprep.subr.bf16.mxu0 0
        %7110 = vmatpush1.bf16.xpose.msra.mxu0 %v7076
        %7111 = vmatprep.subr.bf16.mxu0 0
        %7112 = vmatpush1.bf16.xpose.msra.mxu0 %v7079
        %7113 = vmatprep.mubr.bf16.mxu0 0
        %7114 = vmatmul.mubr.bf16.gmra.mrb[0].mxu0 %v7031
        %v7115 = vpop.f32.mrb[0].mxu0
        %v7116 = vadd.f32 0.0, %v7115
        %v7117 = vpop.f32.mrb[0].mxu0
        %v7118 = vadd.f32 0.0, %v7117
        %v7119 = vpop.f32.mrb[0].mxu0
        %v7120 = vpop.f32.mrb[0].mxu0
        %7121 = vdwg.mxu0
        %v7122 = vadd.f32 %v6911, %v7116
        %v7123 = vadd.f32 %v6912, %v7118
        %v7124 = vld [vmem:[%s6704] sm:$0xf]
        %v7125 = vld [vmem:[%s6704 + $0x4] sm:$0x1]
        %v7126 = vld [vmem:[%s6704 + $0x8] sm:$0xf]
        %v7127 = vld [vmem:[%s6704 + $0xc] sm:$0x1]
        %v7128 = vld [vmem:[%s6704 + $0x10] sm:$0xf]
        %v7129 = vld [vmem:[%s6704 + $0x14] sm:$0x1]
        %v7130 = vld [vmem:[%s6704 + $0x18] sm:$0xf]
        %v7131 = vld [vmem:[%s6704 + $0x1c] sm:$0x1]
        %v7132 = vld [vmem:[%s6704 + $0x20] sm:$0xf]
        %v7133 = vld [vmem:[%s6704 + $0x24] sm:$0x1]
        %v7134 = vld [vmem:[%s6704 + $0x28] sm:$0xf]
        %v7135 = vld [vmem:[%s6704 + $0x2c] sm:$0x1]
        %v7136 = vld [vmem:[%s6704 + $0x30] sm:$0xf]
        %v7137 = vld [vmem:[%s6704 + $0x34] sm:$0x1]
        %v7138 = vld [vmem:[%s6704 + $0x38] sm:$0xf]
        %v7139 = vld [vmem:[%s6704 + $0x3c] sm:$0x1]
        %v7140 = vld [vmem:[%s6704 + $0x48] sm:$0xf]
        %v7141 = vld [vmem:[%s6704 + $0x4c] sm:$0x1]
        %v7142 = vld [vmem:[%s6704 + $0x50] sm:$0xf]
        %v7143 = vld [vmem:[%s6704 + $0x54] sm:$0x1]
        %v7144 = vld [vmem:[%s6704 + $0x58] sm:$0xf]
        %v7145 = vld [vmem:[%s6704 + $0x5c] sm:$0x1]
        %v7146 = vld [vmem:[%s6704 + $0x60] sm:$0xf]
        %v7147 = vld [vmem:[%s6704 + $0x64] sm:$0x1]
        %v7148 = vld [vmem:[%s6704 + $0x68] sm:$0xf]
        %v7149 = vld [vmem:[%s6704 + $0x6c] sm:$0x1]
        %v7150 = vld [vmem:[%s6704 + $0x70] sm:$0xf]
        %v7151 = vld [vmem:[%s6704 + $0x74] sm:$0x1]
        %v7152 = vld [vmem:[%s6704 + $0x78] sm:$0xf]
        %v7153 = vld [vmem:[%s6704 + $0x7c] sm:$0x1]
        %v7154 = vld [vmem:[%s6704 + $0x80] sm:$0xf]
        %v7155 = vld [vmem:[%s6704 + $0x84] sm:$0x1]
        %v7156 = vld [vmem:[%s6704 + $0x90] sm:$0xf]
        %v7157 = vld [vmem:[%s6704 + $0x94] sm:$0x1]
        %v7158 = vld [vmem:[%s6704 + $0x98] sm:$0xf]
        %v7159 = vld [vmem:[%s6704 + $0x9c] sm:$0x1]
        %v7160 = vld [vmem:[%s6704 + $0xa0] sm:$0xf]
        %v7161 = vld [vmem:[%s6704 + $0xa4] sm:$0x1]
        %v7162 = vld [vmem:[%s6704 + $0xa8] sm:$0xf]
        %v7163 = vld [vmem:[%s6704 + $0xac] sm:$0x1]
        %v7164 = vld [vmem:[%s6704 + $0xb0] sm:$0xf]
        %v7165 = vld [vmem:[%s6704 + $0xb4] sm:$0x1]
        %v7166 = vld [vmem:[%s6704 + $0xb8] sm:$0xf]
        %v7167 = vld [vmem:[%s6704 + $0xbc] sm:$0x1]
        %v7168 = vld [vmem:[%s6704 + $0xc0] sm:$0xf]
        %v7169 = vld [vmem:[%s6704 + $0xc4] sm:$0x1]
        %v7170 = vld [vmem:[%s6704 + $0xc8] sm:$0xf]
        %v7171 = vld [vmem:[%s6704 + $0xcc] sm:$0x1]
        %v7172 = vld [vmem:[%s6704 + $0xd8] sm:$0xf]
        %v7173 = vld [vmem:[%s6704 + $0xdc] sm:$0x1]
        %v7174 = vld [vmem:[%s6704 + $0xe0] sm:$0xf]
        %v7175 = vld [vmem:[%s6704 + $0xe4] sm:$0x1]
        %v7176 = vld [vmem:[%s6704 + $0xe8] sm:$0xf]
        %v7177 = vld [vmem:[%s6704 + $0xec] sm:$0x1]
        %v7178 = vld [vmem:[%s6704 + $0xf0] sm:$0xf]
        %v7179 = vld [vmem:[%s6704 + $0xf4] sm:$0x1]
        %v7180 = vld [vmem:[%s6704 + $0xf8] sm:$0xf]
        %v7181 = vld [vmem:[%s6704 + $0xfc] sm:$0x1]
        %v7182 = vld [vmem:[%s6704 + $0x100] sm:$0xf]
        %v7183 = vld [vmem:[%s6704 + $0x104] sm:$0x1]
        %v7184 = vld [vmem:[%s6704 + $0x108] sm:$0xf]
        %v7185 = vld [vmem:[%s6704 + $0x10c] sm:$0x1]
        %v7186 = vld [vmem:[%s6704 + $0x110] sm:$0xf]
        %v7187 = vld [vmem:[%s6704 + $0x114] sm:$0x1]
        %v7189 = vshrl.u32 %v7124, 16
        %v7191 = vrot.slane %v7189, 4
        %v7192 = vshll.u32 %v7124, 16
        %v7194 = vrot.slane %v7192, 5
        %v7195 = vor.u32 %v7191, %v7194
        %v7196 = vrot.slane %v7195, 4
        %v7198 = vshll.u32 %v7125, 16
        %v7200 = vrot.slane %v7198, 5
        %v7201 = vsel %vm718, %v7196, %v7200
        %v7203 = vshrl.u32 %v7126, 16
        %v7205 = vrot.slane %v7203, 4
        %v7206 = vshll.u32 %v7126, 16
        %v7208 = vrot.slane %v7206, 5
        %v7209 = vor.u32 %v7205, %v7208
        %v7210 = vrot.slane %v7209, 4
        %v7212 = vshll.u32 %v7127, 16
        %v7214 = vrot.slane %v7212, 5
        %v7215 = vsel %vm718, %v7210, %v7214
        %v7217 = vshrl.u32 %v7128, 16
        %v7219 = vrot.slane %v7217, 4
        %v7220 = vshll.u32 %v7128, 16
        %v7222 = vrot.slane %v7220, 5
        %v7223 = vor.u32 %v7219, %v7222
        %v7224 = vrot.slane %v7223, 4
        %v7226 = vshll.u32 %v7129, 16
        %v7228 = vrot.slane %v7226, 5
        %v7229 = vsel %vm718, %v7224, %v7228
        %v7231 = vshrl.u32 %v7130, 16
        %v7233 = vrot.slane %v7231, 4
        %v7234 = vshll.u32 %v7130, 16
        %v7236 = vrot.slane %v7234, 5
        %v7237 = vor.u32 %v7233, %v7236
        %v7238 = vrot.slane %v7237, 4
        %v7240 = vshll.u32 %v7131, 16
        %v7242 = vrot.slane %v7240, 5
        %v7243 = vsel %vm718, %v7238, %v7242
        %v7245 = vshrl.u32 %v7132, 16
        %v7247 = vrot.slane %v7245, 4
        %v7248 = vshll.u32 %v7132, 16
        %v7250 = vrot.slane %v7248, 5
        %v7251 = vor.u32 %v7247, %v7250
        %v7252 = vrot.slane %v7251, 4
        %v7254 = vshll.u32 %v7133, 16
        %v7256 = vrot.slane %v7254, 5
        %v7257 = vsel %vm718, %v7252, %v7256
        %v7259 = vshrl.u32 %v7134, 16
        %v7261 = vrot.slane %v7259, 4
        %v7262 = vshll.u32 %v7134, 16
        %v7264 = vrot.slane %v7262, 5
        %v7265 = vor.u32 %v7261, %v7264
        %v7266 = vrot.slane %v7265, 4
        %v7268 = vshll.u32 %v7135, 16
        %v7270 = vrot.slane %v7268, 5
        %v7271 = vsel %vm718, %v7266, %v7270
        %v7273 = vshrl.u32 %v7136, 16
        %v7275 = vrot.slane %v7273, 4
        %v7276 = vshll.u32 %v7136, 16
        %v7278 = vrot.slane %v7276, 5
        %v7279 = vor.u32 %v7275, %v7278
        %v7280 = vrot.slane %v7279, 4
        %v7282 = vshll.u32 %v7137, 16
        %v7284 = vrot.slane %v7282, 5
        %v7285 = vsel %vm718, %v7280, %v7284
        %v7287 = vshrl.u32 %v7138, 16
        %v7289 = vrot.slane %v7287, 4
        %v7290 = vshll.u32 %v7138, 16
        %v7292 = vrot.slane %v7290, 5
        %v7293 = vor.u32 %v7289, %v7292
        %v7294 = vrot.slane %v7293, 4
        %v7296 = vshll.u32 %v7139, 16
        %v7298 = vrot.slane %v7296, 5
        %v7299 = vsel %vm718, %v7294, %v7298
        %v7301 = vshrl.u32 %v7140, 16
        %v7303 = vrot.slane %v7301, 4
        %v7304 = vshll.u32 %v7140, 16
        %v7306 = vrot.slane %v7304, 5
        %v7307 = vor.u32 %v7303, %v7306
        %v7308 = vrot.slane %v7307, 4
        %v7310 = vshll.u32 %v7141, 16
        %v7312 = vrot.slane %v7310, 5
        %v7313 = vsel %vm718, %v7308, %v7312
        %v7315 = vshrl.u32 %v7142, 16
        %v7317 = vrot.slane %v7315, 4
        %v7318 = vshll.u32 %v7142, 16
        %v7320 = vrot.slane %v7318, 5
        %v7321 = vor.u32 %v7317, %v7320
        %v7322 = vrot.slane %v7321, 4
        %v7324 = vshll.u32 %v7143, 16
        %v7326 = vrot.slane %v7324, 5
        %v7327 = vsel %vm718, %v7322, %v7326
        %v7329 = vshrl.u32 %v7144, 16
        %v7331 = vrot.slane %v7329, 4
        %v7332 = vshll.u32 %v7144, 16
        %v7334 = vrot.slane %v7332, 5
        %v7335 = vor.u32 %v7331, %v7334
        %v7336 = vrot.slane %v7335, 4
        %v7338 = vshll.u32 %v7145, 16
        %v7340 = vrot.slane %v7338, 5
        %v7341 = vsel %vm718, %v7336, %v7340
        %v7343 = vshrl.u32 %v7146, 16
        %v7345 = vrot.slane %v7343, 4
        %v7346 = vshll.u32 %v7146, 16
        %v7348 = vrot.slane %v7346, 5
        %v7349 = vor.u32 %v7345, %v7348
        %v7350 = vrot.slane %v7349, 4
        %v7352 = vshll.u32 %v7147, 16
        %v7354 = vrot.slane %v7352, 5
        %v7355 = vsel %vm718, %v7350, %v7354
        %v7357 = vshrl.u32 %v7148, 16
        %v7359 = vrot.slane %v7357, 4
        %v7360 = vshll.u32 %v7148, 16
        %v7362 = vrot.slane %v7360, 5
        %v7363 = vor.u32 %v7359, %v7362
        %v7364 = vrot.slane %v7363, 4
        %v7366 = vshll.u32 %v7149, 16
        %v7368 = vrot.slane %v7366, 5
        %v7369 = vsel %vm718, %v7364, %v7368
        %v7371 = vshrl.u32 %v7150, 16
        %v7373 = vrot.slane %v7371, 4
        %v7374 = vshll.u32 %v7150, 16
        %v7376 = vrot.slane %v7374, 5
        %v7377 = vor.u32 %v7373, %v7376
        %v7378 = vrot.slane %v7377, 4
        %v7380 = vshll.u32 %v7151, 16
        %v7382 = vrot.slane %v7380, 5
        %v7383 = vsel %vm718, %v7378, %v7382
        %v7385 = vshrl.u32 %v7152, 16
        %v7387 = vrot.slane %v7385, 4
        %v7388 = vshll.u32 %v7152, 16
        %v7390 = vrot.slane %v7388, 5
        %v7391 = vor.u32 %v7387, %v7390
        %v7392 = vrot.slane %v7391, 4
        %v7394 = vshll.u32 %v7153, 16
        %v7396 = vrot.slane %v7394, 5
        %v7397 = vsel %vm718, %v7392, %v7396
        %v7399 = vshrl.u32 %v7154, 16
        %v7401 = vrot.slane %v7399, 4
        %v7402 = vshll.u32 %v7154, 16
        %v7404 = vrot.slane %v7402, 5
        %v7405 = vor.u32 %v7401, %v7404
        %v7406 = vrot.slane %v7405, 4
        %v7408 = vshll.u32 %v7155, 16
        %v7410 = vrot.slane %v7408, 5
        %v7411 = vsel %vm718, %v7406, %v7410
        %v7413 = vshrl.u32 %v7156, 16
        %v7415 = vrot.slane %v7413, 4
        %v7416 = vshll.u32 %v7156, 16
        %v7418 = vrot.slane %v7416, 5
        %v7419 = vor.u32 %v7415, %v7418
        %v7420 = vrot.slane %v7419, 4
        %v7422 = vshll.u32 %v7157, 16
        %v7424 = vrot.slane %v7422, 5
        %v7425 = vsel %vm718, %v7420, %v7424
        %v7427 = vshrl.u32 %v7158, 16
        %v7429 = vrot.slane %v7427, 4
        %v7430 = vshll.u32 %v7158, 16
        %v7432 = vrot.slane %v7430, 5
        %v7433 = vor.u32 %v7429, %v7432
        %v7434 = vrot.slane %v7433, 4
        %v7436 = vshll.u32 %v7159, 16
        %v7438 = vrot.slane %v7436, 5
        %v7439 = vsel %vm718, %v7434, %v7438
        %v7441 = vshrl.u32 %v7160, 16
        %v7443 = vrot.slane %v7441, 4
        %v7444 = vshll.u32 %v7160, 16
        %v7446 = vrot.slane %v7444, 5
        %v7447 = vor.u32 %v7443, %v7446
        %v7448 = vrot.slane %v7447, 4
        %v7450 = vshll.u32 %v7161, 16
        %v7452 = vrot.slane %v7450, 5
        %v7453 = vsel %vm718, %v7448, %v7452
        %v7455 = vshrl.u32 %v7162, 16
        %v7457 = vrot.slane %v7455, 4
        %v7458 = vshll.u32 %v7162, 16
        %v7460 = vrot.slane %v7458, 5
        %v7461 = vor.u32 %v7457, %v7460
        %v7462 = vrot.slane %v7461, 4
        %v7464 = vshll.u32 %v7163, 16
        %v7466 = vrot.slane %v7464, 5
        %v7467 = vsel %vm718, %v7462, %v7466
        %v7469 = vshrl.u32 %v7164, 16
        %v7471 = vrot.slane %v7469, 4
        %v7472 = vshll.u32 %v7164, 16
        %v7474 = vrot.slane %v7472, 5
        %v7475 = vor.u32 %v7471, %v7474
        %v7476 = vrot.slane %v7475, 4
        %v7478 = vshll.u32 %v7165, 16
        %v7480 = vrot.slane %v7478, 5
        %v7481 = vsel %vm718, %v7476, %v7480
        %v7483 = vshrl.u32 %v7166, 16
        %v7485 = vrot.slane %v7483, 4
        %v7486 = vshll.u32 %v7166, 16
        %v7488 = vrot.slane %v7486, 5
        %v7489 = vor.u32 %v7485, %v7488
        %v7490 = vrot.slane %v7489, 4
        %v7492 = vshll.u32 %v7167, 16
        %v7494 = vrot.slane %v7492, 5
        %v7495 = vsel %vm718, %v7490, %v7494
        %v7497 = vshrl.u32 %v7168, 16
        %v7499 = vrot.slane %v7497, 4
        %v7500 = vshll.u32 %v7168, 16
        %v7502 = vrot.slane %v7500, 5
        %v7503 = vor.u32 %v7499, %v7502
        %v7504 = vrot.slane %v7503, 4
        %v7506 = vshll.u32 %v7169, 16
        %v7508 = vrot.slane %v7506, 5
        %v7509 = vsel %vm718, %v7504, %v7508
        %v7511 = vshrl.u32 %v7170, 16
        %v7513 = vrot.slane %v7511, 4
        %v7514 = vshll.u32 %v7170, 16
        %v7516 = vrot.slane %v7514, 5
        %v7517 = vor.u32 %v7513, %v7516
        %v7518 = vrot.slane %v7517, 4
        %v7520 = vshll.u32 %v7171, 16
        %v7522 = vrot.slane %v7520, 5
        %v7523 = vsel %vm718, %v7518, %v7522
        %v7525 = vshrl.u32 %v7172, 16
        %v7527 = vrot.slane %v7525, 4
        %v7528 = vshll.u32 %v7172, 16
        %v7530 = vrot.slane %v7528, 5
        %v7531 = vor.u32 %v7527, %v7530
        %v7532 = vrot.slane %v7531, 4
        %v7534 = vshll.u32 %v7173, 16
        %v7536 = vrot.slane %v7534, 5
        %v7537 = vsel %vm718, %v7532, %v7536
        %v7539 = vshrl.u32 %v7174, 16
        %v7541 = vrot.slane %v7539, 4
        %v7542 = vshll.u32 %v7174, 16
        %v7544 = vrot.slane %v7542, 5
        %v7545 = vor.u32 %v7541, %v7544
        %v7546 = vrot.slane %v7545, 4
        %v7548 = vshll.u32 %v7175, 16
        %v7550 = vrot.slane %v7548, 5
        %v7551 = vsel %vm718, %v7546, %v7550
        %v7553 = vshrl.u32 %v7176, 16
        %v7555 = vrot.slane %v7553, 4
        %v7556 = vshll.u32 %v7176, 16
        %v7558 = vrot.slane %v7556, 5
        %v7559 = vor.u32 %v7555, %v7558
        %v7560 = vrot.slane %v7559, 4
        %v7562 = vshll.u32 %v7177, 16
        %v7564 = vrot.slane %v7562, 5
        %v7565 = vsel %vm718, %v7560, %v7564
        %v7567 = vshrl.u32 %v7178, 16
        %v7569 = vrot.slane %v7567, 4
        %v7570 = vshll.u32 %v7178, 16
        %v7572 = vrot.slane %v7570, 5
        %v7573 = vor.u32 %v7569, %v7572
        %v7574 = vrot.slane %v7573, 4
        %v7576 = vshll.u32 %v7179, 16
        %v7578 = vrot.slane %v7576, 5
        %v7579 = vsel %vm718, %v7574, %v7578
        %v7581 = vshrl.u32 %v7180, 16
        %v7583 = vrot.slane %v7581, 4
        %v7584 = vshll.u32 %v7180, 16
        %v7586 = vrot.slane %v7584, 5
        %v7587 = vor.u32 %v7583, %v7586
        %v7588 = vrot.slane %v7587, 4
        %v7590 = vshll.u32 %v7181, 16
        %v7592 = vrot.slane %v7590, 5
        %v7593 = vsel %vm718, %v7588, %v7592
        %v7595 = vshrl.u32 %v7182, 16
        %v7597 = vrot.slane %v7595, 4
        %v7598 = vshll.u32 %v7182, 16
        %v7600 = vrot.slane %v7598, 5
        %v7601 = vor.u32 %v7597, %v7600
        %v7602 = vrot.slane %v7601, 4
        %v7604 = vshll.u32 %v7183, 16
        %v7606 = vrot.slane %v7604, 5
        %v7607 = vsel %vm718, %v7602, %v7606
        %v7609 = vshrl.u32 %v7184, 16
        %v7611 = vrot.slane %v7609, 4
        %v7612 = vshll.u32 %v7184, 16
        %v7614 = vrot.slane %v7612, 5
        %v7615 = vor.u32 %v7611, %v7614
        %v7616 = vrot.slane %v7615, 4
        %v7618 = vshll.u32 %v7185, 16
        %v7620 = vrot.slane %v7618, 5
        %v7621 = vsel %vm718, %v7616, %v7620
        %v7623 = vshrl.u32 %v7186, 16
        %v7625 = vrot.slane %v7623, 4
        %v7626 = vshll.u32 %v7186, 16
        %v7628 = vrot.slane %v7626, 5
        %v7629 = vor.u32 %v7625, %v7628
        %v7630 = vrot.slane %v7629, 4
        %v7632 = vshll.u32 %v7187, 16
        %v7634 = vrot.slane %v7632, 5
        %v7635 = vsel %vm718, %v7630, %v7634
        %s7636 = scalar_lea.vmem %s1, 80
        %v7637 = vld [vmem:[%s7636] sm:$0xf]
        %v7638 = vunpack.c.l.b16 %v7201
        %v7639 = vunpack.c.l.b16 %v7215
        %v7640 = vunpack.c.l.b16 %v7229
        %v7641 = vunpack.c.l.b16 %v7243
        %v7642 = vunpack.c.l.b16 %v7257
        %v7643 = vunpack.c.l.b16 %v7271
        %v7644 = vunpack.c.l.b16 %v7285
        %v7645 = vunpack.c.l.b16 %v7299
        %v7646 = vunpack.c.l.b16 %v7313
        %v7647 = vunpack.c.l.b16 %v7327
        %v7648 = vunpack.c.l.b16 %v7341
        %v7649 = vunpack.c.l.b16 %v7355
        %v7650 = vunpack.c.l.b16 %v7369
        %v7651 = vunpack.c.l.b16 %v7383
        %v7652 = vunpack.c.l.b16 %v7397
        %v7653 = vunpack.c.l.b16 %v7411
        %v7654 = vunpack.c.l.b16 %v7425
        %v7655 = vunpack.c.l.b16 %v7439
        %v7656 = vunpack.c.l.b16 %v7453
        %v7657 = vunpack.c.l.b16 %v7467
        %v7658 = vunpack.c.l.b16 %v7481
        %v7659 = vunpack.c.l.b16 %v7495
        %v7660 = vunpack.c.l.b16 %v7509
        %v7661 = vunpack.c.l.b16 %v7523
        %v7662 = vunpack.c.l.b16 %v7537
        %v7663 = vunpack.c.l.b16 %v7551
        %v7664 = vunpack.c.l.b16 %v7565
        %v7665 = vunpack.c.l.b16 %v7579
        %v7666 = vunpack.c.l.b16 %v7593
        %v7667 = vunpack.c.l.b16 %v7607
        %v7668 = vunpack.c.l.b16 %v7621
        %v7669 = vunpack.c.l.b16 %v7635
        %v7670 = vpack.c.b16 %v7639, %v7638
        %v7671 = vpack.c.b16 %v7641, %v7640
        %v7672 = vpack.c.b16 %v7643, %v7642
        %v7673 = vpack.c.b16 %v7645, %v7644
        %v7674 = vpack.c.b16 %v7647, %v7646
        %v7675 = vpack.c.b16 %v7649, %v7648
        %v7676 = vpack.c.b16 %v7651, %v7650
        %v7677 = vpack.c.b16 %v7653, %v7652
        %v7678 = vpack.c.b16 %v7655, %v7654
        %v7679 = vpack.c.b16 %v7657, %v7656
        %v7680 = vpack.c.b16 %v7659, %v7658
        %v7681 = vpack.c.b16 %v7661, %v7660
        %v7682 = vpack.c.b16 %v7663, %v7662
        %v7683 = vpack.c.b16 %v7665, %v7664
        %v7684 = vpack.c.b16 %v7667, %v7666
        %v7685 = vpack.c.b16 %v7669, %v7668
        %v7687 = vsel %vm387, %v7637, 0
        %v7690 = vsel %vm387, %v7670, 0
        %v7693 = vsel %vm387, %v7671, 0
        %v7696 = vsel %vm387, %v7672, 0
        %v7699 = vsel %vm387, %v7673, 0
        %v7702 = vsel %vm387, %v7674, 0
        %v7705 = vsel %vm387, %v7675, 0
        %v7708 = vsel %vm387, %v7676, 0
        %v7711 = vsel %vm387, %v7677, 0
        %v7714 = vsel %vm387, %v7678, 0
        %v7717 = vsel %vm387, %v7679, 0
        %v7720 = vsel %vm387, %v7680, 0
        %v7723 = vsel %vm387, %v7681, 0
        %v7726 = vsel %vm387, %v7682, 0
        %v7729 = vsel %vm387, %v7683, 0
        %v7732 = vsel %vm387, %v7684, 0
        %v7735 = vsel %vm387, %v7685, 0
        %7737 = vmatprep.subr.bf16.mxu0 0
        %7738 = vmatpush1.bf16.xpose.msra.mxu0 %v7690
        %7739 = vmatprep.subr.bf16.mxu0 0
        %7740 = vmatpush1.bf16.xpose.msra.mxu0 %v7693
        %7741 = vmatprep.subr.bf16.mxu0 0
        %7742 = vmatpush1.bf16.xpose.msra.mxu0 %v7696
        %7743 = vmatprep.subr.bf16.mxu0 0
        %7744 = vmatpush1.bf16.xpose.msra.mxu0 %v7699
        %7745 = vmatprep.subr.bf16.mxu0 0
        %7746 = vmatpush1.bf16.xpose.msra.mxu0 %v7702
        %7747 = vmatprep.subr.bf16.mxu0 0
        %7748 = vmatpush1.bf16.xpose.msra.mxu0 %v7705
        %7749 = vmatprep.subr.bf16.mxu0 0
        %7750 = vmatpush1.bf16.xpose.msra.mxu0 %v7708
        %7751 = vmatprep.subr.bf16.mxu0 0
        %7752 = vmatpush1.bf16.xpose.msra.mxu0 %v7711
        %7753 = vmatprep.subr.bf16.mxu0 0
        %7754 = vmatpush1.bf16.xpose.msra.mxu0 %v7714
        %7755 = vmatprep.subr.bf16.mxu0 0
        %7756 = vmatpush1.bf16.xpose.msra.mxu0 %v7717
        %7757 = vmatprep.subr.bf16.mxu0 0
        %7758 = vmatpush1.bf16.xpose.msra.mxu0 %v7720
        %7759 = vmatprep.subr.bf16.mxu0 0
        %7760 = vmatpush1.bf16.xpose.msra.mxu0 %v7723
        %7761 = vmatprep.subr.bf16.mxu0 0
        %7762 = vmatpush1.bf16.xpose.msra.mxu0 %v7726
        %7763 = vmatprep.subr.bf16.mxu0 0
        %7764 = vmatpush1.bf16.xpose.msra.mxu0 %v7729
        %7765 = vmatprep.subr.bf16.mxu0 0
        %7766 = vmatpush1.bf16.xpose.msra.mxu0 %v7732
        %7767 = vmatprep.subr.bf16.mxu0 0
        %7768 = vmatpush1.bf16.xpose.msra.mxu0 %v7735
        %7769 = vmatprep.mubr.bf16.mxu0 0
        %7770 = vmatmul.mubr.bf16.gmra.mrb[0].mxu0 %v7687
        %v7771 = vpop.f32.mrb[0].mxu0
        %v7772 = vadd.f32 0.0, %v7771
        %v7773 = vpop.f32.mrb[0].mxu0
        %v7774 = vadd.f32 0.0, %v7773
        %v7775 = vpop.f32.mrb[0].mxu0
        %v7776 = vpop.f32.mrb[0].mxu0
        %7777 = vdwg.mxu0
        %v7778 = vadd.f32 %v7122, %v7772
        %v7779 = vadd.f32 %v7123, %v7774
        %s7780 = sadd.s32 %s6702, 324
        %s7781 = smul.addr %s7780, 4
        %s7782 = scalar_lea.vmem %s222, %s7781
        %v7783 = vld [vmem:[%s7782] sm:$0xf]
        %v7784 = vld [vmem:[%s7782 + $0x8] sm:$0xf]
        %v7785 = vld [vmem:[%s7782 + $0x10] sm:$0xf]
        %v7786 = vld [vmem:[%s7782 + $0x18] sm:$0xf]
        %v7787 = vld [vmem:[%s7782 + $0x20] sm:$0xf]
        %v7788 = vld [vmem:[%s7782 + $0x28] sm:$0xf]
        %v7789 = vld [vmem:[%s7782 + $0x30] sm:$0xf]
        %v7790 = vld [vmem:[%s7782 + $0x38] sm:$0xf]
        %v7791 = vld [vmem:[%s7782 + $0x48] sm:$0xf]
        %v7792 = vld [vmem:[%s7782 + $0x50] sm:$0xf]
        %v7793 = vld [vmem:[%s7782 + $0x58] sm:$0xf]
        %v7794 = vld [vmem:[%s7782 + $0x60] sm:$0xf]
        %v7795 = vld [vmem:[%s7782 + $0x68] sm:$0xf]
        %v7796 = vld [vmem:[%s7782 + $0x70] sm:$0xf]
        %v7797 = vld [vmem:[%s7782 + $0x78] sm:$0xf]
        %v7798 = vld [vmem:[%s7782 + $0x80] sm:$0xf]
        %v7799 = vld [vmem:[%s7782 + $0x90] sm:$0xf]
        %v7800 = vld [vmem:[%s7782 + $0x98] sm:$0xf]
        %v7801 = vld [vmem:[%s7782 + $0xa0] sm:$0xf]
        %v7802 = vld [vmem:[%s7782 + $0xa8] sm:$0xf]
        %v7803 = vld [vmem:[%s7782 + $0xb0] sm:$0xf]
        %v7804 = vld [vmem:[%s7782 + $0xb8] sm:$0xf]
        %v7805 = vld [vmem:[%s7782 + $0xc0] sm:$0xf]
        %v7806 = vld [vmem:[%s7782 + $0xc8] sm:$0xf]
        %v7807 = vld [vmem:[%s7782 + $0xd8] sm:$0xf]
        %v7808 = vld [vmem:[%s7782 + $0xe0] sm:$0xf]
        %v7809 = vld [vmem:[%s7782 + $0xe8] sm:$0xf]
        %v7810 = vld [vmem:[%s7782 + $0xf0] sm:$0xf]
        %v7811 = vld [vmem:[%s7782 + $0xf8] sm:$0xf]
        %v7812 = vld [vmem:[%s7782 + $0x100] sm:$0xf]
        %v7813 = vld [vmem:[%s7782 + $0x108] sm:$0xf]
        %v7814 = vld [vmem:[%s7782 + $0x110] sm:$0xf]
        %s7815 = scalar_lea.vmem %s1, 84
        %v7816 = vld [vmem:[%s7815] sm:$0xf]
        %v7849 = vunpack.c.l.b16 %v7783
        %v7850 = vunpack.c.l.b16 %v7784
        %v7851 = vunpack.c.l.b16 %v7785
        %v7852 = vunpack.c.l.b16 %v7786
        %v7853 = vunpack.c.l.b16 %v7787
        %v7854 = vunpack.c.l.b16 %v7788
        %v7855 = vunpack.c.l.b16 %v7789
        %v7856 = vunpack.c.l.b16 %v7790
        %v7857 = vunpack.c.l.b16 %v7791
        %v7858 = vunpack.c.l.b16 %v7792
        %v7859 = vunpack.c.l.b16 %v7793
        %v7860 = vunpack.c.l.b16 %v7794
        %v7861 = vunpack.c.l.b16 %v7795
        %v7862 = vunpack.c.l.b16 %v7796
        %v7863 = vunpack.c.l.b16 %v7797
        %v7864 = vunpack.c.l.b16 %v7798
        %v7865 = vunpack.c.l.b16 %v7799
        %v7866 = vunpack.c.l.b16 %v7800
        %v7867 = vunpack.c.l.b16 %v7801
        %v7868 = vunpack.c.l.b16 %v7802
        %v7869 = vunpack.c.l.b16 %v7803
        %v7870 = vunpack.c.l.b16 %v7804
        %v7871 = vunpack.c.l.b16 %v7805
        %v7872 = vunpack.c.l.b16 %v7806
        %v7873 = vunpack.c.l.b16 %v7807
        %v7874 = vunpack.c.l.b16 %v7808
        %v7875 = vunpack.c.l.b16 %v7809
        %v7876 = vunpack.c.l.b16 %v7810
        %v7877 = vunpack.c.l.b16 %v7811
        %v7878 = vunpack.c.l.b16 %v7812
        %v7879 = vunpack.c.l.b16 %v7813
        %v7880 = vunpack.c.l.b16 %v7814
        %v7881 = vpack.c.b16 %v7850, %v7849
        %v7882 = vpack.c.b16 %v7852, %v7851
        %v7883 = vpack.c.b16 %v7854, %v7853
        %v7884 = vpack.c.b16 %v7856, %v7855
        %v7885 = vpack.c.b16 %v7858, %v7857
        %v7886 = vpack.c.b16 %v7860, %v7859
        %v7887 = vpack.c.b16 %v7862, %v7861
        %v7888 = vpack.c.b16 %v7864, %v7863
        %v7889 = vpack.c.b16 %v7866, %v7865
        %v7890 = vpack.c.b16 %v7868, %v7867
        %v7891 = vpack.c.b16 %v7870, %v7869
        %v7892 = vpack.c.b16 %v7872, %v7871
        %v7893 = vpack.c.b16 %v7874, %v7873
        %v7894 = vpack.c.b16 %v7876, %v7875
        %v7895 = vpack.c.b16 %v7878, %v7877
        %v7896 = vpack.c.b16 %v7880, %v7879
        %v7898 = vsel %vm387, %v7816, 0
        %v7901 = vsel %vm387, %v7881, 0
        %v7904 = vsel %vm387, %v7882, 0
        %v7907 = vsel %vm387, %v7883, 0
        %v7910 = vsel %vm387, %v7884, 0
        %v7913 = vsel %vm387, %v7885, 0
        %v7916 = vsel %vm387, %v7886, 0
        %v7919 = vsel %vm387, %v7887, 0
        %v7922 = vsel %vm387, %v7888, 0
        %v7925 = vsel %vm387, %v7889, 0
        %v7928 = vsel %vm387, %v7890, 0
        %v7931 = vsel %vm387, %v7891, 0
        %v7934 = vsel %vm387, %v7892, 0
        %v7937 = vsel %vm387, %v7893, 0
        %v7940 = vsel %vm387, %v7894, 0
        %v7943 = vsel %vm387, %v7895, 0
        %v7946 = vsel %vm387, %v7896, 0
        %7948 = vmatprep.subr.bf16.mxu0 0
        %7949 = vmatpush1.bf16.xpose.msra.mxu0 %v7901
        %7950 = vmatprep.subr.bf16.mxu0 0
        %7951 = vmatpush1.bf16.xpose.msra.mxu0 %v7904
        %7952 = vmatprep.subr.bf16.mxu0 0
        %7953 = vmatpush1.bf16.xpose.msra.mxu0 %v7907
        %7954 = vmatprep.subr.bf16.mxu0 0
        %7955 = vmatpush1.bf16.xpose.msra.mxu0 %v7910
        %7956 = vmatprep.subr.bf16.mxu0 0
        %7957 = vmatpush1.bf16.xpose.msra.mxu0 %v7913
        %7958 = vmatprep.subr.bf16.mxu0 0
        %7959 = vmatpush1.bf16.xpose.msra.mxu0 %v7916
        %7960 = vmatprep.subr.bf16.mxu0 0
        %7961 = vmatpush1.bf16.xpose.msra.mxu0 %v7919
        %7962 = vmatprep.subr.bf16.mxu0 0
        %7963 = vmatpush1.bf16.xpose.msra.mxu0 %v7922
        %7964 = vmatprep.subr.bf16.mxu0 0
        %7965 = vmatpush1.bf16.xpose.msra.mxu0 %v7925
        %7966 = vmatprep.subr.bf16.mxu0 0
        %7967 = vmatpush1.bf16.xpose.msra.mxu0 %v7928
        %7968 = vmatprep.subr.bf16.mxu0 0
        %7969 = vmatpush1.bf16.xpose.msra.mxu0 %v7931
        %7970 = vmatprep.subr.bf16.mxu0 0
        %7971 = vmatpush1.bf16.xpose.msra.mxu0 %v7934
        %7972 = vmatprep.subr.bf16.mxu0 0
        %7973 = vmatpush1.bf16.xpose.msra.mxu0 %v7937
        %7974 = vmatprep.subr.bf16.mxu0 0
        %7975 = vmatpush1.bf16.xpose.msra.mxu0 %v7940
        %7976 = vmatprep.subr.bf16.mxu0 0
        %7977 = vmatpush1.bf16.xpose.msra.mxu0 %v7943
        %7978 = vmatprep.subr.bf16.mxu0 0
        %7979 = vmatpush1.bf16.xpose.msra.mxu0 %v7946
        %7980 = vmatprep.mubr.bf16.mxu0 0
        %7981 = vmatmul.mubr.bf16.gmra.mrb[0].mxu0 %v7898
        %v7982 = vpop.f32.mrb[0].mxu0
        %v7983 = vadd.f32 0.0, %v7982
        %v7984 = vpop.f32.mrb[0].mxu0
        %v7985 = vadd.f32 0.0, %v7984
        %v7986 = vpop.f32.mrb[0].mxu0
        %v7987 = vpop.f32.mrb[0].mxu0
        %7988 = vdwg.mxu0
        %v7989 = vadd.f32 %v7778, %v7983
        %v7990 = vadd.f32 %v7779, %v7985
        %s7991 = sadd.s32 %s6702, 486
        %s7992 = smul.addr %s7991, 4
        %s7993 = scalar_lea.vmem %s222, %s7992
        %v7994 = vld [vmem:[%s7993] sm:$0xf]
        %v7995 = vld [vmem:[%s7993 + $0x8] sm:$0xf]
        %v7996 = vld [vmem:[%s7993 + $0x10] sm:$0xf]
        %v7997 = vld [vmem:[%s7993 + $0x18] sm:$0xf]
        %v7998 = vld [vmem:[%s7993 + $0x20] sm:$0xf]
        %v7999 = vld [vmem:[%s7993 + $0x28] sm:$0xf]
        %v8000 = vld [vmem:[%s7993 + $0x30] sm:$0xf]
        %v8001 = vld [vmem:[%s7993 + $0x38] sm:$0xf]
        %v8002 = vld [vmem:[%s7993 + $0x48] sm:$0xf]
        %v8003 = vld [vmem:[%s7993 + $0x50] sm:$0xf]
        %v8004 = vld [vmem:[%s7993 + $0x58] sm:$0xf]
        %v8005 = vld [vmem:[%s7993 + $0x60] sm:$0xf]
        %v8006 = vld [vmem:[%s7993 + $0x68] sm:$0xf]
        %v8007 = vld [vmem:[%s7993 + $0x70] sm:$0xf]
        %v8008 = vld [vmem:[%s7993 + $0x78] sm:$0xf]
        %v8009 = vld [vmem:[%s7993 + $0x80] sm:$0xf]
        %v8010 = vld [vmem:[%s7993 + $0x90] sm:$0xf]
        %v8011 = vld [vmem:[%s7993 + $0x98] sm:$0xf]
        %v8012 = vld [vmem:[%s7993 + $0xa0] sm:$0xf]
        %v8013 = vld [vmem:[%s7993 + $0xa8] sm:$0xf]
        %v8014 = vld [vmem:[%s7993 + $0xb0] sm:$0xf]
        %v8015 = vld [vmem:[%s7993 + $0xb8] sm:$0xf]
        %v8016 = vld [vmem:[%s7993 + $0xc0] sm:$0xf]
        %v8017 = vld [vmem:[%s7993 + $0xc8] sm:$0xf]
        %v8018 = vld [vmem:[%s7993 + $0xd8] sm:$0xf]
        %v8019 = vld [vmem:[%s7993 + $0xe0] sm:$0xf]
        %v8020 = vld [vmem:[%s7993 + $0xe8] sm:$0xf]
        %v8021 = vld [vmem:[%s7993 + $0xf0] sm:$0xf]
        %v8022 = vld [vmem:[%s7993 + $0xf8] sm:$0xf]
        %v8023 = vld [vmem:[%s7993 + $0x100] sm:$0xf]
        %v8024 = vld [vmem:[%s7993 + $0x108] sm:$0xf]
        %v8025 = vld [vmem:[%s7993 + $0x110] sm:$0xf]
        %s8026 = scalar_lea.vmem %s1, 88
        %v8027 = vld [vmem:[%s8026] sm:$0xf]
        %v8060 = vunpack.c.l.b16 %v7994
        %v8061 = vunpack.c.l.b16 %v7995
        %v8062 = vunpack.c.l.b16 %v7996
        %v8063 = vunpack.c.l.b16 %v7997
        %v8064 = vunpack.c.l.b16 %v7998
        %v8065 = vunpack.c.l.b16 %v7999
        %v8066 = vunpack.c.l.b16 %v8000
        %v8067 = vunpack.c.l.b16 %v8001
        %v8068 = vunpack.c.l.b16 %v8002
        %v8069 = vunpack.c.l.b16 %v8003
        %v8070 = vunpack.c.l.b16 %v8004
        %v8071 = vunpack.c.l.b16 %v8005
        %v8072 = vunpack.c.l.b16 %v8006
        %v8073 = vunpack.c.l.b16 %v8007
        %v8074 = vunpack.c.l.b16 %v8008
        %v8075 = vunpack.c.l.b16 %v8009
        %v8076 = vunpack.c.l.b16 %v8010
        %v8077 = vunpack.c.l.b16 %v8011
        %v8078 = vunpack.c.l.b16 %v8012
        %v8079 = vunpack.c.l.b16 %v8013
        %v8080 = vunpack.c.l.b16 %v8014
        %v8081 = vunpack.c.l.b16 %v8015
        %v8082 = vunpack.c.l.b16 %v8016
        %v8083 = vunpack.c.l.b16 %v8017
        %v8084 = vunpack.c.l.b16 %v8018
        %v8085 = vunpack.c.l.b16 %v8019
        %v8086 = vunpack.c.l.b16 %v8020
        %v8087 = vunpack.c.l.b16 %v8021
        %v8088 = vunpack.c.l.b16 %v8022
        %v8089 = vunpack.c.l.b16 %v8023
        %v8090 = vunpack.c.l.b16 %v8024
        %v8091 = vunpack.c.l.b16 %v8025
        %v8092 = vpack.c.b16 %v8061, %v8060
        %v8093 = vpack.c.b16 %v8063, %v8062
        %v8094 = vpack.c.b16 %v8065, %v8064
        %v8095 = vpack.c.b16 %v8067, %v8066
        %v8096 = vpack.c.b16 %v8069, %v8068
        %v8097 = vpack.c.b16 %v8071, %v8070
        %v8098 = vpack.c.b16 %v8073, %v8072
        %v8099 = vpack.c.b16 %v8075, %v8074
        %v8100 = vpack.c.b16 %v8077, %v8076
        %v8101 = vpack.c.b16 %v8079, %v8078
        %v8102 = vpack.c.b16 %v8081, %v8080
        %v8103 = vpack.c.b16 %v8083, %v8082
        %v8104 = vpack.c.b16 %v8085, %v8084
        %v8105 = vpack.c.b16 %v8087, %v8086
        %v8106 = vpack.c.b16 %v8089, %v8088
        %v8107 = vpack.c.b16 %v8091, %v8090
        %v8109 = vsel %vm387, %v8027, 0
        %v8112 = vsel %vm387, %v8092, 0
        %v8115 = vsel %vm387, %v8093, 0
        %v8118 = vsel %vm387, %v8094, 0
        %v8121 = vsel %vm387, %v8095, 0
        %v8124 = vsel %vm387, %v8096, 0
        %v8127 = vsel %vm387, %v8097, 0
        %v8130 = vsel %vm387, %v8098, 0
        %v8133 = vsel %vm387, %v8099, 0
        %v8136 = vsel %vm387, %v8100, 0
        %v8139 = vsel %vm387, %v8101, 0
        %v8142 = vsel %vm387, %v8102, 0
        %v8145 = vsel %vm387, %v8103, 0
        %v8148 = vsel %vm387, %v8104, 0
        %v8151 = vsel %vm387, %v8105, 0
        %v8154 = vsel %vm387, %v8106, 0
        %v8157 = vsel %vm387, %v8107, 0
        %8159 = vmatprep.subr.bf16.mxu0 0
        %8160 = vmatpush1.bf16.xpose.msra.mxu0 %v8112
        %8161 = vmatprep.subr.bf16.mxu0 0
        %8162 = vmatpush1.bf16.xpose.msra.mxu0 %v8115
        %8163 = vmatprep.subr.bf16.mxu0 0
        %8164 = vmatpush1.bf16.xpose.msra.mxu0 %v8118
        %8165 = vmatprep.subr.bf16.mxu0 0
        %8166 = vmatpush1.bf16.xpose.msra.mxu0 %v8121
        %8167 = vmatprep.subr.bf16.mxu0 0
        %8168 = vmatpush1.bf16.xpose.msra.mxu0 %v8124
        %8169 = vmatprep.subr.bf16.mxu0 0
        %8170 = vmatpush1.bf16.xpose.msra.mxu0 %v8127
        %8171 = vmatprep.subr.bf16.mxu0 0
        %8172 = vmatpush1.bf16.xpose.msra.mxu0 %v8130
        %8173 = vmatprep.subr.bf16.mxu0 0
        %8174 = vmatpush1.bf16.xpose.msra.mxu0 %v8133
        %8175 = vmatprep.subr.bf16.mxu0 0
        %8176 = vmatpush1.bf16.xpose.msra.mxu0 %v8136
        %8177 = vmatprep.subr.bf16.mxu0 0
        %8178 = vmatpush1.bf16.xpose.msra.mxu0 %v8139
        %8179 = vmatprep.subr.bf16.mxu0 0
        %8180 = vmatpush1.bf16.xpose.msra.mxu0 %v8142
        %8181 = vmatprep.subr.bf16.mxu0 0
        %8182 = vmatpush1.bf16.xpose.msra.mxu0 %v8145
        %8183 = vmatprep.subr.bf16.mxu0 0
        %8184 = vmatpush1.bf16.xpose.msra.mxu0 %v8148
        %8185 = vmatprep.subr.bf16.mxu0 0
        %8186 = vmatpush1.bf16.xpose.msra.mxu0 %v8151
        %8187 = vmatprep.subr.bf16.mxu0 0
        %8188 = vmatpush1.bf16.xpose.msra.mxu0 %v8154
        %8189 = vmatprep.subr.bf16.mxu0 0
        %8190 = vmatpush1.bf16.xpose.msra.mxu0 %v8157
        %8191 = vmatprep.mubr.bf16.mxu0 0
        %8192 = vmatmul.mubr.bf16.gmra.mrb[0].mxu0 %v8109
        %v8193 = vpop.f32.mrb[0].mxu0
        %v8194 = vadd.f32 0.0, %v8193
        %v8195 = vpop.f32.mrb[0].mxu0
        %v8196 = vadd.f32 0.0, %v8195
        %v8197 = vpop.f32.mrb[0].mxu0
        %v8198 = vpop.f32.mrb[0].mxu0
        %8199 = vdwg.mxu0
        %v8200 = vadd.f32 %v7989, %v8194
        %v8201 = vadd.f32 %v7990, %v8196
        %v8202 = vld [vmem:[%s7782] sm:$0xf]
        %v8203 = vld [vmem:[%s7782 + $0x4] sm:$0x1]
        %v8204 = vld [vmem:[%s7782 + $0x8] sm:$0xf]
        %v8205 = vld [vmem:[%s7782 + $0xc] sm:$0x1]
        %v8206 = vld [vmem:[%s7782 + $0x10] sm:$0xf]
        %v8207 = vld [vmem:[%s7782 + $0x14] sm:$0x1]
        %v8208 = vld [vmem:[%s7782 + $0x18] sm:$0xf]
        %v8209 = vld [vmem:[%s7782 + $0x1c] sm:$0x1]
        %v8210 = vld [vmem:[%s7782 + $0x20] sm:$0xf]
        %v8211 = vld [vmem:[%s7782 + $0x24] sm:$0x1]
        %v8212 = vld [vmem:[%s7782 + $0x28] sm:$0xf]
        %v8213 = vld [vmem:[%s7782 + $0x2c] sm:$0x1]
        %v8214 = vld [vmem:[%s7782 + $0x30] sm:$0xf]
        %v8215 = vld [vmem:[%s7782 + $0x34] sm:$0x1]
        %v8216 = vld [vmem:[%s7782 + $0x38] sm:$0xf]
        %v8217 = vld [vmem:[%s7782 + $0x3c] sm:$0x1]
        %v8218 = vld [vmem:[%s7782 + $0x48] sm:$0xf]
        %v8219 = vld [vmem:[%s7782 + $0x4c] sm:$0x1]
        %v8220 = vld [vmem:[%s7782 + $0x50] sm:$0xf]
        %v8221 = vld [vmem:[%s7782 + $0x54] sm:$0x1]
        %v8222 = vld [vmem:[%s7782 + $0x58] sm:$0xf]
        %v8223 = vld [vmem:[%s7782 + $0x5c] sm:$0x1]
        %v8224 = vld [vmem:[%s7782 + $0x60] sm:$0xf]
        %v8225 = vld [vmem:[%s7782 + $0x64] sm:$0x1]
        %v8226 = vld [vmem:[%s7782 + $0x68] sm:$0xf]
        %v8227 = vld [vmem:[%s7782 + $0x6c] sm:$0x1]
        %v8228 = vld [vmem:[%s7782 + $0x70] sm:$0xf]
        %v8229 = vld [vmem:[%s7782 + $0x74] sm:$0x1]
        %v8230 = vld [vmem:[%s7782 + $0x78] sm:$0xf]
        %v8231 = vld [vmem:[%s7782 + $0x7c] sm:$0x1]
        %v8232 = vld [vmem:[%s7782 + $0x80] sm:$0xf]
        %v8233 = vld [vmem:[%s7782 + $0x84] sm:$0x1]
        %v8234 = vld [vmem:[%s7782 + $0x90] sm:$0xf]
        %v8235 = vld [vmem:[%s7782 + $0x94] sm:$0x1]
        %v8236 = vld [vmem:[%s7782 + $0x98] sm:$0xf]
        %v8237 = vld [vmem:[%s7782 + $0x9c] sm:$0x1]
        %v8238 = vld [vmem:[%s7782 + $0xa0] sm:$0xf]
        %v8239 = vld [vmem:[%s7782 + $0xa4] sm:$0x1]
        %v8240 = vld [vmem:[%s7782 + $0xa8] sm:$0xf]
        %v8241 = vld [vmem:[%s7782 + $0xac] sm:$0x1]
        %v8242 = vld [vmem:[%s7782 + $0xb0] sm:$0xf]
        %v8243 = vld [vmem:[%s7782 + $0xb4] sm:$0x1]
        %v8244 = vld [vmem:[%s7782 + $0xb8] sm:$0xf]
        %v8245 = vld [vmem:[%s7782 + $0xbc] sm:$0x1]
        %v8246 = vld [vmem:[%s7782 + $0xc0] sm:$0xf]
        %v8247 = vld [vmem:[%s7782 + $0xc4] sm:$0x1]
        %v8248 = vld [vmem:[%s7782 + $0xc8] sm:$0xf]
        %v8249 = vld [vmem:[%s7782 + $0xcc] sm:$0x1]
        %v8250 = vld [vmem:[%s7782 + $0xd8] sm:$0xf]
        %v8251 = vld [vmem:[%s7782 + $0xdc] sm:$0x1]
        %v8252 = vld [vmem:[%s7782 + $0xe0] sm:$0xf]
        %v8253 = vld [vmem:[%s7782 + $0xe4] sm:$0x1]
        %v8254 = vld [vmem:[%s7782 + $0xe8] sm:$0xf]
        %v8255 = vld [vmem:[%s7782 + $0xec] sm:$0x1]
        %v8256 = vld [vmem:[%s7782 + $0xf0] sm:$0xf]
        %v8257 = vld [vmem:[%s7782 + $0xf4] sm:$0x1]
        %v8258 = vld [vmem:[%s7782 + $0xf8] sm:$0xf]
        %v8259 = vld [vmem:[%s7782 + $0xfc] sm:$0x1]
        %v8260 = vld [vmem:[%s7782 + $0x100] sm:$0xf]
        %v8261 = vld [vmem:[%s7782 + $0x104] sm:$0x1]
        %v8262 = vld [vmem:[%s7782 + $0x108] sm:$0xf]
        %v8263 = vld [vmem:[%s7782 + $0x10c] sm:$0x1]
        %v8264 = vld [vmem:[%s7782 + $0x110] sm:$0xf]
        %v8265 = vld [vmem:[%s7782 + $0x114] sm:$0x1]
        %v8267 = vshrl.u32 %v8202, 16
        %v8269 = vrot.slane %v8267, 4
        %v8270 = vshll.u32 %v8202, 16
        %v8272 = vrot.slane %v8270, 5
        %v8273 = vor.u32 %v8269, %v8272
        %v8274 = vrot.slane %v8273, 4
        %v8276 = vshll.u32 %v8203, 16
        %v8278 = vrot.slane %v8276, 5
        %v8279 = vsel %vm718, %v8274, %v8278
        %v8281 = vshrl.u32 %v8204, 16
        %v8283 = vrot.slane %v8281, 4
        %v8284 = vshll.u32 %v8204, 16
        %v8286 = vrot.slane %v8284, 5
        %v8287 = vor.u32 %v8283, %v8286
        %v8288 = vrot.slane %v8287, 4
        %v8290 = vshll.u32 %v8205, 16
        %v8292 = vrot.slane %v8290, 5
        %v8293 = vsel %vm718, %v8288, %v8292
        %v8295 = vshrl.u32 %v8206, 16
        %v8297 = vrot.slane %v8295, 4
        %v8298 = vshll.u32 %v8206, 16
        %v8300 = vrot.slane %v8298, 5
        %v8301 = vor.u32 %v8297, %v8300
        %v8302 = vrot.slane %v8301, 4
        %v8304 = vshll.u32 %v8207, 16
        %v8306 = vrot.slane %v8304, 5
        %v8307 = vsel %vm718, %v8302, %v8306
        %v8309 = vshrl.u32 %v8208, 16
        %v8311 = vrot.slane %v8309, 4
        %v8312 = vshll.u32 %v8208, 16
        %v8314 = vrot.slane %v8312, 5
        %v8315 = vor.u32 %v8311, %v8314
        %v8316 = vrot.slane %v8315, 4
        %v8318 = vshll.u32 %v8209, 16
        %v8320 = vrot.slane %v8318, 5
        %v8321 = vsel %vm718, %v8316, %v8320
        %v8323 = vshrl.u32 %v8210, 16
        %v8325 = vrot.slane %v8323, 4
        %v8326 = vshll.u32 %v8210, 16
        %v8328 = vrot.slane %v8326, 5
        %v8329 = vor.u32 %v8325, %v8328
        %v8330 = vrot.slane %v8329, 4
        %v8332 = vshll.u32 %v8211, 16
        %v8334 = vrot.slane %v8332, 5
        %v8335 = vsel %vm718, %v8330, %v8334
        %v8337 = vshrl.u32 %v8212, 16
        %v8339 = vrot.slane %v8337, 4
        %v8340 = vshll.u32 %v8212, 16
        %v8342 = vrot.slane %v8340, 5
        %v8343 = vor.u32 %v8339, %v8342
        %v8344 = vrot.slane %v8343, 4
        %v8346 = vshll.u32 %v8213, 16
        %v8348 = vrot.slane %v8346, 5
        %v8349 = vsel %vm718, %v8344, %v8348
        %v8351 = vshrl.u32 %v8214, 16
        %v8353 = vrot.slane %v8351, 4
        %v8354 = vshll.u32 %v8214, 16
        %v8356 = vrot.slane %v8354, 5
        %v8357 = vor.u32 %v8353, %v8356
        %v8358 = vrot.slane %v8357, 4
        %v8360 = vshll.u32 %v8215, 16
        %v8362 = vrot.slane %v8360, 5
        %v8363 = vsel %vm718, %v8358, %v8362
        %v8365 = vshrl.u32 %v8216, 16
        %v8367 = vrot.slane %v8365, 4
        %v8368 = vshll.u32 %v8216, 16
        %v8370 = vrot.slane %v8368, 5
        %v8371 = vor.u32 %v8367, %v8370
        %v8372 = vrot.slane %v8371, 4
        %v8374 = vshll.u32 %v8217, 16
        %v8376 = vrot.slane %v8374, 5
        %v8377 = vsel %vm718, %v8372, %v8376
        %v8379 = vshrl.u32 %v8218, 16
        %v8381 = vrot.slane %v8379, 4
        %v8382 = vshll.u32 %v8218, 16
        %v8384 = vrot.slane %v8382, 5
        %v8385 = vor.u32 %v8381, %v8384
        %v8386 = vrot.slane %v8385, 4
        %v8388 = vshll.u32 %v8219, 16
        %v8390 = vrot.slane %v8388, 5
        %v8391 = vsel %vm718, %v8386, %v8390
        %v8393 = vshrl.u32 %v8220, 16
        %v8395 = vrot.slane %v8393, 4
        %v8396 = vshll.u32 %v8220, 16
        %v8398 = vrot.slane %v8396, 5
        %v8399 = vor.u32 %v8395, %v8398
        %v8400 = vrot.slane %v8399, 4
        %v8402 = vshll.u32 %v8221, 16
        %v8404 = vrot.slane %v8402, 5
        %v8405 = vsel %vm718, %v8400, %v8404
        %v8407 = vshrl.u32 %v8222, 16
        %v8409 = vrot.slane %v8407, 4
        %v8410 = vshll.u32 %v8222, 16
        %v8412 = vrot.slane %v8410, 5
        %v8413 = vor.u32 %v8409, %v8412
        %v8414 = vrot.slane %v8413, 4
        %v8416 = vshll.u32 %v8223, 16
        %v8418 = vrot.slane %v8416, 5
        %v8419 = vsel %vm718, %v8414, %v8418
        %v8421 = vshrl.u32 %v8224, 16
        %v8423 = vrot.slane %v8421, 4
        %v8424 = vshll.u32 %v8224, 16
        %v8426 = vrot.slane %v8424, 5
        %v8427 = vor.u32 %v8423, %v8426
        %v8428 = vrot.slane %v8427, 4
        %v8430 = vshll.u32 %v8225, 16
        %v8432 = vrot.slane %v8430, 5
        %v8433 = vsel %vm718, %v8428, %v8432
        %v8435 = vshrl.u32 %v8226, 16
        %v8437 = vrot.slane %v8435, 4
        %v8438 = vshll.u32 %v8226, 16
        %v8440 = vrot.slane %v8438, 5
        %v8441 = vor.u32 %v8437, %v8440
        %v8442 = vrot.slane %v8441, 4
        %v8444 = vshll.u32 %v8227, 16
        %v8446 = vrot.slane %v8444, 5
        %v8447 = vsel %vm718, %v8442, %v8446
        %v8449 = vshrl.u32 %v8228, 16
        %v8451 = vrot.slane %v8449, 4
        %v8452 = vshll.u32 %v8228, 16
        %v8454 = vrot.slane %v8452, 5
        %v8455 = vor.u32 %v8451, %v8454
        %v8456 = vrot.slane %v8455, 4
        %v8458 = vshll.u32 %v8229, 16
        %v8460 = vrot.slane %v8458, 5
        %v8461 = vsel %vm718, %v8456, %v8460
        %v8463 = vshrl.u32 %v8230, 16
        %v8465 = vrot.slane %v8463, 4
        %v8466 = vshll.u32 %v8230, 16
        %v8468 = vrot.slane %v8466, 5
        %v8469 = vor.u32 %v8465, %v8468
        %v8470 = vrot.slane %v8469, 4
        %v8472 = vshll.u32 %v8231, 16
        %v8474 = vrot.slane %v8472, 5
        %v8475 = vsel %vm718, %v8470, %v8474
        %v8477 = vshrl.u32 %v8232, 16
        %v8479 = vrot.slane %v8477, 4
        %v8480 = vshll.u32 %v8232, 16
        %v8482 = vrot.slane %v8480, 5
        %v8483 = vor.u32 %v8479, %v8482
        %v8484 = vrot.slane %v8483, 4
        %v8486 = vshll.u32 %v8233, 16
        %v8488 = vrot.slane %v8486, 5
        %v8489 = vsel %vm718, %v8484, %v8488
        %v8491 = vshrl.u32 %v8234, 16
        %v8493 = vrot.slane %v8491, 4
        %v8494 = vshll.u32 %v8234, 16
        %v8496 = vrot.slane %v8494, 5
        %v8497 = vor.u32 %v8493, %v8496
        %v8498 = vrot.slane %v8497, 4
        %v8500 = vshll.u32 %v8235, 16
        %v8502 = vrot.slane %v8500, 5
        %v8503 = vsel %vm718, %v8498, %v8502
        %v8505 = vshrl.u32 %v8236, 16
        %v8507 = vrot.slane %v8505, 4
        %v8508 = vshll.u32 %v8236, 16
        %v8510 = vrot.slane %v8508, 5
        %v8511 = vor.u32 %v8507, %v8510
        %v8512 = vrot.slane %v8511, 4
        %v8514 = vshll.u32 %v8237, 16
        %v8516 = vrot.slane %v8514, 5
        %v8517 = vsel %vm718, %v8512, %v8516
        %v8519 = vshrl.u32 %v8238, 16
        %v8521 = vrot.slane %v8519, 4
        %v8522 = vshll.u32 %v8238, 16
        %v8524 = vrot.slane %v8522, 5
        %v8525 = vor.u32 %v8521, %v8524
        %v8526 = vrot.slane %v8525, 4
        %v8528 = vshll.u32 %v8239, 16
        %v8530 = vrot.slane %v8528, 5
        %v8531 = vsel %vm718, %v8526, %v8530
        %v8533 = vshrl.u32 %v8240, 16
        %v8535 = vrot.slane %v8533, 4
        %v8536 = vshll.u32 %v8240, 16
        %v8538 = vrot.slane %v8536, 5
        %v8539 = vor.u32 %v8535, %v8538
        %v8540 = vrot.slane %v8539, 4
        %v8542 = vshll.u32 %v8241, 16
        %v8544 = vrot.slane %v8542, 5
        %v8545 = vsel %vm718, %v8540, %v8544
        %v8547 = vshrl.u32 %v8242, 16
        %v8549 = vrot.slane %v8547, 4
        %v8550 = vshll.u32 %v8242, 16
        %v8552 = vrot.slane %v8550, 5
        %v8553 = vor.u32 %v8549, %v8552
        %v8554 = vrot.slane %v8553, 4
        %v8556 = vshll.u32 %v8243, 16
        %v8558 = vrot.slane %v8556, 5
        %v8559 = vsel %vm718, %v8554, %v8558
        %v8561 = vshrl.u32 %v8244, 16
        %v8563 = vrot.slane %v8561, 4
        %v8564 = vshll.u32 %v8244, 16
        %v8566 = vrot.slane %v8564, 5
        %v8567 = vor.u32 %v8563, %v8566
        %v8568 = vrot.slane %v8567, 4
        %v8570 = vshll.u32 %v8245, 16
        %v8572 = vrot.slane %v8570, 5
        %v8573 = vsel %vm718, %v8568, %v8572
        %v8575 = vshrl.u32 %v8246, 16
        %v8577 = vrot.slane %v8575, 4
        %v8578 = vshll.u32 %v8246, 16
        %v8580 = vrot.slane %v8578, 5
        %v8581 = vor.u32 %v8577, %v8580
        %v8582 = vrot.slane %v8581, 4
        %v8584 = vshll.u32 %v8247, 16
        %v8586 = vrot.slane %v8584, 5
        %v8587 = vsel %vm718, %v8582, %v8586
        %v8589 = vshrl.u32 %v8248, 16
        %v8591 = vrot.slane %v8589, 4
        %v8592 = vshll.u32 %v8248, 16
        %v8594 = vrot.slane %v8592, 5
        %v8595 = vor.u32 %v8591, %v8594
        %v8596 = vrot.slane %v8595, 4
        %v8598 = vshll.u32 %v8249, 16
        %v8600 = vrot.slane %v8598, 5
        %v8601 = vsel %vm718, %v8596, %v8600
        %v8603 = vshrl.u32 %v8250, 16
        %v8605 = vrot.slane %v8603, 4
        %v8606 = vshll.u32 %v8250, 16
        %v8608 = vrot.slane %v8606, 5
        %v8609 = vor.u32 %v8605, %v8608
        %v8610 = vrot.slane %v8609, 4
        %v8612 = vshll.u32 %v8251, 16
        %v8614 = vrot.slane %v8612, 5
        %v8615 = vsel %vm718, %v8610, %v8614
        %v8617 = vshrl.u32 %v8252, 16
        %v8619 = vrot.slane %v8617, 4
        %v8620 = vshll.u32 %v8252, 16
        %v8622 = vrot.slane %v8620, 5
        %v8623 = vor.u32 %v8619, %v8622
        %v8624 = vrot.slane %v8623, 4
        %v8626 = vshll.u32 %v8253, 16
        %v8628 = vrot.slane %v8626, 5
        %v8629 = vsel %vm718, %v8624, %v8628
        %v8631 = vshrl.u32 %v8254, 16
        %v8633 = vrot.slane %v8631, 4
        %v8634 = vshll.u32 %v8254, 16
        %v8636 = vrot.slane %v8634, 5
        %v8637 = vor.u32 %v8633, %v8636
        %v8638 = vrot.slane %v8637, 4
        %v8640 = vshll.u32 %v8255, 16
        %v8642 = vrot.slane %v8640, 5
        %v8643 = vsel %vm718, %v8638, %v8642
        %v8645 = vshrl.u32 %v8256, 16
        %v8647 = vrot.slane %v8645, 4
        %v8648 = vshll.u32 %v8256, 16
        %v8650 = vrot.slane %v8648, 5
        %v8651 = vor.u32 %v8647, %v8650
        %v8652 = vrot.slane %v8651, 4
        %v8654 = vshll.u32 %v8257, 16
        %v8656 = vrot.slane %v8654, 5
        %v8657 = vsel %vm718, %v8652, %v8656
        %v8659 = vshrl.u32 %v8258, 16
        %v8661 = vrot.slane %v8659, 4
        %v8662 = vshll.u32 %v8258, 16
        %v8664 = vrot.slane %v8662, 5
        %v8665 = vor.u32 %v8661, %v8664
        %v8666 = vrot.slane %v8665, 4
        %v8668 = vshll.u32 %v8259, 16
        %v8670 = vrot.slane %v8668, 5
        %v8671 = vsel %vm718, %v8666, %v8670
        %v8673 = vshrl.u32 %v8260, 16
        %v8675 = vrot.slane %v8673, 4
        %v8676 = vshll.u32 %v8260, 16
        %v8678 = vrot.slane %v8676, 5
        %v8679 = vor.u32 %v8675, %v8678
        %v8680 = vrot.slane %v8679, 4
        %v8682 = vshll.u32 %v8261, 16
        %v8684 = vrot.slane %v8682, 5
        %v8685 = vsel %vm718, %v8680, %v8684
        %v8687 = vshrl.u32 %v8262, 16
        %v8689 = vrot.slane %v8687, 4
        %v8690 = vshll.u32 %v8262, 16
        %v8692 = vrot.slane %v8690, 5
        %v8693 = vor.u32 %v8689, %v8692
        %v8694 = vrot.slane %v8693, 4
        %v8696 = vshll.u32 %v8263, 16
        %v8698 = vrot.slane %v8696, 5
        %v8699 = vsel %vm718, %v8694, %v8698
        %v8701 = vshrl.u32 %v8264, 16
        %v8703 = vrot.slane %v8701, 4
        %v8704 = vshll.u32 %v8264, 16
        %v8706 = vrot.slane %v8704, 5
        %v8707 = vor.u32 %v8703, %v8706
        %v8708 = vrot.slane %v8707, 4
        %v8710 = vshll.u32 %v8265, 16
        %v8712 = vrot.slane %v8710, 5
        %v8713 = vsel %vm718, %v8708, %v8712
        %s8714 = scalar_lea.vmem %s1, 92
        %v8715 = vld [vmem:[%s8714] sm:$0xf]
        %v8716 = vunpack.c.l.b16 %v8279
        %v8717 = vunpack.c.l.b16 %v8293
        %v8718 = vunpack.c.l.b16 %v8307
        %v8719 = vunpack.c.l.b16 %v8321
        %v8720 = vunpack.c.l.b16 %v8335
        %v8721 = vunpack.c.l.b16 %v8349
        %v8722 = vunpack.c.l.b16 %v8363
        %v8723 = vunpack.c.l.b16 %v8377
        %v8724 = vunpack.c.l.b16 %v8391
        %v8725 = vunpack.c.l.b16 %v8405
        %v8726 = vunpack.c.l.b16 %v8419
        %v8727 = vunpack.c.l.b16 %v8433
        %v8728 = vunpack.c.l.b16 %v8447
        %v8729 = vunpack.c.l.b16 %v8461
        %v8730 = vunpack.c.l.b16 %v8475
        %v8731 = vunpack.c.l.b16 %v8489
        %v8732 = vunpack.c.l.b16 %v8503
        %v8733 = vunpack.c.l.b16 %v8517
        %v8734 = vunpack.c.l.b16 %v8531
        %v8735 = vunpack.c.l.b16 %v8545
        %v8736 = vunpack.c.l.b16 %v8559
        %v8737 = vunpack.c.l.b16 %v8573
        %v8738 = vunpack.c.l.b16 %v8587
        %v8739 = vunpack.c.l.b16 %v8601
        %v8740 = vunpack.c.l.b16 %v8615
        %v8741 = vunpack.c.l.b16 %v8629
        %v8742 = vunpack.c.l.b16 %v8643
        %v8743 = vunpack.c.l.b16 %v8657
        %v8744 = vunpack.c.l.b16 %v8671
        %v8745 = vunpack.c.l.b16 %v8685
        %v8746 = vunpack.c.l.b16 %v8699
        %v8747 = vunpack.c.l.b16 %v8713
        %v8748 = vpack.c.b16 %v8717, %v8716
        %v8749 = vpack.c.b16 %v8719, %v8718
        %v8750 = vpack.c.b16 %v8721, %v8720
        %v8751 = vpack.c.b16 %v8723, %v8722
        %v8752 = vpack.c.b16 %v8725, %v8724
        %v8753 = vpack.c.b16 %v8727, %v8726
        %v8754 = vpack.c.b16 %v8729, %v8728
        %v8755 = vpack.c.b16 %v8731, %v8730
        %v8756 = vpack.c.b16 %v8733, %v8732
        %v8757 = vpack.c.b16 %v8735, %v8734
        %v8758 = vpack.c.b16 %v8737, %v8736
        %v8759 = vpack.c.b16 %v8739, %v8738
        %v8760 = vpack.c.b16 %v8741, %v8740
        %v8761 = vpack.c.b16 %v8743, %v8742
        %v8762 = vpack.c.b16 %v8745, %v8744
        %v8763 = vpack.c.b16 %v8747, %v8746
        %v8765 = vsel %vm387, %v8715, 0
        %v8768 = vsel %vm387, %v8748, 0
        %v8771 = vsel %vm387, %v8749, 0
        %v8774 = vsel %vm387, %v8750, 0
        %v8777 = vsel %vm387, %v8751, 0
        %v8780 = vsel %vm387, %v8752, 0
        %v8783 = vsel %vm387, %v8753, 0
        %v8786 = vsel %vm387, %v8754, 0
        %v8789 = vsel %vm387, %v8755, 0
        %v8792 = vsel %vm387, %v8756, 0
        %v8795 = vsel %vm387, %v8757, 0
        %v8798 = vsel %vm387, %v8758, 0
        %v8801 = vsel %vm387, %v8759, 0
        %v8804 = vsel %vm387, %v8760, 0
        %v8807 = vsel %vm387, %v8761, 0
        %v8810 = vsel %vm387, %v8762, 0
        %v8813 = vsel %vm387, %v8763, 0
        %8815 = vmatprep.subr.bf16.mxu0 0
        %8816 = vmatpush1.bf16.xpose.msra.mxu0 %v8768
        %8817 = vmatprep.subr.bf16.mxu0 0
        %8818 = vmatpush1.bf16.xpose.msra.mxu0 %v8771
        %8819 = vmatprep.subr.bf16.mxu0 0
        %8820 = vmatpush1.bf16.xpose.msra.mxu0 %v8774
        %8821 = vmatprep.subr.bf16.mxu0 0
        %8822 = vmatpush1.bf16.xpose.msra.mxu0 %v8777
        %8823 = vmatprep.subr.bf16.mxu0 0
        %8824 = vmatpush1.bf16.xpose.msra.mxu0 %v8780
        %8825 = vmatprep.subr.bf16.mxu0 0
        %8826 = vmatpush1.bf16.xpose.msra.mxu0 %v8783
        %8827 = vmatprep.subr.bf16.mxu0 0
        %8828 = vmatpush1.bf16.xpose.msra.mxu0 %v8786
        %8829 = vmatprep.subr.bf16.mxu0 0
        %8830 = vmatpush1.bf16.xpose.msra.mxu0 %v8789
        %8831 = vmatprep.subr.bf16.mxu0 0
        %8832 = vmatpush1.bf16.xpose.msra.mxu0 %v8792
        %8833 = vmatprep.subr.bf16.mxu0 0
        %8834 = vmatpush1.bf16.xpose.msra.mxu0 %v8795
        %8835 = vmatprep.subr.bf16.mxu0 0
        %8836 = vmatpush1.bf16.xpose.msra.mxu0 %v8798
        %8837 = vmatprep.subr.bf16.mxu0 0
        %8838 = vmatpush1.bf16.xpose.msra.mxu0 %v8801
        %8839 = vmatprep.subr.bf16.mxu0 0
        %8840 = vmatpush1.bf16.xpose.msra.mxu0 %v8804
        %8841 = vmatprep.subr.bf16.mxu0 0
        %8842 = vmatpush1.bf16.xpose.msra.mxu0 %v8807
        %8843 = vmatprep.subr.bf16.mxu0 0
        %8844 = vmatpush1.bf16.xpose.msra.mxu0 %v8810
        %8845 = vmatprep.subr.bf16.mxu0 0
        %8846 = vmatpush1.bf16.xpose.msra.mxu0 %v8813
        %8847 = vmatprep.mubr.bf16.mxu0 0
        %8848 = vmatmul.mubr.bf16.gmra.mrb[0].mxu0 %v8765
        %v8849 = vpop.f32.mrb[0].mxu0
        %v8850 = vadd.f32 0.0, %v8849
        %v8851 = vpop.f32.mrb[0].mxu0
        %v8852 = vadd.f32 0.0, %v8851
        %v8853 = vpop.f32.mrb[0].mxu0
        %v8854 = vpop.f32.mrb[0].mxu0
        %8855 = vdwg.mxu0
        %v8856 = vadd.f32 %v8200, %v8850
        %v8857 = vadd.f32 %v8201, %v8852
        %s8858 = sadd.s32 2, %s6702
        %s8859 = smul.addr %s8858, 4
        %s8860 = scalar_lea.vmem %s222, %s8859
        %v8861 = vld [vmem:[%s8860] sm:$0xf]
        %v8862 = vld [vmem:[%s8860 + $0x8] sm:$0xf]
        %v8863 = vld [vmem:[%s8860 + $0x10] sm:$0xf]
        %v8864 = vld [vmem:[%s8860 + $0x18] sm:$0xf]
        %v8865 = vld [vmem:[%s8860 + $0x20] sm:$0xf]
        %v8866 = vld [vmem:[%s8860 + $0x28] sm:$0xf]
        %v8867 = vld [vmem:[%s8860 + $0x30] sm:$0xf]
        %v8868 = vld [vmem:[%s8860 + $0x38] sm:$0xf]
        %v8869 = vld [vmem:[%s8860 + $0x48] sm:$0xf]
        %v8870 = vld [vmem:[%s8860 + $0x50] sm:$0xf]
        %v8871 = vld [vmem:[%s8860 + $0x58] sm:$0xf]
        %v8872 = vld [vmem:[%s8860 + $0x60] sm:$0xf]
        %v8873 = vld [vmem:[%s8860 + $0x68] sm:$0xf]
        %v8874 = vld [vmem:[%s8860 + $0x70] sm:$0xf]
        %v8875 = vld [vmem:[%s8860 + $0x78] sm:$0xf]
        %v8876 = vld [vmem:[%s8860 + $0x80] sm:$0xf]
        %v8877 = vld [vmem:[%s8860 + $0x90] sm:$0xf]
        %v8878 = vld [vmem:[%s8860 + $0x98] sm:$0xf]
        %v8879 = vld [vmem:[%s8860 + $0xa0] sm:$0xf]
        %v8880 = vld [vmem:[%s8860 + $0xa8] sm:$0xf]
        %v8881 = vld [vmem:[%s8860 + $0xb0] sm:$0xf]
        %v8882 = vld [vmem:[%s8860 + $0xb8] sm:$0xf]
        %v8883 = vld [vmem:[%s8860 + $0xc0] sm:$0xf]
        %v8884 = vld [vmem:[%s8860 + $0xc8] sm:$0xf]
        %v8885 = vld [vmem:[%s8860 + $0xd8] sm:$0xf]
        %v8886 = vld [vmem:[%s8860 + $0xe0] sm:$0xf]
        %v8887 = vld [vmem:[%s8860 + $0xe8] sm:$0xf]
        %v8888 = vld [vmem:[%s8860 + $0xf0] sm:$0xf]
        %v8889 = vld [vmem:[%s8860 + $0xf8] sm:$0xf]
        %v8890 = vld [vmem:[%s8860 + $0x100] sm:$0xf]
        %v8891 = vld [vmem:[%s8860 + $0x108] sm:$0xf]
        %v8892 = vld [vmem:[%s8860 + $0x110] sm:$0xf]
        %s8893 = scalar_lea.vmem %s1, 96
        %v8894 = vld [vmem:[%s8893] sm:$0xf]
        %v8927 = vunpack.c.l.b16 %v8861
        %v8928 = vunpack.c.l.b16 %v8862
        %v8929 = vunpack.c.l.b16 %v8863
        %v8930 = vunpack.c.l.b16 %v8864
        %v8931 = vunpack.c.l.b16 %v8865
        %v8932 = vunpack.c.l.b16 %v8866
        %v8933 = vunpack.c.l.b16 %v8867
        %v8934 = vunpack.c.l.b16 %v8868
        %v8935 = vunpack.c.l.b16 %v8869
        %v8936 = vunpack.c.l.b16 %v8870
        %v8937 = vunpack.c.l.b16 %v8871
        %v8938 = vunpack.c.l.b16 %v8872
        %v8939 = vunpack.c.l.b16 %v8873
        %v8940 = vunpack.c.l.b16 %v8874
        %v8941 = vunpack.c.l.b16 %v8875
        %v8942 = vunpack.c.l.b16 %v8876
        %v8943 = vunpack.c.l.b16 %v8877
        %v8944 = vunpack.c.l.b16 %v8878
        %v8945 = vunpack.c.l.b16 %v8879
        %v8946 = vunpack.c.l.b16 %v8880
        %v8947 = vunpack.c.l.b16 %v8881
        %v8948 = vunpack.c.l.b16 %v8882
        %v8949 = vunpack.c.l.b16 %v8883
        %v8950 = vunpack.c.l.b16 %v8884
        %v8951 = vunpack.c.l.b16 %v8885
        %v8952 = vunpack.c.l.b16 %v8886
        %v8953 = vunpack.c.l.b16 %v8887
        %v8954 = vunpack.c.l.b16 %v8888
        %v8955 = vunpack.c.l.b16 %v8889
        %v8956 = vunpack.c.l.b16 %v8890
        %v8957 = vunpack.c.l.b16 %v8891
        %v8958 = vunpack.c.l.b16 %v8892
        %v8959 = vpack.c.b16 %v8928, %v8927
        %v8960 = vpack.c.b16 %v8930, %v8929
        %v8961 = vpack.c.b16 %v8932, %v8931
        %v8962 = vpack.c.b16 %v8934, %v8933
        %v8963 = vpack.c.b16 %v8936, %v8935
        %v8964 = vpack.c.b16 %v8938, %v8937
        %v8965 = vpack.c.b16 %v8940, %v8939
        %v8966 = vpack.c.b16 %v8942, %v8941
        %v8967 = vpack.c.b16 %v8944, %v8943
        %v8968 = vpack.c.b16 %v8946, %v8945
        %v8969 = vpack.c.b16 %v8948, %v8947
        %v8970 = vpack.c.b16 %v8950, %v8949
        %v8971 = vpack.c.b16 %v8952, %v8951
        %v8972 = vpack.c.b16 %v8954, %v8953
        %v8973 = vpack.c.b16 %v8956, %v8955
        %v8974 = vpack.c.b16 %v8958, %v8957
        %v8976 = vsel %vm387, %v8894, 0
        %v8979 = vsel %vm387, %v8959, 0
        %v8982 = vsel %vm387, %v8960, 0
        %v8985 = vsel %vm387, %v8961, 0
        %v8988 = vsel %vm387, %v8962, 0
        %v8991 = vsel %vm387, %v8963, 0
        %v8994 = vsel %vm387, %v8964, 0
        %v8997 = vsel %vm387, %v8965, 0
        %v9000 = vsel %vm387, %v8966, 0
        %v9003 = vsel %vm387, %v8967, 0
        %v9006 = vsel %vm387, %v8968, 0
        %v9009 = vsel %vm387, %v8969, 0
        %v9012 = vsel %vm387, %v8970, 0
        %v9015 = vsel %vm387, %v8971, 0
        %v9018 = vsel %vm387, %v8972, 0
        %v9021 = vsel %vm387, %v8973, 0
        %v9024 = vsel %vm387, %v8974, 0
        %9026 = vmatprep.subr.bf16.mxu0 0
        %9027 = vmatpush1.bf16.xpose.msra.mxu0 %v8979
        %9028 = vmatprep.subr.bf16.mxu0 0
        %9029 = vmatpush1.bf16.xpose.msra.mxu0 %v8982
        %9030 = vmatprep.subr.bf16.mxu0 0
        %9031 = vmatpush1.bf16.xpose.msra.mxu0 %v8985
        %9032 = vmatprep.subr.bf16.mxu0 0
        %9033 = vmatpush1.bf16.xpose.msra.mxu0 %v8988
        %9034 = vmatprep.subr.bf16.mxu0 0
        %9035 = vmatpush1.bf16.xpose.msra.mxu0 %v8991
        %9036 = vmatprep.subr.bf16.mxu0 0
        %9037 = vmatpush1.bf16.xpose.msra.mxu0 %v8994
        %9038 = vmatprep.subr.bf16.mxu0 0
        %9039 = vmatpush1.bf16.xpose.msra.mxu0 %v8997
        %9040 = vmatprep.subr.bf16.mxu0 0
        %9041 = vmatpush1.bf16.xpose.msra.mxu0 %v9000
        %9042 = vmatprep.subr.bf16.mxu0 0
        %9043 = vmatpush1.bf16.xpose.msra.mxu0 %v9003
        %9044 = vmatprep.subr.bf16.mxu0 0
        %9045 = vmatpush1.bf16.xpose.msra.mxu0 %v9006
        %9046 = vmatprep.subr.bf16.mxu0 0
        %9047 = vmatpush1.bf16.xpose.msra.mxu0 %v9009
        %9048 = vmatprep.subr.bf16.mxu0 0
        %9049 = vmatpush1.bf16.xpose.msra.mxu0 %v9012
        %9050 = vmatprep.subr.bf16.mxu0 0
        %9051 = vmatpush1.bf16.xpose.msra.mxu0 %v9015
        %9052 = vmatprep.subr.bf16.mxu0 0
        %9053 = vmatpush1.bf16.xpose.msra.mxu0 %v9018
        %9054 = vmatprep.subr.bf16.mxu0 0
        %9055 = vmatpush1.bf16.xpose.msra.mxu0 %v9021
        %9056 = vmatprep.subr.bf16.mxu0 0
        %9057 = vmatpush1.bf16.xpose.msra.mxu0 %v9024
        %9058 = vmatprep.mubr.bf16.mxu0 0
        %9059 = vmatmul.mubr.bf16.gmra.mrb[0].mxu0 %v8976
        %v9060 = vpop.f32.mrb[0].mxu0
        %v9061 = vadd.f32 0.0, %v9060
        %v9062 = vpop.f32.mrb[0].mxu0
        %v9063 = vadd.f32 0.0, %v9062
        %v9064 = vpop.f32.mrb[0].mxu0
        %v9065 = vpop.f32.mrb[0].mxu0
        %9066 = vdwg.mxu0
        %v9067 = vadd.f32 %v8856, %v9061
        %v9068 = vadd.f32 %v8857, %v9063
        %s9069 = sadd.s32 %s8858, 162
        %s9070 = smul.addr %s9069, 4
        %s9071 = scalar_lea.vmem %s222, %s9070
        %v9072 = vld [vmem:[%s9071] sm:$0xf]
        %v9073 = vld [vmem:[%s9071 + $0x8] sm:$0xf]
        %v9074 = vld [vmem:[%s9071 + $0x10] sm:$0xf]
        %v9075 = vld [vmem:[%s9071 + $0x18] sm:$0xf]
        %v9076 = vld [vmem:[%s9071 + $0x20] sm:$0xf]
        %v9077 = vld [vmem:[%s9071 + $0x28] sm:$0xf]
        %v9078 = vld [vmem:[%s9071 + $0x30] sm:$0xf]
        %v9079 = vld [vmem:[%s9071 + $0x38] sm:$0xf]
        %v9080 = vld [vmem:[%s9071 + $0x48] sm:$0xf]
        %v9081 = vld [vmem:[%s9071 + $0x50] sm:$0xf]
        %v9082 = vld [vmem:[%s9071 + $0x58] sm:$0xf]
        %v9083 = vld [vmem:[%s9071 + $0x60] sm:$0xf]
        %v9084 = vld [vmem:[%s9071 + $0x68] sm:$0xf]
        %v9085 = vld [vmem:[%s9071 + $0x70] sm:$0xf]
        %v9086 = vld [vmem:[%s9071 + $0x78] sm:$0xf]
        %v9087 = vld [vmem:[%s9071 + $0x80] sm:$0xf]
        %v9088 = vld [vmem:[%s9071 + $0x90] sm:$0xf]
        %v9089 = vld [vmem:[%s9071 + $0x98] sm:$0xf]
        %v9090 = vld [vmem:[%s9071 + $0xa0] sm:$0xf]
        %v9091 = vld [vmem:[%s9071 + $0xa8] sm:$0xf]
        %v9092 = vld [vmem:[%s9071 + $0xb0] sm:$0xf]
        %v9093 = vld [vmem:[%s9071 + $0xb8] sm:$0xf]
        %v9094 = vld [vmem:[%s9071 + $0xc0] sm:$0xf]
        %v9095 = vld [vmem:[%s9071 + $0xc8] sm:$0xf]
        %v9096 = vld [vmem:[%s9071 + $0xd8] sm:$0xf]
        %v9097 = vld [vmem:[%s9071 + $0xe0] sm:$0xf]
        %v9098 = vld [vmem:[%s9071 + $0xe8] sm:$0xf]
        %v9099 = vld [vmem:[%s9071 + $0xf0] sm:$0xf]
        %v9100 = vld [vmem:[%s9071 + $0xf8] sm:$0xf]
        %v9101 = vld [vmem:[%s9071 + $0x100] sm:$0xf]
        %v9102 = vld [vmem:[%s9071 + $0x108] sm:$0xf]
        %v9103 = vld [vmem:[%s9071 + $0x110] sm:$0xf]
        %s9104 = scalar_lea.vmem %s1, 100
        %v9105 = vld [vmem:[%s9104] sm:$0xf]
        %v9138 = vunpack.c.l.b16 %v9072
        %v9139 = vunpack.c.l.b16 %v9073
        %v9140 = vunpack.c.l.b16 %v9074
        %v9141 = vunpack.c.l.b16 %v9075
        %v9142 = vunpack.c.l.b16 %v9076
        %v9143 = vunpack.c.l.b16 %v9077
        %v9144 = vunpack.c.l.b16 %v9078
        %v9145 = vunpack.c.l.b16 %v9079
        %v9146 = vunpack.c.l.b16 %v9080
        %v9147 = vunpack.c.l.b16 %v9081
        %v9148 = vunpack.c.l.b16 %v9082
        %v9149 = vunpack.c.l.b16 %v9083
        %v9150 = vunpack.c.l.b16 %v9084
        %v9151 = vunpack.c.l.b16 %v9085
        %v9152 = vunpack.c.l.b16 %v9086
        %v9153 = vunpack.c.l.b16 %v9087
        %v9154 = vunpack.c.l.b16 %v9088
        %v9155 = vunpack.c.l.b16 %v9089
        %v9156 = vunpack.c.l.b16 %v9090
        %v9157 = vunpack.c.l.b16 %v9091
        %v9158 = vunpack.c.l.b16 %v9092
        %v9159 = vunpack.c.l.b16 %v9093
        %v9160 = vunpack.c.l.b16 %v9094
        %v9161 = vunpack.c.l.b16 %v9095
        %v9162 = vunpack.c.l.b16 %v9096
        %v9163 = vunpack.c.l.b16 %v9097
        %v9164 = vunpack.c.l.b16 %v9098
        %v9165 = vunpack.c.l.b16 %v9099
        %v9166 = vunpack.c.l.b16 %v9100
        %v9167 = vunpack.c.l.b16 %v9101
        %v9168 = vunpack.c.l.b16 %v9102
        %v9169 = vunpack.c.l.b16 %v9103
        %v9170 = vpack.c.b16 %v9139, %v9138
        %v9171 = vpack.c.b16 %v9141, %v9140
        %v9172 = vpack.c.b16 %v9143, %v9142
        %v9173 = vpack.c.b16 %v9145, %v9144
        %v9174 = vpack.c.b16 %v9147, %v9146
        %v9175 = vpack.c.b16 %v9149, %v9148
        %v9176 = vpack.c.b16 %v9151, %v9150
        %v9177 = vpack.c.b16 %v9153, %v9152
        %v9178 = vpack.c.b16 %v9155, %v9154
        %v9179 = vpack.c.b16 %v9157, %v9156
        %v9180 = vpack.c.b16 %v9159, %v9158
        %v9181 = vpack.c.b16 %v9161, %v9160
        %v9182 = vpack.c.b16 %v9163, %v9162
        %v9183 = vpack.c.b16 %v9165, %v9164
        %v9184 = vpack.c.b16 %v9167, %v9166
        %v9185 = vpack.c.b16 %v9169, %v9168
        %v9187 = vsel %vm387, %v9105, 0
        %v9190 = vsel %vm387, %v9170, 0
        %v9193 = vsel %vm387, %v9171, 0
        %v9196 = vsel %vm387, %v9172, 0
        %v9199 = vsel %vm387, %v9173, 0
        %v9202 = vsel %vm387, %v9174, 0
        %v9205 = vsel %vm387, %v9175, 0
        %v9208 = vsel %vm387, %v9176, 0
        %v9211 = vsel %vm387, %v9177, 0
        %v9214 = vsel %vm387, %v9178, 0
        %v9217 = vsel %vm387, %v9179, 0
        %v9220 = vsel %vm387, %v9180, 0
        %v9223 = vsel %vm387, %v9181, 0
        %v9226 = vsel %vm387, %v9182, 0
        %v9229 = vsel %vm387, %v9183, 0
        %v9232 = vsel %vm387, %v9184, 0
        %v9235 = vsel %vm387, %v9185, 0
        %9237 = vmatprep.subr.bf16.mxu0 0
        %9238 = vmatpush1.bf16.xpose.msra.mxu0 %v9190
        %9239 = vmatprep.subr.bf16.mxu0 0
        %9240 = vmatpush1.bf16.xpose.msra.mxu0 %v9193
        %9241 = vmatprep.subr.bf16.mxu0 0
        %9242 = vmatpush1.bf16.xpose.msra.mxu0 %v9196
        %9243 = vmatprep.subr.bf16.mxu0 0
        %9244 = vmatpush1.bf16.xpose.msra.mxu0 %v9199
        %9245 = vmatprep.subr.bf16.mxu0 0
        %9246 = vmatpush1.bf16.xpose.msra.mxu0 %v9202
        %9247 = vmatprep.subr.bf16.mxu0 0
        %9248 = vmatpush1.bf16.xpose.msra.mxu0 %v9205
        %9249 = vmatprep.subr.bf16.mxu0 0
        %9250 = vmatpush1.bf16.xpose.msra.mxu0 %v9208
        %9251 = vmatprep.subr.bf16.mxu0 0
        %9252 = vmatpush1.bf16.xpose.msra.mxu0 %v9211
        %9253 = vmatprep.subr.bf16.mxu0 0
        %9254 = vmatpush1.bf16.xpose.msra.mxu0 %v9214
        %9255 = vmatprep.subr.bf16.mxu0 0
        %9256 = vmatpush1.bf16.xpose.msra.mxu0 %v9217
        %9257 = vmatprep.subr.bf16.mxu0 0
        %9258 = vmatpush1.bf16.xpose.msra.mxu0 %v9220
        %9259 = vmatprep.subr.bf16.mxu0 0
        %9260 = vmatpush1.bf16.xpose.msra.mxu0 %v9223
        %9261 = vmatprep.subr.bf16.mxu0 0
        %9262 = vmatpush1.bf16.xpose.msra.mxu0 %v9226
        %9263 = vmatprep.subr.bf16.mxu0 0
        %9264 = vmatpush1.bf16.xpose.msra.mxu0 %v9229
        %9265 = vmatprep.subr.bf16.mxu0 0
        %9266 = vmatpush1.bf16.xpose.msra.mxu0 %v9232
        %9267 = vmatprep.subr.bf16.mxu0 0
        %9268 = vmatpush1.bf16.xpose.msra.mxu0 %v9235
        %9269 = vmatprep.mubr.bf16.mxu0 0
        %9270 = vmatmul.mubr.bf16.gmra.mrb[0].mxu0 %v9187
        %v9271 = vpop.f32.mrb[0].mxu0
        %v9272 = vadd.f32 0.0, %v9271
        %v9273 = vpop.f32.mrb[0].mxu0
        %v9274 = vadd.f32 0.0, %v9273
        %v9275 = vpop.f32.mrb[0].mxu0
        %v9276 = vpop.f32.mrb[0].mxu0
        %9277 = vdwg.mxu0
        %v9278 = vadd.f32 %v9067, %v9272
        %v9279 = vadd.f32 %v9068, %v9274
        %v9280 = vld [vmem:[%s8860] sm:$0xf]
        %v9281 = vld [vmem:[%s8860 + $0x4] sm:$0x1]
        %v9282 = vld [vmem:[%s8860 + $0x8] sm:$0xf]
        %v9283 = vld [vmem:[%s8860 + $0xc] sm:$0x1]
        %v9284 = vld [vmem:[%s8860 + $0x10] sm:$0xf]
        %v9285 = vld [vmem:[%s8860 + $0x14] sm:$0x1]
        %v9286 = vld [vmem:[%s8860 + $0x18] sm:$0xf]
        %v9287 = vld [vmem:[%s8860 + $0x1c] sm:$0x1]
        %v9288 = vld [vmem:[%s8860 + $0x20] sm:$0xf]
        %v9289 = vld [vmem:[%s8860 + $0x24] sm:$0x1]
        %v9290 = vld [vmem:[%s8860 + $0x28] sm:$0xf]
        %v9291 = vld [vmem:[%s8860 + $0x2c] sm:$0x1]
        %v9292 = vld [vmem:[%s8860 + $0x30] sm:$0xf]
        %v9293 = vld [vmem:[%s8860 + $0x34] sm:$0x1]
        %v9294 = vld [vmem:[%s8860 + $0x38] sm:$0xf]
        %v9295 = vld [vmem:[%s8860 + $0x3c] sm:$0x1]
        %v9296 = vld [vmem:[%s8860 + $0x48] sm:$0xf]
        %v9297 = vld [vmem:[%s8860 + $0x4c] sm:$0x1]
        %v9298 = vld [vmem:[%s8860 + $0x50] sm:$0xf]
        %v9299 = vld [vmem:[%s8860 + $0x54] sm:$0x1]
        %v9300 = vld [vmem:[%s8860 + $0x58] sm:$0xf]
        %v9301 = vld [vmem:[%s8860 + $0x5c] sm:$0x1]
        %v9302 = vld [vmem:[%s8860 + $0x60] sm:$0xf]
        %v9303 = vld [vmem:[%s8860 + $0x64] sm:$0x1]
        %v9304 = vld [vmem:[%s8860 + $0x68] sm:$0xf]
        %v9305 = vld [vmem:[%s8860 + $0x6c] sm:$0x1]
        %v9306 = vld [vmem:[%s8860 + $0x70] sm:$0xf]
        %v9307 = vld [vmem:[%s8860 + $0x74] sm:$0x1]
        %v9308 = vld [vmem:[%s8860 + $0x78] sm:$0xf]
        %v9309 = vld [vmem:[%s8860 + $0x7c] sm:$0x1]
        %v9310 = vld [vmem:[%s8860 + $0x80] sm:$0xf]
        %v9311 = vld [vmem:[%s8860 + $0x84] sm:$0x1]
        %v9312 = vld [vmem:[%s8860 + $0x90] sm:$0xf]
        %v9313 = vld [vmem:[%s8860 + $0x94] sm:$0x1]
        %v9314 = vld [vmem:[%s8860 + $0x98] sm:$0xf]
        %v9315 = vld [vmem:[%s8860 + $0x9c] sm:$0x1]
        %v9316 = vld [vmem:[%s8860 + $0xa0] sm:$0xf]
        %v9317 = vld [vmem:[%s8860 + $0xa4] sm:$0x1]
        %v9318 = vld [vmem:[%s8860 + $0xa8] sm:$0xf]
        %v9319 = vld [vmem:[%s8860 + $0xac] sm:$0x1]
        %v9320 = vld [vmem:[%s8860 + $0xb0] sm:$0xf]
        %v9321 = vld [vmem:[%s8860 + $0xb4] sm:$0x1]
        %v9322 = vld [vmem:[%s8860 + $0xb8] sm:$0xf]
        %v9323 = vld [vmem:[%s8860 + $0xbc] sm:$0x1]
        %v9324 = vld [vmem:[%s8860 + $0xc0] sm:$0xf]
        %v9325 = vld [vmem:[%s8860 + $0xc4] sm:$0x1]
        %v9326 = vld [vmem:[%s8860 + $0xc8] sm:$0xf]
        %v9327 = vld [vmem:[%s8860 + $0xcc] sm:$0x1]
        %v9328 = vld [vmem:[%s8860 + $0xd8] sm:$0xf]
        %v9329 = vld [vmem:[%s8860 + $0xdc] sm:$0x1]
        %v9330 = vld [vmem:[%s8860 + $0xe0] sm:$0xf]
        %v9331 = vld [vmem:[%s8860 + $0xe4] sm:$0x1]
        %v9332 = vld [vmem:[%s8860 + $0xe8] sm:$0xf]
        %v9333 = vld [vmem:[%s8860 + $0xec] sm:$0x1]
        %v9334 = vld [vmem:[%s8860 + $0xf0] sm:$0xf]
        %v9335 = vld [vmem:[%s8860 + $0xf4] sm:$0x1]
        %v9336 = vld [vmem:[%s8860 + $0xf8] sm:$0xf]
        %v9337 = vld [vmem:[%s8860 + $0xfc] sm:$0x1]
        %v9338 = vld [vmem:[%s8860 + $0x100] sm:$0xf]
        %v9339 = vld [vmem:[%s8860 + $0x104] sm:$0x1]
        %v9340 = vld [vmem:[%s8860 + $0x108] sm:$0xf]
        %v9341 = vld [vmem:[%s8860 + $0x10c] sm:$0x1]
        %v9342 = vld [vmem:[%s8860 + $0x110] sm:$0xf]
        %v9343 = vld [vmem:[%s8860 + $0x114] sm:$0x1]
        %v9345 = vshrl.u32 %v9280, 16
        %v9347 = vrot.slane %v9345, 4
        %v9348 = vshll.u32 %v9280, 16
        %v9350 = vrot.slane %v9348, 5
        %v9351 = vor.u32 %v9347, %v9350
        %v9352 = vrot.slane %v9351, 4
        %v9354 = vshll.u32 %v9281, 16
        %v9356 = vrot.slane %v9354, 5
        %v9357 = vsel %vm718, %v9352, %v9356
        %v9359 = vshrl.u32 %v9282, 16
        %v9361 = vrot.slane %v9359, 4
        %v9362 = vshll.u32 %v9282, 16
        %v9364 = vrot.slane %v9362, 5
        %v9365 = vor.u32 %v9361, %v9364
        %v9366 = vrot.slane %v9365, 4
        %v9368 = vshll.u32 %v9283, 16
        %v9370 = vrot.slane %v9368, 5
        %v9371 = vsel %vm718, %v9366, %v9370
        %v9373 = vshrl.u32 %v9284, 16
        %v9375 = vrot.slane %v9373, 4
        %v9376 = vshll.u32 %v9284, 16
        %v9378 = vrot.slane %v9376, 5
        %v9379 = vor.u32 %v9375, %v9378
        %v9380 = vrot.slane %v9379, 4
        %v9382 = vshll.u32 %v9285, 16
        %v9384 = vrot.slane %v9382, 5
        %v9385 = vsel %vm718, %v9380, %v9384
        %v9387 = vshrl.u32 %v9286, 16
        %v9389 = vrot.slane %v9387, 4
        %v9390 = vshll.u32 %v9286, 16
        %v9392 = vrot.slane %v9390, 5
        %v9393 = vor.u32 %v9389, %v9392
        %v9394 = vrot.slane %v9393, 4
        %v9396 = vshll.u32 %v9287, 16
        %v9398 = vrot.slane %v9396, 5
        %v9399 = vsel %vm718, %v9394, %v9398
        %v9401 = vshrl.u32 %v9288, 16
        %v9403 = vrot.slane %v9401, 4
        %v9404 = vshll.u32 %v9288, 16
        %v9406 = vrot.slane %v9404, 5
        %v9407 = vor.u32 %v9403, %v9406
        %v9408 = vrot.slane %v9407, 4
        %v9410 = vshll.u32 %v9289, 16
        %v9412 = vrot.slane %v9410, 5
        %v9413 = vsel %vm718, %v9408, %v9412
        %v9415 = vshrl.u32 %v9290, 16
        %v9417 = vrot.slane %v9415, 4
        %v9418 = vshll.u32 %v9290, 16
        %v9420 = vrot.slane %v9418, 5
        %v9421 = vor.u32 %v9417, %v9420
        %v9422 = vrot.slane %v9421, 4
        %v9424 = vshll.u32 %v9291, 16
        %v9426 = vrot.slane %v9424, 5
        %v9427 = vsel %vm718, %v9422, %v9426
        %v9429 = vshrl.u32 %v9292, 16
        %v9431 = vrot.slane %v9429, 4
        %v9432 = vshll.u32 %v9292, 16
        %v9434 = vrot.slane %v9432, 5
        %v9435 = vor.u32 %v9431, %v9434
        %v9436 = vrot.slane %v9435, 4
        %v9438 = vshll.u32 %v9293, 16
        %v9440 = vrot.slane %v9438, 5
        %v9441 = vsel %vm718, %v9436, %v9440
        %v9443 = vshrl.u32 %v9294, 16
        %v9445 = vrot.slane %v9443, 4
        %v9446 = vshll.u32 %v9294, 16
        %v9448 = vrot.slane %v9446, 5
        %v9449 = vor.u32 %v9445, %v9448
        %v9450 = vrot.slane %v9449, 4
        %v9452 = vshll.u32 %v9295, 16
        %v9454 = vrot.slane %v9452, 5
        %v9455 = vsel %vm718, %v9450, %v9454
        %v9457 = vshrl.u32 %v9296, 16
        %v9459 = vrot.slane %v9457, 4
        %v9460 = vshll.u32 %v9296, 16
        %v9462 = vrot.slane %v9460, 5
        %v9463 = vor.u32 %v9459, %v9462
        %v9464 = vrot.slane %v9463, 4
        %v9466 = vshll.u32 %v9297, 16
        %v9468 = vrot.slane %v9466, 5
        %v9469 = vsel %vm718, %v9464, %v9468
        %v9471 = vshrl.u32 %v9298, 16
        %v9473 = vrot.slane %v9471, 4
        %v9474 = vshll.u32 %v9298, 16
        %v9476 = vrot.slane %v9474, 5
        %v9477 = vor.u32 %v9473, %v9476
        %v9478 = vrot.slane %v9477, 4
        %v9480 = vshll.u32 %v9299, 16
        %v9482 = vrot.slane %v9480, 5
        %v9483 = vsel %vm718, %v9478, %v9482
        %v9485 = vshrl.u32 %v9300, 16
        %v9487 = vrot.slane %v9485, 4
        %v9488 = vshll.u32 %v9300, 16
        %v9490 = vrot.slane %v9488, 5
        %v9491 = vor.u32 %v9487, %v9490
        %v9492 = vrot.slane %v9491, 4
        %v9494 = vshll.u32 %v9301, 16
        %v9496 = vrot.slane %v9494, 5
        %v9497 = vsel %vm718, %v9492, %v9496
        %v9499 = vshrl.u32 %v9302, 16
        %v9501 = vrot.slane %v9499, 4
        %v9502 = vshll.u32 %v9302, 16
        %v9504 = vrot.slane %v9502, 5
        %v9505 = vor.u32 %v9501, %v9504
        %v9506 = vrot.slane %v9505, 4
        %v9508 = vshll.u32 %v9303, 16
        %v9510 = vrot.slane %v9508, 5
        %v9511 = vsel %vm718, %v9506, %v9510
        %v9513 = vshrl.u32 %v9304, 16
        %v9515 = vrot.slane %v9513, 4
        %v9516 = vshll.u32 %v9304, 16
        %v9518 = vrot.slane %v9516, 5
        %v9519 = vor.u32 %v9515, %v9518
        %v9520 = vrot.slane %v9519, 4
        %v9522 = vshll.u32 %v9305, 16
        %v9524 = vrot.slane %v9522, 5
        %v9525 = vsel %vm718, %v9520, %v9524
        %v9527 = vshrl.u32 %v9306, 16
        %v9529 = vrot.slane %v9527, 4
        %v9530 = vshll.u32 %v9306, 16
        %v9532 = vrot.slane %v9530, 5
        %v9533 = vor.u32 %v9529, %v9532
        %v9534 = vrot.slane %v9533, 4
        %v9536 = vshll.u32 %v9307, 16
        %v9538 = vrot.slane %v9536, 5
        %v9539 = vsel %vm718, %v9534, %v9538
        %v9541 = vshrl.u32 %v9308, 16
        %v9543 = vrot.slane %v9541, 4
        %v9544 = vshll.u32 %v9308, 16
        %v9546 = vrot.slane %v9544, 5
        %v9547 = vor.u32 %v9543, %v9546
        %v9548 = vrot.slane %v9547, 4
        %v9550 = vshll.u32 %v9309, 16
        %v9552 = vrot.slane %v9550, 5
        %v9553 = vsel %vm718, %v9548, %v9552
        %v9555 = vshrl.u32 %v9310, 16
        %v9557 = vrot.slane %v9555, 4
        %v9558 = vshll.u32 %v9310, 16
        %v9560 = vrot.slane %v9558, 5
        %v9561 = vor.u32 %v9557, %v9560
        %v9562 = vrot.slane %v9561, 4
        %v9564 = vshll.u32 %v9311, 16
        %v9566 = vrot.slane %v9564, 5
        %v9567 = vsel %vm718, %v9562, %v9566
        %v9569 = vshrl.u32 %v9312, 16
        %v9571 = vrot.slane %v9569, 4
        %v9572 = vshll.u32 %v9312, 16
        %v9574 = vrot.slane %v9572, 5
        %v9575 = vor.u32 %v9571, %v9574
        %v9576 = vrot.slane %v9575, 4
        %v9578 = vshll.u32 %v9313, 16
        %v9580 = vrot.slane %v9578, 5
        %v9581 = vsel %vm718, %v9576, %v9580
        %v9583 = vshrl.u32 %v9314, 16
        %v9585 = vrot.slane %v9583, 4
        %v9586 = vshll.u32 %v9314, 16
        %v9588 = vrot.slane %v9586, 5
        %v9589 = vor.u32 %v9585, %v9588
        %v9590 = vrot.slane %v9589, 4
        %v9592 = vshll.u32 %v9315, 16
        %v9594 = vrot.slane %v9592, 5
        %v9595 = vsel %vm718, %v9590, %v9594
        %v9597 = vshrl.u32 %v9316, 16
        %v9599 = vrot.slane %v9597, 4
        %v9600 = vshll.u32 %v9316, 16
        %v9602 = vrot.slane %v9600, 5
        %v9603 = vor.u32 %v9599, %v9602
        %v9604 = vrot.slane %v9603, 4
        %v9606 = vshll.u32 %v9317, 16
        %v9608 = vrot.slane %v9606, 5
        %v9609 = vsel %vm718, %v9604, %v9608
        %v9611 = vshrl.u32 %v9318, 16
        %v9613 = vrot.slane %v9611, 4
        %v9614 = vshll.u32 %v9318, 16
        %v9616 = vrot.slane %v9614, 5
        %v9617 = vor.u32 %v9613, %v9616
        %v9618 = vrot.slane %v9617, 4
        %v9620 = vshll.u32 %v9319, 16
        %v9622 = vrot.slane %v9620, 5
        %v9623 = vsel %vm718, %v9618, %v9622
        %v9625 = vshrl.u32 %v9320, 16
        %v9627 = vrot.slane %v9625, 4
        %v9628 = vshll.u32 %v9320, 16
        %v9630 = vrot.slane %v9628, 5
        %v9631 = vor.u32 %v9627, %v9630
        %v9632 = vrot.slane %v9631, 4
        %v9634 = vshll.u32 %v9321, 16
        %v9636 = vrot.slane %v9634, 5
        %v9637 = vsel %vm718, %v9632, %v9636
        %v9639 = vshrl.u32 %v9322, 16
        %v9641 = vrot.slane %v9639, 4
        %v9642 = vshll.u32 %v9322, 16
        %v9644 = vrot.slane %v9642, 5
        %v9645 = vor.u32 %v9641, %v9644
        %v9646 = vrot.slane %v9645, 4
        %v9648 = vshll.u32 %v9323, 16
        %v9650 = vrot.slane %v9648, 5
        %v9651 = vsel %vm718, %v9646, %v9650
        %v9653 = vshrl.u32 %v9324, 16
        %v9655 = vrot.slane %v9653, 4
        %v9656 = vshll.u32 %v9324, 16
        %v9658 = vrot.slane %v9656, 5
        %v9659 = vor.u32 %v9655, %v9658
        %v9660 = vrot.slane %v9659, 4
        %v9662 = vshll.u32 %v9325, 16
        %v9664 = vrot.slane %v9662, 5
        %v9665 = vsel %vm718, %v9660, %v9664
        %v9667 = vshrl.u32 %v9326, 16
        %v9669 = vrot.slane %v9667, 4
        %v9670 = vshll.u32 %v9326, 16
        %v9672 = vrot.slane %v9670, 5
        %v9673 = vor.u32 %v9669, %v9672
        %v9674 = vrot.slane %v9673, 4
        %v9676 = vshll.u32 %v9327, 16
        %v9678 = vrot.slane %v9676, 5
        %v9679 = vsel %vm718, %v9674, %v9678
        %v9681 = vshrl.u32 %v9328, 16
        %v9683 = vrot.slane %v9681, 4
        %v9684 = vshll.u32 %v9328, 16
        %v9686 = vrot.slane %v9684, 5
        %v9687 = vor.u32 %v9683, %v9686
        %v9688 = vrot.slane %v9687, 4
        %v9690 = vshll.u32 %v9329, 16
        %v9692 = vrot.slane %v9690, 5
        %v9693 = vsel %vm718, %v9688, %v9692
        %v9695 = vshrl.u32 %v9330, 16
        %v9697 = vrot.slane %v9695, 4
        %v9698 = vshll.u32 %v9330, 16
        %v9700 = vrot.slane %v9698, 5
        %v9701 = vor.u32 %v9697, %v9700
        %v9702 = vrot.slane %v9701, 4
        %v9704 = vshll.u32 %v9331, 16
        %v9706 = vrot.slane %v9704, 5
        %v9707 = vsel %vm718, %v9702, %v9706
        %v9709 = vshrl.u32 %v9332, 16
        %v9711 = vrot.slane %v9709, 4
        %v9712 = vshll.u32 %v9332, 16
        %v9714 = vrot.slane %v9712, 5
        %v9715 = vor.u32 %v9711, %v9714
        %v9716 = vrot.slane %v9715, 4
        %v9718 = vshll.u32 %v9333, 16
        %v9720 = vrot.slane %v9718, 5
        %v9721 = vsel %vm718, %v9716, %v9720
        %v9723 = vshrl.u32 %v9334, 16
        %v9725 = vrot.slane %v9723, 4
        %v9726 = vshll.u32 %v9334, 16
        %v9728 = vrot.slane %v9726, 5
        %v9729 = vor.u32 %v9725, %v9728
        %v9730 = vrot.slane %v9729, 4
        %v9732 = vshll.u32 %v9335, 16
        %v9734 = vrot.slane %v9732, 5
        %v9735 = vsel %vm718, %v9730, %v9734
        %v9737 = vshrl.u32 %v9336, 16
        %v9739 = vrot.slane %v9737, 4
        %v9740 = vshll.u32 %v9336, 16
        %v9742 = vrot.slane %v9740, 5
        %v9743 = vor.u32 %v9739, %v9742
        %v9744 = vrot.slane %v9743, 4
        %v9746 = vshll.u32 %v9337, 16
        %v9748 = vrot.slane %v9746, 5
        %v9749 = vsel %vm718, %v9744, %v9748
        %v9751 = vshrl.u32 %v9338, 16
        %v9753 = vrot.slane %v9751, 4
        %v9754 = vshll.u32 %v9338, 16
        %v9756 = vrot.slane %v9754, 5
        %v9757 = vor.u32 %v9753, %v9756
        %v9758 = vrot.slane %v9757, 4
        %v9760 = vshll.u32 %v9339, 16
        %v9762 = vrot.slane %v9760, 5
        %v9763 = vsel %vm718, %v9758, %v9762
        %v9765 = vshrl.u32 %v9340, 16
        %v9767 = vrot.slane %v9765, 4
        %v9768 = vshll.u32 %v9340, 16
        %v9770 = vrot.slane %v9768, 5
        %v9771 = vor.u32 %v9767, %v9770
        %v9772 = vrot.slane %v9771, 4
        %v9774 = vshll.u32 %v9341, 16
        %v9776 = vrot.slane %v9774, 5
        %v9777 = vsel %vm718, %v9772, %v9776
        %v9779 = vshrl.u32 %v9342, 16
        %v9781 = vrot.slane %v9779, 4
        %v9782 = vshll.u32 %v9342, 16
        %v9784 = vrot.slane %v9782, 5
        %v9785 = vor.u32 %v9781, %v9784
        %v9786 = vrot.slane %v9785, 4
        %v9788 = vshll.u32 %v9343, 16
        %v9790 = vrot.slane %v9788, 5
        %v9791 = vsel %vm718, %v9786, %v9790
        %s9792 = scalar_lea.vmem %s1, 104
        %v9793 = vld [vmem:[%s9792] sm:$0xf]
        %v9794 = vunpack.c.l.b16 %v9357
        %v9795 = vunpack.c.l.b16 %v9371
        %v9796 = vunpack.c.l.b16 %v9385
        %v9797 = vunpack.c.l.b16 %v9399
        %v9798 = vunpack.c.l.b16 %v9413
        %v9799 = vunpack.c.l.b16 %v9427
        %v9800 = vunpack.c.l.b16 %v9441
        %v9801 = vunpack.c.l.b16 %v9455
        %v9802 = vunpack.c.l.b16 %v9469
        %v9803 = vunpack.c.l.b16 %v9483
        %v9804 = vunpack.c.l.b16 %v9497
        %v9805 = vunpack.c.l.b16 %v9511
        %v9806 = vunpack.c.l.b16 %v9525
        %v9807 = vunpack.c.l.b16 %v9539
        %v9808 = vunpack.c.l.b16 %v9553
        %v9809 = vunpack.c.l.b16 %v9567
        %v9810 = vunpack.c.l.b16 %v9581
        %v9811 = vunpack.c.l.b16 %v9595
        %v9812 = vunpack.c.l.b16 %v9609
        %v9813 = vunpack.c.l.b16 %v9623
        %v9814 = vunpack.c.l.b16 %v9637
        %v9815 = vunpack.c.l.b16 %v9651
        %v9816 = vunpack.c.l.b16 %v9665
        %v9817 = vunpack.c.l.b16 %v9679
        %v9818 = vunpack.c.l.b16 %v9693
        %v9819 = vunpack.c.l.b16 %v9707
        %v9820 = vunpack.c.l.b16 %v9721
        %v9821 = vunpack.c.l.b16 %v9735
        %v9822 = vunpack.c.l.b16 %v9749
        %v9823 = vunpack.c.l.b16 %v9763
        %v9824 = vunpack.c.l.b16 %v9777
        %v9825 = vunpack.c.l.b16 %v9791
        %v9826 = vpack.c.b16 %v9795, %v9794
        %v9827 = vpack.c.b16 %v9797, %v9796
        %v9828 = vpack.c.b16 %v9799, %v9798
        %v9829 = vpack.c.b16 %v9801, %v9800
        %v9830 = vpack.c.b16 %v9803, %v9802
        %v9831 = vpack.c.b16 %v9805, %v9804
        %v9832 = vpack.c.b16 %v9807, %v9806
        %v9833 = vpack.c.b16 %v9809, %v9808
        %v9834 = vpack.c.b16 %v9811, %v9810
        %v9835 = vpack.c.b16 %v9813, %v9812
        %v9836 = vpack.c.b16 %v9815, %v9814
        %v9837 = vpack.c.b16 %v9817, %v9816
        %v9838 = vpack.c.b16 %v9819, %v9818
        %v9839 = vpack.c.b16 %v9821, %v9820
        %v9840 = vpack.c.b16 %v9823, %v9822
        %v9841 = vpack.c.b16 %v9825, %v9824
        %v9843 = vsel %vm387, %v9793, 0
        %v9846 = vsel %vm387, %v9826, 0
        %v9849 = vsel %vm387, %v9827, 0
        %v9852 = vsel %vm387, %v9828, 0
        %v9855 = vsel %vm387, %v9829, 0
        %v9858 = vsel %vm387, %v9830, 0
        %v9861 = vsel %vm387, %v9831, 0
        %v9864 = vsel %vm387, %v9832, 0
        %v9867 = vsel %vm387, %v9833, 0
        %v9870 = vsel %vm387, %v9834, 0
        %v9873 = vsel %vm387, %v9835, 0
        %v9876 = vsel %vm387, %v9836, 0
        %v9879 = vsel %vm387, %v9837, 0
        %v9882 = vsel %vm387, %v9838, 0
        %v9885 = vsel %vm387, %v9839, 0
        %v9888 = vsel %vm387, %v9840, 0
        %v9891 = vsel %vm387, %v9841, 0
        %9893 = vmatprep.subr.bf16.mxu0 0
        %9894 = vmatpush1.bf16.xpose.msra.mxu0 %v9846
        %9895 = vmatprep.subr.bf16.mxu0 0
        %9896 = vmatpush1.bf16.xpose.msra.mxu0 %v9849
        %9897 = vmatprep.subr.bf16.mxu0 0
        %9898 = vmatpush1.bf16.xpose.msra.mxu0 %v9852
        %9899 = vmatprep.subr.bf16.mxu0 0
        %9900 = vmatpush1.bf16.xpose.msra.mxu0 %v9855
        %9901 = vmatprep.subr.bf16.mxu0 0
        %9902 = vmatpush1.bf16.xpose.msra.mxu0 %v9858
        %9903 = vmatprep.subr.bf16.mxu0 0
        %9904 = vmatpush1.bf16.xpose.msra.mxu0 %v9861
        %9905 = vmatprep.subr.bf16.mxu0 0
        %9906 = vmatpush1.bf16.xpose.msra.mxu0 %v9864
        %9907 = vmatprep.subr.bf16.mxu0 0
        %9908 = vmatpush1.bf16.xpose.msra.mxu0 %v9867
        %9909 = vmatprep.subr.bf16.mxu0 0
        %9910 = vmatpush1.bf16.xpose.msra.mxu0 %v9870
        %9911 = vmatprep.subr.bf16.mxu0 0
        %9912 = vmatpush1.bf16.xpose.msra.mxu0 %v9873
        %9913 = vmatprep.subr.bf16.mxu0 0
        %9914 = vmatpush1.bf16.xpose.msra.mxu0 %v9876
        %9915 = vmatprep.subr.bf16.mxu0 0
        %9916 = vmatpush1.bf16.xpose.msra.mxu0 %v9879
        %9917 = vmatprep.subr.bf16.mxu0 0
        %9918 = vmatpush1.bf16.xpose.msra.mxu0 %v9882
        %9919 = vmatprep.subr.bf16.mxu0 0
        %9920 = vmatpush1.bf16.xpose.msra.mxu0 %v9885
        %9921 = vmatprep.subr.bf16.mxu0 0
        %9922 = vmatpush1.bf16.xpose.msra.mxu0 %v9888
        %9923 = vmatprep.subr.bf16.mxu0 0
        %9924 = vmatpush1.bf16.xpose.msra.mxu0 %v9891
        %9925 = vmatprep.mubr.bf16.mxu0 0
        %9926 = vmatmul.mubr.bf16.gmra.mrb[0].mxu0 %v9843
        %v9927 = vpop.f32.mrb[0].mxu0
        %v9928 = vadd.f32 0.0, %v9927
        %v9929 = vpop.f32.mrb[0].mxu0
        %v9930 = vadd.f32 0.0, %v9929
        %v9931 = vpop.f32.mrb[0].mxu0
        %v9932 = vpop.f32.mrb[0].mxu0
        %9933 = vdwg.mxu0
        %v9934 = vadd.f32 %v9278, %v9928
        %v9935 = vadd.f32 %v9279, %v9930
        %v9936 = vld [vmem:[%s2] sm:$0xff]
        %9938 = vset.pattern.permute.xlu0 0
        %9939 = vperm.xlu0 %9938, %v9936
        %v9940 = vpop.permute.xlu0 %9939
        %v9942 = vadd.f32 %v9934, %v9940
        %v9943 = vadd.f32 %v9935, %v9940
        %9944 = vst [vmem:[%s207] sm:$0xff] %v9942
        %9945 = vst [vmem:[%s207 + $0x8] sm:$0xff] %v9943
        %v9946 = vadd.f32 %v9942, %v9943
        %9947 = vadd.xlane.f32.xlu0 %v9946
        %v9948 = vpop.xlane.xlu0 %9947
        %v9949 = vmul.f32 %v9942, %v9942
        %v9950 = vmul.f32 %v9943, %v9943
        %v9951 = vadd.f32 %v9949, %v9950
        %9952 = vadd.xlane.f32.xlu0 %v9951
        %v9953 = vpop.xlane.xlu0 %9952
        %vm9954 = vcmask 7168
        %v9955 = vsel %vm9954, %v9948, %v9953
        %vm9956 = vcmask 15360
        %9957 = vst.msk [vmem:[%s231] sm:$0xff] %vm9956, %v9955
        %s9958 = sand.u32 %s109, 1
        %s9959 = scalar_lea.sflag [#allocation3], %s9958
        %s9960 = sand.u32 %s109, 1
        %s9961 = smul.addr %s9960, 16
        %s9962 = scalar_lea.vmem [#allocation2], %s9961
        %p9963 = scmp.lt.s32.totalorder %s23, 1
        %s9964 = scalar_select %p9963, %s23, 1
        %p9965 = scmp.lt.s32.totalorder %s24, 1
        %s9966 = scalar_select %p9965, %s24, 1
        %s9967 = smul.addr %s9964, 2
        %s9968 = sadd.s32 %s9966, %s9967
        %s9969 = smul.addr %s9968, 8
        %s9970 = scalar_lea.vmem %s4, %s9969
        // Predicated region
        $region33: #{tpu_custom_call.1} parent=31 // pred_check
          %p9971 = pneg %p119
        $region34: #{tpu_custom_call.1} parent=31 // pred_check_branch
          %9973 = sbr.rel (%p9971) target = $region36
        $region35: #{tpu_custom_call.1} parent=31 // pred_region
          %s9974 = smul.u32 2, %s24
          %s9976 = ssub.s32 256, 256
          %9977 = vsyncadd %s9959, %s9976
          %s9978 = smul.addr %s23, 4
          %s9979 = sadd.s32 %s9974, %s9978
          %s9980 = smul.addr %s9979, 128
          %s9981 = scalar_lea.hbm %s3, %s9980
          %s9983 = sshll.u32 %s9962, 4
          %s9984 = int_to_ptr.vmem [resolvable:$true] %s9983
          %9986 = dma.vmem_to_hbm [thread:$0]  %s9984, 256, %s9981, %s9959
        $region36: #{tpu_custom_call.1} parent=31 // pred_fallthru
          _
        // Predicated region
        $region37: #{tpu_custom_call.1} parent=31 // pred_check
          %p9987 = pneg %p147
        $region38: #{tpu_custom_call.1} parent=31 // pred_check_branch
          %9989 = sbr.rel (%p9987) target = $region40
        $region39: #{tpu_custom_call.1} parent=31 // pred_region
          _
        $region40: #{tpu_custom_call.1} parent=31 // pred_fallthru
          _
      $region32: #{tpu_custom_call.1} parent=5 // pred_fallthru
        _
      %p9990 = scmp.le.s32.totalorder 2, %s14
      // Predicated region
      $region41: #{tpu_custom_call.1} parent=5 // pred_check
        %p9991 = pneg %p9990
      $region42: #{tpu_custom_call.1} parent=5 // pred_check_branch
        %9993 = sbr.rel (%p9991) target = $region44
      $region43: #{tpu_custom_call.1} parent=5 // pred_region
        %s9994 = ssub.s32 %s14, 2
        // Predicated region
        $region45: #{tpu_custom_call.1} parent=43 // pred_check
          %p9995 = pneg %p125
        $region46: #{tpu_custom_call.1} parent=43 // pred_check_branch
          %9997 = sbr.rel (%p9995) target = $region48
        $region47: #{tpu_custom_call.1} parent=43 // pred_region
          %s9998 = sand.u32 %s110, 1
          %s9999 = scalar_lea.sflag [#allocation3], %s9998
          %s10000 = sand.u32 %s110, 1
          %s10001 = smul.addr %s10000, 16
          %s10002 = scalar_lea.vmem [#allocation2], %s10001
          %10003 = dma.done %s9999, 256
        $region48: #{tpu_custom_call.1} parent=43 // pred_fallthru
          _
        // Predicated region
        $region49: #{tpu_custom_call.1} parent=43 // pred_check
          %p10004 = pneg %p153
        $region50: #{tpu_custom_call.1} parent=43 // pred_check_branch
          %10006 = sbr.rel (%p10004) target = $region52
        $region51: #{tpu_custom_call.1} parent=43 // pred_region
          %p10007 = scmp.lt.s32.totalorder %s25, 1
          %s10008 = scalar_select %p10007, %s25, 1
          %p10009 = scmp.lt.s32.totalorder %s26, 1
          %s10010 = scalar_select %p10009, %s26, 1
          %s10011 = smul.addr %s10008, 2
          %s10012 = sadd.s32 %s10010, %s10011
          %s10013 = smul.addr %s10012, 8
          %s10014 = scalar_lea.vmem %s4, %s10013
        $region52: #{tpu_custom_call.1} parent=43 // pred_fallthru
          _
      $region44: #{tpu_custom_call.1} parent=5 // pred_fallthru
        _
    $region6: #{tpu_custom_call.1} parent=1 // loop_footer
      %s18 = sadd.s32 1, %s14
    $region7: #{tpu_custom_call.1} parent=1 // loop_footer_branch
      %13 = sbr.rel target = $region3
    $region8: #{tpu_custom_call.1} parent=1 // loop_exit
      _
    %10015 = vsyncpa [#allocation3], 1
    %s10016 = scalar_lea.sflag [#allocation3], 1
    %10017 = vsyncpa %s10016, 1

</llo_original>
